<compile_context>
chip_gen: v7x
topology: tpu7x:2x2x1
jax: 0.10.0
libtpu: 0.0.40
codegen_flags: <defaults>
</compile_context>

<pallas_src>
import functools
import math

import jax
import jax.numpy as jnp
from jax.experimental import pallas as pl
from jax.experimental.pallas import tpu as pltpu

_BF16 = jnp.bfloat16


# ---------------------------------------------------------------------------
# In-kernel helpers (traced inside the Pallas kernels)
# ---------------------------------------------------------------------------

def _mm(a, b):
    """MXU matmul: activations cast to bf16, weights already bf16, f32 acc."""
    return jnp.dot(a.astype(_BF16), b, preferred_element_type=jnp.float32)


def _add_layernorm(x, res, g, b, inv_d):
    """LayerNorm(x + res) over the REAL features (fixed 1/d_model divisor).

    Padded lanes of x / res are zero by construction; gamma/beta are
    zero-padded, so padded lanes of the result stay exactly zero.
    """
    y = x + res
    mean = jnp.sum(y, axis=-1, keepdims=True) * inv_d
    var = jnp.sum(y * y, axis=-1, keepdims=True) * inv_d - mean * mean
    return (y - mean) * jax.lax.rsqrt(jnp.maximum(var, 0.0) + 1e-5) * g + b


def _mha(q, k, v, mask_add, wo_ref, bo_ref, *, n_head, d_real):
    """Multi-head attention + ONE fused output projection, fully in VMEM.

    q: [B, Sq, Dp], k/v: [B, Sk, Dp] (padded lanes are zero),
    mask_add: [B, Sq, Sk] additive (-1e9 on masked), wo: [Dp, Dp] bf16.

    Heads are selected with a 0/1 lane mask (no sub-128 lane slicing); the
    per-head context is masked-accumulated into a single [B, Sq, Dp] buffer,
    then projected with a single K=Dp matmul.
    """
    Bb, Sq, Dp = q.shape
    dh = d_real // n_head
    scale = 1.0 / math.sqrt(dh)

    kb = k.astype(_BF16)
    vb = v.astype(_BF16)
    lane = jax.lax.broadcasted_iota(jnp.int32, (1, Dp), 1)       # [1, Dp]
    ctx = jnp.zeros((Bb, Sq, Dp), jnp.float32)

    for h in range(n_head):                                      # static unroll
        hm = ((lane >= h * dh) & (lane < (h + 1) * dh)).astype(jnp.float32)
        s = jnp.einsum('bqd,bkd->bqk', (q * hm).astype(_BF16), kb,
                       preferred_element_type=jnp.float32) * scale + mask_add
        s = s - jnp.max(s, axis=-1, keepdims=True)
        p = jnp.exp(s)
        p = p * pl.reciprocal(jnp.sum(p, axis=-1, keepdims=True), approx=True)
        pv = jnp.einsum('bqk,bkd->bqd', p.astype(_BF16), vb,
                        preferred_element_type=jnp.float32)
        ctx = ctx + hm * pv                                      # lane-masked concat

    out = _mm(ctx.reshape(Bb * Sq, Dp), wo_ref[...]) + bo_ref[...]
    return out.reshape(Bb, Sq, Dp)


# ---------------------------------------------------------------------------
# Fused Pallas kernels
# ---------------------------------------------------------------------------

def _encoder_stack_kernel(x_ref, mask_ref,
                          a_wqkv, a_bqkv, a_wo, a_bo, a_lg, a_lb,
                          f_w1, f_b1, f_w2, f_b2, f_lg, f_lb,
                          o_ref, *, n_head, d_real):
    """grid = (batch_blocks, num_layers); o_ref is the resident activation carry."""
    layer = pl.program_id(1)

    @pl.when(layer == 0)
    def _():
        o_ref[...] = x_ref[...]

    x = o_ref[...]                                               # [Bb, S, Dp]
    Bb, S, Dp = x.shape
    inv_d = 1.0 / d_real

    # ---- self-attention (fused QKV, one matmul) ----
    x2 = x.reshape(Bb * S, Dp)
    qkv = _mm(x2, a_wqkv[...]) + a_bqkv[...]                     # [Bb*S, 3*Dp]
    q = qkv[:, :Dp].reshape(Bb, S, Dp)
    k = qkv[:, Dp:2 * Dp].reshape(Bb, S, Dp)
    v = qkv[:, 2 * Dp:].reshape(Bb, S, Dp)
    attn = _mha(q, k, v, mask_ref[...], a_wo, a_bo,
                n_head=n_head, d_real=d_real)
    h = _add_layernorm(attn, x, a_lg[...], a_lb[...], inv_d)

    # ---- feed forward ----
    # TODO(synk): nn.Dropout(0.3) between the two FFN Linears is eval-mode identity.
    f = jnp.maximum(_mm(h.reshape(Bb * S, Dp), f_w1[...]) + f_b1[...], 0.0)
    f = (_mm(f, f_w2[...]) + f_b2[...]).reshape(Bb, S, Dp)
    o_ref[...] = _add_layernorm(f, h, f_lg[...], f_lb[...], inv_d)


def _decoder_stack_kernel(x_ref, enc_ref, smask_ref, cmask_ref,
                          s_wqkv, s_bqkv, s_wo, s_bo, s_lg, s_lb,
                          c_wq, c_bq, c_wkv, c_bkv, c_wo, c_bo, c_lg, c_lb,
                          f_w1, f_b1, f_w2, f_b2, f_lg, f_lb,
                          wgen,
                          logits_ref, carry_ref, kv_ref, *, n_head, d_real):
    """grid = (batch_blocks, num_layers); carry_ref (VMEM scratch) is the
    activation carry; the generator is fused into the last layer step."""
    layer = pl.program_id(1)
    Bb, St, Dp = carry_ref.shape
    Ss = enc_ref.shape[1]
    inv_d = 1.0 / d_real

    @pl.when(layer == 0)
    def _():
        carry_ref[...] = x_ref[...]
        # Cross-attention K/V depend only on the encoder output and the shared
        # (deepcopy'd) weights -> project once, cache in VMEM for all layers.
        enc2 = enc_ref[...].reshape(Bb * Ss, Dp)
        kv_ref[...] = (_mm(enc2, c_wkv[...]) + c_bkv[...]).reshape(Bb, Ss, 2 * Dp)

    x = carry_ref[...]                                           # [Bb, St, Dp]

    # ---- masked self-attention (fused QKV) ----
    qkv = _mm(x.reshape(Bb * St, Dp), s_wqkv[...]) + s_bqkv[...]
    q = qkv[:, :Dp].reshape(Bb, St, Dp)
    k = qkv[:, Dp:2 * Dp].reshape(Bb, St, Dp)
    v = qkv[:, 2 * Dp:].reshape(Bb, St, Dp)
    attn = _mha(q, k, v, smask_ref[...], s_wo, s_bo,
                n_head=n_head, d_real=d_real)
    h1 = _add_layernorm(attn, x, s_lg[...], s_lb[...], inv_d)

    # ---- encoder-decoder cross-attention (cached K/V) ----
    qc = (_mm(h1.reshape(Bb * St, Dp), c_wq[...]) + c_bq[...]).reshape(Bb, St, Dp)
    kv = kv_ref[...]
    attn2 = _mha(qc, kv[..., :Dp], kv[..., Dp:], cmask_ref[...],
                 c_wo, c_bo, n_head=n_head, d_real=d_real)
    h2 = _add_layernorm(attn2, h1, c_lg[...], c_lb[...], inv_d)

    # ---- feed forward ----
    f = jnp.maximum(_mm(h2.reshape(Bb * St, Dp), f_w1[...]) + f_b1[...], 0.0)
    f = (_mm(f, f_w2[...]) + f_b2[...]).reshape(Bb, St, Dp)
    out = _add_layernorm(f, h2, f_lg[...], f_lb[...], inv_d)
    carry_ref[...] = out

    # ---- fused generator (weight-tied Linear, no bias) on the last layer ----
    @pl.when(layer == pl.num_programs(1) - 1)
    def _():
        Vp = logits_ref.shape[-1]
        logits_ref[...] = _mm(out.reshape(Bb * St, Dp),
                              wgen[...]).reshape(Bb, St, Vp)


# ---------------------------------------------------------------------------
# pallas_call wrappers
# ---------------------------------------------------------------------------

def _weight_spec(arr):
    nd = arr.ndim
    return pl.BlockSpec(arr.shape, lambda nb, l: (0,) * nd)


def _act_spec(arr, bb):
    nd = arr.ndim
    return pl.BlockSpec((bb,) + arr.shape[1:],
                        lambda nb, l: (nb,) + (0,) * (nd - 1))


def encoder_stack(x, mask_add, p, *, n_head, d_real, num_layers, batch_blocks=1):
    B, S, Dp = x.shape
    Bb = B // batch_blocks
    a, f = p["attn"], p["ffn"]
    args = (x, mask_add,
            a["wqkv"], a["bqkv"], a["wo"], a["bo"], a["ln_g"], a["ln_b"],
            f["w1"], f["b1"], f["w2"], f["b2"], f["ln_g"], f["ln_b"])
    in_specs = ([_act_spec(x, Bb), _act_spec(mask_add, Bb)]
                + [_weight_spec(w) for w in args[2:]])
    kernel = functools.partial(_encoder_stack_kernel, n_head=n_head, d_real=d_real)
    return pl.pallas_call(
        kernel,
        out_shape=jax.ShapeDtypeStruct((B, S, Dp), jnp.float32),
        grid=(batch_blocks, num_layers),
        in_specs=in_specs,
        out_specs=pl.BlockSpec((Bb, S, Dp), lambda nb, l: (nb, 0, 0)),
        compiler_params=pltpu.CompilerParams(
            dimension_semantics=("parallel", "arbitrary")),
    )(*args)


def decoder_stack_with_generator(dec_x, enc_out, self_mask_add, cross_mask_add,
                                 p, wgen, *, n_head, d_real, num_layers,
                                 batch_blocks=1):
    B, St, Dp = dec_x.shape
    Ss = enc_out.shape[1]
    Vp = wgen.shape[1]
    Bb = B // batch_blocks
    sa, ca, ff = p["self_attn"], p["cross_attn"], p["ffn"]
    args = (dec_x, enc_out, self_mask_add, cross_mask_add,
            sa["wqkv"], sa["bqkv"], sa["wo"], sa["bo"], sa["ln_g"], sa["ln_b"],
            ca["wq"], ca["bq"], ca["wkv"], ca["bkv"], ca["wo"], ca["bo"],
            ca["ln_g"], ca["ln_b"],
            ff["w1"], ff["b1"], ff["w2"], ff["b2"], ff["ln_g"], ff["ln_b"],
            wgen)
    in_specs = ([_act_spec(dec_x, Bb), _act_spec(enc_out, Bb),
                 _act_spec(self_mask_add, Bb), _act_spec(cross_mask_add, Bb)]
                + [_weight_spec(w) for w in args[4:]])
    kernel = functools.partial(_decoder_stack_kernel, n_head=n_head, d_real=d_real)
    return pl.pallas_call(
        kernel,
        out_shape=jax.ShapeDtypeStruct((B, St, Vp), jnp.float32),
        grid=(batch_blocks, num_layers),
        in_specs=in_specs,
        out_specs=pl.BlockSpec((Bb, St, Vp), lambda nb, l: (nb, 0, 0)),
        scratch_shapes=[pltpu.VMEM((Bb, St, Dp), jnp.float32),       # carry
                        pltpu.VMEM((Bb, Ss, 2 * Dp), jnp.float32)],  # cached cross K/V
        compiler_params=pltpu.CompilerParams(
            dimension_semantics=("parallel", "arbitrary")),
    )(*args)


# ---------------------------------------------------------------------------
# Model glue (plain JAX: embedding gather, positional encoding, masks)
# ---------------------------------------------------------------------------

def _round_up(x, m):
    return ((x + m - 1) // m) * m


def positional_encoding(seq_len, d_model, d_pad):
    pos = jnp.arange(seq_len, dtype=jnp.float32)[:, None]
    _2i = jnp.arange(0, d_model, 2, dtype=jnp.float32)
    div = jnp.exp(_2i * (-math.log(10000.0) / d_model))
    enc = jnp.zeros((seq_len, d_pad), jnp.float32)
    enc = enc.at[:, 0:d_model:2].set(jnp.sin(pos * div))
    enc = enc.at[:, 1:d_model:2].set(jnp.cos(pos * div))
    return enc


def pad_mask_additive(len_q, seq_k, mask_token_id):
    """Additive mask [B, len_q, len_k]: -1e9 where key token is padding."""
    B, len_k = seq_k.shape
    pad = (seq_k == mask_token_id)[:, None, :]
    m = jnp.where(pad, jnp.float32(-1e9), jnp.float32(0.0))
    return jnp.broadcast_to(m, (B, len_q, len_k))


def transformer_forward(prep, enc_tokens, dec_tokens, *, n_head, num_layers,
                        mask_token_id, d_model, vocab_size, batch_blocks=1):
    emb_pad = prep["emb_pad"]                                    # [V, Dp] f32
    Dp = emb_pad.shape[1]
    B, src_m = enc_tokens.shape
    _, tar_m = dec_tokens.shape

    # ----- Encoder (all layers in one fused pallas_call) -----
    enc_x = jnp.take(emb_pad, enc_tokens, axis=0) + positional_encoding(src_m, d_model, Dp)[None]
    enc_mask_add = pad_mask_additive(src_m, enc_tokens, mask_token_id)
    enc_out = encoder_stack(enc_x, enc_mask_add, prep["enc_layer"],
                            n_head=n_head, d_real=d_model,
                            num_layers=num_layers, batch_blocks=batch_blocks)

    # ----- Decoder + fused generator (one pallas_call) -----
    dec_x = jnp.take(emb_pad, dec_tokens, axis=0) + positional_encoding(tar_m, d_model, Dp)[None]
    pad_m = (dec_tokens == mask_token_id).astype(jnp.float32)[:, None, :]   # [B,1,T]
    sub_m = jnp.triu(jnp.ones((tar_m, tar_m), jnp.float32), 1)[None]        # [1,T,T]
    self_mask_add = jnp.where((pad_m + sub_m) > 0,
                              jnp.float32(-1e9), jnp.float32(0.0))          # [B,T,T]
    cross_mask_add = pad_mask_additive(tar_m, enc_tokens, mask_token_id)    # [B,T,Ss]

    logits_pad = decoder_stack_with_generator(
        dec_x, enc_out, self_mask_add, cross_mask_add,
        prep["dec_layer"], prep["wgen"],
        n_head=n_head, d_real=d_model, num_layers=num_layers,
        batch_blocks=batch_blocks)

    return logits_pad.reshape(B * tar_m, -1)[:, :vocab_size]     # [B*tar_m, V]


# ---------------------------------------------------------------------------
# Parameter initialization + one-time layout preparation (padding, bf16 cast)
# ---------------------------------------------------------------------------

def _init_linear(key, din, dout, scale=0.05):
    k1, k2 = jax.random.split(key)
    return (jax.random.normal(k1, (din, dout), jnp.float32) * scale,
            jax.random.normal(k2, (dout,), jnp.float32) * scale)


def _init_attn(key, d):
    ks = jax.random.split(key, 4)
    wq, bq = _init_linear(ks[0], d, d)
    wk, bk = _init_linear(ks[1], d, d)
    wv, bv = _init_linear(ks[2], d, d)
    wo, bo = _init_linear(ks[3], d, d)
    return dict(wq=wq, bq=bq, wk=wk, bk=bk, wv=wv, bv=bv, wo=wo, bo=bo,
                ln_g=jnp.ones((d,), jnp.float32), ln_b=jnp.zeros((d,), jnp.float32))


def _init_ffn(key, d):
    k1, k2 = jax.random.split(key)
    w1, b1 = _init_linear(k1, d, d)
    w2, b2 = _init_linear(k2, d, d)
    return dict(w1=w1, b1=b1, w2=w2, b2=b2,
                ln_g=jnp.ones((d,), jnp.float32), ln_b=jnp.zeros((d,), jnp.float32))


def init_params(key, vocab_size, d_model):
    k_emb, k_enc_a, k_enc_f, k_dec_s, k_dec_c, k_dec_f = jax.random.split(key, 6)
    embedding = jax.random.normal(k_emb, (vocab_size, d_model), jnp.float32) * 0.05
    enc_layer = dict(attn=_init_attn(k_enc_a, d_model), ffn=_init_ffn(k_enc_f, d_model))
    dec_layer = dict(self_attn=_init_attn(k_dec_s, d_model),
                     cross_attn=_init_attn(k_dec_c, d_model),
                     ffn=_init_ffn(k_dec_f, d_model))
    return dict(embedding=embedding, enc_layer=enc_layer, dec_layer=dec_layer)


def _pad_to(w, rows, cols, dtype):
    out = jnp.zeros((rows, cols), dtype)
    return out.at[:w.shape[0], :w.shape[1]].set(w.astype(dtype))


def prepare_params(params, d_model, vocab_size):
    """One-time (outside jit) layout prep: zero-pad d_model -> 128 lanes,
    fuse QKV / KV, cast weight matrices to bf16 (biases / LN stay f32)."""
    Dp = _round_up(d_model, 128)
    Vp = _round_up(vocab_size, 128)
    d = d_model

    def prep_ln(g, b):
        return (_pad_to(g.reshape(1, -1), 1, Dp, jnp.float32),
                _pad_to(b.reshape(1, -1), 1, Dp, jnp.float32))

    def fuse_pad(ws_bs):
        n = len(ws_bs)
        w_f = jnp.zeros((Dp, n * Dp), jnp.bfloat16)
        b_f = jnp.zeros((1, n * Dp), jnp.float32)
        for i, (w, b) in enumerate(ws_bs):
            w_f = w_f.at[:d, i * Dp:i * Dp + d].set(w.astype(jnp.bfloat16))
            b_f = b_f.at[0, i * Dp:i * Dp + d].set(b)
        return w_f, b_f

    def prep_self_attn(a):
        wqkv, bqkv = fuse_pad([(a["wq"], a["bq"]), (a["wk"], a["bk"]), (a["wv"], a["bv"])])
        g, b = prep_ln(a["ln_g"], a["ln_b"])
        return dict(wqkv=wqkv, bqkv=bqkv,
                    wo=_pad_to(a["wo"], Dp, Dp, jnp.bfloat16),
                    bo=_pad_to(a["bo"].reshape(1, -1), 1, Dp, jnp.float32),
                    ln_g=g, ln_b=b)

    def prep_cross_attn(a):
        wkv, bkv = fuse_pad([(a["wk"], a["bk"]), (a["wv"], a["bv"])])
        g, b = prep_ln(a["ln_g"], a["ln_b"])
        return dict(wq=_pad_to(a["wq"], Dp, Dp, jnp.bfloat16),
                    bq=_pad_to(a["bq"].reshape(1, -1), 1, Dp, jnp.float32),
                    wkv=wkv, bkv=bkv,
                    wo=_pad_to(a["wo"], Dp, Dp, jnp.bfloat16),
                    bo=_pad_to(a["bo"].reshape(1, -1), 1, Dp, jnp.float32),
                    ln_g=g, ln_b=b)

    def prep_ffn(f):
        g, b = prep_ln(f["ln_g"], f["ln_b"])
        return dict(w1=_pad_to(f["w1"], Dp, Dp, jnp.bfloat16),
                    b1=_pad_to(f["b1"].reshape(1, -1), 1, Dp, jnp.float32),
                    w2=_pad_to(f["w2"], Dp, Dp, jnp.bfloat16),
                    b2=_pad_to(f["b2"].reshape(1, -1), 1, Dp, jnp.float32),
                    ln_g=g, ln_b=b)

    emb = params["embedding"]
    return dict(
        emb_pad=_pad_to(emb, vocab_size, Dp, jnp.float32),
        wgen=_pad_to(emb.T, Dp, Vp, jnp.bfloat16),               # weight-tied generator
        enc_layer=dict(attn=prep_self_attn(params["enc_layer"]["attn"]),
                       ffn=prep_ffn(params["enc_layer"]["ffn"])),
        dec_layer=dict(self_attn=prep_self_attn(params["dec_layer"]["self_attn"]),
                       cross_attn=prep_cross_attn(params["dec_layer"]["cross_attn"]),
                       ffn=prep_ffn(params["dec_layer"]["ffn"])),
    )


# ---------------------------------------------------------------------------
# Main
# ---------------------------------------------------------------------------

if __name__ == "__main__":
    vocab_size = 50
    mask_token_id = 0
    d_model = 32
    n_head = 4
    num_layers = 2
    B, src_m, tar_m = 2, 8, 8

    key = jax.random.PRNGKey(0)
    k_e, k_d, k_p = jax.random.split(key, 3)

    enc_tokens = jax.random.randint(k_e, (B, src_m), 1, vocab_size, dtype=jnp.int32)
    dec_tokens = jax.random.randint(k_d, (B, tar_m), 1, vocab_size, dtype=jnp.int32)
    # introduce some padding tokens so the masks do something
    enc_tokens = enc_tokens.at[:, -2:].set(mask_token_id)
    dec_tokens = dec_tokens.at[:, -1:].set(mask_token_id)

    params = init_params(k_p, vocab_size, d_model)
    prep = prepare_params(params, d_model, vocab_size)   # pad + bf16 cast once, outside jit

    # batch_blocks=1: batch fully folded into the block (best on v5e/v6e);
    # on v7x use batch_blocks=2 so the "parallel" axis uses both TensorCores.
    fwd = jax.jit(functools.partial(transformer_forward,
                                    n_head=n_head,
                                    num_layers=num_layers,
                                    mask_token_id=mask_token_id,
                                    d_model=d_model,
                                    vocab_size=vocab_size,
                                    batch_blocks=1))
    out = jax.block_until_ready(fwd(prep, enc_tokens, dec_tokens))

    assert out.shape == (B * tar_m, vocab_size)
    assert bool(jnp.all(jnp.isfinite(out)))
    print("KERNEL_OK")
</pallas_src>

<mosaic_0001>
module attributes {stable_mosaic.version = 11 : i64} {
  func.func @_encoder_stack_kernel(%arg0: i32, %arg1: i32, %arg2: memref<2x8x128xf32, #tpu.memory_space<vmem>>, %arg3: memref<2x8x8xf32, #tpu.memory_space<vmem>>, %arg4: memref<128x384xbf16, #tpu.memory_space<vmem>>, %arg5: memref<1x384xf32, #tpu.memory_space<vmem>>, %arg6: memref<128x128xbf16, #tpu.memory_space<vmem>>, %arg7: memref<1x128xf32, #tpu.memory_space<vmem>>, %arg8: memref<1x128xf32, #tpu.memory_space<vmem>>, %arg9: memref<1x128xf32, #tpu.memory_space<vmem>>, %arg10: memref<128x128xbf16, #tpu.memory_space<vmem>>, %arg11: memref<1x128xf32, #tpu.memory_space<vmem>>, %arg12: memref<128x128xbf16, #tpu.memory_space<vmem>>, %arg13: memref<1x128xf32, #tpu.memory_space<vmem>>, %arg14: memref<1x128xf32, #tpu.memory_space<vmem>>, %arg15: memref<1x128xf32, #tpu.memory_space<vmem>>, %arg16: memref<2x8x128xf32, #tpu.memory_space<vmem>>) attributes {dimension_semantics = [#tpu.dimension_semantics<parallel>, #tpu.dimension_semantics<arbitrary>], iteration_bounds = array<i64: 1, 2>, scalar_prefetch = 0 : i64, scratch_operands = 0 : i64, tpu.core_type = #tpu.core_type<tc>, window_params = [{transform_indices = @transform_0, window_bounds = array<i64: 2, 8, 128>}, {transform_indices = @transform_1, window_bounds = array<i64: 2, 8, 8>}, {pipeline_mode = #tpu.pipeline_mode<synchronous>, transform_indices = @transform_2, window_bounds = array<i64: 128, 384>}, {pipeline_mode = #tpu.pipeline_mode<synchronous>, transform_indices = @transform_3, window_bounds = array<i64: 1, 384>}, {pipeline_mode = #tpu.pipeline_mode<synchronous>, transform_indices = @transform_4, window_bounds = array<i64: 128, 128>}, {pipeline_mode = #tpu.pipeline_mode<synchronous>, transform_indices = @transform_5, window_bounds = array<i64: 1, 128>}, {pipeline_mode = #tpu.pipeline_mode<synchronous>, transform_indices = @transform_6, window_bounds = array<i64: 1, 128>}, {pipeline_mode = #tpu.pipeline_mode<synchronous>, transform_indices = @transform_7, window_bounds = array<i64: 1, 128>}, {pipeline_mode = #tpu.pipeline_mode<synchronous>, transform_indices = @transform_8, window_bounds = array<i64: 128, 128>}, {pipeline_mode = #tpu.pipeline_mode<synchronous>, transform_indices = @transform_9, window_bounds = array<i64: 1, 128>}, {pipeline_mode = #tpu.pipeline_mode<synchronous>, transform_indices = @transform_10, window_bounds = array<i64: 128, 128>}, {pipeline_mode = #tpu.pipeline_mode<synchronous>, transform_indices = @transform_11, window_bounds = array<i64: 1, 128>}, {pipeline_mode = #tpu.pipeline_mode<synchronous>, transform_indices = @transform_12, window_bounds = array<i64: 1, 128>}, {pipeline_mode = #tpu.pipeline_mode<synchronous>, transform_indices = @transform_13, window_bounds = array<i64: 1, 128>}, {transform_indices = @transform_14, window_bounds = array<i64: 2, 8, 128>}]} {
    %c0_i32 = arith.constant 0 : i32
    %0 = arith.cmpi eq, %arg1, %c0_i32 : i32
    %1 = arith.extui %0 : i1 to i32
    %c0_i32_0 = arith.constant 0 : i32
    %2 = arith.cmpi ne, %1, %c0_i32_0 : i32
    scf.if %2 {
      %c0_74 = arith.constant 0 : index
      %c0_75 = arith.constant 0 : index
      %c0_76 = arith.constant 0 : index
      %229 = vector.load %arg2[%c0_74, %c0_75, %c0_76] : memref<2x8x128xf32, #tpu.memory_space<vmem>>, vector<2x8x128xf32>
      %c0_77 = arith.constant 0 : index
      %c0_78 = arith.constant 0 : index
      %c0_79 = arith.constant 0 : index
      %230 = vector.load %arg16[%c0_77, %c0_78, %c0_79] : memref<2x8x128xf32, #tpu.memory_space<vmem>>, vector<2x8x128xf32>
      tpu.vector_store %arg16[%c0_77, %c0_78, %c0_79], %229 {strides = array<i32>} : memref<2x8x128xf32, #tpu.memory_space<vmem>>, vector<2x8x128xf32>,
    } else {
    }
    %c0 = arith.constant 0 : index
    %c0_1 = arith.constant 0 : index
    %c0_2 = arith.constant 0 : index
    %3 = vector.load %arg16[%c0, %c0_1, %c0_2] : memref<2x8x128xf32, #tpu.memory_space<vmem>>, vector<2x8x128xf32>
    %4 = vector.shape_cast %3 : vector<2x8x128xf32> to vector<16x128xf32>
    %c0_3 = arith.constant 0 : index
    %c0_4 = arith.constant 0 : index
    %5 = vector.load %arg4[%c0_3, %c0_4] : memref<128x384xbf16, #tpu.memory_space<vmem>>, vector<128x384xbf16>
    %6 = arith.truncf %4 : vector<16x128xf32> to vector<16x128xbf16>
    %cst = arith.constant dense<0.000000e+00> : vector<16x384xf32>
    %7 = tpu.matmul %6, %5, %cst {dimension_numbers = #tpu.dot_dimension_numbers<[1], [0], [0], [1], [0, 0, 1, 1], [], []>} : vector<16x128xbf16>, vector<128x384xbf16>, vector<16x384xf32> -> vector<16x384xf32>
    %c0_5 = arith.constant 0 : index
    %c0_6 = arith.constant 0 : index
    %8 = vector.load %arg5[%c0_5, %c0_6] : memref<1x384xf32, #tpu.memory_space<vmem>>, vector<1x384xf32>
    %9 = vector.broadcast %8 : vector<1x384xf32> to vector<16x384xf32>
    %10 = arith.addf %7, %9 : vector<16x384xf32>
    %11 = vector.extract_strided_slice %10 {offsets = [0, 0], sizes = [16, 128], strides = [1, 1]} : vector<16x384xf32> to vector<16x128xf32>
    %12 = vector.shape_cast %11 : vector<16x128xf32> to vector<2x8x128xf32>
    %13 = vector.extract_strided_slice %10 {offsets = [0, 128], sizes = [16, 128], strides = [1, 1]} : vector<16x384xf32> to vector<16x128xf32>
    %14 = vector.shape_cast %13 : vector<16x128xf32> to vector<2x8x128xf32>
    %15 = vector.extract_strided_slice %10 {offsets = [0, 256], sizes = [16, 128], strides = [1, 1]} : vector<16x384xf32> to vector<16x128xf32>
    %16 = vector.shape_cast %15 : vector<16x128xf32> to vector<2x8x128xf32>
    %c0_7 = arith.constant 0 : index
    %c0_8 = arith.constant 0 : index
    %c0_9 = arith.constant 0 : index
    %17 = vector.load %arg3[%c0_7, %c0_8, %c0_9] : memref<2x8x8xf32, #tpu.memory_space<vmem>>, vector<2x8x8xf32>
    %18 = arith.truncf %14 : vector<2x8x128xf32> to vector<2x8x128xbf16>
    %19 = arith.truncf %16 : vector<2x8x128xf32> to vector<2x8x128xbf16>
    %20 = tpu.iota {dimensions = array<i32: 1>} : vector<1x128xi32>
    %cst_10 = arith.constant 0.000000e+00 : f32
    %21 = vector.broadcast %cst_10 : f32 to vector<2x8x128xf32>
    %c0_i32_11 = arith.constant 0 : i32
    %22 = vector.broadcast %c0_i32_11 : i32 to vector<1x128xi32>
    %23 = arith.cmpi sge, %20, %22 : vector<1x128xi32>
    %c8_i32 = arith.constant 8 : i32
    %24 = vector.broadcast %c8_i32 : i32 to vector<1x128xi32>
    %25 = arith.cmpi slt, %20, %24 : vector<1x128xi32>
    %26 = arith.andi %23, %25 : vector<1x128xi1>
    %27 = arith.extui %26 : vector<1x128xi1> to vector<1x128xi32>
    %28 = arith.sitofp %27 : vector<1x128xi32> to vector<1x128xf32>
    %29 = vector.shape_cast %28 : vector<1x128xf32> to vector<1x1x128xf32>
    %30 = vector.broadcast %29 : vector<1x1x128xf32> to vector<2x8x128xf32>
    %31 = arith.mulf %12, %30 : vector<2x8x128xf32>
    %32 = arith.truncf %31 : vector<2x8x128xf32> to vector<2x8x128xbf16>
    "tpu.trace_start"() <{level = 10 : i32, message = "bqd,bkd->bqk"}> : () -> ()
    %cst_12 = arith.constant dense<0.000000e+00> : vector<2x8x8xf32>
    %33 = tpu.matmul %32, %18, %cst_12 {dimension_numbers = #tpu.dot_dimension_numbers<[2], [2], [1], [1], [0, 0, 0, 1, 1, 1], [0], [0]>} : vector<2x8x128xbf16>, vector<2x8x128xbf16>, vector<2x8x8xf32> -> vector<2x8x8xf32>
    "tpu.trace_stop"() : () -> ()
    %cst_13 = arith.constant 0.353553385 : f32
    %34 = vector.broadcast %cst_13 : f32 to vector<2x8x8xf32>
    %35 = arith.mulf %33, %34 : vector<2x8x8xf32>
    %36 = arith.addf %35, %17 : vector<2x8x8xf32>
    %cst_14 = arith.constant dense<0xFF800000> : vector<2x8xf32>
    %37 = vector.multi_reduction <maximumf>, %36, %cst_14 [2] : vector<2x8x8xf32> to vector<2x8xf32>
    %38 = vector.shape_cast %37 : vector<2x8xf32> to vector<2x8x1xf32>
    %39 = vector.broadcast %38 : vector<2x8x1xf32> to vector<2x8x8xf32>
    %40 = arith.subf %36, %39 : vector<2x8x8xf32>
    %41 = math.exp %40 : vector<2x8x8xf32>
    %cst_15 = arith.constant dense<0.000000e+00> : vector<2x8xf32>
    %42 = vector.multi_reduction <add>, %41, %cst_15 [2] : vector<2x8x8xf32> to vector<2x8xf32>
    %43 = vector.shape_cast %42 : vector<2x8xf32> to vector<2x8x1xf32>
    %44 = tpu.reciprocal %43 {approx = true} : vector<2x8x1xf32> -> vector<2x8x1xf32>
    %45 = vector.broadcast %44 : vector<2x8x1xf32> to vector<2x8x8xf32>
    %46 = arith.mulf %41, %45 : vector<2x8x8xf32>
    %47 = arith.truncf %46 : vector<2x8x8xf32> to vector<2x8x8xbf16>
    "tpu.trace_start"() <{level = 10 : i32, message = "bqk,bkd->bqd"}> : () -> ()
    %cst_16 = arith.constant dense<0.000000e+00> : vector<2x8x128xf32>
    %48 = tpu.matmul %47, %19, %cst_16 {dimension_numbers = #tpu.dot_dimension_numbers<[2], [1], [1], [2], [0, 0, 0, 1, 1, 2], [0], [0]>} : vector<2x8x8xbf16>, vector<2x8x128xbf16>, vector<2x8x128xf32> -> vector<2x8x128xf32>
    "tpu.trace_stop"() : () -> ()
    %49 = vector.shape_cast %28 : vector<1x128xf32> to vector<1x1x128xf32>
    %50 = vector.broadcast %49 : vector<1x1x128xf32> to vector<2x8x128xf32>
    %51 = arith.mulf %50, %48 : vector<2x8x128xf32>
    %52 = arith.addf %21, %51 : vector<2x8x128xf32>
    %c8_i32_17 = arith.constant 8 : i32
    %53 = vector.broadcast %c8_i32_17 : i32 to vector<1x128xi32>
    %54 = arith.cmpi sge, %20, %53 : vector<1x128xi32>
    %c16_i32 = arith.constant 16 : i32
    %55 = vector.broadcast %c16_i32 : i32 to vector<1x128xi32>
    %56 = arith.cmpi slt, %20, %55 : vector<1x128xi32>
    %57 = arith.andi %54, %56 : vector<1x128xi1>
    %58 = arith.extui %57 : vector<1x128xi1> to vector<1x128xi32>
    %59 = arith.sitofp %58 : vector<1x128xi32> to vector<1x128xf32>
    %60 = vector.shape_cast %59 : vector<1x128xf32> to vector<1x1x128xf32>
    %61 = vector.broadcast %60 : vector<1x1x128xf32> to vector<2x8x128xf32>
    %62 = arith.mulf %12, %61 : vector<2x8x128xf32>
    %63 = arith.truncf %62 : vector<2x8x128xf32> to vector<2x8x128xbf16>
    "tpu.trace_start"() <{level = 10 : i32, message = "bqd,bkd->bqk"}> : () -> ()
    %cst_18 = arith.constant dense<0.000000e+00> : vector<2x8x8xf32>
    %64 = tpu.matmul %63, %18, %cst_18 {dimension_numbers = #tpu.dot_dimension_numbers<[2], [2], [1], [1], [0, 0, 0, 1, 1, 1], [0], [0]>} : vector<2x8x128xbf16>, vector<2x8x128xbf16>, vector<2x8x8xf32> -> vector<2x8x8xf32>
    "tpu.trace_stop"() : () -> ()
    %cst_19 = arith.constant 0.353553385 : f32
    %65 = vector.broadcast %cst_19 : f32 to vector<2x8x8xf32>
    %66 = arith.mulf %64, %65 : vector<2x8x8xf32>
    %67 = arith.addf %66, %17 : vector<2x8x8xf32>
    %cst_20 = arith.constant dense<0xFF800000> : vector<2x8xf32>
    %68 = vector.multi_reduction <maximumf>, %67, %cst_20 [2] : vector<2x8x8xf32> to vector<2x8xf32>
    %69 = vector.shape_cast %68 : vector<2x8xf32> to vector<2x8x1xf32>
    %70 = vector.broadcast %69 : vector<2x8x1xf32> to vector<2x8x8xf32>
    %71 = arith.subf %67, %70 : vector<2x8x8xf32>
    %72 = math.exp %71 : vector<2x8x8xf32>
    %cst_21 = arith.constant dense<0.000000e+00> : vector<2x8xf32>
    %73 = vector.multi_reduction <add>, %72, %cst_21 [2] : vector<2x8x8xf32> to vector<2x8xf32>
    %74 = vector.shape_cast %73 : vector<2x8xf32> to vector<2x8x1xf32>
    %75 = tpu.reciprocal %74 {approx = true} : vector<2x8x1xf32> -> vector<2x8x1xf32>
    %76 = vector.broadcast %75 : vector<2x8x1xf32> to vector<2x8x8xf32>
    %77 = arith.mulf %72, %76 : vector<2x8x8xf32>
    %78 = arith.truncf %77 : vector<2x8x8xf32> to vector<2x8x8xbf16>
    "tpu.trace_start"() <{level = 10 : i32, message = "bqk,bkd->bqd"}> : () -> ()
    %cst_22 = arith.constant dense<0.000000e+00> : vector<2x8x128xf32>
    %79 = tpu.matmul %78, %19, %cst_22 {dimension_numbers = #tpu.dot_dimension_numbers<[2], [1], [1], [2], [0, 0, 0, 1, 1, 2], [0], [0]>} : vector<2x8x8xbf16>, vector<2x8x128xbf16>, vector<2x8x128xf32> -> vector<2x8x128xf32>
    "tpu.trace_stop"() : () -> ()
    %80 = vector.shape_cast %59 : vector<1x128xf32> to vector<1x1x128xf32>
    %81 = vector.broadcast %80 : vector<1x1x128xf32> to vector<2x8x128xf32>
    %82 = arith.mulf %81, %79 : vector<2x8x128xf32>
    %83 = arith.addf %52, %82 : vector<2x8x128xf32>
    %c16_i32_23 = arith.constant 16 : i32
    %84 = vector.broadcast %c16_i32_23 : i32 to vector<1x128xi32>
    %85 = arith.cmpi sge, %20, %84 : vector<1x128xi32>
    %c24_i32 = arith.constant 24 : i32
    %86 = vector.broadcast %c24_i32 : i32 to vector<1x128xi32>
    %87 = arith.cmpi slt, %20, %86 : vector<1x128xi32>
    %88 = arith.andi %85, %87 : vector<1x128xi1>
    %89 = arith.extui %88 : vector<1x128xi1> to vector<1x128xi32>
    %90 = arith.sitofp %89 : vector<1x128xi32> to vector<1x128xf32>
    %91 = vector.shape_cast %90 : vector<1x128xf32> to vector<1x1x128xf32>
    %92 = vector.broadcast %91 : vector<1x1x128xf32> to vector<2x8x128xf32>
    %93 = arith.mulf %12, %92 : vector<2x8x128xf32>
    %94 = arith.truncf %93 : vector<2x8x128xf32> to vector<2x8x128xbf16>
    "tpu.trace_start"() <{level = 10 : i32, message = "bqd,bkd->bqk"}> : () -> ()
    %cst_24 = arith.constant dense<0.000000e+00> : vector<2x8x8xf32>
    %95 = tpu.matmul %94, %18, %cst_24 {dimension_numbers = #tpu.dot_dimension_numbers<[2], [2], [1], [1], [0, 0, 0, 1, 1, 1], [0], [0]>} : vector<2x8x128xbf16>, vector<2x8x128xbf16>, vector<2x8x8xf32> -> vector<2x8x8xf32>
    "tpu.trace_stop"() : () -> ()
    %cst_25 = arith.constant 0.353553385 : f32
    %96 = vector.broadcast %cst_25 : f32 to vector<2x8x8xf32>
    %97 = arith.mulf %95, %96 : vector<2x8x8xf32>
    %98 = arith.addf %97, %17 : vector<2x8x8xf32>
    %cst_26 = arith.constant dense<0xFF800000> : vector<2x8xf32>
    %99 = vector.multi_reduction <maximumf>, %98, %cst_26 [2] : vector<2x8x8xf32> to vector<2x8xf32>
    %100 = vector.shape_cast %99 : vector<2x8xf32> to vector<2x8x1xf32>
    %101 = vector.broadcast %100 : vector<2x8x1xf32> to vector<2x8x8xf32>
    %102 = arith.subf %98, %101 : vector<2x8x8xf32>
    %103 = math.exp %102 : vector<2x8x8xf32>
    %cst_27 = arith.constant dense<0.000000e+00> : vector<2x8xf32>
    %104 = vector.multi_reduction <add>, %103, %cst_27 [2] : vector<2x8x8xf32> to vector<2x8xf32>
    %105 = vector.shape_cast %104 : vector<2x8xf32> to vector<2x8x1xf32>
    %106 = tpu.reciprocal %105 {approx = true} : vector<2x8x1xf32> -> vector<2x8x1xf32>
    %107 = vector.broadcast %106 : vector<2x8x1xf32> to vector<2x8x8xf32>
    %108 = arith.mulf %103, %107 : vector<2x8x8xf32>
    %109 = arith.truncf %108 : vector<2x8x8xf32> to vector<2x8x8xbf16>
    "tpu.trace_start"() <{level = 10 : i32, message = "bqk,bkd->bqd"}> : () -> ()
    %cst_28 = arith.constant dense<0.000000e+00> : vector<2x8x128xf32>
    %110 = tpu.matmul %109, %19, %cst_28 {dimension_numbers = #tpu.dot_dimension_numbers<[2], [1], [1], [2], [0, 0, 0, 1, 1, 2], [0], [0]>} : vector<2x8x8xbf16>, vector<2x8x128xbf16>, vector<2x8x128xf32> -> vector<2x8x128xf32>
    "tpu.trace_stop"() : () -> ()
    %111 = vector.shape_cast %90 : vector<1x128xf32> to vector<1x1x128xf32>
    %112 = vector.broadcast %111 : vector<1x1x128xf32> to vector<2x8x128xf32>
    %113 = arith.mulf %112, %110 : vector<2x8x128xf32>
    %114 = arith.addf %83, %113 : vector<2x8x128xf32>
    %c24_i32_29 = arith.constant 24 : i32
    %115 = vector.broadcast %c24_i32_29 : i32 to vector<1x128xi32>
    %116 = arith.cmpi sge, %20, %115 : vector<1x128xi32>
    %c32_i32 = arith.constant 32 : i32
    %117 = vector.broadcast %c32_i32 : i32 to vector<1x128xi32>
    %118 = arith.cmpi slt, %20, %117 : vector<1x128xi32>
    %119 = arith.andi %116, %118 : vector<1x128xi1>
    %120 = arith.extui %119 : vector<1x128xi1> to vector<1x128xi32>
    %121 = arith.sitofp %120 : vector<1x128xi32> to vector<1x128xf32>
    %122 = vector.shape_cast %121 : vector<1x128xf32> to vector<1x1x128xf32>
    %123 = vector.broadcast %122 : vector<1x1x128xf32> to vector<2x8x128xf32>
    %124 = arith.mulf %12, %123 : vector<2x8x128xf32>
    %125 = arith.truncf %124 : vector<2x8x128xf32> to vector<2x8x128xbf16>
    "tpu.trace_start"() <{level = 10 : i32, message = "bqd,bkd->bqk"}> : () -> ()
    %cst_30 = arith.constant dense<0.000000e+00> : vector<2x8x8xf32>
    %126 = tpu.matmul %125, %18, %cst_30 {dimension_numbers = #tpu.dot_dimension_numbers<[2], [2], [1], [1], [0, 0, 0, 1, 1, 1], [0], [0]>} : vector<2x8x128xbf16>, vector<2x8x128xbf16>, vector<2x8x8xf32> -> vector<2x8x8xf32>
    "tpu.trace_stop"() : () -> ()
    %cst_31 = arith.constant 0.353553385 : f32
    %127 = vector.broadcast %cst_31 : f32 to vector<2x8x8xf32>
    %128 = arith.mulf %126, %127 : vector<2x8x8xf32>
    %129 = arith.addf %128, %17 : vector<2x8x8xf32>
    %cst_32 = arith.constant dense<0xFF800000> : vector<2x8xf32>
    %130 = vector.multi_reduction <maximumf>, %129, %cst_32 [2] : vector<2x8x8xf32> to vector<2x8xf32>
    %131 = vector.shape_cast %130 : vector<2x8xf32> to vector<2x8x1xf32>
    %132 = vector.broadcast %131 : vector<2x8x1xf32> to vector<2x8x8xf32>
    %133 = arith.subf %129, %132 : vector<2x8x8xf32>
    %134 = math.exp %133 : vector<2x8x8xf32>
    %cst_33 = arith.constant dense<0.000000e+00> : vector<2x8xf32>
    %135 = vector.multi_reduction <add>, %134, %cst_33 [2] : vector<2x8x8xf32> to vector<2x8xf32>
    %136 = vector.shape_cast %135 : vector<2x8xf32> to vector<2x8x1xf32>
    %137 = tpu.reciprocal %136 {approx = true} : vector<2x8x1xf32> -> vector<2x8x1xf32>
    %138 = vector.broadcast %137 : vector<2x8x1xf32> to vector<2x8x8xf32>
    %139 = arith.mulf %134, %138 : vector<2x8x8xf32>
    %140 = arith.truncf %139 : vector<2x8x8xf32> to vector<2x8x8xbf16>
    "tpu.trace_start"() <{level = 10 : i32, message = "bqk,bkd->bqd"}> : () -> ()
    %cst_34 = arith.constant dense<0.000000e+00> : vector<2x8x128xf32>
    %141 = tpu.matmul %140, %19, %cst_34 {dimension_numbers = #tpu.dot_dimension_numbers<[2], [1], [1], [2], [0, 0, 0, 1, 1, 2], [0], [0]>} : vector<2x8x8xbf16>, vector<2x8x128xbf16>, vector<2x8x128xf32> -> vector<2x8x128xf32>
    "tpu.trace_stop"() : () -> ()
    %142 = vector.shape_cast %121 : vector<1x128xf32> to vector<1x1x128xf32>
    %143 = vector.broadcast %142 : vector<1x1x128xf32> to vector<2x8x128xf32>
    %144 = arith.mulf %143, %141 : vector<2x8x128xf32>
    %145 = arith.addf %114, %144 : vector<2x8x128xf32>
    %146 = vector.shape_cast %145 : vector<2x8x128xf32> to vector<16x128xf32>
    %c0_35 = arith.constant 0 : index
    %c0_36 = arith.constant 0 : index
    %147 = vector.load %arg6[%c0_35, %c0_36] : memref<128x128xbf16, #tpu.memory_space<vmem>>, vector<128x128xbf16>
    %148 = arith.truncf %146 : vector<16x128xf32> to vector<16x128xbf16>
    %cst_37 = arith.constant dense<0.000000e+00> : vector<16x128xf32>
    %149 = tpu.matmul %148, %147, %cst_37 {dimension_numbers = #tpu.dot_dimension_numbers<[1], [0], [0], [1], [0, 0, 1, 1], [], []>} : vector<16x128xbf16>, vector<128x128xbf16>, vector<16x128xf32> -> vector<16x128xf32>
    %c0_38 = arith.constant 0 : index
    %c0_39 = arith.constant 0 : index
    %150 = vector.load %arg7[%c0_38, %c0_39] : memref<1x128xf32, #tpu.memory_space<vmem>>, vector<1x128xf32>
    %151 = vector.broadcast %150 : vector<1x128xf32> to vector<16x128xf32>
    %152 = arith.addf %149, %151 : vector<16x128xf32>
    %153 = vector.shape_cast %152 : vector<16x128xf32> to vector<2x8x128xf32>
    %c0_40 = arith.constant 0 : index
    %c0_41 = arith.constant 0 : index
    %154 = vector.load %arg8[%c0_40, %c0_41] : memref<1x128xf32, #tpu.memory_space<vmem>>, vector<1x128xf32>
    %c0_42 = arith.constant 0 : index
    %c0_43 = arith.constant 0 : index
    %155 = vector.load %arg9[%c0_42, %c0_43] : memref<1x128xf32, #tpu.memory_space<vmem>>, vector<1x128xf32>
    %156 = arith.addf %153, %3 : vector<2x8x128xf32>
    %cst_44 = arith.constant dense<0.000000e+00> : vector<2x8xf32>
    %157 = vector.multi_reduction <add>, %156, %cst_44 [2] : vector<2x8x128xf32> to vector<2x8xf32>
    %158 = vector.shape_cast %157 : vector<2x8xf32> to vector<2x8x1xf32>
    %cst_45 = arith.constant 3.125000e-02 : f32
    %159 = vector.broadcast %cst_45 : f32 to vector<2x8x1xf32>
    %160 = arith.mulf %158, %159 : vector<2x8x1xf32>
    %161 = arith.mulf %156, %156 : vector<2x8x128xf32>
    %cst_46 = arith.constant dense<0.000000e+00> : vector<2x8xf32>
    %162 = vector.multi_reduction <add>, %161, %cst_46 [2] : vector<2x8x128xf32> to vector<2x8xf32>
    %163 = vector.shape_cast %162 : vector<2x8xf32> to vector<2x8x1xf32>
    %cst_47 = arith.constant 3.125000e-02 : f32
    %164 = vector.broadcast %cst_47 : f32 to vector<2x8x1xf32>
    %165 = arith.mulf %163, %164 : vector<2x8x1xf32>
    %166 = arith.mulf %160, %160 : vector<2x8x1xf32>
    %167 = arith.subf %165, %166 : vector<2x8x1xf32>
    %168 = vector.broadcast %160 : vector<2x8x1xf32> to vector<2x8x128xf32>
    %169 = arith.subf %156, %168 : vector<2x8x128xf32>
    %cst_48 = arith.constant 0.000000e+00 : f32
    %170 = vector.broadcast %cst_48 : f32 to vector<2x8x1xf32>
    %171 = arith.maximumf %167, %170 : vector<2x8x1xf32>
    %cst_49 = arith.constant 9.99999974E-6 : f32
    %172 = vector.broadcast %cst_49 : f32 to vector<2x8x1xf32>
    %173 = arith.addf %171, %172 : vector<2x8x1xf32>
    %174 = math.rsqrt %173 : vector<2x8x1xf32>
    %175 = vector.broadcast %174 : vector<2x8x1xf32> to vector<2x8x128xf32>
    %176 = arith.mulf %169, %175 : vector<2x8x128xf32>
    %177 = vector.shape_cast %154 : vector<1x128xf32> to vector<1x1x128xf32>
    %178 = vector.broadcast %177 : vector<1x1x128xf32> to vector<2x8x128xf32>
    %179 = arith.mulf %176, %178 : vector<2x8x128xf32>
    %180 = vector.shape_cast %155 : vector<1x128xf32> to vector<1x1x128xf32>
    %181 = vector.broadcast %180 : vector<1x1x128xf32> to vector<2x8x128xf32>
    %182 = arith.addf %179, %181 : vector<2x8x128xf32>
    %183 = vector.shape_cast %182 : vector<2x8x128xf32> to vector<16x128xf32>
    %c0_50 = arith.constant 0 : index
    %c0_51 = arith.constant 0 : index
    %184 = vector.load %arg10[%c0_50, %c0_51] : memref<128x128xbf16, #tpu.memory_space<vmem>>, vector<128x128xbf16>
    %185 = arith.truncf %183 : vector<16x128xf32> to vector<16x128xbf16>
    %cst_52 = arith.constant dense<0.000000e+00> : vector<16x128xf32>
    %186 = tpu.matmul %185, %184, %cst_52 {dimension_numbers = #tpu.dot_dimension_numbers<[1], [0], [0], [1], [0, 0, 1, 1], [], []>} : vector<16x128xbf16>, vector<128x128xbf16>, vector<16x128xf32> -> vector<16x128xf32>
    %c0_53 = arith.constant 0 : index
    %c0_54 = arith.constant 0 : index
    %187 = vector.load %arg11[%c0_53, %c0_54] : memref<1x128xf32, #tpu.memory_space<vmem>>, vector<1x128xf32>
    %188 = vector.broadcast %187 : vector<1x128xf32> to vector<16x128xf32>
    %189 = arith.addf %186, %188 : vector<16x128xf32>
    %cst_55 = arith.constant 0.000000e+00 : f32
    %190 = vector.broadcast %cst_55 : f32 to vector<16x128xf32>
    %191 = arith.maximumf %189, %190 : vector<16x128xf32>
    %c0_56 = arith.constant 0 : index
    %c0_57 = arith.constant 0 : index
    %192 = vector.load %arg12[%c0_56, %c0_57] : memref<128x128xbf16, #tpu.memory_space<vmem>>, vector<128x128xbf16>
    %193 = arith.truncf %191 : vector<16x128xf32> to vector<16x128xbf16>
    %cst_58 = arith.constant dense<0.000000e+00> : vector<16x128xf32>
    %194 = tpu.matmul %193, %192, %cst_58 {dimension_numbers = #tpu.dot_dimension_numbers<[1], [0], [0], [1], [0, 0, 1, 1], [], []>} : vector<16x128xbf16>, vector<128x128xbf16>, vector<16x128xf32> -> vector<16x128xf32>
    %c0_59 = arith.constant 0 : index
    %c0_60 = arith.constant 0 : index
    %195 = vector.load %arg13[%c0_59, %c0_60] : memref<1x128xf32, #tpu.memory_space<vmem>>, vector<1x128xf32>
    %196 = vector.broadcast %195 : vector<1x128xf32> to vector<16x128xf32>
    %197 = arith.addf %194, %196 : vector<16x128xf32>
    %198 = vector.shape_cast %197 : vector<16x128xf32> to vector<2x8x128xf32>
    %c0_61 = arith.constant 0 : index
    %c0_62 = arith.constant 0 : index
    %199 = vector.load %arg14[%c0_61, %c0_62] : memref<1x128xf32, #tpu.memory_space<vmem>>, vector<1x128xf32>
    %c0_63 = arith.constant 0 : index
    %c0_64 = arith.constant 0 : index
    %200 = vector.load %arg15[%c0_63, %c0_64] : memref<1x128xf32, #tpu.memory_space<vmem>>, vector<1x128xf32>
    %201 = arith.addf %198, %182 : vector<2x8x128xf32>
    %cst_65 = arith.constant dense<0.000000e+00> : vector<2x8xf32>
    %202 = vector.multi_reduction <add>, %201, %cst_65 [2] : vector<2x8x128xf32> to vector<2x8xf32>
    %203 = vector.shape_cast %202 : vector<2x8xf32> to vector<2x8x1xf32>
    %cst_66 = arith.constant 3.125000e-02 : f32
    %204 = vector.broadcast %cst_66 : f32 to vector<2x8x1xf32>
    %205 = arith.mulf %203, %204 : vector<2x8x1xf32>
    %206 = arith.mulf %201, %201 : vector<2x8x128xf32>
    %cst_67 = arith.constant dense<0.000000e+00> : vector<2x8xf32>
    %207 = vector.multi_reduction <add>, %206, %cst_67 [2] : vector<2x8x128xf32> to vector<2x8xf32>
    %208 = vector.shape_cast %207 : vector<2x8xf32> to vector<2x8x1xf32>
    %cst_68 = arith.constant 3.125000e-02 : f32
    %209 = vector.broadcast %cst_68 : f32 to vector<2x8x1xf32>
    %210 = arith.mulf %208, %209 : vector<2x8x1xf32>
    %211 = arith.mulf %205, %205 : vector<2x8x1xf32>
    %212 = arith.subf %210, %211 : vector<2x8x1xf32>
    %213 = vector.broadcast %205 : vector<2x8x1xf32> to vector<2x8x128xf32>
    %214 = arith.subf %201, %213 : vector<2x8x128xf32>
    %cst_69 = arith.constant 0.000000e+00 : f32
    %215 = vector.broadcast %cst_69 : f32 to vector<2x8x1xf32>
    %216 = arith.maximumf %212, %215 : vector<2x8x1xf32>
    %cst_70 = arith.constant 9.99999974E-6 : f32
    %217 = vector.broadcast %cst_70 : f32 to vector<2x8x1xf32>
    %218 = arith.addf %216, %217 : vector<2x8x1xf32>
    %219 = math.rsqrt %218 : vector<2x8x1xf32>
    %220 = vector.broadcast %219 : vector<2x8x1xf32> to vector<2x8x128xf32>
    %221 = arith.mulf %214, %220 : vector<2x8x128xf32>
    %222 = vector.shape_cast %199 : vector<1x128xf32> to vector<1x1x128xf32>
    %223 = vector.broadcast %222 : vector<1x1x128xf32> to vector<2x8x128xf32>
    %224 = arith.mulf %221, %223 : vector<2x8x128xf32>
    %225 = vector.shape_cast %200 : vector<1x128xf32> to vector<1x1x128xf32>
    %226 = vector.broadcast %225 : vector<1x1x128xf32> to vector<2x8x128xf32>
    %227 = arith.addf %224, %226 : vector<2x8x128xf32>
    %c0_71 = arith.constant 0 : index
    %c0_72 = arith.constant 0 : index
    %c0_73 = arith.constant 0 : index
    %228 = vector.load %arg16[%c0_71, %c0_72, %c0_73] : memref<2x8x128xf32, #tpu.memory_space<vmem>>, vector<2x8x128xf32>
    tpu.vector_store %arg16[%c0_71, %c0_72, %c0_73], %227 {strides = array<i32>} : memref<2x8x128xf32, #tpu.memory_space<vmem>>, vector<2x8x128xf32>,
    return
  }
  func.func @transform_0(%arg0: i32, %arg1: i32) -> (i32, i32, i32) {
    %c0_i32 = arith.constant 0 : i32
    %c0_i32_0 = arith.constant 0 : i32
    %c0_i32_1 = arith.constant 0 : i32
    return %arg0, %c0_i32, %c0_i32_0 : i32, i32, i32
  }
  func.func @transform_1(%arg0: i32, %arg1: i32) -> (i32, i32, i32) {
    %c0_i32 = arith.constant 0 : i32
    %c0_i32_0 = arith.constant 0 : i32
    %c0_i32_1 = arith.constant 0 : i32
    return %arg0, %c0_i32, %c0_i32_0 : i32, i32, i32
  }
  func.func @transform_2(%arg0: i32, %arg1: i32) -> (i32, i32) {
    %c0_i32 = arith.constant 0 : i32
    %c0_i32_0 = arith.constant 0 : i32
    %c0_i32_1 = arith.constant 0 : i32
    return %c0_i32, %c0_i32_0 : i32, i32
  }
  func.func @transform_3(%arg0: i32, %arg1: i32) -> (i32, i32) {
    %c0_i32 = arith.constant 0 : i32
    %c0_i32_0 = arith.constant 0 : i32
    %c0_i32_1 = arith.constant 0 : i32
    return %c0_i32, %c0_i32_0 : i32, i32
  }
  func.func @transform_4(%arg0: i32, %arg1: i32) -> (i32, i32) {
    %c0_i32 = arith.constant 0 : i32
    %c0_i32_0 = arith.constant 0 : i32
    %c0_i32_1 = arith.constant 0 : i32
    return %c0_i32, %c0_i32_0 : i32, i32
  }
  func.func @transform_5(%arg0: i32, %arg1: i32) -> (i32, i32) {
    %c0_i32 = arith.constant 0 : i32
    %c0_i32_0 = arith.constant 0 : i32
    %c0_i32_1 = arith.constant 0 : i32
    return %c0_i32, %c0_i32_0 : i32, i32
  }
  func.func @transform_6(%arg0: i32, %arg1: i32) -> (i32, i32) {
    %c0_i32 = arith.constant 0 : i32
    %c0_i32_0 = arith.constant 0 : i32
    %c0_i32_1 = arith.constant 0 : i32
    return %c0_i32, %c0_i32_0 : i32, i32
  }
  func.func @transform_7(%arg0: i32, %arg1: i32) -> (i32, i32) {
    %c0_i32 = arith.constant 0 : i32
    %c0_i32_0 = arith.constant 0 : i32
    %c0_i32_1 = arith.constant 0 : i32
    return %c0_i32, %c0_i32_0 : i32, i32
  }
  func.func @transform_8(%arg0: i32, %arg1: i32) -> (i32, i32) {
    %c0_i32 = arith.constant 0 : i32
    %c0_i32_0 = arith.constant 0 : i32
    %c0_i32_1 = arith.constant 0 : i32
    return %c0_i32, %c0_i32_0 : i32, i32
  }
  func.func @transform_9(%arg0: i32, %arg1: i32) -> (i32, i32) {
    %c0_i32 = arith.constant 0 : i32
    %c0_i32_0 = arith.constant 0 : i32
    %c0_i32_1 = arith.constant 0 : i32
    return %c0_i32, %c0_i32_0 : i32, i32
  }
  func.func @transform_10(%arg0: i32, %arg1: i32) -> (i32, i32) {
    %c0_i32 = arith.constant 0 : i32
    %c0_i32_0 = arith.constant 0 : i32
    %c0_i32_1 = arith.constant 0 : i32
    return %c0_i32, %c0_i32_0 : i32, i32
  }
  func.func @transform_11(%arg0: i32, %arg1: i32) -> (i32, i32) {
    %c0_i32 = arith.constant 0 : i32
    %c0_i32_0 = arith.constant 0 : i32
    %c0_i32_1 = arith.constant 0 : i32
    return %c0_i32, %c0_i32_0 : i32, i32
  }
  func.func @transform_12(%arg0: i32, %arg1: i32) -> (i32, i32) {
    %c0_i32 = arith.constant 0 : i32
    %c0_i32_0 = arith.constant 0 : i32
    %c0_i32_1 = arith.constant 0 : i32
    return %c0_i32, %c0_i32_0 : i32, i32
  }
  func.func @transform_13(%arg0: i32, %arg1: i32) -> (i32, i32) {
    %c0_i32 = arith.constant 0 : i32
    %c0_i32_0 = arith.constant 0 : i32
    %c0_i32_1 = arith.constant 0 : i32
    return %c0_i32, %c0_i32_0 : i32, i32
  }
  func.func @transform_14(%arg0: i32, %arg1: i32) -> (i32, i32, i32) {
    %c0_i32 = arith.constant 0 : i32
    %c0_i32_0 = arith.constant 0 : i32
    %c0_i32_1 = arith.constant 0 : i32
    return %arg0, %c0_i32, %c0_i32_0 : i32, i32, i32
  }
}

module attributes {stable_mosaic.version = 11 : i64} {
  func.func @_decoder_stack_kernel(%arg0: i32, %arg1: i32, %arg2: memref<2x8x128xf32, #tpu.memory_space<vmem>>, %arg3: memref<2x8x128xf32, #tpu.memory_space<vmem>>, %arg4: memref<2x8x8xf32, #tpu.memory_space<vmem>>, %arg5: memref<2x8x8xf32, #tpu.memory_space<vmem>>, %arg6: memref<128x384xbf16, #tpu.memory_space<vmem>>, %arg7: memref<1x384xf32, #tpu.memory_space<vmem>>, %arg8: memref<128x128xbf16, #tpu.memory_space<vmem>>, %arg9: memref<1x128xf32, #tpu.memory_space<vmem>>, %arg10: memref<1x128xf32, #tpu.memory_space<vmem>>, %arg11: memref<1x128xf32, #tpu.memory_space<vmem>>, %arg12: memref<128x128xbf16, #tpu.memory_space<vmem>>, %arg13: memref<1x128xf32, #tpu.memory_space<vmem>>, %arg14: memref<128x256xbf16, #tpu.memory_space<vmem>>, %arg15: memref<1x256xf32, #tpu.memory_space<vmem>>, %arg16: memref<128x128xbf16, #tpu.memory_space<vmem>>, %arg17: memref<1x128xf32, #tpu.memory_space<vmem>>, %arg18: memref<1x128xf32, #tpu.memory_space<vmem>>, %arg19: memref<1x128xf32, #tpu.memory_space<vmem>>, %arg20: memref<128x128xbf16, #tpu.memory_space<vmem>>, %arg21: memref<1x128xf32, #tpu.memory_space<vmem>>, %arg22: memref<128x128xbf16, #tpu.memory_space<vmem>>, %arg23: memref<1x128xf32, #tpu.memory_space<vmem>>, %arg24: memref<1x128xf32, #tpu.memory_space<vmem>>, %arg25: memref<1x128xf32, #tpu.memory_space<vmem>>, %arg26: memref<128x128xbf16, #tpu.memory_space<vmem>>, %arg27: memref<2x8x128xf32, #tpu.memory_space<vmem>>, %arg28: memref<2x8x128xf32, #tpu.memory_space<vmem>>, %arg29: memref<2x8x256xf32, #tpu.memory_space<vmem>>) attributes {dimension_semantics = [#tpu.dimension_semantics<parallel>, #tpu.dimension_semantics<arbitrary>], iteration_bounds = array<i64: 1, 2>, scalar_prefetch = 0 : i64, scratch_operands = 2 : i64, tpu.core_type = #tpu.core_type<tc>, window_params = [{transform_indices = @transform_0, window_bounds = array<i64: 2, 8, 128>}, {transform_indices = @transform_1, window_bounds = array<i64: 2, 8, 128>}, {transform_indices = @transform_2, window_bounds = array<i64: 2, 8, 8>}, {transform_indices = @transform_3, window_bounds = array<i64: 2, 8, 8>}, {pipeline_mode = #tpu.pipeline_mode<synchronous>, transform_indices = @transform_4, window_bounds = array<i64: 128, 384>}, {pipeline_mode = #tpu.pipeline_mode<synchronous>, transform_indices = @transform_5, window_bounds = array<i64: 1, 384>}, {pipeline_mode = #tpu.pipeline_mode<synchronous>, transform_indices = @transform_6, window_bounds = array<i64: 128, 128>}, {pipeline_mode = #tpu.pipeline_mode<synchronous>, transform_indices = @transform_7, window_bounds = array<i64: 1, 128>}, {pipeline_mode = #tpu.pipeline_mode<synchronous>, transform_indices = @transform_8, window_bounds = array<i64: 1, 128>}, {pipeline_mode = #tpu.pipeline_mode<synchronous>, transform_indices = @transform_9, window_bounds = array<i64: 1, 128>}, {pipeline_mode = #tpu.pipeline_mode<synchronous>, transform_indices = @transform_10, window_bounds = array<i64: 128, 128>}, {pipeline_mode = #tpu.pipeline_mode<synchronous>, transform_indices = @transform_11, window_bounds = array<i64: 1, 128>}, {pipeline_mode = #tpu.pipeline_mode<synchronous>, transform_indices = @transform_12, window_bounds = array<i64: 128, 256>}, {pipeline_mode = #tpu.pipeline_mode<synchronous>, transform_indices = @transform_13, window_bounds = array<i64: 1, 256>}, {pipeline_mode = #tpu.pipeline_mode<synchronous>, transform_indices = @transform_14, window_bounds = array<i64: 128, 128>}, {pipeline_mode = #tpu.pipeline_mode<synchronous>, transform_indices = @transform_15, window_bounds = array<i64: 1, 128>}, {pipeline_mode = #tpu.pipeline_mode<synchronous>, transform_indices = @transform_16, window_bounds = array<i64: 1, 128>}, {pipeline_mode = #tpu.pipeline_mode<synchronous>, transform_indices = @transform_17, window_bounds = array<i64: 1, 128>}, {pipeline_mode = #tpu.pipeline_mode<synchronous>, transform_indices = @transform_18, window_bounds = array<i64: 128, 128>}, {pipeline_mode = #tpu.pipeline_mode<synchronous>, transform_indices = @transform_19, window_bounds = array<i64: 1, 128>}, {pipeline_mode = #tpu.pipeline_mode<synchronous>, transform_indices = @transform_20, window_bounds = array<i64: 128, 128>}, {pipeline_mode = #tpu.pipeline_mode<synchronous>, transform_indices = @transform_21, window_bounds = array<i64: 1, 128>}, {pipeline_mode = #tpu.pipeline_mode<synchronous>, transform_indices = @transform_22, window_bounds = array<i64: 1, 128>}, {pipeline_mode = #tpu.pipeline_mode<synchronous>, transform_indices = @transform_23, window_bounds = array<i64: 1, 128>}, {pipeline_mode = #tpu.pipeline_mode<synchronous>, transform_indices = @transform_24, window_bounds = array<i64: 128, 128>}, {transform_indices = @transform_25, window_bounds = array<i64: 2, 8, 128>}]} {
    %c0_i32 = arith.constant 0 : i32
    %0 = arith.cmpi eq, %arg1, %c0_i32 : i32
    %1 = arith.extui %0 : i1 to i32
    %c0_i32_0 = arith.constant 0 : i32
    %2 = arith.cmpi ne, %1, %c0_i32_0 : i32
    scf.if %2 {
      %c0_130 = arith.constant 0 : index
      %c0_131 = arith.constant 0 : index
      %c0_132 = arith.constant 0 : index
      %409 = vector.load %arg2[%c0_130, %c0_131, %c0_132] : memref<2x8x128xf32, #tpu.memory_space<vmem>>, vector<2x8x128xf32>
      %c0_133 = arith.constant 0 : index
      %c0_134 = arith.constant 0 : index
      %c0_135 = arith.constant 0 : index
      %410 = vector.load %arg28[%c0_133, %c0_134, %c0_135] : memref<2x8x128xf32, #tpu.memory_space<vmem>>, vector<2x8x128xf32>
      tpu.vector_store %arg28[%c0_133, %c0_134, %c0_135], %409 {strides = array<i32>} : memref<2x8x128xf32, #tpu.memory_space<vmem>>, vector<2x8x128xf32>,
      %c0_136 = arith.constant 0 : index
      %c0_137 = arith.constant 0 : index
      %c0_138 = arith.constant 0 : index
      %411 = vector.load %arg3[%c0_136, %c0_137, %c0_138] : memref<2x8x128xf32, #tpu.memory_space<vmem>>, vector<2x8x128xf32>
      %412 = vector.shape_cast %411 : vector<2x8x128xf32> to vector<16x128xf32>
      %c0_139 = arith.constant 0 : index
      %c0_140 = arith.constant 0 : index
      %413 = vector.load %arg14[%c0_139, %c0_140] : memref<128x256xbf16, #tpu.memory_space<vmem>>, vector<128x256xbf16>
      %414 = arith.truncf %412 : vector<16x128xf32> to vector<16x128xbf16>
      %cst_141 = arith.constant dense<0.000000e+00> : vector<16x256xf32>
      %415 = tpu.matmul %414, %413, %cst_141 {dimension_numbers = #tpu.dot_dimension_numbers<[1], [0], [0], [1], [0, 0, 1, 1], [], []>} : vector<16x128xbf16>, vector<128x256xbf16>, vector<16x256xf32> -> vector<16x256xf32>
      %c0_142 = arith.constant 0 : index
      %c0_143 = arith.constant 0 : index
      %416 = vector.load %arg15[%c0_142, %c0_143] : memref<1x256xf32, #tpu.memory_space<vmem>>, vector<1x256xf32>
      %417 = vector.broadcast %416 : vector<1x256xf32> to vector<16x256xf32>
      %418 = arith.addf %415, %417 : vector<16x256xf32>
      %419 = vector.shape_cast %418 : vector<16x256xf32> to vector<2x8x256xf32>
      %c0_144 = arith.constant 0 : index
      %c0_145 = arith.constant 0 : index
      %c0_146 = arith.constant 0 : index
      %420 = vector.load %arg29[%c0_144, %c0_145, %c0_146] : memref<2x8x256xf32, #tpu.memory_space<vmem>>, vector<2x8x256xf32>
      tpu.vector_store %arg29[%c0_144, %c0_145, %c0_146], %419 {strides = array<i32>} : memref<2x8x256xf32, #tpu.memory_space<vmem>>, vector<2x8x256xf32>,
    } else {
    }
    %c0 = arith.constant 0 : index
    %c0_1 = arith.constant 0 : index
    %c0_2 = arith.constant 0 : index
    %3 = vector.load %arg28[%c0, %c0_1, %c0_2] : memref<2x8x128xf32, #tpu.memory_space<vmem>>, vector<2x8x128xf32>
    %4 = vector.shape_cast %3 : vector<2x8x128xf32> to vector<16x128xf32>
    %c0_3 = arith.constant 0 : index
    %c0_4 = arith.constant 0 : index
    %5 = vector.load %arg6[%c0_3, %c0_4] : memref<128x384xbf16, #tpu.memory_space<vmem>>, vector<128x384xbf16>
    %6 = arith.truncf %4 : vector<16x128xf32> to vector<16x128xbf16>
    %cst = arith.constant dense<0.000000e+00> : vector<16x384xf32>
    %7 = tpu.matmul %6, %5, %cst {dimension_numbers = #tpu.dot_dimension_numbers<[1], [0], [0], [1], [0, 0, 1, 1], [], []>} : vector<16x128xbf16>, vector<128x384xbf16>, vector<16x384xf32> -> vector<16x384xf32>
    %c0_5 = arith.constant 0 : index
    %c0_6 = arith.constant 0 : index
    %8 = vector.load %arg7[%c0_5, %c0_6] : memref<1x384xf32, #tpu.memory_space<vmem>>, vector<1x384xf32>
    %9 = vector.broadcast %8 : vector<1x384xf32> to vector<16x384xf32>
    %10 = arith.addf %7, %9 : vector<16x384xf32>
    %11 = vector.extract_strided_slice %10 {offsets = [0, 0], sizes = [16, 128], strides = [1, 1]} : vector<16x384xf32> to vector<16x128xf32>
    %12 = vector.shape_cast %11 : vector<16x128xf32> to vector<2x8x128xf32>
    %13 = vector.extract_strided_slice %10 {offsets = [0, 128], sizes = [16, 128], strides = [1, 1]} : vector<16x384xf32> to vector<16x128xf32>
    %14 = vector.shape_cast %13 : vector<16x128xf32> to vector<2x8x128xf32>
    %15 = vector.extract_strided_slice %10 {offsets = [0, 256], sizes = [16, 128], strides = [1, 1]} : vector<16x384xf32> to vector<16x128xf32>
    %16 = vector.shape_cast %15 : vector<16x128xf32> to vector<2x8x128xf32>
    %c0_7 = arith.constant 0 : index
    %c0_8 = arith.constant 0 : index
    %c0_9 = arith.constant 0 : index
    %17 = vector.load %arg4[%c0_7, %c0_8, %c0_9] : memref<2x8x8xf32, #tpu.memory_space<vmem>>, vector<2x8x8xf32>
    %18 = arith.truncf %14 : vector<2x8x128xf32> to vector<2x8x128xbf16>
    %19 = arith.truncf %16 : vector<2x8x128xf32> to vector<2x8x128xbf16>
    %20 = tpu.iota {dimensions = array<i32: 1>} : vector<1x128xi32>
    %cst_10 = arith.constant 0.000000e+00 : f32
    %21 = vector.broadcast %cst_10 : f32 to vector<2x8x128xf32>
    %c0_i32_11 = arith.constant 0 : i32
    %22 = vector.broadcast %c0_i32_11 : i32 to vector<1x128xi32>
    %23 = arith.cmpi sge, %20, %22 : vector<1x128xi32>
    %c8_i32 = arith.constant 8 : i32
    %24 = vector.broadcast %c8_i32 : i32 to vector<1x128xi32>
    %25 = arith.cmpi slt, %20, %24 : vector<1x128xi32>
    %26 = arith.andi %23, %25 : vector<1x128xi1>
    %27 = arith.extui %26 : vector<1x128xi1> to vector<1x128xi32>
    %28 = arith.sitofp %27 : vector<1x128xi32> to vector<1x128xf32>
    %29 = vector.shape_cast %28 : vector<1x128xf32> to vector<1x1x128xf32>
    %30 = vector.broadcast %29 : vector<1x1x128xf32> to vector<2x8x128xf32>
    %31 = arith.mulf %12, %30 : vector<2x8x128xf32>
    %32 = arith.truncf %31 : vector<2x8x128xf32> to vector<2x8x128xbf16>
    "tpu.trace_start"() <{level = 10 : i32, message = "bqd,bkd->bqk"}> : () -> ()
    %cst_12 = arith.constant dense<0.000000e+00> : vector<2x8x8xf32>
    %33 = tpu.matmul %32, %18, %cst_12 {dimension_numbers = #tpu.dot_dimension_numbers<[2], [2], [1], [1], [0, 0, 0, 1, 1, 1], [0], [0]>} : vector<2x8x128xbf16>, vector<2x8x128xbf16>, vector<2x8x8xf32> -> vector<2x8x8xf32>
    "tpu.trace_stop"() : () -> ()
    %cst_13 = arith.constant 0.353553385 : f32
    %34 = vector.broadcast %cst_13 : f32 to vector<2x8x8xf32>
    %35 = arith.mulf %33, %34 : vector<2x8x8xf32>
    %36 = arith.addf %35, %17 : vector<2x8x8xf32>
    %cst_14 = arith.constant dense<0xFF800000> : vector<2x8xf32>
    %37 = vector.multi_reduction <maximumf>, %36, %cst_14 [2] : vector<2x8x8xf32> to vector<2x8xf32>
    %38 = vector.shape_cast %37 : vector<2x8xf32> to vector<2x8x1xf32>
    %39 = vector.broadcast %38 : vector<2x8x1xf32> to vector<2x8x8xf32>
    %40 = arith.subf %36, %39 : vector<2x8x8xf32>
    %41 = math.exp %40 : vector<2x8x8xf32>
    %cst_15 = arith.constant dense<0.000000e+00> : vector<2x8xf32>
    %42 = vector.multi_reduction <add>, %41, %cst_15 [2] : vector<2x8x8xf32> to vector<2x8xf32>
    %43 = vector.shape_cast %42 : vector<2x8xf32> to vector<2x8x1xf32>
    %44 = tpu.reciprocal %43 {approx = true} : vector<2x8x1xf32> -> vector<2x8x1xf32>
    %45 = vector.broadcast %44 : vector<2x8x1xf32> to vector<2x8x8xf32>
    %46 = arith.mulf %41, %45 : vector<2x8x8xf32>
    %47 = arith.truncf %46 : vector<2x8x8xf32> to vector<2x8x8xbf16>
    "tpu.trace_start"() <{level = 10 : i32, message = "bqk,bkd->bqd"}> : () -> ()
    %cst_16 = arith.constant dense<0.000000e+00> : vector<2x8x128xf32>
    %48 = tpu.matmul %47, %19, %cst_16 {dimension_numbers = #tpu.dot_dimension_numbers<[2], [1], [1], [2], [0, 0, 0, 1, 1, 2], [0], [0]>} : vector<2x8x8xbf16>, vector<2x8x128xbf16>, vector<2x8x128xf32> -> vector<2x8x128xf32>
    "tpu.trace_stop"() : () -> ()
    %49 = vector.shape_cast %28 : vector<1x128xf32> to vector<1x1x128xf32>
    %50 = vector.broadcast %49 : vector<1x1x128xf32> to vector<2x8x128xf32>
    %51 = arith.mulf %50, %48 : vector<2x8x128xf32>
    %52 = arith.addf %21, %51 : vector<2x8x128xf32>
    %c8_i32_17 = arith.constant 8 : i32
    %53 = vector.broadcast %c8_i32_17 : i32 to vector<1x128xi32>
    %54 = arith.cmpi sge, %20, %53 : vector<1x128xi32>
    %c16_i32 = arith.constant 16 : i32
    %55 = vector.broadcast %c16_i32 : i32 to vector<1x128xi32>
    %56 = arith.cmpi slt, %20, %55 : vector<1x128xi32>
    %57 = arith.andi %54, %56 : vector<1x128xi1>
    %58 = arith.extui %57 : vector<1x128xi1> to vector<1x128xi32>
    %59 = arith.sitofp %58 : vector<1x128xi32> to vector<1x128xf32>
    %60 = vector.shape_cast %59 : vector<1x128xf32> to vector<1x1x128xf32>
    %61 = vector.broadcast %60 : vector<1x1x128xf32> to vector<2x8x128xf32>
    %62 = arith.mulf %12, %61 : vector<2x8x128xf32>
    %63 = arith.truncf %62 : vector<2x8x128xf32> to vector<2x8x128xbf16>
    "tpu.trace_start"() <{level = 10 : i32, message = "bqd,bkd->bqk"}> : () -> ()
    %cst_18 = arith.constant dense<0.000000e+00> : vector<2x8x8xf32>
    %64 = tpu.matmul %63, %18, %cst_18 {dimension_numbers = #tpu.dot_dimension_numbers<[2], [2], [1], [1], [0, 0, 0, 1, 1, 1], [0], [0]>} : vector<2x8x128xbf16>, vector<2x8x128xbf16>, vector<2x8x8xf32> -> vector<2x8x8xf32>
    "tpu.trace_stop"() : () -> ()
    %cst_19 = arith.constant 0.353553385 : f32
    %65 = vector.broadcast %cst_19 : f32 to vector<2x8x8xf32>
    %66 = arith.mulf %64, %65 : vector<2x8x8xf32>
    %67 = arith.addf %66, %17 : vector<2x8x8xf32>
    %cst_20 = arith.constant dense<0xFF800000> : vector<2x8xf32>
    %68 = vector.multi_reduction <maximumf>, %67, %cst_20 [2] : vector<2x8x8xf32> to vector<2x8xf32>
    %69 = vector.shape_cast %68 : vector<2x8xf32> to vector<2x8x1xf32>
    %70 = vector.broadcast %69 : vector<2x8x1xf32> to vector<2x8x8xf32>
    %71 = arith.subf %67, %70 : vector<2x8x8xf32>
    %72 = math.exp %71 : vector<2x8x8xf32>
    %cst_21 = arith.constant dense<0.000000e+00> : vector<2x8xf32>
    %73 = vector.multi_reduction <add>, %72, %cst_21 [2] : vector<2x8x8xf32> to vector<2x8xf32>
    %74 = vector.shape_cast %73 : vector<2x8xf32> to vector<2x8x1xf32>
    %75 = tpu.reciprocal %74 {approx = true} : vector<2x8x1xf32> -> vector<2x8x1xf32>
    %76 = vector.broadcast %75 : vector<2x8x1xf32> to vector<2x8x8xf32>
    %77 = arith.mulf %72, %76 : vector<2x8x8xf32>
    %78 = arith.truncf %77 : vector<2x8x8xf32> to vector<2x8x8xbf16>
    "tpu.trace_start"() <{level = 10 : i32, message = "bqk,bkd->bqd"}> : () -> ()
    %cst_22 = arith.constant dense<0.000000e+00> : vector<2x8x128xf32>
    %79 = tpu.matmul %78, %19, %cst_22 {dimension_numbers = #tpu.dot_dimension_numbers<[2], [1], [1], [2], [0, 0, 0, 1, 1, 2], [0], [0]>} : vector<2x8x8xbf16>, vector<2x8x128xbf16>, vector<2x8x128xf32> -> vector<2x8x128xf32>
    "tpu.trace_stop"() : () -> ()
    %80 = vector.shape_cast %59 : vector<1x128xf32> to vector<1x1x128xf32>
    %81 = vector.broadcast %80 : vector<1x1x128xf32> to vector<2x8x128xf32>
    %82 = arith.mulf %81, %79 : vector<2x8x128xf32>
    %83 = arith.addf %52, %82 : vector<2x8x128xf32>
    %c16_i32_23 = arith.constant 16 : i32
    %84 = vector.broadcast %c16_i32_23 : i32 to vector<1x128xi32>
    %85 = arith.cmpi sge, %20, %84 : vector<1x128xi32>
    %c24_i32 = arith.constant 24 : i32
    %86 = vector.broadcast %c24_i32 : i32 to vector<1x128xi32>
    %87 = arith.cmpi slt, %20, %86 : vector<1x128xi32>
    %88 = arith.andi %85, %87 : vector<1x128xi1>
    %89 = arith.extui %88 : vector<1x128xi1> to vector<1x128xi32>
    %90 = arith.sitofp %89 : vector<1x128xi32> to vector<1x128xf32>
    %91 = vector.shape_cast %90 : vector<1x128xf32> to vector<1x1x128xf32>
    %92 = vector.broadcast %91 : vector<1x1x128xf32> to vector<2x8x128xf32>
    %93 = arith.mulf %12, %92 : vector<2x8x128xf32>
    %94 = arith.truncf %93 : vector<2x8x128xf32> to vector<2x8x128xbf16>
    "tpu.trace_start"() <{level = 10 : i32, message = "bqd,bkd->bqk"}> : () -> ()
    %cst_24 = arith.constant dense<0.000000e+00> : vector<2x8x8xf32>
    %95 = tpu.matmul %94, %18, %cst_24 {dimension_numbers = #tpu.dot_dimension_numbers<[2], [2], [1], [1], [0, 0, 0, 1, 1, 1], [0], [0]>} : vector<2x8x128xbf16>, vector<2x8x128xbf16>, vector<2x8x8xf32> -> vector<2x8x8xf32>
    "tpu.trace_stop"() : () -> ()
    %cst_25 = arith.constant 0.353553385 : f32
    %96 = vector.broadcast %cst_25 : f32 to vector<2x8x8xf32>
    %97 = arith.mulf %95, %96 : vector<2x8x8xf32>
    %98 = arith.addf %97, %17 : vector<2x8x8xf32>
    %cst_26 = arith.constant dense<0xFF800000> : vector<2x8xf32>
    %99 = vector.multi_reduction <maximumf>, %98, %cst_26 [2] : vector<2x8x8xf32> to vector<2x8xf32>
    %100 = vector.shape_cast %99 : vector<2x8xf32> to vector<2x8x1xf32>
    %101 = vector.broadcast %100 : vector<2x8x1xf32> to vector<2x8x8xf32>
    %102 = arith.subf %98, %101 : vector<2x8x8xf32>
    %103 = math.exp %102 : vector<2x8x8xf32>
    %cst_27 = arith.constant dense<0.000000e+00> : vector<2x8xf32>
    %104 = vector.multi_reduction <add>, %103, %cst_27 [2] : vector<2x8x8xf32> to vector<2x8xf32>
    %105 = vector.shape_cast %104 : vector<2x8xf32> to vector<2x8x1xf32>
    %106 = tpu.reciprocal %105 {approx = true} : vector<2x8x1xf32> -> vector<2x8x1xf32>
    %107 = vector.broadcast %106 : vector<2x8x1xf32> to vector<2x8x8xf32>
    %108 = arith.mulf %103, %107 : vector<2x8x8xf32>
    %109 = arith.truncf %108 : vector<2x8x8xf32> to vector<2x8x8xbf16>
    "tpu.trace_start"() <{level = 10 : i32, message = "bqk,bkd->bqd"}> : () -> ()
    %cst_28 = arith.constant dense<0.000000e+00> : vector<2x8x128xf32>
    %110 = tpu.matmul %109, %19, %cst_28 {dimension_numbers = #tpu.dot_dimension_numbers<[2], [1], [1], [2], [0, 0, 0, 1, 1, 2], [0], [0]>} : vector<2x8x8xbf16>, vector<2x8x128xbf16>, vector<2x8x128xf32> -> vector<2x8x128xf32>
    "tpu.trace_stop"() : () -> ()
    %111 = vector.shape_cast %90 : vector<1x128xf32> to vector<1x1x128xf32>
    %112 = vector.broadcast %111 : vector<1x1x128xf32> to vector<2x8x128xf32>
    %113 = arith.mulf %112, %110 : vector<2x8x128xf32>
    %114 = arith.addf %83, %113 : vector<2x8x128xf32>
    %c24_i32_29 = arith.constant 24 : i32
    %115 = vector.broadcast %c24_i32_29 : i32 to vector<1x128xi32>
    %116 = arith.cmpi sge, %20, %115 : vector<1x128xi32>
    %c32_i32 = arith.constant 32 : i32
    %117 = vector.broadcast %c32_i32 : i32 to vector<1x128xi32>
    %118 = arith.cmpi slt, %20, %117 : vector<1x128xi32>
    %119 = arith.andi %116, %118 : vector<1x128xi1>
    %120 = arith.extui %119 : vector<1x128xi1> to vector<1x128xi32>
    %121 = arith.sitofp %120 : vector<1x128xi32> to vector<1x128xf32>
    %122 = vector.shape_cast %121 : vector<1x128xf32> to vector<1x1x128xf32>
    %123 = vector.broadcast %122 : vector<1x1x128xf32> to vector<2x8x128xf32>
    %124 = arith.mulf %12, %123 : vector<2x8x128xf32>
    %125 = arith.truncf %124 : vector<2x8x128xf32> to vector<2x8x128xbf16>
    "tpu.trace_start"() <{level = 10 : i32, message = "bqd,bkd->bqk"}> : () -> ()
    %cst_30 = arith.constant dense<0.000000e+00> : vector<2x8x8xf32>
    %126 = tpu.matmul %125, %18, %cst_30 {dimension_numbers = #tpu.dot_dimension_numbers<[2], [2], [1], [1], [0, 0, 0, 1, 1, 1], [0], [0]>} : vector<2x8x128xbf16>, vector<2x8x128xbf16>, vector<2x8x8xf32> -> vector<2x8x8xf32>
    "tpu.trace_stop"() : () -> ()
    %cst_31 = arith.constant 0.353553385 : f32
    %127 = vector.broadcast %cst_31 : f32 to vector<2x8x8xf32>
    %128 = arith.mulf %126, %127 : vector<2x8x8xf32>
    %129 = arith.addf %128, %17 : vector<2x8x8xf32>
    %cst_32 = arith.constant dense<0xFF800000> : vector<2x8xf32>
    %130 = vector.multi_reduction <maximumf>, %129, %cst_32 [2] : vector<2x8x8xf32> to vector<2x8xf32>
    %131 = vector.shape_cast %130 : vector<2x8xf32> to vector<2x8x1xf32>
    %132 = vector.broadcast %131 : vector<2x8x1xf32> to vector<2x8x8xf32>
    %133 = arith.subf %129, %132 : vector<2x8x8xf32>
    %134 = math.exp %133 : vector<2x8x8xf32>
    %cst_33 = arith.constant dense<0.000000e+00> : vector<2x8xf32>
    %135 = vector.multi_reduction <add>, %134, %cst_33 [2] : vector<2x8x8xf32> to vector<2x8xf32>
    %136 = vector.shape_cast %135 : vector<2x8xf32> to vector<2x8x1xf32>
    %137 = tpu.reciprocal %136 {approx = true} : vector<2x8x1xf32> -> vector<2x8x1xf32>
    %138 = vector.broadcast %137 : vector<2x8x1xf32> to vector<2x8x8xf32>
    %139 = arith.mulf %134, %138 : vector<2x8x8xf32>
    %140 = arith.truncf %139 : vector<2x8x8xf32> to vector<2x8x8xbf16>
    "tpu.trace_start"() <{level = 10 : i32, message = "bqk,bkd->bqd"}> : () -> ()
    %cst_34 = arith.constant dense<0.000000e+00> : vector<2x8x128xf32>
    %141 = tpu.matmul %140, %19, %cst_34 {dimension_numbers = #tpu.dot_dimension_numbers<[2], [1], [1], [2], [0, 0, 0, 1, 1, 2], [0], [0]>} : vector<2x8x8xbf16>, vector<2x8x128xbf16>, vector<2x8x128xf32> -> vector<2x8x128xf32>
    "tpu.trace_stop"() : () -> ()
    %142 = vector.shape_cast %121 : vector<1x128xf32> to vector<1x1x128xf32>
    %143 = vector.broadcast %142 : vector<1x1x128xf32> to vector<2x8x128xf32>
    %144 = arith.mulf %143, %141 : vector<2x8x128xf32>
    %145 = arith.addf %114, %144 : vector<2x8x128xf32>
    %146 = vector.shape_cast %145 : vector<2x8x128xf32> to vector<16x128xf32>
    %c0_35 = arith.constant 0 : index
    %c0_36 = arith.constant 0 : index
    %147 = vector.load %arg8[%c0_35, %c0_36] : memref<128x128xbf16, #tpu.memory_space<vmem>>, vector<128x128xbf16>
    %148 = arith.truncf %146 : vector<16x128xf32> to vector<16x128xbf16>
    %cst_37 = arith.constant dense<0.000000e+00> : vector<16x128xf32>
    %149 = tpu.matmul %148, %147, %cst_37 {dimension_numbers = #tpu.dot_dimension_numbers<[1], [0], [0], [1], [0, 0, 1, 1], [], []>} : vector<16x128xbf16>, vector<128x128xbf16>, vector<16x128xf32> -> vector<16x128xf32>
    %c0_38 = arith.constant 0 : index
    %c0_39 = arith.constant 0 : index
    %150 = vector.load %arg9[%c0_38, %c0_39] : memref<1x128xf32, #tpu.memory_space<vmem>>, vector<1x128xf32>
    %151 = vector.broadcast %150 : vector<1x128xf32> to vector<16x128xf32>
    %152 = arith.addf %149, %151 : vector<16x128xf32>
    %153 = vector.shape_cast %152 : vector<16x128xf32> to vector<2x8x128xf32>
    %c0_40 = arith.constant 0 : index
    %c0_41 = arith.constant 0 : index
    %154 = vector.load %arg10[%c0_40, %c0_41] : memref<1x128xf32, #tpu.memory_space<vmem>>, vector<1x128xf32>
    %c0_42 = arith.constant 0 : index
    %c0_43 = arith.constant 0 : index
    %155 = vector.load %arg11[%c0_42, %c0_43] : memref<1x128xf32, #tpu.memory_space<vmem>>, vector<1x128xf32>
    %156 = arith.addf %153, %3 : vector<2x8x128xf32>
    %cst_44 = arith.constant dense<0.000000e+00> : vector<2x8xf32>
    %157 = vector.multi_reduction <add>, %156, %cst_44 [2] : vector<2x8x128xf32> to vector<2x8xf32>
    %158 = vector.shape_cast %157 : vector<2x8xf32> to vector<2x8x1xf32>
    %cst_45 = arith.constant 3.125000e-02 : f32
    %159 = vector.broadcast %cst_45 : f32 to vector<2x8x1xf32>
    %160 = arith.mulf %158, %159 : vector<2x8x1xf32>
    %161 = arith.mulf %156, %156 : vector<2x8x128xf32>
    %cst_46 = arith.constant dense<0.000000e+00> : vector<2x8xf32>
    %162 = vector.multi_reduction <add>, %161, %cst_46 [2] : vector<2x8x128xf32> to vector<2x8xf32>
    %163 = vector.shape_cast %162 : vector<2x8xf32> to vector<2x8x1xf32>
    %cst_47 = arith.constant 3.125000e-02 : f32
    %164 = vector.broadcast %cst_47 : f32 to vector<2x8x1xf32>
    %165 = arith.mulf %163, %164 : vector<2x8x1xf32>
    %166 = arith.mulf %160, %160 : vector<2x8x1xf32>
    %167 = arith.subf %165, %166 : vector<2x8x1xf32>
    %168 = vector.broadcast %160 : vector<2x8x1xf32> to vector<2x8x128xf32>
    %169 = arith.subf %156, %168 : vector<2x8x128xf32>
    %cst_48 = arith.constant 0.000000e+00 : f32
    %170 = vector.broadcast %cst_48 : f32 to vector<2x8x1xf32>
    %171 = arith.maximumf %167, %170 : vector<2x8x1xf32>
    %cst_49 = arith.constant 9.99999974E-6 : f32
    %172 = vector.broadcast %cst_49 : f32 to vector<2x8x1xf32>
    %173 = arith.addf %171, %172 : vector<2x8x1xf32>
    %174 = math.rsqrt %173 : vector<2x8x1xf32>
    %175 = vector.broadcast %174 : vector<2x8x1xf32> to vector<2x8x128xf32>
    %176 = arith.mulf %169, %175 : vector<2x8x128xf32>
    %177 = vector.shape_cast %154 : vector<1x128xf32> to vector<1x1x128xf32>
    %178 = vector.broadcast %177 : vector<1x1x128xf32> to vector<2x8x128xf32>
    %179 = arith.mulf %176, %178 : vector<2x8x128xf32>
    %180 = vector.shape_cast %155 : vector<1x128xf32> to vector<1x1x128xf32>
    %181 = vector.broadcast %180 : vector<1x1x128xf32> to vector<2x8x128xf32>
    %182 = arith.addf %179, %181 : vector<2x8x128xf32>
    %183 = vector.shape_cast %182 : vector<2x8x128xf32> to vector<16x128xf32>
    %c0_50 = arith.constant 0 : index
    %c0_51 = arith.constant 0 : index
    %184 = vector.load %arg12[%c0_50, %c0_51] : memref<128x128xbf16, #tpu.memory_space<vmem>>, vector<128x128xbf16>
    %185 = arith.truncf %183 : vector<16x128xf32> to vector<16x128xbf16>
    %cst_52 = arith.constant dense<0.000000e+00> : vector<16x128xf32>
    %186 = tpu.matmul %185, %184, %cst_52 {dimension_numbers = #tpu.dot_dimension_numbers<[1], [0], [0], [1], [0, 0, 1, 1], [], []>} : vector<16x128xbf16>, vector<128x128xbf16>, vector<16x128xf32> -> vector<16x128xf32>
    %c0_53 = arith.constant 0 : index
    %c0_54 = arith.constant 0 : index
    %187 = vector.load %arg13[%c0_53, %c0_54] : memref<1x128xf32, #tpu.memory_space<vmem>>, vector<1x128xf32>
    %188 = vector.broadcast %187 : vector<1x128xf32> to vector<16x128xf32>
    %189 = arith.addf %186, %188 : vector<16x128xf32>
    %190 = vector.shape_cast %189 : vector<16x128xf32> to vector<2x8x128xf32>
    %c0_55 = arith.constant 0 : index
    %c0_56 = arith.constant 0 : index
    %c0_57 = arith.constant 0 : index
    %191 = vector.load %arg29[%c0_55, %c0_56, %c0_57] : memref<2x8x256xf32, #tpu.memory_space<vmem>>, vector<2x8x256xf32>
    %192 = vector.extract_strided_slice %191 {offsets = [0, 0, 0], sizes = [2, 8, 128], strides = [1, 1, 1]} : vector<2x8x256xf32> to vector<2x8x128xf32>
    %193 = vector.extract_strided_slice %191 {offsets = [0, 0, 128], sizes = [2, 8, 128], strides = [1, 1, 1]} : vector<2x8x256xf32> to vector<2x8x128xf32>
    %c0_58 = arith.constant 0 : index
    %c0_59 = arith.constant 0 : index
    %c0_60 = arith.constant 0 : index
    %194 = vector.load %arg5[%c0_58, %c0_59, %c0_60] : memref<2x8x8xf32, #tpu.memory_space<vmem>>, vector<2x8x8xf32>
    %195 = arith.truncf %192 : vector<2x8x128xf32> to vector<2x8x128xbf16>
    %196 = arith.truncf %193 : vector<2x8x128xf32> to vector<2x8x128xbf16>
    %197 = tpu.iota {dimensions = array<i32: 1>} : vector<1x128xi32>
    %cst_61 = arith.constant 0.000000e+00 : f32
    %198 = vector.broadcast %cst_61 : f32 to vector<2x8x128xf32>
    %c0_i32_62 = arith.constant 0 : i32
    %199 = vector.broadcast %c0_i32_62 : i32 to vector<1x128xi32>
    %200 = arith.cmpi sge, %197, %199 : vector<1x128xi32>
    %c8_i32_63 = arith.constant 8 : i32
    %201 = vector.broadcast %c8_i32_63 : i32 to vector<1x128xi32>
    %202 = arith.cmpi slt, %197, %201 : vector<1x128xi32>
    %203 = arith.andi %200, %202 : vector<1x128xi1>
    %204 = arith.extui %203 : vector<1x128xi1> to vector<1x128xi32>
    %205 = arith.sitofp %204 : vector<1x128xi32> to vector<1x128xf32>
    %206 = vector.shape_cast %205 : vector<1x128xf32> to vector<1x1x128xf32>
    %207 = vector.broadcast %206 : vector<1x1x128xf32> to vector<2x8x128xf32>
    %208 = arith.mulf %190, %207 : vector<2x8x128xf32>
    %209 = arith.truncf %208 : vector<2x8x128xf32> to vector<2x8x128xbf16>
    "tpu.trace_start"() <{level = 10 : i32, message = "bqd,bkd->bqk"}> : () -> ()
    %cst_64 = arith.constant dense<0.000000e+00> : vector<2x8x8xf32>
    %210 = tpu.matmul %209, %195, %cst_64 {dimension_numbers = #tpu.dot_dimension_numbers<[2], [2], [1], [1], [0, 0, 0, 1, 1, 1], [0], [0]>} : vector<2x8x128xbf16>, vector<2x8x128xbf16>, vector<2x8x8xf32> -> vector<2x8x8xf32>
    "tpu.trace_stop"() : () -> ()
    %cst_65 = arith.constant 0.353553385 : f32
    %211 = vector.broadcast %cst_65 : f32 to vector<2x8x8xf32>
    %212 = arith.mulf %210, %211 : vector<2x8x8xf32>
    %213 = arith.addf %212, %194 : vector<2x8x8xf32>
    %cst_66 = arith.constant dense<0xFF800000> : vector<2x8xf32>
    %214 = vector.multi_reduction <maximumf>, %213, %cst_66 [2] : vector<2x8x8xf32> to vector<2x8xf32>
    %215 = vector.shape_cast %214 : vector<2x8xf32> to vector<2x8x1xf32>
    %216 = vector.broadcast %215 : vector<2x8x1xf32> to vector<2x8x8xf32>
    %217 = arith.subf %213, %216 : vector<2x8x8xf32>
    %218 = math.exp %217 : vector<2x8x8xf32>
    %cst_67 = arith.constant dense<0.000000e+00> : vector<2x8xf32>
    %219 = vector.multi_reduction <add>, %218, %cst_67 [2] : vector<2x8x8xf32> to vector<2x8xf32>
    %220 = vector.shape_cast %219 : vector<2x8xf32> to vector<2x8x1xf32>
    %221 = tpu.reciprocal %220 {approx = true} : vector<2x8x1xf32> -> vector<2x8x1xf32>
    %222 = vector.broadcast %221 : vector<2x8x1xf32> to vector<2x8x8xf32>
    %223 = arith.mulf %218, %222 : vector<2x8x8xf32>
    %224 = arith.truncf %223 : vector<2x8x8xf32> to vector<2x8x8xbf16>
    "tpu.trace_start"() <{level = 10 : i32, message = "bqk,bkd->bqd"}> : () -> ()
    %cst_68 = arith.constant dense<0.000000e+00> : vector<2x8x128xf32>
    %225 = tpu.matmul %224, %196, %cst_68 {dimension_numbers = #tpu.dot_dimension_numbers<[2], [1], [1], [2], [0, 0, 0, 1, 1, 2], [0], [0]>} : vector<2x8x8xbf16>, vector<2x8x128xbf16>, vector<2x8x128xf32> -> vector<2x8x128xf32>
    "tpu.trace_stop"() : () -> ()
    %226 = vector.shape_cast %205 : vector<1x128xf32> to vector<1x1x128xf32>
    %227 = vector.broadcast %226 : vector<1x1x128xf32> to vector<2x8x128xf32>
    %228 = arith.mulf %227, %225 : vector<2x8x128xf32>
    %229 = arith.addf %198, %228 : vector<2x8x128xf32>
    %c8_i32_69 = arith.constant 8 : i32
    %230 = vector.broadcast %c8_i32_69 : i32 to vector<1x128xi32>
    %231 = arith.cmpi sge, %197, %230 : vector<1x128xi32>
    %c16_i32_70 = arith.constant 16 : i32
    %232 = vector.broadcast %c16_i32_70 : i32 to vector<1x128xi32>
    %233 = arith.cmpi slt, %197, %232 : vector<1x128xi32>
    %234 = arith.andi %231, %233 : vector<1x128xi1>
    %235 = arith.extui %234 : vector<1x128xi1> to vector<1x128xi32>
    %236 = arith.sitofp %235 : vector<1x128xi32> to vector<1x128xf32>
    %237 = vector.shape_cast %236 : vector<1x128xf32> to vector<1x1x128xf32>
    %238 = vector.broadcast %237 : vector<1x1x128xf32> to vector<2x8x128xf32>
    %239 = arith.mulf %190, %238 : vector<2x8x128xf32>
    %240 = arith.truncf %239 : vector<2x8x128xf32> to vector<2x8x128xbf16>
    "tpu.trace_start"() <{level = 10 : i32, message = "bqd,bkd->bqk"}> : () -> ()
    %cst_71 = arith.constant dense<0.000000e+00> : vector<2x8x8xf32>
    %241 = tpu.matmul %240, %195, %cst_71 {dimension_numbers = #tpu.dot_dimension_numbers<[2], [2], [1], [1], [0, 0, 0, 1, 1, 1], [0], [0]>} : vector<2x8x128xbf16>, vector<2x8x128xbf16>, vector<2x8x8xf32> -> vector<2x8x8xf32>
    "tpu.trace_stop"() : () -> ()
    %cst_72 = arith.constant 0.353553385 : f32
    %242 = vector.broadcast %cst_72 : f32 to vector<2x8x8xf32>
    %243 = arith.mulf %241, %242 : vector<2x8x8xf32>
    %244 = arith.addf %243, %194 : vector<2x8x8xf32>
    %cst_73 = arith.constant dense<0xFF800000> : vector<2x8xf32>
    %245 = vector.multi_reduction <maximumf>, %244, %cst_73 [2] : vector<2x8x8xf32> to vector<2x8xf32>
    %246 = vector.shape_cast %245 : vector<2x8xf32> to vector<2x8x1xf32>
    %247 = vector.broadcast %246 : vector<2x8x1xf32> to vector<2x8x8xf32>
    %248 = arith.subf %244, %247 : vector<2x8x8xf32>
    %249 = math.exp %248 : vector<2x8x8xf32>
    %cst_74 = arith.constant dense<0.000000e+00> : vector<2x8xf32>
    %250 = vector.multi_reduction <add>, %249, %cst_74 [2] : vector<2x8x8xf32> to vector<2x8xf32>
    %251 = vector.shape_cast %250 : vector<2x8xf32> to vector<2x8x1xf32>
    %252 = tpu.reciprocal %251 {approx = true} : vector<2x8x1xf32> -> vector<2x8x1xf32>
    %253 = vector.broadcast %252 : vector<2x8x1xf32> to vector<2x8x8xf32>
    %254 = arith.mulf %249, %253 : vector<2x8x8xf32>
    %255 = arith.truncf %254 : vector<2x8x8xf32> to vector<2x8x8xbf16>
    "tpu.trace_start"() <{level = 10 : i32, message = "bqk,bkd->bqd"}> : () -> ()
    %cst_75 = arith.constant dense<0.000000e+00> : vector<2x8x128xf32>
    %256 = tpu.matmul %255, %196, %cst_75 {dimension_numbers = #tpu.dot_dimension_numbers<[2], [1], [1], [2], [0, 0, 0, 1, 1, 2], [0], [0]>} : vector<2x8x8xbf16>, vector<2x8x128xbf16>, vector<2x8x128xf32> -> vector<2x8x128xf32>
    "tpu.trace_stop"() : () -> ()
    %257 = vector.shape_cast %236 : vector<1x128xf32> to vector<1x1x128xf32>
    %258 = vector.broadcast %257 : vector<1x1x128xf32> to vector<2x8x128xf32>
    %259 = arith.mulf %258, %256 : vector<2x8x128xf32>
    %260 = arith.addf %229, %259 : vector<2x8x128xf32>
    %c16_i32_76 = arith.constant 16 : i32
    %261 = vector.broadcast %c16_i32_76 : i32 to vector<1x128xi32>
    %262 = arith.cmpi sge, %197, %261 : vector<1x128xi32>
    %c24_i32_77 = arith.constant 24 : i32
    %263 = vector.broadcast %c24_i32_77 : i32 to vector<1x128xi32>
    %264 = arith.cmpi slt, %197, %263 : vector<1x128xi32>
    %265 = arith.andi %262, %264 : vector<1x128xi1>
    %266 = arith.extui %265 : vector<1x128xi1> to vector<1x128xi32>
    %267 = arith.sitofp %266 : vector<1x128xi32> to vector<1x128xf32>
    %268 = vector.shape_cast %267 : vector<1x128xf32> to vector<1x1x128xf32>
    %269 = vector.broadcast %268 : vector<1x1x128xf32> to vector<2x8x128xf32>
    %270 = arith.mulf %190, %269 : vector<2x8x128xf32>
    %271 = arith.truncf %270 : vector<2x8x128xf32> to vector<2x8x128xbf16>
    "tpu.trace_start"() <{level = 10 : i32, message = "bqd,bkd->bqk"}> : () -> ()
    %cst_78 = arith.constant dense<0.000000e+00> : vector<2x8x8xf32>
    %272 = tpu.matmul %271, %195, %cst_78 {dimension_numbers = #tpu.dot_dimension_numbers<[2], [2], [1], [1], [0, 0, 0, 1, 1, 1], [0], [0]>} : vector<2x8x128xbf16>, vector<2x8x128xbf16>, vector<2x8x8xf32> -> vector<2x8x8xf32>
    "tpu.trace_stop"() : () -> ()
    %cst_79 = arith.constant 0.353553385 : f32
    %273 = vector.broadcast %cst_79 : f32 to vector<2x8x8xf32>
    %274 = arith.mulf %272, %273 : vector<2x8x8xf32>
    %275 = arith.addf %274, %194 : vector<2x8x8xf32>
    %cst_80 = arith.constant dense<0xFF800000> : vector<2x8xf32>
    %276 = vector.multi_reduction <maximumf>, %275, %cst_80 [2] : vector<2x8x8xf32> to vector<2x8xf32>
    %277 = vector.shape_cast %276 : vector<2x8xf32> to vector<2x8x1xf32>
    %278 = vector.broadcast %277 : vector<2x8x1xf32> to vector<2x8x8xf32>
    %279 = arith.subf %275, %278 : vector<2x8x8xf32>
    %280 = math.exp %279 : vector<2x8x8xf32>
    %cst_81 = arith.constant dense<0.000000e+00> : vector<2x8xf32>
    %281 = vector.multi_reduction <add>, %280, %cst_81 [2] : vector<2x8x8xf32> to vector<2x8xf32>
    %282 = vector.shape_cast %281 : vector<2x8xf32> to vector<2x8x1xf32>
    %283 = tpu.reciprocal %282 {approx = true} : vector<2x8x1xf32> -> vector<2x8x1xf32>
    %284 = vector.broadcast %283 : vector<2x8x1xf32> to vector<2x8x8xf32>
    %285 = arith.mulf %280, %284 : vector<2x8x8xf32>
    %286 = arith.truncf %285 : vector<2x8x8xf32> to vector<2x8x8xbf16>
    "tpu.trace_start"() <{level = 10 : i32, message = "bqk,bkd->bqd"}> : () -> ()
    %cst_82 = arith.constant dense<0.000000e+00> : vector<2x8x128xf32>
    %287 = tpu.matmul %286, %196, %cst_82 {dimension_numbers = #tpu.dot_dimension_numbers<[2], [1], [1], [2], [0, 0, 0, 1, 1, 2], [0], [0]>} : vector<2x8x8xbf16>, vector<2x8x128xbf16>, vector<2x8x128xf32> -> vector<2x8x128xf32>
    "tpu.trace_stop"() : () -> ()
    %288 = vector.shape_cast %267 : vector<1x128xf32> to vector<1x1x128xf32>
    %289 = vector.broadcast %288 : vector<1x1x128xf32> to vector<2x8x128xf32>
    %290 = arith.mulf %289, %287 : vector<2x8x128xf32>
    %291 = arith.addf %260, %290 : vector<2x8x128xf32>
    %c24_i32_83 = arith.constant 24 : i32
    %292 = vector.broadcast %c24_i32_83 : i32 to vector<1x128xi32>
    %293 = arith.cmpi sge, %197, %292 : vector<1x128xi32>
    %c32_i32_84 = arith.constant 32 : i32
    %294 = vector.broadcast %c32_i32_84 : i32 to vector<1x128xi32>
    %295 = arith.cmpi slt, %197, %294 : vector<1x128xi32>
    %296 = arith.andi %293, %295 : vector<1x128xi1>
    %297 = arith.extui %296 : vector<1x128xi1> to vector<1x128xi32>
    %298 = arith.sitofp %297 : vector<1x128xi32> to vector<1x128xf32>
    %299 = vector.shape_cast %298 : vector<1x128xf32> to vector<1x1x128xf32>
    %300 = vector.broadcast %299 : vector<1x1x128xf32> to vector<2x8x128xf32>
    %301 = arith.mulf %190, %300 : vector<2x8x128xf32>
    %302 = arith.truncf %301 : vector<2x8x128xf32> to vector<2x8x128xbf16>
    "tpu.trace_start"() <{level = 10 : i32, message = "bqd,bkd->bqk"}> : () -> ()
    %cst_85 = arith.constant dense<0.000000e+00> : vector<2x8x8xf32>
    %303 = tpu.matmul %302, %195, %cst_85 {dimension_numbers = #tpu.dot_dimension_numbers<[2], [2], [1], [1], [0, 0, 0, 1, 1, 1], [0], [0]>} : vector<2x8x128xbf16>, vector<2x8x128xbf16>, vector<2x8x8xf32> -> vector<2x8x8xf32>
    "tpu.trace_stop"() : () -> ()
    %cst_86 = arith.constant 0.353553385 : f32
    %304 = vector.broadcast %cst_86 : f32 to vector<2x8x8xf32>
    %305 = arith.mulf %303, %304 : vector<2x8x8xf32>
    %306 = arith.addf %305, %194 : vector<2x8x8xf32>
    %cst_87 = arith.constant dense<0xFF800000> : vector<2x8xf32>
    %307 = vector.multi_reduction <maximumf>, %306, %cst_87 [2] : vector<2x8x8xf32> to vector<2x8xf32>
    %308 = vector.shape_cast %307 : vector<2x8xf32> to vector<2x8x1xf32>
    %309 = vector.broadcast %308 : vector<2x8x1xf32> to vector<2x8x8xf32>
    %310 = arith.subf %306, %309 : vector<2x8x8xf32>
    %311 = math.exp %310 : vector<2x8x8xf32>
    %cst_88 = arith.constant dense<0.000000e+00> : vector<2x8xf32>
    %312 = vector.multi_reduction <add>, %311, %cst_88 [2] : vector<2x8x8xf32> to vector<2x8xf32>
    %313 = vector.shape_cast %312 : vector<2x8xf32> to vector<2x8x1xf32>
    %314 = tpu.reciprocal %313 {approx = true} : vector<2x8x1xf32> -> vector<2x8x1xf32>
    %315 = vector.broadcast %314 : vector<2x8x1xf32> to vector<2x8x8xf32>
    %316 = arith.mulf %311, %315 : vector<2x8x8xf32>
    %317 = arith.truncf %316 : vector<2x8x8xf32> to vector<2x8x8xbf16>
    "tpu.trace_start"() <{level = 10 : i32, message = "bqk,bkd->bqd"}> : () -> ()
    %cst_89 = arith.constant dense<0.000000e+00> : vector<2x8x128xf32>
    %318 = tpu.matmul %317, %196, %cst_89 {dimension_numbers = #tpu.dot_dimension_numbers<[2], [1], [1], [2], [0, 0, 0, 1, 1, 2], [0], [0]>} : vector<2x8x8xbf16>, vector<2x8x128xbf16>, vector<2x8x128xf32> -> vector<2x8x128xf32>
    "tpu.trace_stop"() : () -> ()
    %319 = vector.shape_cast %298 : vector<1x128xf32> to vector<1x1x128xf32>
    %320 = vector.broadcast %319 : vector<1x1x128xf32> to vector<2x8x128xf32>
    %321 = arith.mulf %320, %318 : vector<2x8x128xf32>
    %322 = arith.addf %291, %321 : vector<2x8x128xf32>
    %323 = vector.shape_cast %322 : vector<2x8x128xf32> to vector<16x128xf32>
    %c0_90 = arith.constant 0 : index
    %c0_91 = arith.constant 0 : index
    %324 = vector.load %arg16[%c0_90, %c0_91] : memref<128x128xbf16, #tpu.memory_space<vmem>>, vector<128x128xbf16>
    %325 = arith.truncf %323 : vector<16x128xf32> to vector<16x128xbf16>
    %cst_92 = arith.constant dense<0.000000e+00> : vector<16x128xf32>
    %326 = tpu.matmul %325, %324, %cst_92 {dimension_numbers = #tpu.dot_dimension_numbers<[1], [0], [0], [1], [0, 0, 1, 1], [], []>} : vector<16x128xbf16>, vector<128x128xbf16>, vector<16x128xf32> -> vector<16x128xf32>
    %c0_93 = arith.constant 0 : index
    %c0_94 = arith.constant 0 : index
    %327 = vector.load %arg17[%c0_93, %c0_94] : memref<1x128xf32, #tpu.memory_space<vmem>>, vector<1x128xf32>
    %328 = vector.broadcast %327 : vector<1x128xf32> to vector<16x128xf32>
    %329 = arith.addf %326, %328 : vector<16x128xf32>
    %330 = vector.shape_cast %329 : vector<16x128xf32> to vector<2x8x128xf32>
    %c0_95 = arith.constant 0 : index
    %c0_96 = arith.constant 0 : index
    %331 = vector.load %arg18[%c0_95, %c0_96] : memref<1x128xf32, #tpu.memory_space<vmem>>, vector<1x128xf32>
    %c0_97 = arith.constant 0 : index
    %c0_98 = arith.constant 0 : index
    %332 = vector.load %arg19[%c0_97, %c0_98] : memref<1x128xf32, #tpu.memory_space<vmem>>, vector<1x128xf32>
    %333 = arith.addf %330, %182 : vector<2x8x128xf32>
    %cst_99 = arith.constant dense<0.000000e+00> : vector<2x8xf32>
    %334 = vector.multi_reduction <add>, %333, %cst_99 [2] : vector<2x8x128xf32> to vector<2x8xf32>
    %335 = vector.shape_cast %334 : vector<2x8xf32> to vector<2x8x1xf32>
    %cst_100 = arith.constant 3.125000e-02 : f32
    %336 = vector.broadcast %cst_100 : f32 to vector<2x8x1xf32>
    %337 = arith.mulf %335, %336 : vector<2x8x1xf32>
    %338 = arith.mulf %333, %333 : vector<2x8x128xf32>
    %cst_101 = arith.constant dense<0.000000e+00> : vector<2x8xf32>
    %339 = vector.multi_reduction <add>, %338, %cst_101 [2] : vector<2x8x128xf32> to vector<2x8xf32>
    %340 = vector.shape_cast %339 : vector<2x8xf32> to vector<2x8x1xf32>
    %cst_102 = arith.constant 3.125000e-02 : f32
    %341 = vector.broadcast %cst_102 : f32 to vector<2x8x1xf32>
    %342 = arith.mulf %340, %341 : vector<2x8x1xf32>
    %343 = arith.mulf %337, %337 : vector<2x8x1xf32>
    %344 = arith.subf %342, %343 : vector<2x8x1xf32>
    %345 = vector.broadcast %337 : vector<2x8x1xf32> to vector<2x8x128xf32>
    %346 = arith.subf %333, %345 : vector<2x8x128xf32>
    %cst_103 = arith.constant 0.000000e+00 : f32
    %347 = vector.broadcast %cst_103 : f32 to vector<2x8x1xf32>
    %348 = arith.maximumf %344, %347 : vector<2x8x1xf32>
    %cst_104 = arith.constant 9.99999974E-6 : f32
    %349 = vector.broadcast %cst_104 : f32 to vector<2x8x1xf32>
    %350 = arith.addf %348, %349 : vector<2x8x1xf32>
    %351 = math.rsqrt %350 : vector<2x8x1xf32>
    %352 = vector.broadcast %351 : vector<2x8x1xf32> to vector<2x8x128xf32>
    %353 = arith.mulf %346, %352 : vector<2x8x128xf32>
    %354 = vector.shape_cast %331 : vector<1x128xf32> to vector<1x1x128xf32>
    %355 = vector.broadcast %354 : vector<1x1x128xf32> to vector<2x8x128xf32>
    %356 = arith.mulf %353, %355 : vector<2x8x128xf32>
    %357 = vector.shape_cast %332 : vector<1x128xf32> to vector<1x1x128xf32>
    %358 = vector.broadcast %357 : vector<1x1x128xf32> to vector<2x8x128xf32>
    %359 = arith.addf %356, %358 : vector<2x8x128xf32>
    %360 = vector.shape_cast %359 : vector<2x8x128xf32> to vector<16x128xf32>
    %c0_105 = arith.constant 0 : index
    %c0_106 = arith.constant 0 : index
    %361 = vector.load %arg20[%c0_105, %c0_106] : memref<128x128xbf16, #tpu.memory_space<vmem>>, vector<128x128xbf16>
    %362 = arith.truncf %360 : vector<16x128xf32> to vector<16x128xbf16>
    %cst_107 = arith.constant dense<0.000000e+00> : vector<16x128xf32>
    %363 = tpu.matmul %362, %361, %cst_107 {dimension_numbers = #tpu.dot_dimension_numbers<[1], [0], [0], [1], [0, 0, 1, 1], [], []>} : vector<16x128xbf16>, vector<128x128xbf16>, vector<16x128xf32> -> vector<16x128xf32>
    %c0_108 = arith.constant 0 : index
    %c0_109 = arith.constant 0 : index
    %364 = vector.load %arg21[%c0_108, %c0_109] : memref<1x128xf32, #tpu.memory_space<vmem>>, vector<1x128xf32>
    %365 = vector.broadcast %364 : vector<1x128xf32> to vector<16x128xf32>
    %366 = arith.addf %363, %365 : vector<16x128xf32>
    %cst_110 = arith.constant 0.000000e+00 : f32
    %367 = vector.broadcast %cst_110 : f32 to vector<16x128xf32>
    %368 = arith.maximumf %366, %367 : vector<16x128xf32>
    %c0_111 = arith.constant 0 : index
    %c0_112 = arith.constant 0 : index
    %369 = vector.load %arg22[%c0_111, %c0_112] : memref<128x128xbf16, #tpu.memory_space<vmem>>, vector<128x128xbf16>
    %370 = arith.truncf %368 : vector<16x128xf32> to vector<16x128xbf16>
    %cst_113 = arith.constant dense<0.000000e+00> : vector<16x128xf32>
    %371 = tpu.matmul %370, %369, %cst_113 {dimension_numbers = #tpu.dot_dimension_numbers<[1], [0], [0], [1], [0, 0, 1, 1], [], []>} : vector<16x128xbf16>, vector<128x128xbf16>, vector<16x128xf32> -> vector<16x128xf32>
    %c0_114 = arith.constant 0 : index
    %c0_115 = arith.constant 0 : index
    %372 = vector.load %arg23[%c0_114, %c0_115] : memref<1x128xf32, #tpu.memory_space<vmem>>, vector<1x128xf32>
    %373 = vector.broadcast %372 : vector<1x128xf32> to vector<16x128xf32>
    %374 = arith.addf %371, %373 : vector<16x128xf32>
    %375 = vector.shape_cast %374 : vector<16x128xf32> to vector<2x8x128xf32>
    %c0_116 = arith.constant 0 : index
    %c0_117 = arith.constant 0 : index
    %376 = vector.load %arg24[%c0_116, %c0_117] : memref<1x128xf32, #tpu.memory_space<vmem>>, vector<1x128xf32>
    %c0_118 = arith.constant 0 : index
    %c0_119 = arith.constant 0 : index
    %377 = vector.load %arg25[%c0_118, %c0_119] : memref<1x128xf32, #tpu.memory_space<vmem>>, vector<1x128xf32>
    %378 = arith.addf %375, %359 : vector<2x8x128xf32>
    %cst_120 = arith.constant dense<0.000000e+00> : vector<2x8xf32>
    %379 = vector.multi_reduction <add>, %378, %cst_120 [2] : vector<2x8x128xf32> to vector<2x8xf32>
    %380 = vector.shape_cast %379 : vector<2x8xf32> to vector<2x8x1xf32>
    %cst_121 = arith.constant 3.125000e-02 : f32
    %381 = vector.broadcast %cst_121 : f32 to vector<2x8x1xf32>
    %382 = arith.mulf %380, %381 : vector<2x8x1xf32>
    %383 = arith.mulf %378, %378 : vector<2x8x128xf32>
    %cst_122 = arith.constant dense<0.000000e+00> : vector<2x8xf32>
    %384 = vector.multi_reduction <add>, %383, %cst_122 [2] : vector<2x8x128xf32> to vector<2x8xf32>
    %385 = vector.shape_cast %384 : vector<2x8xf32> to vector<2x8x1xf32>
    %cst_123 = arith.constant 3.125000e-02 : f32
    %386 = vector.broadcast %cst_123 : f32 to vector<2x8x1xf32>
    %387 = arith.mulf %385, %386 : vector<2x8x1xf32>
    %388 = arith.mulf %382, %382 : vector<2x8x1xf32>
    %389 = arith.subf %387, %388 : vector<2x8x1xf32>
    %390 = vector.broadcast %382 : vector<2x8x1xf32> to vector<2x8x128xf32>
    %391 = arith.subf %378, %390 : vector<2x8x128xf32>
    %cst_124 = arith.constant 0.000000e+00 : f32
    %392 = vector.broadcast %cst_124 : f32 to vector<2x8x1xf32>
    %393 = arith.maximumf %389, %392 : vector<2x8x1xf32>
    %cst_125 = arith.constant 9.99999974E-6 : f32
    %394 = vector.broadcast %cst_125 : f32 to vector<2x8x1xf32>
    %395 = arith.addf %393, %394 : vector<2x8x1xf32>
    %396 = math.rsqrt %395 : vector<2x8x1xf32>
    %397 = vector.broadcast %396 : vector<2x8x1xf32> to vector<2x8x128xf32>
    %398 = arith.mulf %391, %397 : vector<2x8x128xf32>
    %399 = vector.shape_cast %376 : vector<1x128xf32> to vector<1x1x128xf32>
    %400 = vector.broadcast %399 : vector<1x1x128xf32> to vector<2x8x128xf32>
    %401 = arith.mulf %398, %400 : vector<2x8x128xf32>
    %402 = vector.shape_cast %377 : vector<1x128xf32> to vector<1x1x128xf32>
    %403 = vector.broadcast %402 : vector<1x1x128xf32> to vector<2x8x128xf32>
    %404 = arith.addf %401, %403 : vector<2x8x128xf32>
    %c0_126 = arith.constant 0 : index
    %c0_127 = arith.constant 0 : index
    %c0_128 = arith.constant 0 : index
    %405 = vector.load %arg28[%c0_126, %c0_127, %c0_128] : memref<2x8x128xf32, #tpu.memory_space<vmem>>, vector<2x8x128xf32>
    tpu.vector_store %arg28[%c0_126, %c0_127, %c0_128], %404 {strides = array<i32>} : memref<2x8x128xf32, #tpu.memory_space<vmem>>, vector<2x8x128xf32>,
    %c1_i32 = arith.constant 1 : i32
    %406 = arith.cmpi eq, %arg1, %c1_i32 : i32
    %407 = arith.extui %406 : i1 to i32
    %c0_i32_129 = arith.constant 0 : i32
    %408 = arith.cmpi ne, %407, %c0_i32_129 : i32
    scf.if %408 {
      %409 = vector.shape_cast %404 : vector<2x8x128xf32> to vector<16x128xf32>
      %c0_130 = arith.constant 0 : index
      %c0_131 = arith.constant 0 : index
      %410 = vector.load %arg26[%c0_130, %c0_131] : memref<128x128xbf16, #tpu.memory_space<vmem>>, vector<128x128xbf16>
      %411 = arith.truncf %409 : vector<16x128xf32> to vector<16x128xbf16>
      %cst_132 = arith.constant dense<0.000000e+00> : vector<16x128xf32>
      %412 = tpu.matmul %411, %410, %cst_132 {dimension_numbers = #tpu.dot_dimension_numbers<[1], [0], [0], [1], [0, 0, 1, 1], [], []>} : vector<16x128xbf16>, vector<128x128xbf16>, vector<16x128xf32> -> vector<16x128xf32>
      %413 = vector.shape_cast %412 : vector<16x128xf32> to vector<2x8x128xf32>
      %c0_133 = arith.constant 0 : index
      %c0_134 = arith.constant 0 : index
      %c0_135 = arith.constant 0 : index
      %414 = vector.load %arg27[%c0_133, %c0_134, %c0_135] : memref<2x8x128xf32, #tpu.memory_space<vmem>>, vector<2x8x128xf32>
      tpu.vector_store %arg27[%c0_133, %c0_134, %c0_135], %413 {strides = array<i32>} : memref<2x8x128xf32, #tpu.memory_space<vmem>>, vector<2x8x128xf32>,
    } else {
    }
    return
  }
  func.func @transform_0(%arg0: i32, %arg1: i32) -> (i32, i32, i32) {
    %c0_i32 = arith.constant 0 : i32
    %c0_i32_0 = arith.constant 0 : i32
    %c0_i32_1 = arith.constant 0 : i32
    return %arg0, %c0_i32, %c0_i32_0 : i32, i32, i32
  }
  func.func @transform_1(%arg0: i32, %arg1: i32) -> (i32, i32, i32) {
    %c0_i32 = arith.constant 0 : i32
    %c0_i32_0 = arith.constant 0 : i32
    %c0_i32_1 = arith.constant 0 : i32
    return %arg0, %c0_i32, %c0_i32_0 : i32, i32, i32
  }
  func.func @transform_2(%arg0: i32, %arg1: i32) -> (i32, i32, i32) {
    %c0_i32 = arith.constant 0 : i32
    %c0_i32_0 = arith.constant 0 : i32
    %c0_i32_1 = arith.constant 0 : i32
    return %arg0, %c0_i32, %c0_i32_0 : i32, i32, i32
  }
  func.func @transform_3(%arg0: i32, %arg1: i32) -> (i32, i32, i32) {
    %c0_i32 = arith.constant 0 : i32
    %c0_i32_0 = arith.constant 0 : i32
    %c0_i32_1 = arith.constant 0 : i32
    return %arg0, %c0_i32, %c0_i32_0 : i32, i32, i32
  }
  func.func @transform_4(%arg0: i32, %arg1: i32) -> (i32, i32) {
    %c0_i32 = arith.constant 0 : i32
    %c0_i32_0 = arith.constant 0 : i32
    %c0_i32_1 = arith.constant 0 : i32
    return %c0_i32, %c0_i32_0 : i32, i32
  }
  func.func @transform_5(%arg0: i32, %arg1: i32) -> (i32, i32) {
    %c0_i32 = arith.constant 0 : i32
    %c0_i32_0 = arith.constant 0 : i32
    %c0_i32_1 = arith.constant 0 : i32
    return %c0_i32, %c0_i32_0 : i32, i32
  }
  func.func @transform_6(%arg0: i32, %arg1: i32) -> (i32, i32) {
    %c0_i32 = arith.constant 0 : i32
    %c0_i32_0 = arith.constant 0 : i32
    %c0_i32_1 = arith.constant 0 : i32
    return %c0_i32, %c0_i32_0 : i32, i32
  }
  func.func @transform_7(%arg0: i32, %arg1: i32) -> (i32, i32) {
    %c0_i32 = arith.constant 0 : i32
    %c0_i32_0 = arith.constant 0 : i32
    %c0_i32_1 = arith.constant 0 : i32
    return %c0_i32, %c0_i32_0 : i32, i32
  }
  func.func @transform_8(%arg0: i32, %arg1: i32) -> (i32, i32) {
    %c0_i32 = arith.constant 0 : i32
    %c0_i32_0 = arith.constant 0 : i32
    %c0_i32_1 = arith.constant 0 : i32
    return %c0_i32, %c0_i32_0 : i32, i32
  }
  func.func @transform_9(%arg0: i32, %arg1: i32) -> (i32, i32) {
    %c0_i32 = arith.constant 0 : i32
    %c0_i32_0 = arith.constant 0 : i32
    %c0_i32_1 = arith.constant 0 : i32
    return %c0_i32, %c0_i32_0 : i32, i32
  }
  func.func @transform_10(%arg0: i32, %arg1: i32) -> (i32, i32) {
    %c0_i32 = arith.constant 0 : i32
    %c0_i32_0 = arith.constant 0 : i32
    %c0_i32_1 = arith.constant 0 : i32
    return %c0_i32, %c0_i32_0 : i32, i32
  }
  func.func @transform_11(%arg0: i32, %arg1: i32) -> (i32, i32) {
    %c0_i32 = arith.constant 0 : i32
    %c0_i32_0 = arith.constant 0 : i32
    %c0_i32_1 = arith.constant 0 : i32
    return %c0_i32, %c0_i32_0 : i32, i32
  }
  func.func @transform_12(%arg0: i32, %arg1: i32) -> (i32, i32) {
    %c0_i32 = arith.constant 0 : i32
    %c0_i32_0 = arith.constant 0 : i32
    %c0_i32_1 = arith.constant 0 : i32
    return %c0_i32, %c0_i32_0 : i32, i32
  }
  func.func @transform_13(%arg0: i32, %arg1: i32) -> (i32, i32) {
    %c0_i32 = arith.constant 0 : i32
    %c0_i32_0 = arith.constant 0 : i32
    %c0_i32_1 = arith.constant 0 : i32
    return %c0_i32, %c0_i32_0 : i32, i32
  }
  func.func @transform_14(%arg0: i32, %arg1: i32) -> (i32, i32) {
    %c0_i32 = arith.constant 0 : i32
    %c0_i32_0 = arith.constant 0 : i32
    %c0_i32_1 = arith.constant 0 : i32
    return %c0_i32, %c0_i32_0 : i32, i32
  }
  func.func @transform_15(%arg0: i32, %arg1: i32) -> (i32, i32) {
    %c0_i32 = arith.constant 0 : i32
    %c0_i32_0 = arith.constant 0 : i32
    %c0_i32_1 = arith.constant 0 : i32
    return %c0_i32, %c0_i32_0 : i32, i32
  }
  func.func @transform_16(%arg0: i32, %arg1: i32) -> (i32, i32) {
    %c0_i32 = arith.constant 0 : i32
    %c0_i32_0 = arith.constant 0 : i32
    %c0_i32_1 = arith.constant 0 : i32
    return %c0_i32, %c0_i32_0 : i32, i32
  }
  func.func @transform_17(%arg0: i32, %arg1: i32) -> (i32, i32) {
    %c0_i32 = arith.constant 0 : i32
    %c0_i32_0 = arith.constant 0 : i32
    %c0_i32_1 = arith.constant 0 : i32
    return %c0_i32, %c0_i32_0 : i32, i32
  }
  func.func @transform_18(%arg0: i32, %arg1: i32) -> (i32, i32) {
    %c0_i32 = arith.constant 0 : i32
    %c0_i32_0 = arith.constant 0 : i32
    %c0_i32_1 = arith.constant 0 : i32
    return %c0_i32, %c0_i32_0 : i32, i32
  }
  func.func @transform_19(%arg0: i32, %arg1: i32) -> (i32, i32) {
    %c0_i32 = arith.constant 0 : i32
    %c0_i32_0 = arith.constant 0 : i32
    %c0_i32_1 = arith.constant 0 : i32
    return %c0_i32, %c0_i32_0 : i32, i32
  }
  func.func @transform_20(%arg0: i32, %arg1: i32) -> (i32, i32) {
    %c0_i32 = arith.constant 0 : i32
    %c0_i32_0 = arith.constant 0 : i32
    %c0_i32_1 = arith.constant 0 : i32
    return %c0_i32, %c0_i32_0 : i32, i32
  }
  func.func @transform_21(%arg0: i32, %arg1: i32) -> (i32, i32) {
    %c0_i32 = arith.constant 0 : i32
    %c0_i32_0 = arith.constant 0 : i32
    %c0_i32_1 = arith.constant 0 : i32
    return %c0_i32, %c0_i32_0 : i32, i32
  }
  func.func @transform_22(%arg0: i32, %arg1: i32) -> (i32, i32) {
    %c0_i32 = arith.constant 0 : i32
    %c0_i32_0 = arith.constant 0 : i32
    %c0_i32_1 = arith.constant 0 : i32
    return %c0_i32, %c0_i32_0 : i32, i32
  }
  func.func @transform_23(%arg0: i32, %arg1: i32) -> (i32, i32) {
    %c0_i32 = arith.constant 0 : i32
    %c0_i32_0 = arith.constant 0 : i32
    %c0_i32_1 = arith.constant 0 : i32
    return %c0_i32, %c0_i32_0 : i32, i32
  }
  func.func @transform_24(%arg0: i32, %arg1: i32) -> (i32, i32) {
    %c0_i32 = arith.constant 0 : i32
    %c0_i32_0 = arith.constant 0 : i32
    %c0_i32_1 = arith.constant 0 : i32
    return %c0_i32, %c0_i32_0 : i32, i32
  }
  func.func @transform_25(%arg0: i32, %arg1: i32) -> (i32, i32, i32) {
    %c0_i32 = arith.constant 0 : i32
    %c0_i32_0 = arith.constant 0 : i32
    %c0_i32_1 = arith.constant 0 : i32
    return %arg0, %c0_i32, %c0_i32_0 : i32, i32, i32
  }
}

</mosaic_0001>

<llo_original>
// kernel: transformer_forward.2
$region0: #{transformer_forward.2}
  #allocation0 [shape = 'u32[]', space=smem, size = 0x4, offset = 0x4, fixed_abs, tag = 'smem constant byte address 0x4 - core index']
  #allocation1 [shape = 'u32[144,128]{1,0:T(1,128)}', space=vmem, size = 0x12000, scoped, tag = 'internal scratch']
  %s0 = inlined_call_operand.vmem [shape: f32[2,8,128], index: 0, kind: input, shape index: {}]
  %s1 = inlined_call_operand.vmem [shape: f32[2,8,8], index: 1, kind: input, shape index: {}]
  %s2 = inlined_call_operand.vmem [shape: bf16[128,384], index: 2, kind: input, shape index: {}]
  %s3 = inlined_call_operand.vmem [shape: f32[1,384], index: 3, kind: input, shape index: {}]
  %s4 = inlined_call_operand.vmem [shape: bf16[128,128], index: 4, kind: input, shape index: {}]
  %s5 = inlined_call_operand.vmem [shape: f32[1,128], index: 5, kind: input, shape index: {}]
  %s6 = inlined_call_operand.vmem [shape: f32[1,128], index: 6, kind: input, shape index: {}]
  %s7 = inlined_call_operand.vmem [shape: f32[1,128], index: 7, kind: input, shape index: {}]
  %s8 = inlined_call_operand.vmem [shape: bf16[128,128], index: 8, kind: input, shape index: {}]
  %s9 = inlined_call_operand.vmem [shape: f32[1,128], index: 9, kind: input, shape index: {}]
  %s10 = inlined_call_operand.vmem [shape: bf16[128,128], index: 10, kind: input, shape index: {}]
  %s11 = inlined_call_operand.vmem [shape: f32[1,128], index: 11, kind: input, shape index: {}]
  %s12 = inlined_call_operand.vmem [shape: f32[1,128], index: 12, kind: input, shape index: {}]
  %s13 = inlined_call_operand.vmem [shape: f32[1,128], index: 13, kind: input, shape index: {}]
  %s14 = inlined_call_operand.vmem [shape: f32[2,8,128], index: 14, kind: output, shape index: {}]
  %s15 = sld [smem:[#allocation0]]
  $region93: #{transformer_forward.2} parent=0
    _
  %s17 = ssub.s32 1, %s15
  %s18 = scalar_select 0, %s17, %s15
  loop: start=0, step=1, limit=4
  $region2: #{transformer_forward.2} parent=0 // loop_pre_header
    _
  $region3: #{transformer_forward.2} parent=0 // loop_header
    %s20 = sphi 0, %s24
    %p21 = scmp.ge.s32.totalorder %s20, 4
    %s27 = sphi 0, %s39
    %s28 = sphi 0, %s35
    %s29 = sphi 0, %s27
    %s30 = sphi 0, %s28
    %s31 = sphi 0, %s29
    %s32 = sphi 0, %s30
    %s42 = sphi 0, %s44
    %s45 = sphi 0, %s42
    %s46 = sphi 0, %s45
    %s62 = sphi 0, %s46
    %s68 = sphi 0, %s70
    %s71 = sphi 0, %s68
    %s72 = sphi 0, %s71
    %s88 = sphi 0, %s72
    %s92 = sphi 0, %s92
    %s94 = sphi 0, %s92
    %s95 = sphi 0, %s94
    %s109 = sphi 0, %s95
    %s113 = sphi 0, %s113
    %s115 = sphi 0, %s113
    %s116 = sphi 0, %s115
    %s130 = sphi 0, %s116
    %s134 = sphi 0, %s134
    %s136 = sphi 0, %s134
    %s137 = sphi 0, %s136
    %s151 = sphi 0, %s137
    %s155 = sphi 0, %s155
    %s157 = sphi 0, %s155
    %s158 = sphi 0, %s157
    %s172 = sphi 0, %s158
    %s176 = sphi 0, %s176
    %s178 = sphi 0, %s176
    %s179 = sphi 0, %s178
    %s193 = sphi 0, %s179
    %s197 = sphi 0, %s197
    %s199 = sphi 0, %s197
    %s200 = sphi 0, %s199
    %s214 = sphi 0, %s200
    %s218 = sphi 0, %s218
    %s220 = sphi 0, %s218
    %s221 = sphi 0, %s220
    %s235 = sphi 0, %s221
    %s239 = sphi 0, %s239
    %s241 = sphi 0, %s239
    %s242 = sphi 0, %s241
    %s256 = sphi 0, %s242
    %s260 = sphi 0, %s260
    %s262 = sphi 0, %s260
    %s263 = sphi 0, %s262
    %s277 = sphi 0, %s263
    %s281 = sphi 0, %s281
    %s283 = sphi 0, %s281
    %s284 = sphi 0, %s283
    %s298 = sphi 0, %s284
    %s302 = sphi 0, %s302
    %s304 = sphi 0, %s302
    %s305 = sphi 0, %s304
    %s319 = sphi 0, %s305
    %s323 = sphi 0, %s323
    %s325 = sphi 0, %s323
    %s326 = sphi 0, %s325
    %s340 = sphi 0, %s326
    %s346 = sphi 0, %s348
    %s349 = sphi 0, %s346
    %s350 = sphi 0, %s349
    %s366 = sphi 0, %s350
  $region4: #{transformer_forward.2} parent=0 // loop_header_branch
    %23 = sbr.rel (%p21) target = $region8
  $region5: #{transformer_forward.2} parent=0 // loop_body
    %s25 = ssub.s32 %s20, 1
    %s26 = ssub.s32 %s20, 2
    %s33 = sadd.s32 1, %s28
    %p34 = scmp.ge.s32.totalorder %s33, 2
    %s35 = scalar_select %p34, 0, %s33
    %s36 = sadd.s32 1, %s27
    %s37 = scalar_select %p34, %s36, %s27
    %p38 = scmp.ge.s32.totalorder %s37, 1
    %s39 = scalar_select %p38, 0, %s37
    %s40 = ssub.s32 %s27, %s39
    %p41 = scmp.eq.s32.totalorder %s40, 0
    %s43 = sadd.s32 %s42, 1
    %s44 = scalar_select %p41, %s42, %s43
    %p47 = pneg %p41
    %p48 = scmp.eq.s32.totalorder %s20, 1
    %p49 = por %p47, %p48
    %p50 = scmp.ne.s32.totalorder %s42, %s45
    %p51 = scmp.eq.s32.totalorder %s20, 0
    %p52 = por %p50, %p51
    %p53 = scmp.ne.s32.totalorder %s42, %s45
    %p54 = scmp.eq.s32.totalorder %s25, 1
    %p55 = por %p53, %p54
    %p56 = scmp.ne.s32.totalorder %s45, %s46
    %p57 = scmp.eq.s32.totalorder %s25, 0
    %p58 = por %p56, %p57
    %p59 = scmp.ne.s32.totalorder %s45, %s46
    %p60 = scmp.eq.s32.totalorder %s26, 1
    %p61 = por %p59, %p60
    %p63 = scmp.ne.s32.totalorder %s46, %s62
    %p64 = scmp.eq.s32.totalorder %s26, 0
    %p65 = por %p63, %p64
    %s66 = ssub.s32 %s27, %s39
    %p67 = scmp.eq.s32.totalorder %s66, 0
    %s69 = sadd.s32 %s68, 1
    %s70 = scalar_select %p67, %s68, %s69
    %p73 = pneg %p67
    %p74 = scmp.eq.s32.totalorder %s20, 1
    %p75 = por %p73, %p74
    %p76 = scmp.ne.s32.totalorder %s68, %s71
    %p77 = scmp.eq.s32.totalorder %s20, 0
    %p78 = por %p76, %p77
    %p79 = scmp.ne.s32.totalorder %s68, %s71
    %p80 = scmp.eq.s32.totalorder %s25, 1
    %p81 = por %p79, %p80
    %p82 = scmp.ne.s32.totalorder %s71, %s72
    %p83 = scmp.eq.s32.totalorder %s25, 0
    %p84 = por %p82, %p83
    %p85 = scmp.ne.s32.totalorder %s71, %s72
    %p86 = scmp.eq.s32.totalorder %s26, 1
    %p87 = por %p85, %p86
    %p89 = scmp.ne.s32.totalorder %s72, %s88
    %p90 = scmp.eq.s32.totalorder %s26, 0
    %p91 = por %p89, %p90
    %s93 = sadd.s32 %s92, 1
    %p96 = scmp.eq.s32.totalorder %s20, 1
    %p97 = scmp.ne.s32.totalorder %s92, %s94
    %p98 = scmp.eq.s32.totalorder %s20, 0
    %p99 = por %p97, %p98
    %p100 = scmp.ne.s32.totalorder %s92, %s94
    %p101 = scmp.eq.s32.totalorder %s25, 1
    %p102 = por %p100, %p101
    %p103 = scmp.ne.s32.totalorder %s94, %s95
    %p104 = scmp.eq.s32.totalorder %s25, 0
    %p105 = por %p103, %p104
    %p106 = scmp.ne.s32.totalorder %s94, %s95
    %p107 = scmp.eq.s32.totalorder %s26, 1
    %p108 = por %p106, %p107
    %p110 = scmp.ne.s32.totalorder %s95, %s109
    %p111 = scmp.eq.s32.totalorder %s26, 0
    %p112 = por %p110, %p111
    %s114 = sadd.s32 %s113, 1
    %p117 = scmp.eq.s32.totalorder %s20, 1
    %p118 = scmp.ne.s32.totalorder %s113, %s115
    %p119 = scmp.eq.s32.totalorder %s20, 0
    %p120 = por %p118, %p119
    %p121 = scmp.ne.s32.totalorder %s113, %s115
    %p122 = scmp.eq.s32.totalorder %s25, 1
    %p123 = por %p121, %p122
    %p124 = scmp.ne.s32.totalorder %s115, %s116
    %p125 = scmp.eq.s32.totalorder %s25, 0
    %p126 = por %p124, %p125
    %p127 = scmp.ne.s32.totalorder %s115, %s116
    %p128 = scmp.eq.s32.totalorder %s26, 1
    %p129 = por %p127, %p128
    %p131 = scmp.ne.s32.totalorder %s116, %s130
    %p132 = scmp.eq.s32.totalorder %s26, 0
    %p133 = por %p131, %p132
    %s135 = sadd.s32 %s134, 1
    %p138 = scmp.eq.s32.totalorder %s20, 1
    %p139 = scmp.ne.s32.totalorder %s134, %s136
    %p140 = scmp.eq.s32.totalorder %s20, 0
    %p141 = por %p139, %p140
    %p142 = scmp.ne.s32.totalorder %s134, %s136
    %p143 = scmp.eq.s32.totalorder %s25, 1
    %p144 = por %p142, %p143
    %p145 = scmp.ne.s32.totalorder %s136, %s137
    %p146 = scmp.eq.s32.totalorder %s25, 0
    %p147 = por %p145, %p146
    %p148 = scmp.ne.s32.totalorder %s136, %s137
    %p149 = scmp.eq.s32.totalorder %s26, 1
    %p150 = por %p148, %p149
    %p152 = scmp.ne.s32.totalorder %s137, %s151
    %p153 = scmp.eq.s32.totalorder %s26, 0
    %p154 = por %p152, %p153
    %s156 = sadd.s32 %s155, 1
    %p159 = scmp.eq.s32.totalorder %s20, 1
    %p160 = scmp.ne.s32.totalorder %s155, %s157
    %p161 = scmp.eq.s32.totalorder %s20, 0
    %p162 = por %p160, %p161
    %p163 = scmp.ne.s32.totalorder %s155, %s157
    %p164 = scmp.eq.s32.totalorder %s25, 1
    %p165 = por %p163, %p164
    %p166 = scmp.ne.s32.totalorder %s157, %s158
    %p167 = scmp.eq.s32.totalorder %s25, 0
    %p168 = por %p166, %p167
    %p169 = scmp.ne.s32.totalorder %s157, %s158
    %p170 = scmp.eq.s32.totalorder %s26, 1
    %p171 = por %p169, %p170
    %p173 = scmp.ne.s32.totalorder %s158, %s172
    %p174 = scmp.eq.s32.totalorder %s26, 0
    %p175 = por %p173, %p174
    %s177 = sadd.s32 %s176, 1
    %p180 = scmp.eq.s32.totalorder %s20, 1
    %p181 = scmp.ne.s32.totalorder %s176, %s178
    %p182 = scmp.eq.s32.totalorder %s20, 0
    %p183 = por %p181, %p182
    %p184 = scmp.ne.s32.totalorder %s176, %s178
    %p185 = scmp.eq.s32.totalorder %s25, 1
    %p186 = por %p184, %p185
    %p187 = scmp.ne.s32.totalorder %s178, %s179
    %p188 = scmp.eq.s32.totalorder %s25, 0
    %p189 = por %p187, %p188
    %p190 = scmp.ne.s32.totalorder %s178, %s179
    %p191 = scmp.eq.s32.totalorder %s26, 1
    %p192 = por %p190, %p191
    %p194 = scmp.ne.s32.totalorder %s179, %s193
    %p195 = scmp.eq.s32.totalorder %s26, 0
    %p196 = por %p194, %p195
    %s198 = sadd.s32 %s197, 1
    %p201 = scmp.eq.s32.totalorder %s20, 1
    %p202 = scmp.ne.s32.totalorder %s197, %s199
    %p203 = scmp.eq.s32.totalorder %s20, 0
    %p204 = por %p202, %p203
    %p205 = scmp.ne.s32.totalorder %s197, %s199
    %p206 = scmp.eq.s32.totalorder %s25, 1
    %p207 = por %p205, %p206
    %p208 = scmp.ne.s32.totalorder %s199, %s200
    %p209 = scmp.eq.s32.totalorder %s25, 0
    %p210 = por %p208, %p209
    %p211 = scmp.ne.s32.totalorder %s199, %s200
    %p212 = scmp.eq.s32.totalorder %s26, 1
    %p213 = por %p211, %p212
    %p215 = scmp.ne.s32.totalorder %s200, %s214
    %p216 = scmp.eq.s32.totalorder %s26, 0
    %p217 = por %p215, %p216
    %s219 = sadd.s32 %s218, 1
    %p222 = scmp.eq.s32.totalorder %s20, 1
    %p223 = scmp.ne.s32.totalorder %s218, %s220
    %p224 = scmp.eq.s32.totalorder %s20, 0
    %p225 = por %p223, %p224
    %p226 = scmp.ne.s32.totalorder %s218, %s220
    %p227 = scmp.eq.s32.totalorder %s25, 1
    %p228 = por %p226, %p227
    %p229 = scmp.ne.s32.totalorder %s220, %s221
    %p230 = scmp.eq.s32.totalorder %s25, 0
    %p231 = por %p229, %p230
    %p232 = scmp.ne.s32.totalorder %s220, %s221
    %p233 = scmp.eq.s32.totalorder %s26, 1
    %p234 = por %p232, %p233
    %p236 = scmp.ne.s32.totalorder %s221, %s235
    %p237 = scmp.eq.s32.totalorder %s26, 0
    %p238 = por %p236, %p237
    %s240 = sadd.s32 %s239, 1
    %p243 = scmp.eq.s32.totalorder %s20, 1
    %p244 = scmp.ne.s32.totalorder %s239, %s241
    %p245 = scmp.eq.s32.totalorder %s20, 0
    %p246 = por %p244, %p245
    %p247 = scmp.ne.s32.totalorder %s239, %s241
    %p248 = scmp.eq.s32.totalorder %s25, 1
    %p249 = por %p247, %p248
    %p250 = scmp.ne.s32.totalorder %s241, %s242
    %p251 = scmp.eq.s32.totalorder %s25, 0
    %p252 = por %p250, %p251
    %p253 = scmp.ne.s32.totalorder %s241, %s242
    %p254 = scmp.eq.s32.totalorder %s26, 1
    %p255 = por %p253, %p254
    %p257 = scmp.ne.s32.totalorder %s242, %s256
    %p258 = scmp.eq.s32.totalorder %s26, 0
    %p259 = por %p257, %p258
    %s261 = sadd.s32 %s260, 1
    %p264 = scmp.eq.s32.totalorder %s20, 1
    %p265 = scmp.ne.s32.totalorder %s260, %s262
    %p266 = scmp.eq.s32.totalorder %s20, 0
    %p267 = por %p265, %p266
    %p268 = scmp.ne.s32.totalorder %s260, %s262
    %p269 = scmp.eq.s32.totalorder %s25, 1
    %p270 = por %p268, %p269
    %p271 = scmp.ne.s32.totalorder %s262, %s263
    %p272 = scmp.eq.s32.totalorder %s25, 0
    %p273 = por %p271, %p272
    %p274 = scmp.ne.s32.totalorder %s262, %s263
    %p275 = scmp.eq.s32.totalorder %s26, 1
    %p276 = por %p274, %p275
    %p278 = scmp.ne.s32.totalorder %s263, %s277
    %p279 = scmp.eq.s32.totalorder %s26, 0
    %p280 = por %p278, %p279
    %s282 = sadd.s32 %s281, 1
    %p285 = scmp.eq.s32.totalorder %s20, 1
    %p286 = scmp.ne.s32.totalorder %s281, %s283
    %p287 = scmp.eq.s32.totalorder %s20, 0
    %p288 = por %p286, %p287
    %p289 = scmp.ne.s32.totalorder %s281, %s283
    %p290 = scmp.eq.s32.totalorder %s25, 1
    %p291 = por %p289, %p290
    %p292 = scmp.ne.s32.totalorder %s283, %s284
    %p293 = scmp.eq.s32.totalorder %s25, 0
    %p294 = por %p292, %p293
    %p295 = scmp.ne.s32.totalorder %s283, %s284
    %p296 = scmp.eq.s32.totalorder %s26, 1
    %p297 = por %p295, %p296
    %p299 = scmp.ne.s32.totalorder %s284, %s298
    %p300 = scmp.eq.s32.totalorder %s26, 0
    %p301 = por %p299, %p300
    %s303 = sadd.s32 %s302, 1
    %p306 = scmp.eq.s32.totalorder %s20, 1
    %p307 = scmp.ne.s32.totalorder %s302, %s304
    %p308 = scmp.eq.s32.totalorder %s20, 0
    %p309 = por %p307, %p308
    %p310 = scmp.ne.s32.totalorder %s302, %s304
    %p311 = scmp.eq.s32.totalorder %s25, 1
    %p312 = por %p310, %p311
    %p313 = scmp.ne.s32.totalorder %s304, %s305
    %p314 = scmp.eq.s32.totalorder %s25, 0
    %p315 = por %p313, %p314
    %p316 = scmp.ne.s32.totalorder %s304, %s305
    %p317 = scmp.eq.s32.totalorder %s26, 1
    %p318 = por %p316, %p317
    %p320 = scmp.ne.s32.totalorder %s305, %s319
    %p321 = scmp.eq.s32.totalorder %s26, 0
    %p322 = por %p320, %p321
    %s324 = sadd.s32 %s323, 1
    %p327 = scmp.eq.s32.totalorder %s20, 1
    %p328 = scmp.ne.s32.totalorder %s323, %s325
    %p329 = scmp.eq.s32.totalorder %s20, 0
    %p330 = por %p328, %p329
    %p331 = scmp.ne.s32.totalorder %s323, %s325
    %p332 = scmp.eq.s32.totalorder %s25, 1
    %p333 = por %p331, %p332
    %p334 = scmp.ne.s32.totalorder %s325, %s326
    %p335 = scmp.eq.s32.totalorder %s25, 0
    %p336 = por %p334, %p335
    %p337 = scmp.ne.s32.totalorder %s325, %s326
    %p338 = scmp.eq.s32.totalorder %s26, 1
    %p339 = por %p337, %p338
    %p341 = scmp.ne.s32.totalorder %s326, %s340
    %p342 = scmp.eq.s32.totalorder %s26, 0
    %p343 = por %p341, %p342
    %s344 = ssub.s32 %s27, %s39
    %p345 = scmp.eq.s32.totalorder %s344, 0
    %s347 = sadd.s32 %s346, 1
    %s348 = scalar_select %p345, %s346, %s347
    %p351 = pneg %p345
    %p352 = scmp.eq.s32.totalorder %s20, 1
    %p353 = por %p351, %p352
    %p354 = scmp.ne.s32.totalorder %s346, %s349
    %p355 = scmp.eq.s32.totalorder %s20, 0
    %p356 = por %p354, %p355
    %p357 = scmp.ne.s32.totalorder %s346, %s349
    %p358 = scmp.eq.s32.totalorder %s25, 1
    %p359 = por %p357, %p358
    %p360 = scmp.ne.s32.totalorder %s349, %s350
    %p361 = scmp.eq.s32.totalorder %s25, 0
    %p362 = por %p360, %p361
    %p363 = scmp.ne.s32.totalorder %s349, %s350
    %p364 = scmp.eq.s32.totalorder %s26, 1
    %p365 = por %p363, %p364
    %p367 = scmp.ne.s32.totalorder %s350, %s366
    %p368 = scmp.eq.s32.totalorder %s26, 0
    %p369 = por %p367, %p368
    %p370 = scmp.le.s32.totalorder 1, %s20
    %p371 = scmp.lt.s32.totalorder %s20, 3
    %p372 = pnand %p370, %p371
    %p373 = pneg %p372
    // Predicated region
    $region9: #{transformer_forward.2} parent=5 // pred_check
      _
    $region10: #{transformer_forward.2} parent=5 // pred_check_branch
      %375 = sbr.rel (%p372) target = $region12
    $region11: #{transformer_forward.2} parent=5 // pred_region
      %s376 = ssub.s32 %s20, 1
      // Predicated region
      $region13: #{transformer_forward.2} parent=11 // pred_check
        %p377 = pneg %p58
      $region14: #{transformer_forward.2} parent=11 // pred_check_branch
        %379 = sbr.rel (%p377) target = $region16
      $region15: #{transformer_forward.2} parent=11 // pred_region
        %s380 = smul.u32 2, %s29
        %p381 = scmp.lt.s32.totalorder %s380, 1
        %s382 = scalar_select %p381, %s380, 1
        %s383 = smul.addr %s382, 8
        %s384 = scalar_lea.vmem %s0, %s383
        %s385 = smul.u32 2, %s29
      $region16: #{transformer_forward.2} parent=11 // pred_fallthru
        _
      // Predicated region
      $region17: #{transformer_forward.2} parent=11 // pred_check
        %p386 = pneg %p84
      $region18: #{transformer_forward.2} parent=11 // pred_check_branch
        %388 = sbr.rel (%p386) target = $region20
      $region19: #{transformer_forward.2} parent=11 // pred_region
        %s389 = smul.u32 2, %s29
        %p390 = scmp.lt.s32.totalorder %s389, 1
        %s391 = scalar_select %p390, %s389, 1
        %s392 = smul.addr %s391, 8
        %s393 = scalar_lea.vmem %s1, %s392
        %s394 = smul.u32 2, %s29
      $region20: #{transformer_forward.2} parent=11 // pred_fallthru
        _
      // Predicated region
      $region21: #{transformer_forward.2} parent=11 // pred_check
        %p395 = pneg %p105
      $region22: #{transformer_forward.2} parent=11 // pred_check_branch
        %397 = sbr.rel (%p395) target = $region24
      $region23: #{transformer_forward.2} parent=11 // pred_region
        _
      $region24: #{transformer_forward.2} parent=11 // pred_fallthru
        _
      // Predicated region
      $region25: #{transformer_forward.2} parent=11 // pred_check
        %p398 = pneg %p126
      $region26: #{transformer_forward.2} parent=11 // pred_check_branch
        %400 = sbr.rel (%p398) target = $region28
      $region27: #{transformer_forward.2} parent=11 // pred_region
        _
      $region28: #{transformer_forward.2} parent=11 // pred_fallthru
        _
      // Predicated region
      $region29: #{transformer_forward.2} parent=11 // pred_check
        %p401 = pneg %p147
      $region30: #{transformer_forward.2} parent=11 // pred_check_branch
        %403 = sbr.rel (%p401) target = $region32
      $region31: #{transformer_forward.2} parent=11 // pred_region
        _
      $region32: #{transformer_forward.2} parent=11 // pred_fallthru
        _
      // Predicated region
      $region33: #{transformer_forward.2} parent=11 // pred_check
        %p404 = pneg %p168
      $region34: #{transformer_forward.2} parent=11 // pred_check_branch
        %406 = sbr.rel (%p404) target = $region36
      $region35: #{transformer_forward.2} parent=11 // pred_region
        _
      $region36: #{transformer_forward.2} parent=11 // pred_fallthru
        _
      // Predicated region
      $region37: #{transformer_forward.2} parent=11 // pred_check
        %p407 = pneg %p189
      $region38: #{transformer_forward.2} parent=11 // pred_check_branch
        %409 = sbr.rel (%p407) target = $region40
      $region39: #{transformer_forward.2} parent=11 // pred_region
        _
      $region40: #{transformer_forward.2} parent=11 // pred_fallthru
        _
      // Predicated region
      $region41: #{transformer_forward.2} parent=11 // pred_check
        %p410 = pneg %p210
      $region42: #{transformer_forward.2} parent=11 // pred_check_branch
        %412 = sbr.rel (%p410) target = $region44
      $region43: #{transformer_forward.2} parent=11 // pred_region
        _
      $region44: #{transformer_forward.2} parent=11 // pred_fallthru
        _
      // Predicated region
      $region45: #{transformer_forward.2} parent=11 // pred_check
        %p413 = pneg %p231
      $region46: #{transformer_forward.2} parent=11 // pred_check_branch
        %415 = sbr.rel (%p413) target = $region48
      $region47: #{transformer_forward.2} parent=11 // pred_region
        _
      $region48: #{transformer_forward.2} parent=11 // pred_fallthru
        _
      // Predicated region
      $region49: #{transformer_forward.2} parent=11 // pred_check
        %p416 = pneg %p252
      $region50: #{transformer_forward.2} parent=11 // pred_check_branch
        %418 = sbr.rel (%p416) target = $region52
      $region51: #{transformer_forward.2} parent=11 // pred_region
        _
      $region52: #{transformer_forward.2} parent=11 // pred_fallthru
        _
      // Predicated region
      $region53: #{transformer_forward.2} parent=11 // pred_check
        %p419 = pneg %p273
      $region54: #{transformer_forward.2} parent=11 // pred_check_branch
        %421 = sbr.rel (%p419) target = $region56
      $region55: #{transformer_forward.2} parent=11 // pred_region
        _
      $region56: #{transformer_forward.2} parent=11 // pred_fallthru
        _
      // Predicated region
      $region57: #{transformer_forward.2} parent=11 // pred_check
        %p422 = pneg %p294
      $region58: #{transformer_forward.2} parent=11 // pred_check_branch
        %424 = sbr.rel (%p422) target = $region60
      $region59: #{transformer_forward.2} parent=11 // pred_region
        _
      $region60: #{transformer_forward.2} parent=11 // pred_fallthru
        _
      // Predicated region
      $region61: #{transformer_forward.2} parent=11 // pred_check
        %p425 = pneg %p315
      $region62: #{transformer_forward.2} parent=11 // pred_check_branch
        %427 = sbr.rel (%p425) target = $region64
      $region63: #{transformer_forward.2} parent=11 // pred_region
        _
      $region64: #{transformer_forward.2} parent=11 // pred_fallthru
        _
      // Predicated region
      $region65: #{transformer_forward.2} parent=11 // pred_check
        %p428 = pneg %p336
      $region66: #{transformer_forward.2} parent=11 // pred_check_branch
        %430 = sbr.rel (%p428) target = $region68
      $region67: #{transformer_forward.2} parent=11 // pred_region
        _
      $region68: #{transformer_forward.2} parent=11 // pred_fallthru
        _
    $region12: #{transformer_forward.2} parent=5 // pred_fallthru
      _
    %p431 = scmp.lt.s32.totalorder %s20, 2
    // Predicated region
    $region69: #{transformer_forward.2} parent=5 // pred_check
      %p432 = pneg %p431
    $region70: #{transformer_forward.2} parent=5 // pred_check_branch
      %434 = sbr.rel (%p432) target = $region72
    $region71: #{transformer_forward.2} parent=5 // pred_region
      _
    $region72: #{transformer_forward.2} parent=5 // pred_fallthru
      _
    %p435 = scmp.le.s32.totalorder 1, %s20
    %p436 = scmp.lt.s32.totalorder %s20, 3
    %p437 = pnand %p435, %p436
    %p438 = pneg %p437
    // Predicated region
    $region73: #{transformer_forward.2} parent=5 // pred_check
      _
    $region74: #{transformer_forward.2} parent=5 // pred_check_branch
      %440 = sbr.rel (%p437) target = $region76
    $region75: #{transformer_forward.2} parent=5 // pred_region
      %s441 = ssub.s32 %s20, 1
      %s442 = smul.u32 2, %s29
      %p443 = scmp.lt.s32.totalorder %s442, 1
      %s444 = scalar_select %p443, %s442, 1
      %s445 = smul.addr %s444, 8
      %s446 = scalar_lea.vmem %s0, %s445
      %p447 = pneg %p58
      %p448 = pneg %p55
      %s449 = smul.u32 2, %s29
      %p450 = scmp.lt.s32.totalorder %s449, 1
      %s451 = scalar_select %p450, %s449, 1
      %s452 = smul.addr %s451, 8
      %s453 = scalar_lea.vmem %s1, %s452
      %p454 = pneg %p84
      %p455 = pneg %p81
      %p456 = pneg %p105
      %p457 = pneg %p102
      %p458 = pneg %p126
      %p459 = pneg %p123
      %p460 = pneg %p147
      %p461 = pneg %p144
      %p462 = pneg %p168
      %p463 = pneg %p165
      %p464 = pneg %p189
      %p465 = pneg %p186
      %p466 = pneg %p210
      %p467 = pneg %p207
      %p468 = pneg %p231
      %p469 = pneg %p228
      %p470 = pneg %p252
      %p471 = pneg %p249
      %p472 = pneg %p273
      %p473 = pneg %p270
      %p474 = pneg %p294
      %p475 = pneg %p291
      %p476 = pneg %p315
      %p477 = pneg %p312
      %p478 = pneg %p336
      %p479 = pneg %p333
      %p480 = pneg %p362
      %p481 = pneg %p359
      %s482 = smul.u32 2, %s29
      %p483 = scmp.lt.s32.totalorder %s482, 1
      %s484 = scalar_select %p483, %s482, 1
      %s485 = smul.addr %s484, 8
      %s486 = scalar_lea.vmem %s14, %s485
      %s487 = smul.u32 2, %s29
      %p488 = scmp.lt.s32.totalorder %s487, 1
      %s489 = scalar_select %p488, %s487, 1
      %s490 = smul.addr %s489, 8
      %s491 = scalar_lea.vmem %s0, %s490
      %s492 = smul.u32 2, %s29
      %s493 = smul.u32 2, %s29
      %p494 = scmp.lt.s32.totalorder %s493, 1
      %s495 = scalar_select %p494, %s493, 1
      %s496 = smul.addr %s495, 8
      %s497 = scalar_lea.vmem %s1, %s496
      %s498 = smul.u32 2, %s29
      %s499 = smul.u32 2, %s29
      %p500 = scmp.lt.s32.totalorder %s499, 1
      %s501 = scalar_select %p500, %s499, 1
      %s502 = smul.addr %s501, 8
      %s503 = scalar_lea.vmem %s14, %s502
      %s504 = smul.u32 2, %s29
      %p506 = scmp.eq.s32.totalorder %s30, 0
      // Predicated region
      $region77: #{transformer_forward.2} parent=75 // pred_check
        %p507 = pneg %p506
      $region78: #{transformer_forward.2} parent=75 // pred_check_branch
        %509 = sbr.rel (%p507) target = $region80
      $region79: #{transformer_forward.2} parent=75 // pred_region
        %v510 = vld [vmem:[%s491] sm:$0xff]
        %v511 = vld [vmem:[%s491 + $0x8] sm:$0xff]
        %512 = vst [vmem:[%s503] sm:$0xff] %v510
        %513 = vst [vmem:[%s503 + $0x8] sm:$0xff] %v511
      $region80: #{transformer_forward.2} parent=75 // pred_fallthru
        _
      %v514 = vld [vmem:[%s503] sm:$0xff]
      %v515 = vld [vmem:[%s503 + $0x8] sm:$0xff]
      %v516 = vld [vmem:[%s2] sm:$0xff]
      %v517 = vld [vmem:[%s2 + $0x8] sm:$0xf]
      %v518 = vld [vmem:[%s2 + $0xc] sm:$0xff]
      %v519 = vld [vmem:[%s2 + $0x14] sm:$0xf]
      %v520 = vld [vmem:[%s2 + $0x18] sm:$0xff]
      %v521 = vld [vmem:[%s2 + $0x20] sm:$0xf]
      %v522 = vld [vmem:[%s2 + $0x24] sm:$0xff]
      %v523 = vld [vmem:[%s2 + $0x2c] sm:$0xf]
      %v524 = vld [vmem:[%s2 + $0x30] sm:$0xff]
      %v525 = vld [vmem:[%s2 + $0x38] sm:$0xf]
      %v526 = vld [vmem:[%s2 + $0x3c] sm:$0xff]
      %v527 = vld [vmem:[%s2 + $0x44] sm:$0xf]
      %v528 = vld [vmem:[%s2 + $0x48] sm:$0xff]
      %v529 = vld [vmem:[%s2 + $0x50] sm:$0xf]
      %v530 = vld [vmem:[%s2 + $0x54] sm:$0xff]
      %v531 = vld [vmem:[%s2 + $0x5c] sm:$0xf]
      %v532 = vld [vmem:[%s2 + $0x60] sm:$0xff]
      %v533 = vld [vmem:[%s2 + $0x68] sm:$0xf]
      %v534 = vld [vmem:[%s2 + $0x6c] sm:$0xff]
      %v535 = vld [vmem:[%s2 + $0x74] sm:$0xf]
      %v536 = vld [vmem:[%s2 + $0x78] sm:$0xff]
      %v537 = vld [vmem:[%s2 + $0x80] sm:$0xf]
      %v538 = vld [vmem:[%s2 + $0x84] sm:$0xff]
      %v539 = vld [vmem:[%s2 + $0x8c] sm:$0xf]
      %v540 = vld [vmem:[%s2 + $0x90] sm:$0xff]
      %v541 = vld [vmem:[%s2 + $0x98] sm:$0xf]
      %v542 = vld [vmem:[%s2 + $0x9c] sm:$0xff]
      %v543 = vld [vmem:[%s2 + $0xa4] sm:$0xf]
      %v544 = vld [vmem:[%s2 + $0xa8] sm:$0xff]
      %v545 = vld [vmem:[%s2 + $0xb0] sm:$0xf]
      %v546 = vld [vmem:[%s2 + $0xb4] sm:$0xff]
      %v547 = vld [vmem:[%s2 + $0xbc] sm:$0xf]
      %v548 = vpack.c.bf16 %v515, %v514
      %v549 = vld [vmem:[%s3] sm:$0x7]
      %v551 = vlaneseq
      %v552 = vshrl.u32 %v551, 7
      %v553 = vsub.s32 0, %v552
      %v554 = vrot.slane %v549, %v553
      %v555 = vlaneseq
      %v556 = vshrl.u32 %v555, 7
      %v557 = vsub.s32 1, %v556
      %v558 = vrot.slane %v549, %v557
      %v559 = vlaneseq
      %v560 = vshrl.u32 %v559, 7
      %v561 = vsub.s32 2, %v560
      %v562 = vrot.slane %v549, %v561
      %v598 = vunpack.c.l.b16 %v516
      %v599 = vunpack.c.h.b16 %v516
      %v600 = vunpack.c.l.b16 %v517
      %v601 = vunpack.c.l.b16 %v518
      %v602 = vunpack.c.h.b16 %v518
      %v603 = vunpack.c.l.b16 %v519
      %v604 = vunpack.c.l.b16 %v520
      %v605 = vunpack.c.h.b16 %v520
      %v606 = vunpack.c.l.b16 %v521
      %v607 = vunpack.c.l.b16 %v522
      %v608 = vunpack.c.h.b16 %v522
      %v609 = vunpack.c.l.b16 %v523
      %v610 = vunpack.c.l.b16 %v524
      %v611 = vunpack.c.h.b16 %v524
      %v612 = vunpack.c.l.b16 %v525
      %v613 = vunpack.c.l.b16 %v526
      %v614 = vunpack.c.h.b16 %v526
      %v615 = vunpack.c.l.b16 %v527
      %v616 = vunpack.c.l.b16 %v528
      %v617 = vunpack.c.h.b16 %v528
      %v618 = vunpack.c.l.b16 %v529
      %v619 = vunpack.c.l.b16 %v530
      %v620 = vunpack.c.h.b16 %v530
      %v621 = vunpack.c.l.b16 %v531
      %v622 = vunpack.c.l.b16 %v532
      %v623 = vunpack.c.h.b16 %v532
      %v624 = vunpack.c.l.b16 %v533
      %v625 = vunpack.c.l.b16 %v534
      %v626 = vunpack.c.h.b16 %v534
      %v627 = vunpack.c.l.b16 %v535
      %v628 = vunpack.c.l.b16 %v536
      %v629 = vunpack.c.h.b16 %v536
      %v630 = vunpack.c.l.b16 %v537
      %v631 = vunpack.c.l.b16 %v538
      %v632 = vunpack.c.h.b16 %v538
      %v633 = vunpack.c.l.b16 %v539
      %v634 = vunpack.c.l.b16 %v540
      %v635 = vunpack.c.h.b16 %v540
      %v636 = vunpack.c.l.b16 %v541
      %v637 = vunpack.c.l.b16 %v542
      %v638 = vunpack.c.h.b16 %v542
      %v639 = vunpack.c.l.b16 %v543
      %v640 = vunpack.c.l.b16 %v544
      %v641 = vunpack.c.h.b16 %v544
      %v642 = vunpack.c.l.b16 %v545
      %v643 = vunpack.c.l.b16 %v546
      %v644 = vunpack.c.h.b16 %v546
      %v645 = vunpack.c.l.b16 %v547
      %v646 = vpack.c.b16 %v601, %v598
      %v647 = vpack.c.b16 %v602, %v599
      %v648 = vpack.c.b16 %v603, %v600
      %v649 = vpack.c.b16 %v607, %v604
      %v650 = vpack.c.b16 %v608, %v605
      %v651 = vpack.c.b16 %v609, %v606
      %v652 = vpack.c.b16 %v613, %v610
      %v653 = vpack.c.b16 %v614, %v611
      %v654 = vpack.c.b16 %v615, %v612
      %v655 = vpack.c.b16 %v619, %v616
      %v656 = vpack.c.b16 %v620, %v617
      %v657 = vpack.c.b16 %v621, %v618
      %v658 = vpack.c.b16 %v625, %v622
      %v659 = vpack.c.b16 %v626, %v623
      %v660 = vpack.c.b16 %v627, %v624
      %v661 = vpack.c.b16 %v631, %v628
      %v662 = vpack.c.b16 %v632, %v629
      %v663 = vpack.c.b16 %v633, %v630
      %v664 = vpack.c.b16 %v637, %v634
      %v665 = vpack.c.b16 %v638, %v635
      %v666 = vpack.c.b16 %v639, %v636
      %v667 = vpack.c.b16 %v643, %v640
      %v668 = vpack.c.b16 %v644, %v641
      %v669 = vpack.c.b16 %v645, %v642
      %694 = vmatprep.subr.bf16.mxu0 %v647
      %695 = vmatpush1.bf16.msra.mxu0 %v646
      %696 = vmatprep.subr.bf16.mxu0 %v650
      %697 = vmatpush1.bf16.msra.mxu0 %v649
      %698 = vmatprep.subr.bf16.mxu0 %v653
      %699 = vmatpush1.bf16.msra.mxu0 %v652
      %700 = vmatprep.subr.bf16.mxu0 %v656
      %701 = vmatpush1.bf16.msra.mxu0 %v655
      %702 = vmatprep.subr.bf16.mxu0 %v659
      %703 = vmatpush1.bf16.msra.mxu0 %v658
      %704 = vmatprep.subr.bf16.mxu0 %v662
      %705 = vmatpush1.bf16.msra.mxu0 %v661
      %706 = vmatprep.subr.bf16.mxu0 %v665
      %707 = vmatpush1.bf16.msra.mxu0 %v664
      %708 = vmatprep.subr.bf16.mxu0 %v668
      %709 = vmatpush1.bf16.msra.mxu0 %v667
      %710 = vmatprep.subr.bf16.mxu0 0
      %711 = vmatpush1.bf16.msra.mxu0 0
      %712 = vmatprep.subr.bf16.mxu0 0
      %713 = vmatpush1.bf16.msra.mxu0 0
      %714 = vmatprep.subr.bf16.mxu0 0
      %715 = vmatpush1.bf16.msra.mxu0 0
      %716 = vmatprep.subr.bf16.mxu0 0
      %717 = vmatpush1.bf16.msra.mxu0 0
      %718 = vmatprep.subr.bf16.mxu0 0
      %719 = vmatpush1.bf16.msra.mxu0 0
      %720 = vmatprep.subr.bf16.mxu0 0
      %721 = vmatpush1.bf16.msra.mxu0 0
      %722 = vmatprep.subr.bf16.mxu0 0
      %723 = vmatpush1.bf16.msra.mxu0 0
      %724 = vmatprep.subr.bf16.mxu0 0
      %725 = vmatpush1.bf16.msra.mxu0 0
      %726 = vmatprep.mubr.bf16.mxu0 0
      %727 = vmatmul.mubr.bf16.gmra.mrb[0].mxu0 %v548
      %v728 = vpop.f32.mrb[0].mxu0
      %v729 = vadd.f32 %v554, %v728
      %v730 = vpop.f32.mrb[0].mxu0
      %v731 = vadd.f32 %v558, %v730
      %v732 = vpop.f32.mrb[0].mxu0
      %v733 = vadd.f32 %v554, %v732
      %v734 = vpop.f32.mrb[0].mxu0
      %v735 = vadd.f32 %v558, %v734
      %736 = vdwg.mxu0
      %737 = vmatprep.subr.bf16.mxu0 0
      %738 = vmatpush1.bf16.msra.mxu0 %v648
      %739 = vmatprep.subr.bf16.mxu0 0
      %740 = vmatpush1.bf16.msra.mxu0 %v651
      %741 = vmatprep.subr.bf16.mxu0 0
      %742 = vmatpush1.bf16.msra.mxu0 %v654
      %743 = vmatprep.subr.bf16.mxu0 0
      %744 = vmatpush1.bf16.msra.mxu0 %v657
      %745 = vmatprep.subr.bf16.mxu0 0
      %746 = vmatpush1.bf16.msra.mxu0 %v660
      %747 = vmatprep.subr.bf16.mxu0 0
      %748 = vmatpush1.bf16.msra.mxu0 %v663
      %749 = vmatprep.subr.bf16.mxu0 0
      %750 = vmatpush1.bf16.msra.mxu0 %v666
      %751 = vmatprep.subr.bf16.mxu0 0
      %752 = vmatpush1.bf16.msra.mxu0 %v669
      %753 = vmatprep.subr.bf16.mxu0 0
      %754 = vmatpush1.bf16.msra.mxu0 0
      %755 = vmatprep.subr.bf16.mxu0 0
      %756 = vmatpush1.bf16.msra.mxu0 0
      %757 = vmatprep.subr.bf16.mxu0 0
      %758 = vmatpush1.bf16.msra.mxu0 0
      %759 = vmatprep.subr.bf16.mxu0 0
      %760 = vmatpush1.bf16.msra.mxu0 0
      %761 = vmatprep.subr.bf16.mxu0 0
      %762 = vmatpush1.bf16.msra.mxu0 0
      %763 = vmatprep.subr.bf16.mxu0 0
      %764 = vmatpush1.bf16.msra.mxu0 0
      %765 = vmatprep.subr.bf16.mxu0 0
      %766 = vmatpush1.bf16.msra.mxu0 0
      %767 = vmatprep.subr.bf16.mxu0 0
      %768 = vmatpush1.bf16.msra.mxu0 0
      %769 = vmatprep.mubr.bf16.mxu0 0
      %770 = vmatmul.mubr.bf16.gmra.mrb[0].mxu0 %v548
      %v771 = vpop.f32.mrb[0].mxu0
      %v772 = vadd.f32 %v562, %v771
      %v773 = vpop.f32.mrb[0].mxu0
      %v774 = vpop.f32.mrb[0].mxu0
      %v775 = vadd.f32 %v562, %v774
      %v776 = vpop.f32.mrb[0].mxu0
      %777 = vdwg.mxu0
      %v778 = vld [vmem:[%s497] sm:$0xff]
      %v779 = vld [vmem:[%s497 + $0x8] sm:$0xff]
      %v780 = vpack.c.bf16 %v731, %v731
      %v781 = vpack.c.bf16 %v735, %v735
      %v782 = vpack.c.bf16 %v772, %v772
      %v783 = vpack.c.bf16 %v775, %v775
      %v784 = vlaneseq
      %v785 = vand.u32 %v784, 127
      %vm786 = vcmp.ge.s32.totalorder %v785, 0
      %vm787 = vcmp.lt.s32.totalorder %v785, 8
      %vm788 = vmand %vm786, %vm787
      %v789 = vsel %vm788, 1, 0
      %v790 = vcvt.s32.f32 %v789
      %v791 = vmul.f32 %v729, %v790
      %v792 = vmul.f32 %v733, %v790
      %v793 = vpack.c.bf16 %v791, %v791
      %v794 = vpack.c.bf16 %v792, %v792
      %795 = vmatprep.subr.bf16.mxu0 0
      %796 = vmatpush1.bf16.xpose.msra.mxu0 %v780
      %797 = vmatprep.subr.bf16.mxu0 0
      %798 = vmatpush1.bf16.xpose.msra.mxu0 0
      %799 = vmatprep.subr.bf16.mxu0 0
      %800 = vmatpush1.bf16.xpose.msra.mxu0 0
      %801 = vmatprep.subr.bf16.mxu0 0
      %802 = vmatpush1.bf16.xpose.msra.mxu0 0
      %803 = vmatprep.subr.bf16.mxu0 0
      %804 = vmatpush1.bf16.xpose.msra.mxu0 0
      %805 = vmatprep.subr.bf16.mxu0 0
      %806 = vmatpush1.bf16.xpose.msra.mxu0 0
      %807 = vmatprep.subr.bf16.mxu0 0
      %808 = vmatpush1.bf16.xpose.msra.mxu0 0
      %809 = vmatprep.subr.bf16.mxu0 0
      %810 = vmatpush1.bf16.xpose.msra.mxu0 0
      %811 = vmatprep.subr.bf16.mxu0 0
      %812 = vmatpush1.bf16.xpose.msra.mxu0 0
      %813 = vmatprep.subr.bf16.mxu0 0
      %814 = vmatpush1.bf16.xpose.msra.mxu0 0
      %815 = vmatprep.subr.bf16.mxu0 0
      %816 = vmatpush1.bf16.xpose.msra.mxu0 0
      %817 = vmatprep.subr.bf16.mxu0 0
      %818 = vmatpush1.bf16.xpose.msra.mxu0 0
      %819 = vmatprep.subr.bf16.mxu0 0
      %820 = vmatpush1.bf16.xpose.msra.mxu0 0
      %821 = vmatprep.subr.bf16.mxu0 0
      %822 = vmatpush1.bf16.xpose.msra.mxu0 0
      %823 = vmatprep.subr.bf16.mxu0 0
      %824 = vmatpush1.bf16.xpose.msra.mxu0 0
      %825 = vmatprep.subr.bf16.mxu0 0
      %826 = vmatpush1.bf16.xpose.msra.mxu0 0
      %827 = vmatprep.mubr.bf16.mxu0 0
      %828 = vmatmul.mubr.bf16.gmra.mrb[0].mxu0 %v793
      %v829 = vpop.f32.mrb[0].mxu0
      %v830 = vadd.f32 0.0, %v829
      %v831 = vpop.f32.mrb[0].mxu0
      %v832 = vpop.f32.mrb[0].mxu0
      %v833 = vpop.f32.mrb[0].mxu0
      %834 = vdwg.mxu0
      %835 = vmatprep.subr.bf16.mxu0 0
      %836 = vmatpush1.bf16.xpose.msra.mxu0 %v781
      %837 = vmatprep.subr.bf16.mxu0 0
      %838 = vmatpush1.bf16.xpose.msra.mxu0 0
      %839 = vmatprep.subr.bf16.mxu0 0
      %840 = vmatpush1.bf16.xpose.msra.mxu0 0
      %841 = vmatprep.subr.bf16.mxu0 0
      %842 = vmatpush1.bf16.xpose.msra.mxu0 0
      %843 = vmatprep.subr.bf16.mxu0 0
      %844 = vmatpush1.bf16.xpose.msra.mxu0 0
      %845 = vmatprep.subr.bf16.mxu0 0
      %846 = vmatpush1.bf16.xpose.msra.mxu0 0
      %847 = vmatprep.subr.bf16.mxu0 0
      %848 = vmatpush1.bf16.xpose.msra.mxu0 0
      %849 = vmatprep.subr.bf16.mxu0 0
      %850 = vmatpush1.bf16.xpose.msra.mxu0 0
      %851 = vmatprep.subr.bf16.mxu0 0
      %852 = vmatpush1.bf16.xpose.msra.mxu0 0
      %853 = vmatprep.subr.bf16.mxu0 0
      %854 = vmatpush1.bf16.xpose.msra.mxu0 0
      %855 = vmatprep.subr.bf16.mxu0 0
      %856 = vmatpush1.bf16.xpose.msra.mxu0 0
      %857 = vmatprep.subr.bf16.mxu0 0
      %858 = vmatpush1.bf16.xpose.msra.mxu0 0
      %859 = vmatprep.subr.bf16.mxu0 0
      %860 = vmatpush1.bf16.xpose.msra.mxu0 0
      %861 = vmatprep.subr.bf16.mxu0 0
      %862 = vmatpush1.bf16.xpose.msra.mxu0 0
      %863 = vmatprep.subr.bf16.mxu0 0
      %864 = vmatpush1.bf16.xpose.msra.mxu0 0
      %865 = vmatprep.subr.bf16.mxu0 0
      %866 = vmatpush1.bf16.xpose.msra.mxu0 0
      %867 = vmatprep.mubr.bf16.mxu0 0
      %868 = vmatmul.mubr.bf16.gmra.mrb[0].mxu0 %v794
      %v869 = vpop.f32.mrb[0].mxu0
      %v870 = vadd.f32 0.0, %v869
      %v871 = vpop.f32.mrb[0].mxu0
      %v872 = vpop.f32.mrb[0].mxu0
      %v873 = vpop.f32.mrb[0].mxu0
      %874 = vdwg.mxu0
      %v875 = vmul.f32 %v830, 0.35355338
      %v876 = vmul.f32 %v870, 0.35355338
      %v877 = vadd.f32 %v875, %v778
      %v878 = vadd.f32 %v876, %v779
      %vm879 = vcmask 64512
      %v880 = vsel %vm879, %v877, -inf
      %881 = vmax.xlane.f32.xlu0 %v880
      %v882 = vpop.xlane.xlu0 %881
      %v883 = vsel %vm879, %v878, -inf
      %884 = vmax.xlane.f32.xlu0 %v883
      %v885 = vpop.xlane.xlu0 %884
      %v886 = vsub.f32 %v877, %v882
      %v887 = vsub.f32 %v878, %v885
      %v888 = vmul.f32 %v886, 1.442695
      %v889 = vpow.pop %v888
      %v890 = vmul.f32 %v887, 1.442695
      %v891 = vpow.pop %v890
      %v892 = vsel %vm879, %v889, 0.0
      %893 = vadd.xlane.f32.xlu0 %v892
      %v894 = vpop.xlane.xlu0 %893
      %v895 = vsel %vm879, %v891, 0.0
      %896 = vadd.xlane.f32.xlu0 %v895
      %v897 = vpop.xlane.xlu0 %896
      %v898 = vrcp.pop %v894
      %v899 = vrcp.pop %v897
      %v900 = vmul.f32 %v889, %v898
      %v901 = vmul.f32 %v891, %v899
      %v902 = vpack.c.bf16 %v900, %v900
      %v903 = vpack.c.bf16 %v901, %v901
      %v905 = vsel %vm879, %v902, 0
      %vm907 = vcmask 1043456
      %v909 = vsel %vm907, %v782, 0
      %911 = vmatprep.subr.bf16.mxu0 0
      %912 = vmatpush1.bf16.msra.mxu0 %v909
      %913 = vmatprep.subr.bf16.mxu0 0
      %914 = vmatpush1.bf16.msra.mxu0 0
      %915 = vmatprep.subr.bf16.mxu0 0
      %916 = vmatpush1.bf16.msra.mxu0 0
      %917 = vmatprep.subr.bf16.mxu0 0
      %918 = vmatpush1.bf16.msra.mxu0 0
      %919 = vmatprep.subr.bf16.mxu0 0
      %920 = vmatpush1.bf16.msra.mxu0 0
      %921 = vmatprep.subr.bf16.mxu0 0
      %922 = vmatpush1.bf16.msra.mxu0 0
      %923 = vmatprep.subr.bf16.mxu0 0
      %924 = vmatpush1.bf16.msra.mxu0 0
      %925 = vmatprep.subr.bf16.mxu0 0
      %926 = vmatpush1.bf16.msra.mxu0 0
      %927 = vmatprep.subr.bf16.mxu0 0
      %928 = vmatpush1.bf16.msra.mxu0 0
      %929 = vmatprep.subr.bf16.mxu0 0
      %930 = vmatpush1.bf16.msra.mxu0 0
      %931 = vmatprep.subr.bf16.mxu0 0
      %932 = vmatpush1.bf16.msra.mxu0 0
      %933 = vmatprep.subr.bf16.mxu0 0
      %934 = vmatpush1.bf16.msra.mxu0 0
      %935 = vmatprep.subr.bf16.mxu0 0
      %936 = vmatpush1.bf16.msra.mxu0 0
      %937 = vmatprep.subr.bf16.mxu0 0
      %938 = vmatpush1.bf16.msra.mxu0 0
      %939 = vmatprep.subr.bf16.mxu0 0
      %940 = vmatpush1.bf16.msra.mxu0 0
      %941 = vmatprep.subr.bf16.mxu0 0
      %942 = vmatpush1.bf16.msra.mxu0 0
      %943 = vmatprep.mubr.bf16.mxu0 0
      %944 = vmatmul.mubr.bf16.gmra.mrb[0].mxu0 %v905
      %v945 = vpop.f32.mrb[0].mxu0
      %v946 = vadd.f32 0.0, %v945
      %v947 = vpop.f32.mrb[0].mxu0
      %v948 = vpop.f32.mrb[0].mxu0
      %v949 = vpop.f32.mrb[0].mxu0
      %950 = vdwg.mxu0
      %v952 = vsel %vm879, %v903, 0
      %v955 = vsel %vm907, %v783, 0
      %957 = vmatprep.subr.bf16.mxu0 0
      %958 = vmatpush1.bf16.msra.mxu0 %v955
      %959 = vmatprep.subr.bf16.mxu0 0
      %960 = vmatpush1.bf16.msra.mxu0 0
      %961 = vmatprep.subr.bf16.mxu0 0
      %962 = vmatpush1.bf16.msra.mxu0 0
      %963 = vmatprep.subr.bf16.mxu0 0
      %964 = vmatpush1.bf16.msra.mxu0 0
      %965 = vmatprep.subr.bf16.mxu0 0
      %966 = vmatpush1.bf16.msra.mxu0 0
      %967 = vmatprep.subr.bf16.mxu0 0
      %968 = vmatpush1.bf16.msra.mxu0 0
      %969 = vmatprep.subr.bf16.mxu0 0
      %970 = vmatpush1.bf16.msra.mxu0 0
      %971 = vmatprep.subr.bf16.mxu0 0
      %972 = vmatpush1.bf16.msra.mxu0 0
      %973 = vmatprep.subr.bf16.mxu0 0
      %974 = vmatpush1.bf16.msra.mxu0 0
      %975 = vmatprep.subr.bf16.mxu0 0
      %976 = vmatpush1.bf16.msra.mxu0 0
      %977 = vmatprep.subr.bf16.mxu0 0
      %978 = vmatpush1.bf16.msra.mxu0 0
      %979 = vmatprep.subr.bf16.mxu0 0
      %980 = vmatpush1.bf16.msra.mxu0 0
      %981 = vmatprep.subr.bf16.mxu0 0
      %982 = vmatpush1.bf16.msra.mxu0 0
      %983 = vmatprep.subr.bf16.mxu0 0
      %984 = vmatpush1.bf16.msra.mxu0 0
      %985 = vmatprep.subr.bf16.mxu0 0
      %986 = vmatpush1.bf16.msra.mxu0 0
      %987 = vmatprep.subr.bf16.mxu0 0
      %988 = vmatpush1.bf16.msra.mxu0 0
      %989 = vmatprep.mubr.bf16.mxu0 0
      %990 = vmatmul.mubr.bf16.gmra.mrb[0].mxu0 %v952
      %v991 = vpop.f32.mrb[0].mxu0
      %v992 = vadd.f32 0.0, %v991
      %v993 = vpop.f32.mrb[0].mxu0
      %v994 = vpop.f32.mrb[0].mxu0
      %v995 = vpop.f32.mrb[0].mxu0
      %996 = vdwg.mxu0
      %v997 = vmul.f32 %v790, %v946
      %v998 = vmul.f32 %v790, %v992
      %v999 = vadd.f32 %v997, 0.0
      %v1000 = vadd.f32 %v998, 0.0
      %vm1001 = vcmp.ge.s32.totalorder %v785, 8
      %vm1002 = vcmp.lt.s32.totalorder %v785, 16
      %vm1003 = vmand %vm1001, %vm1002
      %v1004 = vsel %vm1003, 1, 0
      %v1005 = vcvt.s32.f32 %v1004
      %v1006 = vmul.f32 %v729, %v1005
      %v1007 = vmul.f32 %v733, %v1005
      %v1008 = vpack.c.bf16 %v1006, %v1006
      %v1009 = vpack.c.bf16 %v1007, %v1007
      %1010 = vmatprep.subr.bf16.mxu0 0
      %1011 = vmatpush1.bf16.xpose.msra.mxu0 %v780
      %1012 = vmatprep.subr.bf16.mxu0 0
      %1013 = vmatpush1.bf16.xpose.msra.mxu0 0
      %1014 = vmatprep.subr.bf16.mxu0 0
      %1015 = vmatpush1.bf16.xpose.msra.mxu0 0
      %1016 = vmatprep.subr.bf16.mxu0 0
      %1017 = vmatpush1.bf16.xpose.msra.mxu0 0
      %1018 = vmatprep.subr.bf16.mxu0 0
      %1019 = vmatpush1.bf16.xpose.msra.mxu0 0
      %1020 = vmatprep.subr.bf16.mxu0 0
      %1021 = vmatpush1.bf16.xpose.msra.mxu0 0
      %1022 = vmatprep.subr.bf16.mxu0 0
      %1023 = vmatpush1.bf16.xpose.msra.mxu0 0
      %1024 = vmatprep.subr.bf16.mxu0 0
      %1025 = vmatpush1.bf16.xpose.msra.mxu0 0
      %1026 = vmatprep.subr.bf16.mxu0 0
      %1027 = vmatpush1.bf16.xpose.msra.mxu0 0
      %1028 = vmatprep.subr.bf16.mxu0 0
      %1029 = vmatpush1.bf16.xpose.msra.mxu0 0
      %1030 = vmatprep.subr.bf16.mxu0 0
      %1031 = vmatpush1.bf16.xpose.msra.mxu0 0
      %1032 = vmatprep.subr.bf16.mxu0 0
      %1033 = vmatpush1.bf16.xpose.msra.mxu0 0
      %1034 = vmatprep.subr.bf16.mxu0 0
      %1035 = vmatpush1.bf16.xpose.msra.mxu0 0
      %1036 = vmatprep.subr.bf16.mxu0 0
      %1037 = vmatpush1.bf16.xpose.msra.mxu0 0
      %1038 = vmatprep.subr.bf16.mxu0 0
      %1039 = vmatpush1.bf16.xpose.msra.mxu0 0
      %1040 = vmatprep.subr.bf16.mxu0 0
      %1041 = vmatpush1.bf16.xpose.msra.mxu0 0
      %1042 = vmatprep.mubr.bf16.mxu0 0
      %1043 = vmatmul.mubr.bf16.gmra.mrb[0].mxu0 %v1008
      %v1044 = vpop.f32.mrb[0].mxu0
      %v1045 = vadd.f32 0.0, %v1044
      %v1046 = vpop.f32.mrb[0].mxu0
      %v1047 = vpop.f32.mrb[0].mxu0
      %v1048 = vpop.f32.mrb[0].mxu0
      %1049 = vdwg.mxu0
      %1050 = vmatprep.subr.bf16.mxu0 0
      %1051 = vmatpush1.bf16.xpose.msra.mxu0 %v781
      %1052 = vmatprep.subr.bf16.mxu0 0
      %1053 = vmatpush1.bf16.xpose.msra.mxu0 0
      %1054 = vmatprep.subr.bf16.mxu0 0
      %1055 = vmatpush1.bf16.xpose.msra.mxu0 0
      %1056 = vmatprep.subr.bf16.mxu0 0
      %1057 = vmatpush1.bf16.xpose.msra.mxu0 0
      %1058 = vmatprep.subr.bf16.mxu0 0
      %1059 = vmatpush1.bf16.xpose.msra.mxu0 0
      %1060 = vmatprep.subr.bf16.mxu0 0
      %1061 = vmatpush1.bf16.xpose.msra.mxu0 0
      %1062 = vmatprep.subr.bf16.mxu0 0
      %1063 = vmatpush1.bf16.xpose.msra.mxu0 0
      %1064 = vmatprep.subr.bf16.mxu0 0
      %1065 = vmatpush1.bf16.xpose.msra.mxu0 0
      %1066 = vmatprep.subr.bf16.mxu0 0
      %1067 = vmatpush1.bf16.xpose.msra.mxu0 0
      %1068 = vmatprep.subr.bf16.mxu0 0
      %1069 = vmatpush1.bf16.xpose.msra.mxu0 0
      %1070 = vmatprep.subr.bf16.mxu0 0
      %1071 = vmatpush1.bf16.xpose.msra.mxu0 0
      %1072 = vmatprep.subr.bf16.mxu0 0
      %1073 = vmatpush1.bf16.xpose.msra.mxu0 0
      %1074 = vmatprep.subr.bf16.mxu0 0
      %1075 = vmatpush1.bf16.xpose.msra.mxu0 0
      %1076 = vmatprep.subr.bf16.mxu0 0
      %1077 = vmatpush1.bf16.xpose.msra.mxu0 0
      %1078 = vmatprep.subr.bf16.mxu0 0
      %1079 = vmatpush1.bf16.xpose.msra.mxu0 0
      %1080 = vmatprep.subr.bf16.mxu0 0
      %1081 = vmatpush1.bf16.xpose.msra.mxu0 0
      %1082 = vmatprep.mubr.bf16.mxu0 0
      %1083 = vmatmul.mubr.bf16.gmra.mrb[0].mxu0 %v1009
      %v1084 = vpop.f32.mrb[0].mxu0
      %v1085 = vadd.f32 0.0, %v1084
      %v1086 = vpop.f32.mrb[0].mxu0
      %v1087 = vpop.f32.mrb[0].mxu0
      %v1088 = vpop.f32.mrb[0].mxu0
      %1089 = vdwg.mxu0
      %v1090 = vmul.f32 %v1045, 0.35355338
      %v1091 = vmul.f32 %v1085, 0.35355338
      %v1092 = vadd.f32 %v1090, %v778
      %v1093 = vadd.f32 %v1091, %v779
      %v1094 = vsel %vm879, %v1092, -inf
      %1095 = vmax.xlane.f32.xlu0 %v1094
      %v1096 = vpop.xlane.xlu0 %1095
      %v1097 = vsel %vm879, %v1093, -inf
      %1098 = vmax.xlane.f32.xlu0 %v1097
      %v1099 = vpop.xlane.xlu0 %1098
      %v1100 = vsub.f32 %v1092, %v1096
      %v1101 = vsub.f32 %v1093, %v1099
      %v1102 = vmul.f32 %v1100, 1.442695
      %v1103 = vpow.pop %v1102
      %v1104 = vmul.f32 %v1101, 1.442695
      %v1105 = vpow.pop %v1104
      %v1106 = vsel %vm879, %v1103, 0.0
      %1107 = vadd.xlane.f32.xlu0 %v1106
      %v1108 = vpop.xlane.xlu0 %1107
      %v1109 = vsel %vm879, %v1105, 0.0
      %1110 = vadd.xlane.f32.xlu0 %v1109
      %v1111 = vpop.xlane.xlu0 %1110
      %v1112 = vrcp.pop %v1108
      %v1113 = vrcp.pop %v1111
      %v1114 = vmul.f32 %v1103, %v1112
      %v1115 = vmul.f32 %v1105, %v1113
      %v1116 = vpack.c.bf16 %v1114, %v1114
      %v1117 = vpack.c.bf16 %v1115, %v1115
      %v1119 = vsel %vm879, %v1116, 0
      %1121 = vmatprep.subr.bf16.mxu0 0
      %1122 = vmatpush1.bf16.msra.mxu0 %v909
      %1123 = vmatprep.subr.bf16.mxu0 0
      %1124 = vmatpush1.bf16.msra.mxu0 0
      %1125 = vmatprep.subr.bf16.mxu0 0
      %1126 = vmatpush1.bf16.msra.mxu0 0
      %1127 = vmatprep.subr.bf16.mxu0 0
      %1128 = vmatpush1.bf16.msra.mxu0 0
      %1129 = vmatprep.subr.bf16.mxu0 0
      %1130 = vmatpush1.bf16.msra.mxu0 0
      %1131 = vmatprep.subr.bf16.mxu0 0
      %1132 = vmatpush1.bf16.msra.mxu0 0
      %1133 = vmatprep.subr.bf16.mxu0 0
      %1134 = vmatpush1.bf16.msra.mxu0 0
      %1135 = vmatprep.subr.bf16.mxu0 0
      %1136 = vmatpush1.bf16.msra.mxu0 0
      %1137 = vmatprep.subr.bf16.mxu0 0
      %1138 = vmatpush1.bf16.msra.mxu0 0
      %1139 = vmatprep.subr.bf16.mxu0 0
      %1140 = vmatpush1.bf16.msra.mxu0 0
      %1141 = vmatprep.subr.bf16.mxu0 0
      %1142 = vmatpush1.bf16.msra.mxu0 0
      %1143 = vmatprep.subr.bf16.mxu0 0
      %1144 = vmatpush1.bf16.msra.mxu0 0
      %1145 = vmatprep.subr.bf16.mxu0 0
      %1146 = vmatpush1.bf16.msra.mxu0 0
      %1147 = vmatprep.subr.bf16.mxu0 0
      %1148 = vmatpush1.bf16.msra.mxu0 0
      %1149 = vmatprep.subr.bf16.mxu0 0
      %1150 = vmatpush1.bf16.msra.mxu0 0
      %1151 = vmatprep.subr.bf16.mxu0 0
      %1152 = vmatpush1.bf16.msra.mxu0 0
      %1153 = vmatprep.mubr.bf16.mxu0 0
      %1154 = vmatmul.mubr.bf16.gmra.mrb[0].mxu0 %v1119
      %v1155 = vpop.f32.mrb[0].mxu0
      %v1156 = vadd.f32 0.0, %v1155
      %v1157 = vpop.f32.mrb[0].mxu0
      %v1158 = vpop.f32.mrb[0].mxu0
      %v1159 = vpop.f32.mrb[0].mxu0
      %1160 = vdwg.mxu0
      %v1162 = vsel %vm879, %v1117, 0
      %1164 = vmatprep.subr.bf16.mxu0 0
      %1165 = vmatpush1.bf16.msra.mxu0 %v955
      %1166 = vmatprep.subr.bf16.mxu0 0
      %1167 = vmatpush1.bf16.msra.mxu0 0
      %1168 = vmatprep.subr.bf16.mxu0 0
      %1169 = vmatpush1.bf16.msra.mxu0 0
      %1170 = vmatprep.subr.bf16.mxu0 0
      %1171 = vmatpush1.bf16.msra.mxu0 0
      %1172 = vmatprep.subr.bf16.mxu0 0
      %1173 = vmatpush1.bf16.msra.mxu0 0
      %1174 = vmatprep.subr.bf16.mxu0 0
      %1175 = vmatpush1.bf16.msra.mxu0 0
      %1176 = vmatprep.subr.bf16.mxu0 0
      %1177 = vmatpush1.bf16.msra.mxu0 0
      %1178 = vmatprep.subr.bf16.mxu0 0
      %1179 = vmatpush1.bf16.msra.mxu0 0
      %1180 = vmatprep.subr.bf16.mxu0 0
      %1181 = vmatpush1.bf16.msra.mxu0 0
      %1182 = vmatprep.subr.bf16.mxu0 0
      %1183 = vmatpush1.bf16.msra.mxu0 0
      %1184 = vmatprep.subr.bf16.mxu0 0
      %1185 = vmatpush1.bf16.msra.mxu0 0
      %1186 = vmatprep.subr.bf16.mxu0 0
      %1187 = vmatpush1.bf16.msra.mxu0 0
      %1188 = vmatprep.subr.bf16.mxu0 0
      %1189 = vmatpush1.bf16.msra.mxu0 0
      %1190 = vmatprep.subr.bf16.mxu0 0
      %1191 = vmatpush1.bf16.msra.mxu0 0
      %1192 = vmatprep.subr.bf16.mxu0 0
      %1193 = vmatpush1.bf16.msra.mxu0 0
      %1194 = vmatprep.subr.bf16.mxu0 0
      %1195 = vmatpush1.bf16.msra.mxu0 0
      %1196 = vmatprep.mubr.bf16.mxu0 0
      %1197 = vmatmul.mubr.bf16.gmra.mrb[0].mxu0 %v1162
      %v1198 = vpop.f32.mrb[0].mxu0
      %v1199 = vadd.f32 0.0, %v1198
      %v1200 = vpop.f32.mrb[0].mxu0
      %v1201 = vpop.f32.mrb[0].mxu0
      %v1202 = vpop.f32.mrb[0].mxu0
      %1203 = vdwg.mxu0
      %v1204 = vmul.f32 %v1005, %v1156
      %v1205 = vmul.f32 %v1005, %v1199
      %v1206 = vadd.f32 %v999, %v1204
      %v1207 = vadd.f32 %v1000, %v1205
      %vm1208 = vcmp.ge.s32.totalorder %v785, 16
      %vm1209 = vcmp.lt.s32.totalorder %v785, 24
      %vm1210 = vmand %vm1208, %vm1209
      %v1211 = vsel %vm1210, 1, 0
      %v1212 = vcvt.s32.f32 %v1211
      %v1213 = vmul.f32 %v729, %v1212
      %v1214 = vmul.f32 %v733, %v1212
      %v1215 = vpack.c.bf16 %v1213, %v1213
      %v1216 = vpack.c.bf16 %v1214, %v1214
      %1217 = vmatprep.subr.bf16.mxu0 0
      %1218 = vmatpush1.bf16.xpose.msra.mxu0 %v780
      %1219 = vmatprep.subr.bf16.mxu0 0
      %1220 = vmatpush1.bf16.xpose.msra.mxu0 0
      %1221 = vmatprep.subr.bf16.mxu0 0
      %1222 = vmatpush1.bf16.xpose.msra.mxu0 0
      %1223 = vmatprep.subr.bf16.mxu0 0
      %1224 = vmatpush1.bf16.xpose.msra.mxu0 0
      %1225 = vmatprep.subr.bf16.mxu0 0
      %1226 = vmatpush1.bf16.xpose.msra.mxu0 0
      %1227 = vmatprep.subr.bf16.mxu0 0
      %1228 = vmatpush1.bf16.xpose.msra.mxu0 0
      %1229 = vmatprep.subr.bf16.mxu0 0
      %1230 = vmatpush1.bf16.xpose.msra.mxu0 0
      %1231 = vmatprep.subr.bf16.mxu0 0
      %1232 = vmatpush1.bf16.xpose.msra.mxu0 0
      %1233 = vmatprep.subr.bf16.mxu0 0
      %1234 = vmatpush1.bf16.xpose.msra.mxu0 0
      %1235 = vmatprep.subr.bf16.mxu0 0
      %1236 = vmatpush1.bf16.xpose.msra.mxu0 0
      %1237 = vmatprep.subr.bf16.mxu0 0
      %1238 = vmatpush1.bf16.xpose.msra.mxu0 0
      %1239 = vmatprep.subr.bf16.mxu0 0
      %1240 = vmatpush1.bf16.xpose.msra.mxu0 0
      %1241 = vmatprep.subr.bf16.mxu0 0
      %1242 = vmatpush1.bf16.xpose.msra.mxu0 0
      %1243 = vmatprep.subr.bf16.mxu0 0
      %1244 = vmatpush1.bf16.xpose.msra.mxu0 0
      %1245 = vmatprep.subr.bf16.mxu0 0
      %1246 = vmatpush1.bf16.xpose.msra.mxu0 0
      %1247 = vmatprep.subr.bf16.mxu0 0
      %1248 = vmatpush1.bf16.xpose.msra.mxu0 0
      %1249 = vmatprep.mubr.bf16.mxu0 0
      %1250 = vmatmul.mubr.bf16.gmra.mrb[0].mxu0 %v1215
      %v1251 = vpop.f32.mrb[0].mxu0
      %v1252 = vadd.f32 0.0, %v1251
      %v1253 = vpop.f32.mrb[0].mxu0
      %v1254 = vpop.f32.mrb[0].mxu0
      %v1255 = vpop.f32.mrb[0].mxu0
      %1256 = vdwg.mxu0
      %1257 = vmatprep.subr.bf16.mxu0 0
      %1258 = vmatpush1.bf16.xpose.msra.mxu0 %v781
      %1259 = vmatprep.subr.bf16.mxu0 0
      %1260 = vmatpush1.bf16.xpose.msra.mxu0 0
      %1261 = vmatprep.subr.bf16.mxu0 0
      %1262 = vmatpush1.bf16.xpose.msra.mxu0 0
      %1263 = vmatprep.subr.bf16.mxu0 0
      %1264 = vmatpush1.bf16.xpose.msra.mxu0 0
      %1265 = vmatprep.subr.bf16.mxu0 0
      %1266 = vmatpush1.bf16.xpose.msra.mxu0 0
      %1267 = vmatprep.subr.bf16.mxu0 0
      %1268 = vmatpush1.bf16.xpose.msra.mxu0 0
      %1269 = vmatprep.subr.bf16.mxu0 0
      %1270 = vmatpush1.bf16.xpose.msra.mxu0 0
      %1271 = vmatprep.subr.bf16.mxu0 0
      %1272 = vmatpush1.bf16.xpose.msra.mxu0 0
      %1273 = vmatprep.subr.bf16.mxu0 0
      %1274 = vmatpush1.bf16.xpose.msra.mxu0 0
      %1275 = vmatprep.subr.bf16.mxu0 0
      %1276 = vmatpush1.bf16.xpose.msra.mxu0 0
      %1277 = vmatprep.subr.bf16.mxu0 0
      %1278 = vmatpush1.bf16.xpose.msra.mxu0 0
      %1279 = vmatprep.subr.bf16.mxu0 0
      %1280 = vmatpush1.bf16.xpose.msra.mxu0 0
      %1281 = vmatprep.subr.bf16.mxu0 0
      %1282 = vmatpush1.bf16.xpose.msra.mxu0 0
      %1283 = vmatprep.subr.bf16.mxu0 0
      %1284 = vmatpush1.bf16.xpose.msra.mxu0 0
      %1285 = vmatprep.subr.bf16.mxu0 0
      %1286 = vmatpush1.bf16.xpose.msra.mxu0 0
      %1287 = vmatprep.subr.bf16.mxu0 0
      %1288 = vmatpush1.bf16.xpose.msra.mxu0 0
      %1289 = vmatprep.mubr.bf16.mxu0 0
      %1290 = vmatmul.mubr.bf16.gmra.mrb[0].mxu0 %v1216
      %v1291 = vpop.f32.mrb[0].mxu0
      %v1292 = vadd.f32 0.0, %v1291
      %v1293 = vpop.f32.mrb[0].mxu0
      %v1294 = vpop.f32.mrb[0].mxu0
      %v1295 = vpop.f32.mrb[0].mxu0
      %1296 = vdwg.mxu0
      %v1297 = vmul.f32 %v1252, 0.35355338
      %v1298 = vmul.f32 %v1292, 0.35355338
      %v1299 = vadd.f32 %v1297, %v778
      %v1300 = vadd.f32 %v1298, %v779
      %v1301 = vsel %vm879, %v1299, -inf
      %1302 = vmax.xlane.f32.xlu0 %v1301
      %v1303 = vpop.xlane.xlu0 %1302
      %v1304 = vsel %vm879, %v1300, -inf
      %1305 = vmax.xlane.f32.xlu0 %v1304
      %v1306 = vpop.xlane.xlu0 %1305
      %v1307 = vsub.f32 %v1299, %v1303
      %v1308 = vsub.f32 %v1300, %v1306
      %v1309 = vmul.f32 %v1307, 1.442695
      %v1310 = vpow.pop %v1309
      %v1311 = vmul.f32 %v1308, 1.442695
      %v1312 = vpow.pop %v1311
      %v1313 = vsel %vm879, %v1310, 0.0
      %1314 = vadd.xlane.f32.xlu0 %v1313
      %v1315 = vpop.xlane.xlu0 %1314
      %v1316 = vsel %vm879, %v1312, 0.0
      %1317 = vadd.xlane.f32.xlu0 %v1316
      %v1318 = vpop.xlane.xlu0 %1317
      %v1319 = vrcp.pop %v1315
      %v1320 = vrcp.pop %v1318
      %v1321 = vmul.f32 %v1310, %v1319
      %v1322 = vmul.f32 %v1312, %v1320
      %v1323 = vpack.c.bf16 %v1321, %v1321
      %v1324 = vpack.c.bf16 %v1322, %v1322
      %v1326 = vsel %vm879, %v1323, 0
      %1328 = vmatprep.subr.bf16.mxu0 0
      %1329 = vmatpush1.bf16.msra.mxu0 %v909
      %1330 = vmatprep.subr.bf16.mxu0 0
      %1331 = vmatpush1.bf16.msra.mxu0 0
      %1332 = vmatprep.subr.bf16.mxu0 0
      %1333 = vmatpush1.bf16.msra.mxu0 0
      %1334 = vmatprep.subr.bf16.mxu0 0
      %1335 = vmatpush1.bf16.msra.mxu0 0
      %1336 = vmatprep.subr.bf16.mxu0 0
      %1337 = vmatpush1.bf16.msra.mxu0 0
      %1338 = vmatprep.subr.bf16.mxu0 0
      %1339 = vmatpush1.bf16.msra.mxu0 0
      %1340 = vmatprep.subr.bf16.mxu0 0
      %1341 = vmatpush1.bf16.msra.mxu0 0
      %1342 = vmatprep.subr.bf16.mxu0 0
      %1343 = vmatpush1.bf16.msra.mxu0 0
      %1344 = vmatprep.subr.bf16.mxu0 0
      %1345 = vmatpush1.bf16.msra.mxu0 0
      %1346 = vmatprep.subr.bf16.mxu0 0
      %1347 = vmatpush1.bf16.msra.mxu0 0
      %1348 = vmatprep.subr.bf16.mxu0 0
      %1349 = vmatpush1.bf16.msra.mxu0 0
      %1350 = vmatprep.subr.bf16.mxu0 0
      %1351 = vmatpush1.bf16.msra.mxu0 0
      %1352 = vmatprep.subr.bf16.mxu0 0
      %1353 = vmatpush1.bf16.msra.mxu0 0
      %1354 = vmatprep.subr.bf16.mxu0 0
      %1355 = vmatpush1.bf16.msra.mxu0 0
      %1356 = vmatprep.subr.bf16.mxu0 0
      %1357 = vmatpush1.bf16.msra.mxu0 0
      %1358 = vmatprep.subr.bf16.mxu0 0
      %1359 = vmatpush1.bf16.msra.mxu0 0
      %1360 = vmatprep.mubr.bf16.mxu0 0
      %1361 = vmatmul.mubr.bf16.gmra.mrb[0].mxu0 %v1326
      %v1362 = vpop.f32.mrb[0].mxu0
      %v1363 = vadd.f32 0.0, %v1362
      %v1364 = vpop.f32.mrb[0].mxu0
      %v1365 = vpop.f32.mrb[0].mxu0
      %v1366 = vpop.f32.mrb[0].mxu0
      %1367 = vdwg.mxu0
      %v1369 = vsel %vm879, %v1324, 0
      %1371 = vmatprep.subr.bf16.mxu0 0
      %1372 = vmatpush1.bf16.msra.mxu0 %v955
      %1373 = vmatprep.subr.bf16.mxu0 0
      %1374 = vmatpush1.bf16.msra.mxu0 0
      %1375 = vmatprep.subr.bf16.mxu0 0
      %1376 = vmatpush1.bf16.msra.mxu0 0
      %1377 = vmatprep.subr.bf16.mxu0 0
      %1378 = vmatpush1.bf16.msra.mxu0 0
      %1379 = vmatprep.subr.bf16.mxu0 0
      %1380 = vmatpush1.bf16.msra.mxu0 0
      %1381 = vmatprep.subr.bf16.mxu0 0
      %1382 = vmatpush1.bf16.msra.mxu0 0
      %1383 = vmatprep.subr.bf16.mxu0 0
      %1384 = vmatpush1.bf16.msra.mxu0 0
      %1385 = vmatprep.subr.bf16.mxu0 0
      %1386 = vmatpush1.bf16.msra.mxu0 0
      %1387 = vmatprep.subr.bf16.mxu0 0
      %1388 = vmatpush1.bf16.msra.mxu0 0
      %1389 = vmatprep.subr.bf16.mxu0 0
      %1390 = vmatpush1.bf16.msra.mxu0 0
      %1391 = vmatprep.subr.bf16.mxu0 0
      %1392 = vmatpush1.bf16.msra.mxu0 0
      %1393 = vmatprep.subr.bf16.mxu0 0
      %1394 = vmatpush1.bf16.msra.mxu0 0
      %1395 = vmatprep.subr.bf16.mxu0 0
      %1396 = vmatpush1.bf16.msra.mxu0 0
      %1397 = vmatprep.subr.bf16.mxu0 0
      %1398 = vmatpush1.bf16.msra.mxu0 0
      %1399 = vmatprep.subr.bf16.mxu0 0
      %1400 = vmatpush1.bf16.msra.mxu0 0
      %1401 = vmatprep.subr.bf16.mxu0 0
      %1402 = vmatpush1.bf16.msra.mxu0 0
      %1403 = vmatprep.mubr.bf16.mxu0 0
      %1404 = vmatmul.mubr.bf16.gmra.mrb[0].mxu0 %v1369
      %v1405 = vpop.f32.mrb[0].mxu0
      %v1406 = vadd.f32 0.0, %v1405
      %v1407 = vpop.f32.mrb[0].mxu0
      %v1408 = vpop.f32.mrb[0].mxu0
      %v1409 = vpop.f32.mrb[0].mxu0
      %1410 = vdwg.mxu0
      %v1411 = vmul.f32 %v1212, %v1363
      %v1412 = vmul.f32 %v1212, %v1406
      %v1413 = vadd.f32 %v1206, %v1411
      %v1414 = vadd.f32 %v1207, %v1412
      %vm1415 = vcmp.ge.s32.totalorder %v785, 24
      %vm1416 = vcmp.lt.s32.totalorder %v785, 32
      %vm1417 = vmand %vm1415, %vm1416
      %v1418 = vsel %vm1417, 1, 0
      %v1419 = vcvt.s32.f32 %v1418
      %v1420 = vmul.f32 %v729, %v1419
      %v1421 = vmul.f32 %v733, %v1419
      %v1422 = vpack.c.bf16 %v1420, %v1420
      %v1423 = vpack.c.bf16 %v1421, %v1421
      %1424 = vmatprep.subr.bf16.mxu0 0
      %1425 = vmatpush1.bf16.xpose.msra.mxu0 %v780
      %1426 = vmatprep.subr.bf16.mxu0 0
      %1427 = vmatpush1.bf16.xpose.msra.mxu0 0
      %1428 = vmatprep.subr.bf16.mxu0 0
      %1429 = vmatpush1.bf16.xpose.msra.mxu0 0
      %1430 = vmatprep.subr.bf16.mxu0 0
      %1431 = vmatpush1.bf16.xpose.msra.mxu0 0
      %1432 = vmatprep.subr.bf16.mxu0 0
      %1433 = vmatpush1.bf16.xpose.msra.mxu0 0
      %1434 = vmatprep.subr.bf16.mxu0 0
      %1435 = vmatpush1.bf16.xpose.msra.mxu0 0
      %1436 = vmatprep.subr.bf16.mxu0 0
      %1437 = vmatpush1.bf16.xpose.msra.mxu0 0
      %1438 = vmatprep.subr.bf16.mxu0 0
      %1439 = vmatpush1.bf16.xpose.msra.mxu0 0
      %1440 = vmatprep.subr.bf16.mxu0 0
      %1441 = vmatpush1.bf16.xpose.msra.mxu0 0
      %1442 = vmatprep.subr.bf16.mxu0 0
      %1443 = vmatpush1.bf16.xpose.msra.mxu0 0
      %1444 = vmatprep.subr.bf16.mxu0 0
      %1445 = vmatpush1.bf16.xpose.msra.mxu0 0
      %1446 = vmatprep.subr.bf16.mxu0 0
      %1447 = vmatpush1.bf16.xpose.msra.mxu0 0
      %1448 = vmatprep.subr.bf16.mxu0 0
      %1449 = vmatpush1.bf16.xpose.msra.mxu0 0
      %1450 = vmatprep.subr.bf16.mxu0 0
      %1451 = vmatpush1.bf16.xpose.msra.mxu0 0
      %1452 = vmatprep.subr.bf16.mxu0 0
      %1453 = vmatpush1.bf16.xpose.msra.mxu0 0
      %1454 = vmatprep.subr.bf16.mxu0 0
      %1455 = vmatpush1.bf16.xpose.msra.mxu0 0
      %1456 = vmatprep.mubr.bf16.mxu0 0
      %1457 = vmatmul.mubr.bf16.gmra.mrb[0].mxu0 %v1422
      %v1458 = vpop.f32.mrb[0].mxu0
      %v1459 = vadd.f32 0.0, %v1458
      %v1460 = vpop.f32.mrb[0].mxu0
      %v1461 = vpop.f32.mrb[0].mxu0
      %v1462 = vpop.f32.mrb[0].mxu0
      %1463 = vdwg.mxu0
      %1464 = vmatprep.subr.bf16.mxu0 0
      %1465 = vmatpush1.bf16.xpose.msra.mxu0 %v781
      %1466 = vmatprep.subr.bf16.mxu0 0
      %1467 = vmatpush1.bf16.xpose.msra.mxu0 0
      %1468 = vmatprep.subr.bf16.mxu0 0
      %1469 = vmatpush1.bf16.xpose.msra.mxu0 0
      %1470 = vmatprep.subr.bf16.mxu0 0
      %1471 = vmatpush1.bf16.xpose.msra.mxu0 0
      %1472 = vmatprep.subr.bf16.mxu0 0
      %1473 = vmatpush1.bf16.xpose.msra.mxu0 0
      %1474 = vmatprep.subr.bf16.mxu0 0
      %1475 = vmatpush1.bf16.xpose.msra.mxu0 0
      %1476 = vmatprep.subr.bf16.mxu0 0
      %1477 = vmatpush1.bf16.xpose.msra.mxu0 0
      %1478 = vmatprep.subr.bf16.mxu0 0
      %1479 = vmatpush1.bf16.xpose.msra.mxu0 0
      %1480 = vmatprep.subr.bf16.mxu0 0
      %1481 = vmatpush1.bf16.xpose.msra.mxu0 0
      %1482 = vmatprep.subr.bf16.mxu0 0
      %1483 = vmatpush1.bf16.xpose.msra.mxu0 0
      %1484 = vmatprep.subr.bf16.mxu0 0
      %1485 = vmatpush1.bf16.xpose.msra.mxu0 0
      %1486 = vmatprep.subr.bf16.mxu0 0
      %1487 = vmatpush1.bf16.xpose.msra.mxu0 0
      %1488 = vmatprep.subr.bf16.mxu0 0
      %1489 = vmatpush1.bf16.xpose.msra.mxu0 0
      %1490 = vmatprep.subr.bf16.mxu0 0
      %1491 = vmatpush1.bf16.xpose.msra.mxu0 0
      %1492 = vmatprep.subr.bf16.mxu0 0
      %1493 = vmatpush1.bf16.xpose.msra.mxu0 0
      %1494 = vmatprep.subr.bf16.mxu0 0
      %1495 = vmatpush1.bf16.xpose.msra.mxu0 0
      %1496 = vmatprep.mubr.bf16.mxu0 0
      %1497 = vmatmul.mubr.bf16.gmra.mrb[0].mxu0 %v1423
      %v1498 = vpop.f32.mrb[0].mxu0
      %v1499 = vadd.f32 0.0, %v1498
      %v1500 = vpop.f32.mrb[0].mxu0
      %v1501 = vpop.f32.mrb[0].mxu0
      %v1502 = vpop.f32.mrb[0].mxu0
      %1503 = vdwg.mxu0
      %v1504 = vmul.f32 %v1459, 0.35355338
      %v1505 = vmul.f32 %v1499, 0.35355338
      %v1506 = vadd.f32 %v1504, %v778
      %v1507 = vadd.f32 %v1505, %v779
      %v1508 = vsel %vm879, %v1506, -inf
      %1509 = vmax.xlane.f32.xlu0 %v1508
      %v1510 = vpop.xlane.xlu0 %1509
      %v1511 = vsel %vm879, %v1507, -inf
      %1512 = vmax.xlane.f32.xlu0 %v1511
      %v1513 = vpop.xlane.xlu0 %1512
      %v1514 = vsub.f32 %v1506, %v1510
      %v1515 = vsub.f32 %v1507, %v1513
      %v1516 = vmul.f32 %v1514, 1.442695
      %v1517 = vpow.pop %v1516
      %v1518 = vmul.f32 %v1515, 1.442695
      %v1519 = vpow.pop %v1518
      %v1520 = vsel %vm879, %v1517, 0.0
      %1521 = vadd.xlane.f32.xlu0 %v1520
      %v1522 = vpop.xlane.xlu0 %1521
      %v1523 = vsel %vm879, %v1519, 0.0
      %1524 = vadd.xlane.f32.xlu0 %v1523
      %v1525 = vpop.xlane.xlu0 %1524
      %v1526 = vrcp.pop %v1522
      %v1527 = vrcp.pop %v1525
      %v1528 = vmul.f32 %v1517, %v1526
      %v1529 = vmul.f32 %v1519, %v1527
      %v1530 = vpack.c.bf16 %v1528, %v1528
      %v1531 = vpack.c.bf16 %v1529, %v1529
      %v1533 = vsel %vm879, %v1530, 0
      %1535 = vmatprep.subr.bf16.mxu0 0
      %1536 = vmatpush1.bf16.msra.mxu0 %v909
      %1537 = vmatprep.subr.bf16.mxu0 0
      %1538 = vmatpush1.bf16.msra.mxu0 0
      %1539 = vmatprep.subr.bf16.mxu0 0
      %1540 = vmatpush1.bf16.msra.mxu0 0
      %1541 = vmatprep.subr.bf16.mxu0 0
      %1542 = vmatpush1.bf16.msra.mxu0 0
      %1543 = vmatprep.subr.bf16.mxu0 0
      %1544 = vmatpush1.bf16.msra.mxu0 0
      %1545 = vmatprep.subr.bf16.mxu0 0
      %1546 = vmatpush1.bf16.msra.mxu0 0
      %1547 = vmatprep.subr.bf16.mxu0 0
      %1548 = vmatpush1.bf16.msra.mxu0 0
      %1549 = vmatprep.subr.bf16.mxu0 0
      %1550 = vmatpush1.bf16.msra.mxu0 0
      %1551 = vmatprep.subr.bf16.mxu0 0
      %1552 = vmatpush1.bf16.msra.mxu0 0
      %1553 = vmatprep.subr.bf16.mxu0 0
      %1554 = vmatpush1.bf16.msra.mxu0 0
      %1555 = vmatprep.subr.bf16.mxu0 0
      %1556 = vmatpush1.bf16.msra.mxu0 0
      %1557 = vmatprep.subr.bf16.mxu0 0
      %1558 = vmatpush1.bf16.msra.mxu0 0
      %1559 = vmatprep.subr.bf16.mxu0 0
      %1560 = vmatpush1.bf16.msra.mxu0 0
      %1561 = vmatprep.subr.bf16.mxu0 0
      %1562 = vmatpush1.bf16.msra.mxu0 0
      %1563 = vmatprep.subr.bf16.mxu0 0
      %1564 = vmatpush1.bf16.msra.mxu0 0
      %1565 = vmatprep.subr.bf16.mxu0 0
      %1566 = vmatpush1.bf16.msra.mxu0 0
      %1567 = vmatprep.mubr.bf16.mxu0 0
      %1568 = vmatmul.mubr.bf16.gmra.mrb[0].mxu0 %v1533
      %v1569 = vpop.f32.mrb[0].mxu0
      %v1570 = vadd.f32 0.0, %v1569
      %v1571 = vpop.f32.mrb[0].mxu0
      %v1572 = vpop.f32.mrb[0].mxu0
      %v1573 = vpop.f32.mrb[0].mxu0
      %1574 = vdwg.mxu0
      %v1576 = vsel %vm879, %v1531, 0
      %1578 = vmatprep.subr.bf16.mxu0 0
      %1579 = vmatpush1.bf16.msra.mxu0 %v955
      %1580 = vmatprep.subr.bf16.mxu0 0
      %1581 = vmatpush1.bf16.msra.mxu0 0
      %1582 = vmatprep.subr.bf16.mxu0 0
      %1583 = vmatpush1.bf16.msra.mxu0 0
      %1584 = vmatprep.subr.bf16.mxu0 0
      %1585 = vmatpush1.bf16.msra.mxu0 0
      %1586 = vmatprep.subr.bf16.mxu0 0
      %1587 = vmatpush1.bf16.msra.mxu0 0
      %1588 = vmatprep.subr.bf16.mxu0 0
      %1589 = vmatpush1.bf16.msra.mxu0 0
      %1590 = vmatprep.subr.bf16.mxu0 0
      %1591 = vmatpush1.bf16.msra.mxu0 0
      %1592 = vmatprep.subr.bf16.mxu0 0
      %1593 = vmatpush1.bf16.msra.mxu0 0
      %1594 = vmatprep.subr.bf16.mxu0 0
      %1595 = vmatpush1.bf16.msra.mxu0 0
      %1596 = vmatprep.subr.bf16.mxu0 0
      %1597 = vmatpush1.bf16.msra.mxu0 0
      %1598 = vmatprep.subr.bf16.mxu0 0
      %1599 = vmatpush1.bf16.msra.mxu0 0
      %1600 = vmatprep.subr.bf16.mxu0 0
      %1601 = vmatpush1.bf16.msra.mxu0 0
      %1602 = vmatprep.subr.bf16.mxu0 0
      %1603 = vmatpush1.bf16.msra.mxu0 0
      %1604 = vmatprep.subr.bf16.mxu0 0
      %1605 = vmatpush1.bf16.msra.mxu0 0
      %1606 = vmatprep.subr.bf16.mxu0 0
      %1607 = vmatpush1.bf16.msra.mxu0 0
      %1608 = vmatprep.subr.bf16.mxu0 0
      %1609 = vmatpush1.bf16.msra.mxu0 0
      %1610 = vmatprep.mubr.bf16.mxu0 0
      %1611 = vmatmul.mubr.bf16.gmra.mrb[0].mxu0 %v1576
      %v1612 = vpop.f32.mrb[0].mxu0
      %v1613 = vadd.f32 0.0, %v1612
      %v1614 = vpop.f32.mrb[0].mxu0
      %v1615 = vpop.f32.mrb[0].mxu0
      %v1616 = vpop.f32.mrb[0].mxu0
      %1617 = vdwg.mxu0
      %v1618 = vmul.f32 %v1419, %v1570
      %v1619 = vmul.f32 %v1419, %v1613
      %v1620 = vadd.f32 %v1413, %v1618
      %v1621 = vadd.f32 %v1414, %v1619
      %v1622 = vld [vmem:[%s4] sm:$0xf]
      %v1623 = vld [vmem:[%s4 + $0x4] sm:$0xf]
      %v1624 = vld [vmem:[%s4 + $0x8] sm:$0xf]
      %v1625 = vld [vmem:[%s4 + $0xc] sm:$0xf]
      %v1626 = vld [vmem:[%s4 + $0x10] sm:$0xf]
      %v1627 = vld [vmem:[%s4 + $0x14] sm:$0xf]
      %v1628 = vld [vmem:[%s4 + $0x18] sm:$0xf]
      %v1629 = vld [vmem:[%s4 + $0x1c] sm:$0xf]
      %v1630 = vld [vmem:[%s4 + $0x20] sm:$0xf]
      %v1631 = vld [vmem:[%s4 + $0x24] sm:$0xf]
      %v1632 = vld [vmem:[%s4 + $0x28] sm:$0xf]
      %v1633 = vld [vmem:[%s4 + $0x2c] sm:$0xf]
      %v1634 = vld [vmem:[%s4 + $0x30] sm:$0xf]
      %v1635 = vld [vmem:[%s4 + $0x34] sm:$0xf]
      %v1636 = vld [vmem:[%s4 + $0x38] sm:$0xf]
      %v1637 = vld [vmem:[%s4 + $0x3c] sm:$0xf]
      %v1638 = vpack.c.bf16 %v1621, %v1620
      %v1639 = vld [vmem:[%s5] sm:$0x1]
      %v1641 = vlaneseq
      %v1642 = vshrl.u32 %v1641, 7
      %v1643 = vsub.s32 0, %v1642
      %v1644 = vrot.slane %v1639, %v1643
      %v1662 = vunpack.c.l.b16 %v1622
      %v1663 = vunpack.c.l.b16 %v1623
      %v1664 = vunpack.c.l.b16 %v1624
      %v1665 = vunpack.c.l.b16 %v1625
      %v1666 = vunpack.c.l.b16 %v1626
      %v1667 = vunpack.c.l.b16 %v1627
      %v1668 = vunpack.c.l.b16 %v1628
      %v1669 = vunpack.c.l.b16 %v1629
      %v1670 = vunpack.c.l.b16 %v1630
      %v1671 = vunpack.c.l.b16 %v1631
      %v1672 = vunpack.c.l.b16 %v1632
      %v1673 = vunpack.c.l.b16 %v1633
      %v1674 = vunpack.c.l.b16 %v1634
      %v1675 = vunpack.c.l.b16 %v1635
      %v1676 = vunpack.c.l.b16 %v1636
      %v1677 = vunpack.c.l.b16 %v1637
      %v1678 = vpack.c.b16 %v1663, %v1662
      %v1679 = vpack.c.b16 %v1665, %v1664
      %v1680 = vpack.c.b16 %v1667, %v1666
      %v1681 = vpack.c.b16 %v1669, %v1668
      %v1682 = vpack.c.b16 %v1671, %v1670
      %v1683 = vpack.c.b16 %v1673, %v1672
      %v1684 = vpack.c.b16 %v1675, %v1674
      %v1685 = vpack.c.b16 %v1677, %v1676
      %1694 = vmatprep.subr.bf16.mxu0 0
      %1695 = vmatpush1.bf16.msra.mxu0 %v1678
      %1696 = vmatprep.subr.bf16.mxu0 0
      %1697 = vmatpush1.bf16.msra.mxu0 %v1679
      %1698 = vmatprep.subr.bf16.mxu0 0
      %1699 = vmatpush1.bf16.msra.mxu0 %v1680
      %1700 = vmatprep.subr.bf16.mxu0 0
      %1701 = vmatpush1.bf16.msra.mxu0 %v1681
      %1702 = vmatprep.subr.bf16.mxu0 0
      %1703 = vmatpush1.bf16.msra.mxu0 %v1682
      %1704 = vmatprep.subr.bf16.mxu0 0
      %1705 = vmatpush1.bf16.msra.mxu0 %v1683
      %1706 = vmatprep.subr.bf16.mxu0 0
      %1707 = vmatpush1.bf16.msra.mxu0 %v1684
      %1708 = vmatprep.subr.bf16.mxu0 0
      %1709 = vmatpush1.bf16.msra.mxu0 %v1685
      %1710 = vmatprep.subr.bf16.mxu0 0
      %1711 = vmatpush1.bf16.msra.mxu0 0
      %1712 = vmatprep.subr.bf16.mxu0 0
      %1713 = vmatpush1.bf16.msra.mxu0 0
      %1714 = vmatprep.subr.bf16.mxu0 0
      %1715 = vmatpush1.bf16.msra.mxu0 0
      %1716 = vmatprep.subr.bf16.mxu0 0
      %1717 = vmatpush1.bf16.msra.mxu0 0
      %1718 = vmatprep.subr.bf16.mxu0 0
      %1719 = vmatpush1.bf16.msra.mxu0 0
      %1720 = vmatprep.subr.bf16.mxu0 0
      %1721 = vmatpush1.bf16.msra.mxu0 0
      %1722 = vmatprep.subr.bf16.mxu0 0
      %1723 = vmatpush1.bf16.msra.mxu0 0
      %1724 = vmatprep.subr.bf16.mxu0 0
      %1725 = vmatpush1.bf16.msra.mxu0 0
      %1726 = vmatprep.mubr.bf16.mxu0 0
      %1727 = vmatmul.mubr.bf16.gmra.mrb[0].mxu0 %v1638
      %v1728 = vpop.f32.mrb[0].mxu0
      %v1729 = vadd.f32 %v1644, %v1728
      %v1730 = vpop.f32.mrb[0].mxu0
      %v1731 = vpop.f32.mrb[0].mxu0
      %v1732 = vadd.f32 %v1644, %v1731
      %v1733 = vpop.f32.mrb[0].mxu0
      %1734 = vdwg.mxu0
      %v1735 = vld [vmem:[%s6] sm:$0x1]
      %v1736 = vld [vmem:[%s7] sm:$0x1]
      %v1737 = vadd.f32 %v1729, %v514
      %v1738 = vadd.f32 %v1732, %v515
      %1739 = vadd.xlane.f32.xlu0 %v1737
      %v1740 = vpop.xlane.xlu0 %1739
      %1741 = vadd.xlane.f32.xlu0 %v1738
      %v1742 = vpop.xlane.xlu0 %1741
      %v1743 = vmul.f32 %v1740, 0.03125
      %v1744 = vmul.f32 %v1742, 0.03125
      %v1745 = vmul.f32 %v1737, %v1737
      %v1746 = vmul.f32 %v1738, %v1738
      %1747 = vadd.xlane.f32.xlu0 %v1745
      %v1748 = vpop.xlane.xlu0 %1747
      %1749 = vadd.xlane.f32.xlu0 %v1746
      %v1750 = vpop.xlane.xlu0 %1749
      %v1751 = vmul.f32 %v1748, 0.03125
      %v1752 = vmul.f32 %v1750, 0.03125
      %v1753 = vmul.f32 %v1743, %v1743
      %v1754 = vmul.f32 %v1744, %v1744
      %v1755 = vsub.f32 %v1751, %v1753
      %v1756 = vsub.f32 %v1752, %v1754
      %v1757 = vsub.f32 %v1737, %v1743
      %v1758 = vsub.f32 %v1738, %v1744
      %v1759 = vmax.f32 %v1755, 0.0
      %v1760 = vmax.f32 %v1756, 0.0
      %v1761 = vadd.f32 %v1759, 1e-05
      %v1762 = vadd.f32 %v1760, 1e-05
      %v1763 = vrsqrt.pop %v1761
      %v1764 = vrsqrt.pop %v1762
      %v1765 = vmul.f32 %v1757, %v1763
      %v1766 = vmul.f32 %v1758, %v1764
      %v1768 = vlaneseq
      %v1769 = vshrl.u32 %v1768, 7
      %v1770 = vsub.s32 0, %v1769
      %v1771 = vrot.slane %v1735, %v1770
      %v1773 = vmul.f32 %v1765, %v1771
      %v1774 = vmul.f32 %v1766, %v1771
      %v1776 = vlaneseq
      %v1777 = vshrl.u32 %v1776, 7
      %v1778 = vsub.s32 0, %v1777
      %v1779 = vrot.slane %v1736, %v1778
      %v1781 = vadd.f32 %v1773, %v1779
      %v1782 = vadd.f32 %v1774, %v1779
      %v1783 = vld [vmem:[%s8] sm:$0xf]
      %v1784 = vld [vmem:[%s8 + $0x4] sm:$0xf]
      %v1785 = vld [vmem:[%s8 + $0x8] sm:$0xf]
      %v1786 = vld [vmem:[%s8 + $0xc] sm:$0xf]
      %v1787 = vld [vmem:[%s8 + $0x10] sm:$0xf]
      %v1788 = vld [vmem:[%s8 + $0x14] sm:$0xf]
      %v1789 = vld [vmem:[%s8 + $0x18] sm:$0xf]
      %v1790 = vld [vmem:[%s8 + $0x1c] sm:$0xf]
      %v1791 = vld [vmem:[%s8 + $0x20] sm:$0xf]
      %v1792 = vld [vmem:[%s8 + $0x24] sm:$0xf]
      %v1793 = vld [vmem:[%s8 + $0x28] sm:$0xf]
      %v1794 = vld [vmem:[%s8 + $0x2c] sm:$0xf]
      %v1795 = vld [vmem:[%s8 + $0x30] sm:$0xf]
      %v1796 = vld [vmem:[%s8 + $0x34] sm:$0xf]
      %v1797 = vld [vmem:[%s8 + $0x38] sm:$0xf]
      %v1798 = vld [vmem:[%s8 + $0x3c] sm:$0xf]
      %v1799 = vpack.c.bf16 %v1782, %v1781
      %v1800 = vld [vmem:[%s9] sm:$0x1]
      %v1802 = vlaneseq
      %v1803 = vshrl.u32 %v1802, 7
      %v1804 = vsub.s32 0, %v1803
      %v1805 = vrot.slane %v1800, %v1804
      %v1823 = vunpack.c.l.b16 %v1783
      %v1824 = vunpack.c.l.b16 %v1784
      %v1825 = vunpack.c.l.b16 %v1785
      %v1826 = vunpack.c.l.b16 %v1786
      %v1827 = vunpack.c.l.b16 %v1787
      %v1828 = vunpack.c.l.b16 %v1788
      %v1829 = vunpack.c.l.b16 %v1789
      %v1830 = vunpack.c.l.b16 %v1790
      %v1831 = vunpack.c.l.b16 %v1791
      %v1832 = vunpack.c.l.b16 %v1792
      %v1833 = vunpack.c.l.b16 %v1793
      %v1834 = vunpack.c.l.b16 %v1794
      %v1835 = vunpack.c.l.b16 %v1795
      %v1836 = vunpack.c.l.b16 %v1796
      %v1837 = vunpack.c.l.b16 %v1797
      %v1838 = vunpack.c.l.b16 %v1798
      %v1839 = vpack.c.b16 %v1824, %v1823
      %v1840 = vpack.c.b16 %v1826, %v1825
      %v1841 = vpack.c.b16 %v1828, %v1827
      %v1842 = vpack.c.b16 %v1830, %v1829
      %v1843 = vpack.c.b16 %v1832, %v1831
      %v1844 = vpack.c.b16 %v1834, %v1833
      %v1845 = vpack.c.b16 %v1836, %v1835
      %v1846 = vpack.c.b16 %v1838, %v1837
      %1855 = vmatprep.subr.bf16.mxu0 0
      %1856 = vmatpush1.bf16.msra.mxu0 %v1839
      %1857 = vmatprep.subr.bf16.mxu0 0
      %1858 = vmatpush1.bf16.msra.mxu0 %v1840
      %1859 = vmatprep.subr.bf16.mxu0 0
      %1860 = vmatpush1.bf16.msra.mxu0 %v1841
      %1861 = vmatprep.subr.bf16.mxu0 0
      %1862 = vmatpush1.bf16.msra.mxu0 %v1842
      %1863 = vmatprep.subr.bf16.mxu0 0
      %1864 = vmatpush1.bf16.msra.mxu0 %v1843
      %1865 = vmatprep.subr.bf16.mxu0 0
      %1866 = vmatpush1.bf16.msra.mxu0 %v1844
      %1867 = vmatprep.subr.bf16.mxu0 0
      %1868 = vmatpush1.bf16.msra.mxu0 %v1845
      %1869 = vmatprep.subr.bf16.mxu0 0
      %1870 = vmatpush1.bf16.msra.mxu0 %v1846
      %1871 = vmatprep.subr.bf16.mxu0 0
      %1872 = vmatpush1.bf16.msra.mxu0 0
      %1873 = vmatprep.subr.bf16.mxu0 0
      %1874 = vmatpush1.bf16.msra.mxu0 0
      %1875 = vmatprep.subr.bf16.mxu0 0
      %1876 = vmatpush1.bf16.msra.mxu0 0
      %1877 = vmatprep.subr.bf16.mxu0 0
      %1878 = vmatpush1.bf16.msra.mxu0 0
      %1879 = vmatprep.subr.bf16.mxu0 0
      %1880 = vmatpush1.bf16.msra.mxu0 0
      %1881 = vmatprep.subr.bf16.mxu0 0
      %1882 = vmatpush1.bf16.msra.mxu0 0
      %1883 = vmatprep.subr.bf16.mxu0 0
      %1884 = vmatpush1.bf16.msra.mxu0 0
      %1885 = vmatprep.subr.bf16.mxu0 0
      %1886 = vmatpush1.bf16.msra.mxu0 0
      %1887 = vmatprep.mubr.bf16.mxu0 0
      %1888 = vmatmul.mubr.bf16.gmra.mrb[0].mxu0 %v1799
      %v1889 = vpop.f32.mrb[0].mxu0
      %v1890 = vadd.f32 %v1805, %v1889
      %v1891 = vpop.f32.mrb[0].mxu0
      %v1892 = vpop.f32.mrb[0].mxu0
      %v1893 = vadd.f32 %v1805, %v1892
      %v1894 = vpop.f32.mrb[0].mxu0
      %1895 = vdwg.mxu0
      %v1896 = vmax.f32 %v1890, 0.0
      %v1897 = vmax.f32 %v1893, 0.0
      %v1898 = vld [vmem:[%s10] sm:$0xf]
      %v1899 = vld [vmem:[%s10 + $0x4] sm:$0xf]
      %v1900 = vld [vmem:[%s10 + $0x8] sm:$0xf]
      %v1901 = vld [vmem:[%s10 + $0xc] sm:$0xf]
      %v1902 = vld [vmem:[%s10 + $0x10] sm:$0xf]
      %v1903 = vld [vmem:[%s10 + $0x14] sm:$0xf]
      %v1904 = vld [vmem:[%s10 + $0x18] sm:$0xf]
      %v1905 = vld [vmem:[%s10 + $0x1c] sm:$0xf]
      %v1906 = vld [vmem:[%s10 + $0x20] sm:$0xf]
      %v1907 = vld [vmem:[%s10 + $0x24] sm:$0xf]
      %v1908 = vld [vmem:[%s10 + $0x28] sm:$0xf]
      %v1909 = vld [vmem:[%s10 + $0x2c] sm:$0xf]
      %v1910 = vld [vmem:[%s10 + $0x30] sm:$0xf]
      %v1911 = vld [vmem:[%s10 + $0x34] sm:$0xf]
      %v1912 = vld [vmem:[%s10 + $0x38] sm:$0xf]
      %v1913 = vld [vmem:[%s10 + $0x3c] sm:$0xf]
      %v1914 = vpack.c.bf16 %v1897, %v1896
      %v1915 = vld [vmem:[%s11] sm:$0x1]
      %v1917 = vlaneseq
      %v1918 = vshrl.u32 %v1917, 7
      %v1919 = vsub.s32 0, %v1918
      %v1920 = vrot.slane %v1915, %v1919
      %v1938 = vunpack.c.l.b16 %v1898
      %v1939 = vunpack.c.l.b16 %v1899
      %v1940 = vunpack.c.l.b16 %v1900
      %v1941 = vunpack.c.l.b16 %v1901
      %v1942 = vunpack.c.l.b16 %v1902
      %v1943 = vunpack.c.l.b16 %v1903
      %v1944 = vunpack.c.l.b16 %v1904
      %v1945 = vunpack.c.l.b16 %v1905
      %v1946 = vunpack.c.l.b16 %v1906
      %v1947 = vunpack.c.l.b16 %v1907
      %v1948 = vunpack.c.l.b16 %v1908
      %v1949 = vunpack.c.l.b16 %v1909
      %v1950 = vunpack.c.l.b16 %v1910
      %v1951 = vunpack.c.l.b16 %v1911
      %v1952 = vunpack.c.l.b16 %v1912
      %v1953 = vunpack.c.l.b16 %v1913
      %v1954 = vpack.c.b16 %v1939, %v1938
      %v1955 = vpack.c.b16 %v1941, %v1940
      %v1956 = vpack.c.b16 %v1943, %v1942
      %v1957 = vpack.c.b16 %v1945, %v1944
      %v1958 = vpack.c.b16 %v1947, %v1946
      %v1959 = vpack.c.b16 %v1949, %v1948
      %v1960 = vpack.c.b16 %v1951, %v1950
      %v1961 = vpack.c.b16 %v1953, %v1952
      %1970 = vmatprep.subr.bf16.mxu0 0
      %1971 = vmatpush1.bf16.msra.mxu0 %v1954
      %1972 = vmatprep.subr.bf16.mxu0 0
      %1973 = vmatpush1.bf16.msra.mxu0 %v1955
      %1974 = vmatprep.subr.bf16.mxu0 0
      %1975 = vmatpush1.bf16.msra.mxu0 %v1956
      %1976 = vmatprep.subr.bf16.mxu0 0
      %1977 = vmatpush1.bf16.msra.mxu0 %v1957
      %1978 = vmatprep.subr.bf16.mxu0 0
      %1979 = vmatpush1.bf16.msra.mxu0 %v1958
      %1980 = vmatprep.subr.bf16.mxu0 0
      %1981 = vmatpush1.bf16.msra.mxu0 %v1959
      %1982 = vmatprep.subr.bf16.mxu0 0
      %1983 = vmatpush1.bf16.msra.mxu0 %v1960
      %1984 = vmatprep.subr.bf16.mxu0 0
      %1985 = vmatpush1.bf16.msra.mxu0 %v1961
      %1986 = vmatprep.subr.bf16.mxu0 0
      %1987 = vmatpush1.bf16.msra.mxu0 0
      %1988 = vmatprep.subr.bf16.mxu0 0
      %1989 = vmatpush1.bf16.msra.mxu0 0
      %1990 = vmatprep.subr.bf16.mxu0 0
      %1991 = vmatpush1.bf16.msra.mxu0 0
      %1992 = vmatprep.subr.bf16.mxu0 0
      %1993 = vmatpush1.bf16.msra.mxu0 0
      %1994 = vmatprep.subr.bf16.mxu0 0
      %1995 = vmatpush1.bf16.msra.mxu0 0
      %1996 = vmatprep.subr.bf16.mxu0 0
      %1997 = vmatpush1.bf16.msra.mxu0 0
      %1998 = vmatprep.subr.bf16.mxu0 0
      %1999 = vmatpush1.bf16.msra.mxu0 0
      %2000 = vmatprep.subr.bf16.mxu0 0
      %2001 = vmatpush1.bf16.msra.mxu0 0
      %2002 = vmatprep.mubr.bf16.mxu0 0
      %2003 = vmatmul.mubr.bf16.gmra.mrb[0].mxu0 %v1914
      %v2004 = vpop.f32.mrb[0].mxu0
      %v2005 = vadd.f32 %v1920, %v2004
      %v2006 = vpop.f32.mrb[0].mxu0
      %v2007 = vpop.f32.mrb[0].mxu0
      %v2008 = vadd.f32 %v1920, %v2007
      %v2009 = vpop.f32.mrb[0].mxu0
      %2010 = vdwg.mxu0
      %v2011 = vld [vmem:[%s12] sm:$0x1]
      %v2012 = vld [vmem:[%s13] sm:$0x1]
      %v2013 = vadd.f32 %v2005, %v1781
      %v2014 = vadd.f32 %v2008, %v1782
      %2015 = vadd.xlane.f32.xlu0 %v2013
      %v2016 = vpop.xlane.xlu0 %2015
      %2017 = vadd.xlane.f32.xlu0 %v2014
      %v2018 = vpop.xlane.xlu0 %2017
      %v2019 = vmul.f32 %v2016, 0.03125
      %v2020 = vmul.f32 %v2018, 0.03125
      %v2021 = vmul.f32 %v2013, %v2013
      %v2022 = vmul.f32 %v2014, %v2014
      %2023 = vadd.xlane.f32.xlu0 %v2021
      %v2024 = vpop.xlane.xlu0 %2023
      %2025 = vadd.xlane.f32.xlu0 %v2022
      %v2026 = vpop.xlane.xlu0 %2025
      %v2027 = vmul.f32 %v2024, 0.03125
      %v2028 = vmul.f32 %v2026, 0.03125
      %v2029 = vmul.f32 %v2019, %v2019
      %v2030 = vmul.f32 %v2020, %v2020
      %v2031 = vsub.f32 %v2027, %v2029
      %v2032 = vsub.f32 %v2028, %v2030
      %v2033 = vsub.f32 %v2013, %v2019
      %v2034 = vsub.f32 %v2014, %v2020
      %v2035 = vmax.f32 %v2031, 0.0
      %v2036 = vmax.f32 %v2032, 0.0
      %v2037 = vadd.f32 %v2035, 1e-05
      %v2038 = vadd.f32 %v2036, 1e-05
      %v2039 = vrsqrt.pop %v2037
      %v2040 = vrsqrt.pop %v2038
      %v2041 = vmul.f32 %v2033, %v2039
      %v2042 = vmul.f32 %v2034, %v2040
      %v2044 = vlaneseq
      %v2045 = vshrl.u32 %v2044, 7
      %v2046 = vsub.s32 0, %v2045
      %v2047 = vrot.slane %v2011, %v2046
      %v2049 = vmul.f32 %v2041, %v2047
      %v2050 = vmul.f32 %v2042, %v2047
      %v2052 = vlaneseq
      %v2053 = vshrl.u32 %v2052, 7
      %v2054 = vsub.s32 0, %v2053
      %v2055 = vrot.slane %v2012, %v2054
      %v2057 = vadd.f32 %v2049, %v2055
      %v2058 = vadd.f32 %v2050, %v2055
      %2059 = vst [vmem:[%s503] sm:$0xff] %v2057
      %2060 = vst [vmem:[%s503 + $0x8] sm:$0xff] %v2058
      %s2061 = smul.u32 2, %s29
      %p2062 = scmp.lt.s32.totalorder %s2061, 1
      %s2063 = scalar_select %p2062, %s2061, 1
      %s2064 = smul.addr %s2063, 8
      %s2065 = scalar_lea.vmem %s14, %s2064
      // Predicated region
      $region81: #{transformer_forward.2} parent=75 // pred_check
        %p2066 = pneg %p359
      $region82: #{transformer_forward.2} parent=75 // pred_check_branch
        %2068 = sbr.rel (%p2066) target = $region84
      $region83: #{transformer_forward.2} parent=75 // pred_region
        %s2069 = smul.u32 2, %s29
      $region84: #{transformer_forward.2} parent=75 // pred_fallthru
        _
      // Predicated region
      $region85: #{transformer_forward.2} parent=75 // pred_check
        %p2070 = pneg %p359
      $region86: #{transformer_forward.2} parent=75 // pred_check_branch
        %2072 = sbr.rel (%p2070) target = $region88
      $region87: #{transformer_forward.2} parent=75 // pred_region
        %s2073 = smul.u32 2, %s29
        %p2074 = scmp.lt.s32.totalorder %s2073, 1
        %s2075 = scalar_select %p2074, %s2073, 1
        %s2076 = smul.addr %s2075, 8
        %s2077 = scalar_lea.vmem %s14, %s2076
      $region88: #{transformer_forward.2} parent=75 // pred_fallthru
        _
    $region76: #{transformer_forward.2} parent=5 // pred_fallthru
      _
    %p2078 = scmp.le.s32.totalorder 2, %s20
    // Predicated region
    $region89: #{transformer_forward.2} parent=5 // pred_check
      %p2079 = pneg %p2078
    $region90: #{transformer_forward.2} parent=5 // pred_check_branch
      %2081 = sbr.rel (%p2079) target = $region92
    $region91: #{transformer_forward.2} parent=5 // pred_region
      %s2082 = ssub.s32 %s20, 2
    $region92: #{transformer_forward.2} parent=5 // pred_fallthru
      _
  $region6: #{transformer_forward.2} parent=0 // loop_footer
    %s24 = sadd.s32 1, %s20
  $region7: #{transformer_forward.2} parent=0 // loop_footer_branch
    %19 = sbr.rel target = $region3
  $region8: #{transformer_forward.2} parent=0 // loop_exit
    _

// kernel: transformer_forward.3
$region0: #{transformer_forward.3}
  #allocation0 [shape = 'u32[]', space=smem, size = 0x4, offset = 0x4, fixed_abs, tag = 'smem constant byte address 0x4 - core index']
  #allocation1 [shape = 'u32[144,128]{1,0:T(1,128)}', space=vmem, size = 0x12000, scoped, tag = 'internal scratch']
  #allocation2 [shape = 'f32[2,8,128]{2,1,0:T(8,128)}', space=vmem, size = 0x2000, scoped, tag = 'scratch operand']
  #allocation3 [shape = 'f32[2,8,256]{2,1,0:T(8,128)}', space=vmem, size = 0x4000, scoped, tag = 'scratch operand']
  %s0 = inlined_call_operand.vmem [shape: f32[2,8,128], index: 0, kind: input, shape index: {}]
  %s1 = inlined_call_operand.vmem [shape: f32[2,8,128], index: 1, kind: input, shape index: {}]
  %s2 = inlined_call_operand.vmem [shape: f32[2,8,8], index: 2, kind: input, shape index: {}]
  %s3 = inlined_call_operand.vmem [shape: f32[2,8,8], index: 3, kind: input, shape index: {}]
  %s4 = inlined_call_operand.vmem [shape: bf16[128,384], index: 4, kind: input, shape index: {}]
  %s5 = inlined_call_operand.vmem [shape: f32[1,384], index: 5, kind: input, shape index: {}]
  %s6 = inlined_call_operand.vmem [shape: bf16[128,128], index: 6, kind: input, shape index: {}]
  %s7 = inlined_call_operand.vmem [shape: f32[1,128], index: 7, kind: input, shape index: {}]
  %s8 = inlined_call_operand.vmem [shape: f32[1,128], index: 8, kind: input, shape index: {}]
  %s9 = inlined_call_operand.vmem [shape: f32[1,128], index: 9, kind: input, shape index: {}]
  %s10 = inlined_call_operand.vmem [shape: bf16[128,128], index: 10, kind: input, shape index: {}]
  %s11 = inlined_call_operand.vmem [shape: f32[1,128], index: 11, kind: input, shape index: {}]
  %s12 = inlined_call_operand.vmem [shape: bf16[128,256], index: 12, kind: input, shape index: {}]
  %s13 = inlined_call_operand.vmem [shape: f32[1,256], index: 13, kind: input, shape index: {}]
  %s14 = inlined_call_operand.vmem [shape: bf16[128,128], index: 14, kind: input, shape index: {}]
  %s15 = inlined_call_operand.vmem [shape: f32[1,128], index: 15, kind: input, shape index: {}]
  %s16 = inlined_call_operand.vmem [shape: f32[1,128], index: 16, kind: input, shape index: {}]
  %s17 = inlined_call_operand.vmem [shape: f32[1,128], index: 17, kind: input, shape index: {}]
  %s18 = inlined_call_operand.vmem [shape: bf16[128,128], index: 18, kind: input, shape index: {}]
  %s19 = inlined_call_operand.vmem [shape: f32[1,128], index: 19, kind: input, shape index: {}]
  %s20 = inlined_call_operand.vmem [shape: bf16[128,128], index: 20, kind: input, shape index: {}]
  %s21 = inlined_call_operand.vmem [shape: f32[1,128], index: 21, kind: input, shape index: {}]
  %s22 = inlined_call_operand.vmem [shape: f32[1,128], index: 22, kind: input, shape index: {}]
  %s23 = inlined_call_operand.vmem [shape: f32[1,128], index: 23, kind: input, shape index: {}]
  %s24 = inlined_call_operand.vmem [shape: bf16[128,128], index: 24, kind: input, shape index: {}]
  %s25 = inlined_call_operand.hbm [shape: f32[2,8,128], index: 25, kind: output, shape index: {}]
  %s26 = sld [smem:[#allocation0]]
  $region141: #{transformer_forward.3} parent=0
    _
  %s28 = ssub.s32 1, %s26
  %s29 = scalar_select 0, %s28, %s26
  $region1: #{transformer_forward.3} parent=0
    #allocation4 [shape = 'u8[8192]{0}', space=vmem, size = 0x2000, scoped, tag = 'output window, operand 0, single buffered']
    #allocation5 [shape = 's32[2]{0}', space=sflag, size = 0x8, scoped, tag = 'scoped memory for transformer_forward.3']
    %30 = vsyncpa [#allocation5], 0
    loop: start=0, step=1, limit=4
    $region2: #{transformer_forward.3} parent=1 // loop_pre_header
      _
    $region3: #{transformer_forward.3} parent=1 // loop_header
      %s32 = sphi 0, %s36
      %p33 = scmp.ge.s32.totalorder %s32, 4
      %s39 = sphi 0, %s51
      %s40 = sphi 0, %s47
      %s41 = sphi 0, %s39
      %s42 = sphi 0, %s40
      %s43 = sphi 0, %s41
      %s44 = sphi 0, %s42
      %s54 = sphi 0, %s56
      %s57 = sphi 0, %s54
      %s58 = sphi 0, %s57
      %s74 = sphi 0, %s58
      %s80 = sphi 0, %s82
      %s83 = sphi 0, %s80
      %s84 = sphi 0, %s83
      %s100 = sphi 0, %s84
      %s106 = sphi 0, %s108
      %s109 = sphi 0, %s106
      %s110 = sphi 0, %s109
      %s126 = sphi 0, %s110
      %s132 = sphi 0, %s134
      %s135 = sphi 0, %s132
      %s136 = sphi 0, %s135
      %s152 = sphi 0, %s136
      %s156 = sphi 0, %s156
      %s158 = sphi 0, %s156
      %s159 = sphi 0, %s158
      %s173 = sphi 0, %s159
      %s177 = sphi 0, %s177
      %s179 = sphi 0, %s177
      %s180 = sphi 0, %s179
      %s194 = sphi 0, %s180
      %s198 = sphi 0, %s198
      %s200 = sphi 0, %s198
      %s201 = sphi 0, %s200
      %s215 = sphi 0, %s201
      %s219 = sphi 0, %s219
      %s221 = sphi 0, %s219
      %s222 = sphi 0, %s221
      %s236 = sphi 0, %s222
      %s240 = sphi 0, %s240
      %s242 = sphi 0, %s240
      %s243 = sphi 0, %s242
      %s257 = sphi 0, %s243
      %s261 = sphi 0, %s261
      %s263 = sphi 0, %s261
      %s264 = sphi 0, %s263
      %s278 = sphi 0, %s264
      %s282 = sphi 0, %s282
      %s284 = sphi 0, %s282
      %s285 = sphi 0, %s284
      %s299 = sphi 0, %s285
      %s303 = sphi 0, %s303
      %s305 = sphi 0, %s303
      %s306 = sphi 0, %s305
      %s320 = sphi 0, %s306
      %s324 = sphi 0, %s324
      %s326 = sphi 0, %s324
      %s327 = sphi 0, %s326
      %s341 = sphi 0, %s327
      %s345 = sphi 0, %s345
      %s347 = sphi 0, %s345
      %s348 = sphi 0, %s347
      %s362 = sphi 0, %s348
      %s366 = sphi 0, %s366
      %s368 = sphi 0, %s366
      %s369 = sphi 0, %s368
      %s383 = sphi 0, %s369
      %s387 = sphi 0, %s387
      %s389 = sphi 0, %s387
      %s390 = sphi 0, %s389
      %s404 = sphi 0, %s390
      %s408 = sphi 0, %s408
      %s410 = sphi 0, %s408
      %s411 = sphi 0, %s410
      %s425 = sphi 0, %s411
      %s429 = sphi 0, %s429
      %s431 = sphi 0, %s429
      %s432 = sphi 0, %s431
      %s446 = sphi 0, %s432
      %s450 = sphi 0, %s450
      %s452 = sphi 0, %s450
      %s453 = sphi 0, %s452
      %s467 = sphi 0, %s453
      %s471 = sphi 0, %s471
      %s473 = sphi 0, %s471
      %s474 = sphi 0, %s473
      %s488 = sphi 0, %s474
      %s492 = sphi 0, %s492
      %s494 = sphi 0, %s492
      %s495 = sphi 0, %s494
      %s509 = sphi 0, %s495
      %s513 = sphi 0, %s513
      %s515 = sphi 0, %s513
      %s516 = sphi 0, %s515
      %s530 = sphi 0, %s516
      %s534 = sphi 0, %s534
      %s536 = sphi 0, %s534
      %s537 = sphi 0, %s536
      %s551 = sphi 0, %s537
      %s555 = sphi 0, %s555
      %s557 = sphi 0, %s555
      %s558 = sphi 0, %s557
      %s572 = sphi 0, %s558
      %s576 = sphi 0, %s576
      %s578 = sphi 0, %s576
      %s579 = sphi 0, %s578
      %s593 = sphi 0, %s579
      %s599 = sphi 0, %s601
      %s602 = sphi 0, %s599
      %s603 = sphi 0, %s602
      %s619 = sphi 0, %s603
    $region4: #{transformer_forward.3} parent=1 // loop_header_branch
      %35 = sbr.rel (%p33) target = $region8
    $region5: #{transformer_forward.3} parent=1 // loop_body
      %s37 = ssub.s32 %s32, 1
      %s38 = ssub.s32 %s32, 2
      %s45 = sadd.s32 1, %s40
      %p46 = scmp.ge.s32.totalorder %s45, 2
      %s47 = scalar_select %p46, 0, %s45
      %s48 = sadd.s32 1, %s39
      %s49 = scalar_select %p46, %s48, %s39
      %p50 = scmp.ge.s32.totalorder %s49, 1
      %s51 = scalar_select %p50, 0, %s49
      %s52 = ssub.s32 %s39, %s51
      %p53 = scmp.eq.s32.totalorder %s52, 0
      %s55 = sadd.s32 %s54, 1
      %s56 = scalar_select %p53, %s54, %s55
      %p59 = pneg %p53
      %p60 = scmp.eq.s32.totalorder %s32, 1
      %p61 = por %p59, %p60
      %p62 = scmp.ne.s32.totalorder %s54, %s57
      %p63 = scmp.eq.s32.totalorder %s32, 0
      %p64 = por %p62, %p63
      %p65 = scmp.ne.s32.totalorder %s54, %s57
      %p66 = scmp.eq.s32.totalorder %s37, 1
      %p67 = por %p65, %p66
      %p68 = scmp.ne.s32.totalorder %s57, %s58
      %p69 = scmp.eq.s32.totalorder %s37, 0
      %p70 = por %p68, %p69
      %p71 = scmp.ne.s32.totalorder %s57, %s58
      %p72 = scmp.eq.s32.totalorder %s38, 1
      %p73 = por %p71, %p72
      %p75 = scmp.ne.s32.totalorder %s58, %s74
      %p76 = scmp.eq.s32.totalorder %s38, 0
      %p77 = por %p75, %p76
      %s78 = ssub.s32 %s39, %s51
      %p79 = scmp.eq.s32.totalorder %s78, 0
      %s81 = sadd.s32 %s80, 1
      %s82 = scalar_select %p79, %s80, %s81
      %p85 = pneg %p79
      %p86 = scmp.eq.s32.totalorder %s32, 1
      %p87 = por %p85, %p86
      %p88 = scmp.ne.s32.totalorder %s80, %s83
      %p89 = scmp.eq.s32.totalorder %s32, 0
      %p90 = por %p88, %p89
      %p91 = scmp.ne.s32.totalorder %s80, %s83
      %p92 = scmp.eq.s32.totalorder %s37, 1
      %p93 = por %p91, %p92
      %p94 = scmp.ne.s32.totalorder %s83, %s84
      %p95 = scmp.eq.s32.totalorder %s37, 0
      %p96 = por %p94, %p95
      %p97 = scmp.ne.s32.totalorder %s83, %s84
      %p98 = scmp.eq.s32.totalorder %s38, 1
      %p99 = por %p97, %p98
      %p101 = scmp.ne.s32.totalorder %s84, %s100
      %p102 = scmp.eq.s32.totalorder %s38, 0
      %p103 = por %p101, %p102
      %s104 = ssub.s32 %s39, %s51
      %p105 = scmp.eq.s32.totalorder %s104, 0
      %s107 = sadd.s32 %s106, 1
      %s108 = scalar_select %p105, %s106, %s107
      %p111 = pneg %p105
      %p112 = scmp.eq.s32.totalorder %s32, 1
      %p113 = por %p111, %p112
      %p114 = scmp.ne.s32.totalorder %s106, %s109
      %p115 = scmp.eq.s32.totalorder %s32, 0
      %p116 = por %p114, %p115
      %p117 = scmp.ne.s32.totalorder %s106, %s109
      %p118 = scmp.eq.s32.totalorder %s37, 1
      %p119 = por %p117, %p118
      %p120 = scmp.ne.s32.totalorder %s109, %s110
      %p121 = scmp.eq.s32.totalorder %s37, 0
      %p122 = por %p120, %p121
      %p123 = scmp.ne.s32.totalorder %s109, %s110
      %p124 = scmp.eq.s32.totalorder %s38, 1
      %p125 = por %p123, %p124
      %p127 = scmp.ne.s32.totalorder %s110, %s126
      %p128 = scmp.eq.s32.totalorder %s38, 0
      %p129 = por %p127, %p128
      %s130 = ssub.s32 %s39, %s51
      %p131 = scmp.eq.s32.totalorder %s130, 0
      %s133 = sadd.s32 %s132, 1
      %s134 = scalar_select %p131, %s132, %s133
      %p137 = pneg %p131
      %p138 = scmp.eq.s32.totalorder %s32, 1
      %p139 = por %p137, %p138
      %p140 = scmp.ne.s32.totalorder %s132, %s135
      %p141 = scmp.eq.s32.totalorder %s32, 0
      %p142 = por %p140, %p141
      %p143 = scmp.ne.s32.totalorder %s132, %s135
      %p144 = scmp.eq.s32.totalorder %s37, 1
      %p145 = por %p143, %p144
      %p146 = scmp.ne.s32.totalorder %s135, %s136
      %p147 = scmp.eq.s32.totalorder %s37, 0
      %p148 = por %p146, %p147
      %p149 = scmp.ne.s32.totalorder %s135, %s136
      %p150 = scmp.eq.s32.totalorder %s38, 1
      %p151 = por %p149, %p150
      %p153 = scmp.ne.s32.totalorder %s136, %s152
      %p154 = scmp.eq.s32.totalorder %s38, 0
      %p155 = por %p153, %p154
      %s157 = sadd.s32 %s156, 1
      %p160 = scmp.eq.s32.totalorder %s32, 1
      %p161 = scmp.ne.s32.totalorder %s156, %s158
      %p162 = scmp.eq.s32.totalorder %s32, 0
      %p163 = por %p161, %p162
      %p164 = scmp.ne.s32.totalorder %s156, %s158
      %p165 = scmp.eq.s32.totalorder %s37, 1
      %p166 = por %p164, %p165
      %p167 = scmp.ne.s32.totalorder %s158, %s159
      %p168 = scmp.eq.s32.totalorder %s37, 0
      %p169 = por %p167, %p168
      %p170 = scmp.ne.s32.totalorder %s158, %s159
      %p171 = scmp.eq.s32.totalorder %s38, 1
      %p172 = por %p170, %p171
      %p174 = scmp.ne.s32.totalorder %s159, %s173
      %p175 = scmp.eq.s32.totalorder %s38, 0
      %p176 = por %p174, %p175
      %s178 = sadd.s32 %s177, 1
      %p181 = scmp.eq.s32.totalorder %s32, 1
      %p182 = scmp.ne.s32.totalorder %s177, %s179
      %p183 = scmp.eq.s32.totalorder %s32, 0
      %p184 = por %p182, %p183
      %p185 = scmp.ne.s32.totalorder %s177, %s179
      %p186 = scmp.eq.s32.totalorder %s37, 1
      %p187 = por %p185, %p186
      %p188 = scmp.ne.s32.totalorder %s179, %s180
      %p189 = scmp.eq.s32.totalorder %s37, 0
      %p190 = por %p188, %p189
      %p191 = scmp.ne.s32.totalorder %s179, %s180
      %p192 = scmp.eq.s32.totalorder %s38, 1
      %p193 = por %p191, %p192
      %p195 = scmp.ne.s32.totalorder %s180, %s194
      %p196 = scmp.eq.s32.totalorder %s38, 0
      %p197 = por %p195, %p196
      %s199 = sadd.s32 %s198, 1
      %p202 = scmp.eq.s32.totalorder %s32, 1
      %p203 = scmp.ne.s32.totalorder %s198, %s200
      %p204 = scmp.eq.s32.totalorder %s32, 0
      %p205 = por %p203, %p204
      %p206 = scmp.ne.s32.totalorder %s198, %s200
      %p207 = scmp.eq.s32.totalorder %s37, 1
      %p208 = por %p206, %p207
      %p209 = scmp.ne.s32.totalorder %s200, %s201
      %p210 = scmp.eq.s32.totalorder %s37, 0
      %p211 = por %p209, %p210
      %p212 = scmp.ne.s32.totalorder %s200, %s201
      %p213 = scmp.eq.s32.totalorder %s38, 1
      %p214 = por %p212, %p213
      %p216 = scmp.ne.s32.totalorder %s201, %s215
      %p217 = scmp.eq.s32.totalorder %s38, 0
      %p218 = por %p216, %p217
      %s220 = sadd.s32 %s219, 1
      %p223 = scmp.eq.s32.totalorder %s32, 1
      %p224 = scmp.ne.s32.totalorder %s219, %s221
      %p225 = scmp.eq.s32.totalorder %s32, 0
      %p226 = por %p224, %p225
      %p227 = scmp.ne.s32.totalorder %s219, %s221
      %p228 = scmp.eq.s32.totalorder %s37, 1
      %p229 = por %p227, %p228
      %p230 = scmp.ne.s32.totalorder %s221, %s222
      %p231 = scmp.eq.s32.totalorder %s37, 0
      %p232 = por %p230, %p231
      %p233 = scmp.ne.s32.totalorder %s221, %s222
      %p234 = scmp.eq.s32.totalorder %s38, 1
      %p235 = por %p233, %p234
      %p237 = scmp.ne.s32.totalorder %s222, %s236
      %p238 = scmp.eq.s32.totalorder %s38, 0
      %p239 = por %p237, %p238
      %s241 = sadd.s32 %s240, 1
      %p244 = scmp.eq.s32.totalorder %s32, 1
      %p245 = scmp.ne.s32.totalorder %s240, %s242
      %p246 = scmp.eq.s32.totalorder %s32, 0
      %p247 = por %p245, %p246
      %p248 = scmp.ne.s32.totalorder %s240, %s242
      %p249 = scmp.eq.s32.totalorder %s37, 1
      %p250 = por %p248, %p249
      %p251 = scmp.ne.s32.totalorder %s242, %s243
      %p252 = scmp.eq.s32.totalorder %s37, 0
      %p253 = por %p251, %p252
      %p254 = scmp.ne.s32.totalorder %s242, %s243
      %p255 = scmp.eq.s32.totalorder %s38, 1
      %p256 = por %p254, %p255
      %p258 = scmp.ne.s32.totalorder %s243, %s257
      %p259 = scmp.eq.s32.totalorder %s38, 0
      %p260 = por %p258, %p259
      %s262 = sadd.s32 %s261, 1
      %p265 = scmp.eq.s32.totalorder %s32, 1
      %p266 = scmp.ne.s32.totalorder %s261, %s263
      %p267 = scmp.eq.s32.totalorder %s32, 0
      %p268 = por %p266, %p267
      %p269 = scmp.ne.s32.totalorder %s261, %s263
      %p270 = scmp.eq.s32.totalorder %s37, 1
      %p271 = por %p269, %p270
      %p272 = scmp.ne.s32.totalorder %s263, %s264
      %p273 = scmp.eq.s32.totalorder %s37, 0
      %p274 = por %p272, %p273
      %p275 = scmp.ne.s32.totalorder %s263, %s264
      %p276 = scmp.eq.s32.totalorder %s38, 1
      %p277 = por %p275, %p276
      %p279 = scmp.ne.s32.totalorder %s264, %s278
      %p280 = scmp.eq.s32.totalorder %s38, 0
      %p281 = por %p279, %p280
      %s283 = sadd.s32 %s282, 1
      %p286 = scmp.eq.s32.totalorder %s32, 1
      %p287 = scmp.ne.s32.totalorder %s282, %s284
      %p288 = scmp.eq.s32.totalorder %s32, 0
      %p289 = por %p287, %p288
      %p290 = scmp.ne.s32.totalorder %s282, %s284
      %p291 = scmp.eq.s32.totalorder %s37, 1
      %p292 = por %p290, %p291
      %p293 = scmp.ne.s32.totalorder %s284, %s285
      %p294 = scmp.eq.s32.totalorder %s37, 0
      %p295 = por %p293, %p294
      %p296 = scmp.ne.s32.totalorder %s284, %s285
      %p297 = scmp.eq.s32.totalorder %s38, 1
      %p298 = por %p296, %p297
      %p300 = scmp.ne.s32.totalorder %s285, %s299
      %p301 = scmp.eq.s32.totalorder %s38, 0
      %p302 = por %p300, %p301
      %s304 = sadd.s32 %s303, 1
      %p307 = scmp.eq.s32.totalorder %s32, 1
      %p308 = scmp.ne.s32.totalorder %s303, %s305
      %p309 = scmp.eq.s32.totalorder %s32, 0
      %p310 = por %p308, %p309
      %p311 = scmp.ne.s32.totalorder %s303, %s305
      %p312 = scmp.eq.s32.totalorder %s37, 1
      %p313 = por %p311, %p312
      %p314 = scmp.ne.s32.totalorder %s305, %s306
      %p315 = scmp.eq.s32.totalorder %s37, 0
      %p316 = por %p314, %p315
      %p317 = scmp.ne.s32.totalorder %s305, %s306
      %p318 = scmp.eq.s32.totalorder %s38, 1
      %p319 = por %p317, %p318
      %p321 = scmp.ne.s32.totalorder %s306, %s320
      %p322 = scmp.eq.s32.totalorder %s38, 0
      %p323 = por %p321, %p322
      %s325 = sadd.s32 %s324, 1
      %p328 = scmp.eq.s32.totalorder %s32, 1
      %p329 = scmp.ne.s32.totalorder %s324, %s326
      %p330 = scmp.eq.s32.totalorder %s32, 0
      %p331 = por %p329, %p330
      %p332 = scmp.ne.s32.totalorder %s324, %s326
      %p333 = scmp.eq.s32.totalorder %s37, 1
      %p334 = por %p332, %p333
      %p335 = scmp.ne.s32.totalorder %s326, %s327
      %p336 = scmp.eq.s32.totalorder %s37, 0
      %p337 = por %p335, %p336
      %p338 = scmp.ne.s32.totalorder %s326, %s327
      %p339 = scmp.eq.s32.totalorder %s38, 1
      %p340 = por %p338, %p339
      %p342 = scmp.ne.s32.totalorder %s327, %s341
      %p343 = scmp.eq.s32.totalorder %s38, 0
      %p344 = por %p342, %p343
      %s346 = sadd.s32 %s345, 1
      %p349 = scmp.eq.s32.totalorder %s32, 1
      %p350 = scmp.ne.s32.totalorder %s345, %s347
      %p351 = scmp.eq.s32.totalorder %s32, 0
      %p352 = por %p350, %p351
      %p353 = scmp.ne.s32.totalorder %s345, %s347
      %p354 = scmp.eq.s32.totalorder %s37, 1
      %p355 = por %p353, %p354
      %p356 = scmp.ne.s32.totalorder %s347, %s348
      %p357 = scmp.eq.s32.totalorder %s37, 0
      %p358 = por %p356, %p357
      %p359 = scmp.ne.s32.totalorder %s347, %s348
      %p360 = scmp.eq.s32.totalorder %s38, 1
      %p361 = por %p359, %p360
      %p363 = scmp.ne.s32.totalorder %s348, %s362
      %p364 = scmp.eq.s32.totalorder %s38, 0
      %p365 = por %p363, %p364
      %s367 = sadd.s32 %s366, 1
      %p370 = scmp.eq.s32.totalorder %s32, 1
      %p371 = scmp.ne.s32.totalorder %s366, %s368
      %p372 = scmp.eq.s32.totalorder %s32, 0
      %p373 = por %p371, %p372
      %p374 = scmp.ne.s32.totalorder %s366, %s368
      %p375 = scmp.eq.s32.totalorder %s37, 1
      %p376 = por %p374, %p375
      %p377 = scmp.ne.s32.totalorder %s368, %s369
      %p378 = scmp.eq.s32.totalorder %s37, 0
      %p379 = por %p377, %p378
      %p380 = scmp.ne.s32.totalorder %s368, %s369
      %p381 = scmp.eq.s32.totalorder %s38, 1
      %p382 = por %p380, %p381
      %p384 = scmp.ne.s32.totalorder %s369, %s383
      %p385 = scmp.eq.s32.totalorder %s38, 0
      %p386 = por %p384, %p385
      %s388 = sadd.s32 %s387, 1
      %p391 = scmp.eq.s32.totalorder %s32, 1
      %p392 = scmp.ne.s32.totalorder %s387, %s389
      %p393 = scmp.eq.s32.totalorder %s32, 0
      %p394 = por %p392, %p393
      %p395 = scmp.ne.s32.totalorder %s387, %s389
      %p396 = scmp.eq.s32.totalorder %s37, 1
      %p397 = por %p395, %p396
      %p398 = scmp.ne.s32.totalorder %s389, %s390
      %p399 = scmp.eq.s32.totalorder %s37, 0
      %p400 = por %p398, %p399
      %p401 = scmp.ne.s32.totalorder %s389, %s390
      %p402 = scmp.eq.s32.totalorder %s38, 1
      %p403 = por %p401, %p402
      %p405 = scmp.ne.s32.totalorder %s390, %s404
      %p406 = scmp.eq.s32.totalorder %s38, 0
      %p407 = por %p405, %p406
      %s409 = sadd.s32 %s408, 1
      %p412 = scmp.eq.s32.totalorder %s32, 1
      %p413 = scmp.ne.s32.totalorder %s408, %s410
      %p414 = scmp.eq.s32.totalorder %s32, 0
      %p415 = por %p413, %p414
      %p416 = scmp.ne.s32.totalorder %s408, %s410
      %p417 = scmp.eq.s32.totalorder %s37, 1
      %p418 = por %p416, %p417
      %p419 = scmp.ne.s32.totalorder %s410, %s411
      %p420 = scmp.eq.s32.totalorder %s37, 0
      %p421 = por %p419, %p420
      %p422 = scmp.ne.s32.totalorder %s410, %s411
      %p423 = scmp.eq.s32.totalorder %s38, 1
      %p424 = por %p422, %p423
      %p426 = scmp.ne.s32.totalorder %s411, %s425
      %p427 = scmp.eq.s32.totalorder %s38, 0
      %p428 = por %p426, %p427
      %s430 = sadd.s32 %s429, 1
      %p433 = scmp.eq.s32.totalorder %s32, 1
      %p434 = scmp.ne.s32.totalorder %s429, %s431
      %p435 = scmp.eq.s32.totalorder %s32, 0
      %p436 = por %p434, %p435
      %p437 = scmp.ne.s32.totalorder %s429, %s431
      %p438 = scmp.eq.s32.totalorder %s37, 1
      %p439 = por %p437, %p438
      %p440 = scmp.ne.s32.totalorder %s431, %s432
      %p441 = scmp.eq.s32.totalorder %s37, 0
      %p442 = por %p440, %p441
      %p443 = scmp.ne.s32.totalorder %s431, %s432
      %p444 = scmp.eq.s32.totalorder %s38, 1
      %p445 = por %p443, %p444
      %p447 = scmp.ne.s32.totalorder %s432, %s446
      %p448 = scmp.eq.s32.totalorder %s38, 0
      %p449 = por %p447, %p448
      %s451 = sadd.s32 %s450, 1
      %p454 = scmp.eq.s32.totalorder %s32, 1
      %p455 = scmp.ne.s32.totalorder %s450, %s452
      %p456 = scmp.eq.s32.totalorder %s32, 0
      %p457 = por %p455, %p456
      %p458 = scmp.ne.s32.totalorder %s450, %s452
      %p459 = scmp.eq.s32.totalorder %s37, 1
      %p460 = por %p458, %p459
      %p461 = scmp.ne.s32.totalorder %s452, %s453
      %p462 = scmp.eq.s32.totalorder %s37, 0
      %p463 = por %p461, %p462
      %p464 = scmp.ne.s32.totalorder %s452, %s453
      %p465 = scmp.eq.s32.totalorder %s38, 1
      %p466 = por %p464, %p465
      %p468 = scmp.ne.s32.totalorder %s453, %s467
      %p469 = scmp.eq.s32.totalorder %s38, 0
      %p470 = por %p468, %p469
      %s472 = sadd.s32 %s471, 1
      %p475 = scmp.eq.s32.totalorder %s32, 1
      %p476 = scmp.ne.s32.totalorder %s471, %s473
      %p477 = scmp.eq.s32.totalorder %s32, 0
      %p478 = por %p476, %p477
      %p479 = scmp.ne.s32.totalorder %s471, %s473
      %p480 = scmp.eq.s32.totalorder %s37, 1
      %p481 = por %p479, %p480
      %p482 = scmp.ne.s32.totalorder %s473, %s474
      %p483 = scmp.eq.s32.totalorder %s37, 0
      %p484 = por %p482, %p483
      %p485 = scmp.ne.s32.totalorder %s473, %s474
      %p486 = scmp.eq.s32.totalorder %s38, 1
      %p487 = por %p485, %p486
      %p489 = scmp.ne.s32.totalorder %s474, %s488
      %p490 = scmp.eq.s32.totalorder %s38, 0
      %p491 = por %p489, %p490
      %s493 = sadd.s32 %s492, 1
      %p496 = scmp.eq.s32.totalorder %s32, 1
      %p497 = scmp.ne.s32.totalorder %s492, %s494
      %p498 = scmp.eq.s32.totalorder %s32, 0
      %p499 = por %p497, %p498
      %p500 = scmp.ne.s32.totalorder %s492, %s494
      %p501 = scmp.eq.s32.totalorder %s37, 1
      %p502 = por %p500, %p501
      %p503 = scmp.ne.s32.totalorder %s494, %s495
      %p504 = scmp.eq.s32.totalorder %s37, 0
      %p505 = por %p503, %p504
      %p506 = scmp.ne.s32.totalorder %s494, %s495
      %p507 = scmp.eq.s32.totalorder %s38, 1
      %p508 = por %p506, %p507
      %p510 = scmp.ne.s32.totalorder %s495, %s509
      %p511 = scmp.eq.s32.totalorder %s38, 0
      %p512 = por %p510, %p511
      %s514 = sadd.s32 %s513, 1
      %p517 = scmp.eq.s32.totalorder %s32, 1
      %p518 = scmp.ne.s32.totalorder %s513, %s515
      %p519 = scmp.eq.s32.totalorder %s32, 0
      %p520 = por %p518, %p519
      %p521 = scmp.ne.s32.totalorder %s513, %s515
      %p522 = scmp.eq.s32.totalorder %s37, 1
      %p523 = por %p521, %p522
      %p524 = scmp.ne.s32.totalorder %s515, %s516
      %p525 = scmp.eq.s32.totalorder %s37, 0
      %p526 = por %p524, %p525
      %p527 = scmp.ne.s32.totalorder %s515, %s516
      %p528 = scmp.eq.s32.totalorder %s38, 1
      %p529 = por %p527, %p528
      %p531 = scmp.ne.s32.totalorder %s516, %s530
      %p532 = scmp.eq.s32.totalorder %s38, 0
      %p533 = por %p531, %p532
      %s535 = sadd.s32 %s534, 1
      %p538 = scmp.eq.s32.totalorder %s32, 1
      %p539 = scmp.ne.s32.totalorder %s534, %s536
      %p540 = scmp.eq.s32.totalorder %s32, 0
      %p541 = por %p539, %p540
      %p542 = scmp.ne.s32.totalorder %s534, %s536
      %p543 = scmp.eq.s32.totalorder %s37, 1
      %p544 = por %p542, %p543
      %p545 = scmp.ne.s32.totalorder %s536, %s537
      %p546 = scmp.eq.s32.totalorder %s37, 0
      %p547 = por %p545, %p546
      %p548 = scmp.ne.s32.totalorder %s536, %s537
      %p549 = scmp.eq.s32.totalorder %s38, 1
      %p550 = por %p548, %p549
      %p552 = scmp.ne.s32.totalorder %s537, %s551
      %p553 = scmp.eq.s32.totalorder %s38, 0
      %p554 = por %p552, %p553
      %s556 = sadd.s32 %s555, 1
      %p559 = scmp.eq.s32.totalorder %s32, 1
      %p560 = scmp.ne.s32.totalorder %s555, %s557
      %p561 = scmp.eq.s32.totalorder %s32, 0
      %p562 = por %p560, %p561
      %p563 = scmp.ne.s32.totalorder %s555, %s557
      %p564 = scmp.eq.s32.totalorder %s37, 1
      %p565 = por %p563, %p564
      %p566 = scmp.ne.s32.totalorder %s557, %s558
      %p567 = scmp.eq.s32.totalorder %s37, 0
      %p568 = por %p566, %p567
      %p569 = scmp.ne.s32.totalorder %s557, %s558
      %p570 = scmp.eq.s32.totalorder %s38, 1
      %p571 = por %p569, %p570
      %p573 = scmp.ne.s32.totalorder %s558, %s572
      %p574 = scmp.eq.s32.totalorder %s38, 0
      %p575 = por %p573, %p574
      %s577 = sadd.s32 %s576, 1
      %p580 = scmp.eq.s32.totalorder %s32, 1
      %p581 = scmp.ne.s32.totalorder %s576, %s578
      %p582 = scmp.eq.s32.totalorder %s32, 0
      %p583 = por %p581, %p582
      %p584 = scmp.ne.s32.totalorder %s576, %s578
      %p585 = scmp.eq.s32.totalorder %s37, 1
      %p586 = por %p584, %p585
      %p587 = scmp.ne.s32.totalorder %s578, %s579
      %p588 = scmp.eq.s32.totalorder %s37, 0
      %p589 = por %p587, %p588
      %p590 = scmp.ne.s32.totalorder %s578, %s579
      %p591 = scmp.eq.s32.totalorder %s38, 1
      %p592 = por %p590, %p591
      %p594 = scmp.ne.s32.totalorder %s579, %s593
      %p595 = scmp.eq.s32.totalorder %s38, 0
      %p596 = por %p594, %p595
      %s597 = ssub.s32 %s39, %s51
      %p598 = scmp.eq.s32.totalorder %s597, 0
      %s600 = sadd.s32 %s599, 1
      %s601 = scalar_select %p598, %s599, %s600
      %p604 = pneg %p598
      %p605 = scmp.eq.s32.totalorder %s32, 1
      %p606 = por %p604, %p605
      %p607 = scmp.ne.s32.totalorder %s599, %s602
      %p608 = scmp.eq.s32.totalorder %s32, 0
      %p609 = por %p607, %p608
      %p610 = scmp.ne.s32.totalorder %s599, %s602
      %p611 = scmp.eq.s32.totalorder %s37, 1
      %p612 = por %p610, %p611
      %p613 = scmp.ne.s32.totalorder %s602, %s603
      %p614 = scmp.eq.s32.totalorder %s37, 0
      %p615 = por %p613, %p614
      %p616 = scmp.ne.s32.totalorder %s602, %s603
      %p617 = scmp.eq.s32.totalorder %s38, 1
      %p618 = por %p616, %p617
      %p620 = scmp.ne.s32.totalorder %s603, %s619
      %p621 = scmp.eq.s32.totalorder %s38, 0
      %p622 = por %p620, %p621
      %p623 = scmp.le.s32.totalorder 1, %s32
      %p624 = scmp.lt.s32.totalorder %s32, 3
      %p625 = pnand %p623, %p624
      %p626 = pneg %p625
      // Predicated region
      $region9: #{transformer_forward.3} parent=5 // pred_check
        _
      $region10: #{transformer_forward.3} parent=5 // pred_check_branch
        %628 = sbr.rel (%p625) target = $region12
      $region11: #{transformer_forward.3} parent=5 // pred_region
        %s629 = ssub.s32 %s32, 1
        // Predicated region
        $region13: #{transformer_forward.3} parent=11 // pred_check
          %p630 = pneg %p70
        $region14: #{transformer_forward.3} parent=11 // pred_check_branch
          %632 = sbr.rel (%p630) target = $region16
        $region15: #{transformer_forward.3} parent=11 // pred_region
          %s633 = smul.u32 2, %s41
          %p634 = scmp.lt.s32.totalorder %s633, 1
          %s635 = scalar_select %p634, %s633, 1
          %s636 = smul.addr %s635, 8
          %s637 = scalar_lea.vmem %s0, %s636
          %s638 = smul.u32 2, %s41
        $region16: #{transformer_forward.3} parent=11 // pred_fallthru
          _
        // Predicated region
        $region17: #{transformer_forward.3} parent=11 // pred_check
          %p639 = pneg %p96
        $region18: #{transformer_forward.3} parent=11 // pred_check_branch
          %641 = sbr.rel (%p639) target = $region20
        $region19: #{transformer_forward.3} parent=11 // pred_region
          %s642 = smul.u32 2, %s41
          %p643 = scmp.lt.s32.totalorder %s642, 1
          %s644 = scalar_select %p643, %s642, 1
          %s645 = smul.addr %s644, 8
          %s646 = scalar_lea.vmem %s1, %s645
          %s647 = smul.u32 2, %s41
        $region20: #{transformer_forward.3} parent=11 // pred_fallthru
          _
        // Predicated region
        $region21: #{transformer_forward.3} parent=11 // pred_check
          %p648 = pneg %p122
        $region22: #{transformer_forward.3} parent=11 // pred_check_branch
          %650 = sbr.rel (%p648) target = $region24
        $region23: #{transformer_forward.3} parent=11 // pred_region
          %s651 = smul.u32 2, %s41
          %p652 = scmp.lt.s32.totalorder %s651, 1
          %s653 = scalar_select %p652, %s651, 1
          %s654 = smul.addr %s653, 8
          %s655 = scalar_lea.vmem %s2, %s654
          %s656 = smul.u32 2, %s41
        $region24: #{transformer_forward.3} parent=11 // pred_fallthru
          _
        // Predicated region
        $region25: #{transformer_forward.3} parent=11 // pred_check
          %p657 = pneg %p148
        $region26: #{transformer_forward.3} parent=11 // pred_check_branch
          %659 = sbr.rel (%p657) target = $region28
        $region27: #{transformer_forward.3} parent=11 // pred_region
          %s660 = smul.u32 2, %s41
          %p661 = scmp.lt.s32.totalorder %s660, 1
          %s662 = scalar_select %p661, %s660, 1
          %s663 = smul.addr %s662, 8
          %s664 = scalar_lea.vmem %s3, %s663
          %s665 = smul.u32 2, %s41
        $region28: #{transformer_forward.3} parent=11 // pred_fallthru
          _
        // Predicated region
        $region29: #{transformer_forward.3} parent=11 // pred_check
          %p666 = pneg %p169
        $region30: #{transformer_forward.3} parent=11 // pred_check_branch
          %668 = sbr.rel (%p666) target = $region32
        $region31: #{transformer_forward.3} parent=11 // pred_region
          _
        $region32: #{transformer_forward.3} parent=11 // pred_fallthru
          _
        // Predicated region
        $region33: #{transformer_forward.3} parent=11 // pred_check
          %p669 = pneg %p190
        $region34: #{transformer_forward.3} parent=11 // pred_check_branch
          %671 = sbr.rel (%p669) target = $region36
        $region35: #{transformer_forward.3} parent=11 // pred_region
          _
        $region36: #{transformer_forward.3} parent=11 // pred_fallthru
          _
        // Predicated region
        $region37: #{transformer_forward.3} parent=11 // pred_check
          %p672 = pneg %p211
        $region38: #{transformer_forward.3} parent=11 // pred_check_branch
          %674 = sbr.rel (%p672) target = $region40
        $region39: #{transformer_forward.3} parent=11 // pred_region
          _
        $region40: #{transformer_forward.3} parent=11 // pred_fallthru
          _
        // Predicated region
        $region41: #{transformer_forward.3} parent=11 // pred_check
          %p675 = pneg %p232
        $region42: #{transformer_forward.3} parent=11 // pred_check_branch
          %677 = sbr.rel (%p675) target = $region44
        $region43: #{transformer_forward.3} parent=11 // pred_region
          _
        $region44: #{transformer_forward.3} parent=11 // pred_fallthru
          _
        // Predicated region
        $region45: #{transformer_forward.3} parent=11 // pred_check
          %p678 = pneg %p253
        $region46: #{transformer_forward.3} parent=11 // pred_check_branch
          %680 = sbr.rel (%p678) target = $region48
        $region47: #{transformer_forward.3} parent=11 // pred_region
          _
        $region48: #{transformer_forward.3} parent=11 // pred_fallthru
          _
        // Predicated region
        $region49: #{transformer_forward.3} parent=11 // pred_check
          %p681 = pneg %p274
        $region50: #{transformer_forward.3} parent=11 // pred_check_branch
          %683 = sbr.rel (%p681) target = $region52
        $region51: #{transformer_forward.3} parent=11 // pred_region
          _
        $region52: #{transformer_forward.3} parent=11 // pred_fallthru
          _
        // Predicated region
        $region53: #{transformer_forward.3} parent=11 // pred_check
          %p684 = pneg %p295
        $region54: #{transformer_forward.3} parent=11 // pred_check_branch
          %686 = sbr.rel (%p684) target = $region56
        $region55: #{transformer_forward.3} parent=11 // pred_region
          _
        $region56: #{transformer_forward.3} parent=11 // pred_fallthru
          _
        // Predicated region
        $region57: #{transformer_forward.3} parent=11 // pred_check
          %p687 = pneg %p316
        $region58: #{transformer_forward.3} parent=11 // pred_check_branch
          %689 = sbr.rel (%p687) target = $region60
        $region59: #{transformer_forward.3} parent=11 // pred_region
          _
        $region60: #{transformer_forward.3} parent=11 // pred_fallthru
          _
        // Predicated region
        $region61: #{transformer_forward.3} parent=11 // pred_check
          %p690 = pneg %p337
        $region62: #{transformer_forward.3} parent=11 // pred_check_branch
          %692 = sbr.rel (%p690) target = $region64
        $region63: #{transformer_forward.3} parent=11 // pred_region
          _
        $region64: #{transformer_forward.3} parent=11 // pred_fallthru
          _
        // Predicated region
        $region65: #{transformer_forward.3} parent=11 // pred_check
          %p693 = pneg %p358
        $region66: #{transformer_forward.3} parent=11 // pred_check_branch
          %695 = sbr.rel (%p693) target = $region68
        $region67: #{transformer_forward.3} parent=11 // pred_region
          _
        $region68: #{transformer_forward.3} parent=11 // pred_fallthru
          _
        // Predicated region
        $region69: #{transformer_forward.3} parent=11 // pred_check
          %p696 = pneg %p379
        $region70: #{transformer_forward.3} parent=11 // pred_check_branch
          %698 = sbr.rel (%p696) target = $region72
        $region71: #{transformer_forward.3} parent=11 // pred_region
          _
        $region72: #{transformer_forward.3} parent=11 // pred_fallthru
          _
        // Predicated region
        $region73: #{transformer_forward.3} parent=11 // pred_check
          %p699 = pneg %p400
        $region74: #{transformer_forward.3} parent=11 // pred_check_branch
          %701 = sbr.rel (%p699) target = $region76
        $region75: #{transformer_forward.3} parent=11 // pred_region
          _
        $region76: #{transformer_forward.3} parent=11 // pred_fallthru
          _
        // Predicated region
        $region77: #{transformer_forward.3} parent=11 // pred_check
          %p702 = pneg %p421
        $region78: #{transformer_forward.3} parent=11 // pred_check_branch
          %704 = sbr.rel (%p702) target = $region80
        $region79: #{transformer_forward.3} parent=11 // pred_region
          _
        $region80: #{transformer_forward.3} parent=11 // pred_fallthru
          _
        // Predicated region
        $region81: #{transformer_forward.3} parent=11 // pred_check
          %p705 = pneg %p442
        $region82: #{transformer_forward.3} parent=11 // pred_check_branch
          %707 = sbr.rel (%p705) target = $region84
        $region83: #{transformer_forward.3} parent=11 // pred_region
          _
        $region84: #{transformer_forward.3} parent=11 // pred_fallthru
          _
        // Predicated region
        $region85: #{transformer_forward.3} parent=11 // pred_check
          %p708 = pneg %p463
        $region86: #{transformer_forward.3} parent=11 // pred_check_branch
          %710 = sbr.rel (%p708) target = $region88
        $region87: #{transformer_forward.3} parent=11 // pred_region
          _
        $region88: #{transformer_forward.3} parent=11 // pred_fallthru
          _
        // Predicated region
        $region89: #{transformer_forward.3} parent=11 // pred_check
          %p711 = pneg %p484
        $region90: #{transformer_forward.3} parent=11 // pred_check_branch
          %713 = sbr.rel (%p711) target = $region92
        $region91: #{transformer_forward.3} parent=11 // pred_region
          _
        $region92: #{transformer_forward.3} parent=11 // pred_fallthru
          _
        // Predicated region
        $region93: #{transformer_forward.3} parent=11 // pred_check
          %p714 = pneg %p505
        $region94: #{transformer_forward.3} parent=11 // pred_check_branch
          %716 = sbr.rel (%p714) target = $region96
        $region95: #{transformer_forward.3} parent=11 // pred_region
          _
        $region96: #{transformer_forward.3} parent=11 // pred_fallthru
          _
        // Predicated region
        $region97: #{transformer_forward.3} parent=11 // pred_check
          %p717 = pneg %p526
        $region98: #{transformer_forward.3} parent=11 // pred_check_branch
          %719 = sbr.rel (%p717) target = $region100
        $region99: #{transformer_forward.3} parent=11 // pred_region
          _
        $region100: #{transformer_forward.3} parent=11 // pred_fallthru
          _
        // Predicated region
        $region101: #{transformer_forward.3} parent=11 // pred_check
          %p720 = pneg %p547
        $region102: #{transformer_forward.3} parent=11 // pred_check_branch
          %722 = sbr.rel (%p720) target = $region104
        $region103: #{transformer_forward.3} parent=11 // pred_region
          _
        $region104: #{transformer_forward.3} parent=11 // pred_fallthru
          _
        // Predicated region
        $region105: #{transformer_forward.3} parent=11 // pred_check
          %p723 = pneg %p568
        $region106: #{transformer_forward.3} parent=11 // pred_check_branch
          %725 = sbr.rel (%p723) target = $region108
        $region107: #{transformer_forward.3} parent=11 // pred_region
          _
        $region108: #{transformer_forward.3} parent=11 // pred_fallthru
          _
        // Predicated region
        $region109: #{transformer_forward.3} parent=11 // pred_check
          %p726 = pneg %p589
        $region110: #{transformer_forward.3} parent=11 // pred_check_branch
          %728 = sbr.rel (%p726) target = $region112
        $region111: #{transformer_forward.3} parent=11 // pred_region
          _
        $region112: #{transformer_forward.3} parent=11 // pred_fallthru
          _
      $region12: #{transformer_forward.3} parent=5 // pred_fallthru
        _
      %p729 = scmp.lt.s32.totalorder %s32, 2
      // Predicated region
      $region113: #{transformer_forward.3} parent=5 // pred_check
        %p730 = pneg %p729
      $region114: #{transformer_forward.3} parent=5 // pred_check_branch
        %732 = sbr.rel (%p730) target = $region116
      $region115: #{transformer_forward.3} parent=5 // pred_region
        _
      $region116: #{transformer_forward.3} parent=5 // pred_fallthru
        _
      %p733 = scmp.le.s32.totalorder 1, %s32
      %p734 = scmp.lt.s32.totalorder %s32, 3
      %p735 = pnand %p733, %p734
      %p736 = pneg %p735
      // Predicated region
      $region117: #{transformer_forward.3} parent=5 // pred_check
        _
      $region118: #{transformer_forward.3} parent=5 // pred_check_branch
        %738 = sbr.rel (%p735) target = $region120
      $region119: #{transformer_forward.3} parent=5 // pred_region
        %s739 = ssub.s32 %s32, 1
        %s740 = smul.u32 2, %s41
        %p741 = scmp.lt.s32.totalorder %s740, 1
        %s742 = scalar_select %p741, %s740, 1
        %s743 = smul.addr %s742, 8
        %s744 = scalar_lea.vmem %s0, %s743
        %p745 = pneg %p70
        %p746 = pneg %p67
        %s747 = smul.u32 2, %s41
        %p748 = scmp.lt.s32.totalorder %s747, 1
        %s749 = scalar_select %p748, %s747, 1
        %s750 = smul.addr %s749, 8
        %s751 = scalar_lea.vmem %s1, %s750
        %p752 = pneg %p96
        %p753 = pneg %p93
        %s754 = smul.u32 2, %s41
        %p755 = scmp.lt.s32.totalorder %s754, 1
        %s756 = scalar_select %p755, %s754, 1
        %s757 = smul.addr %s756, 8
        %s758 = scalar_lea.vmem %s2, %s757
        %p759 = pneg %p122
        %p760 = pneg %p119
        %s761 = smul.u32 2, %s41
        %p762 = scmp.lt.s32.totalorder %s761, 1
        %s763 = scalar_select %p762, %s761, 1
        %s764 = smul.addr %s763, 8
        %s765 = scalar_lea.vmem %s3, %s764
        %p766 = pneg %p148
        %p767 = pneg %p145
        %p768 = pneg %p169
        %p769 = pneg %p166
        %p770 = pneg %p190
        %p771 = pneg %p187
        %p772 = pneg %p211
        %p773 = pneg %p208
        %p774 = pneg %p232
        %p775 = pneg %p229
        %p776 = pneg %p253
        %p777 = pneg %p250
        %p778 = pneg %p274
        %p779 = pneg %p271
        %p780 = pneg %p295
        %p781 = pneg %p292
        %p782 = pneg %p316
        %p783 = pneg %p313
        %p784 = pneg %p337
        %p785 = pneg %p334
        %p786 = pneg %p358
        %p787 = pneg %p355
        %p788 = pneg %p379
        %p789 = pneg %p376
        %p790 = pneg %p400
        %p791 = pneg %p397
        %p792 = pneg %p421
        %p793 = pneg %p418
        %p794 = pneg %p442
        %p795 = pneg %p439
        %p796 = pneg %p463
        %p797 = pneg %p460
        %p798 = pneg %p484
        %p799 = pneg %p481
        %p800 = pneg %p505
        %p801 = pneg %p502
        %p802 = pneg %p526
        %p803 = pneg %p523
        %p804 = pneg %p547
        %p805 = pneg %p544
        %p806 = pneg %p568
        %p807 = pneg %p565
        %p808 = pneg %p589
        %p809 = pneg %p586
        %p810 = pneg %p615
        %p811 = pneg %p612
        %s812 = smul.u32 2, %s41
        %p813 = scmp.lt.s32.totalorder %s812, 1
        %s814 = scalar_select %p813, %s812, 1
        %s815 = smul.addr %s814, 8
        %s816 = scalar_lea.vmem %s0, %s815
        %s817 = smul.u32 2, %s41
        %s818 = smul.u32 2, %s41
        %p819 = scmp.lt.s32.totalorder %s818, 1
        %s820 = scalar_select %p819, %s818, 1
        %s821 = smul.addr %s820, 8
        %s822 = scalar_lea.vmem %s1, %s821
        %s823 = smul.u32 2, %s41
        %s824 = smul.u32 2, %s41
        %p825 = scmp.lt.s32.totalorder %s824, 1
        %s826 = scalar_select %p825, %s824, 1
        %s827 = smul.addr %s826, 8
        %s828 = scalar_lea.vmem %s2, %s827
        %s829 = smul.u32 2, %s41
        %s830 = smul.u32 2, %s41
        %p831 = scmp.lt.s32.totalorder %s830, 1
        %s832 = scalar_select %p831, %s830, 1
        %s833 = smul.addr %s832, 8
        %s834 = scalar_lea.vmem %s3, %s833
        %s835 = smul.u32 2, %s41
        %s836 = smul.u32 2, %s41
        %p838 = scmp.eq.s32.totalorder %s42, 0
        // Predicated region
        $region121: #{transformer_forward.3} parent=119 // pred_check
          %p839 = pneg %p838
        $region122: #{transformer_forward.3} parent=119 // pred_check_branch
          %841 = sbr.rel (%p839) target = $region124
        $region123: #{transformer_forward.3} parent=119 // pred_region
          %v842 = vld [vmem:[%s816] sm:$0xff]
          %v843 = vld [vmem:[%s816 + $0x8] sm:$0xff]
          %844 = vst [vmem:[#allocation2] sm:$0xff] %v842
          %845 = vst [vmem:[#allocation2 + $0x8] sm:$0xff] %v843
          %v846 = vld [vmem:[%s822] sm:$0xff]
          %v847 = vld [vmem:[%s822 + $0x8] sm:$0xff]
          %v848 = vld [vmem:[%s12] sm:$0xff]
          %v849 = vld [vmem:[%s12 + $0x8] sm:$0xff]
          %v850 = vld [vmem:[%s12 + $0x10] sm:$0xff]
          %v851 = vld [vmem:[%s12 + $0x18] sm:$0xff]
          %v852 = vld [vmem:[%s12 + $0x20] sm:$0xff]
          %v853 = vld [vmem:[%s12 + $0x28] sm:$0xff]
          %v854 = vld [vmem:[%s12 + $0x30] sm:$0xff]
          %v855 = vld [vmem:[%s12 + $0x38] sm:$0xff]
          %v856 = vld [vmem:[%s12 + $0x40] sm:$0xff]
          %v857 = vld [vmem:[%s12 + $0x48] sm:$0xff]
          %v858 = vld [vmem:[%s12 + $0x50] sm:$0xff]
          %v859 = vld [vmem:[%s12 + $0x58] sm:$0xff]
          %v860 = vld [vmem:[%s12 + $0x60] sm:$0xff]
          %v861 = vld [vmem:[%s12 + $0x68] sm:$0xff]
          %v862 = vld [vmem:[%s12 + $0x70] sm:$0xff]
          %v863 = vld [vmem:[%s12 + $0x78] sm:$0xff]
          %v864 = vpack.c.bf16 %v847, %v846
          %v865 = vld [vmem:[%s13] sm:$0x3]
          %v867 = vlaneseq
          %v868 = vshrl.u32 %v867, 7
          %v869 = vsub.s32 0, %v868
          %v870 = vrot.slane %v865, %v869
          %v871 = vlaneseq
          %v872 = vshrl.u32 %v871, 7
          %v873 = vsub.s32 1, %v872
          %v874 = vrot.slane %v865, %v873
          %v893 = vunpack.c.l.b16 %v848
          %v894 = vunpack.c.h.b16 %v848
          %v895 = vunpack.c.l.b16 %v849
          %v896 = vunpack.c.h.b16 %v849
          %v897 = vunpack.c.l.b16 %v850
          %v898 = vunpack.c.h.b16 %v850
          %v899 = vunpack.c.l.b16 %v851
          %v900 = vunpack.c.h.b16 %v851
          %v901 = vunpack.c.l.b16 %v852
          %v902 = vunpack.c.h.b16 %v852
          %v903 = vunpack.c.l.b16 %v853
          %v904 = vunpack.c.h.b16 %v853
          %v905 = vunpack.c.l.b16 %v854
          %v906 = vunpack.c.h.b16 %v854
          %v907 = vunpack.c.l.b16 %v855
          %v908 = vunpack.c.h.b16 %v855
          %v909 = vunpack.c.l.b16 %v856
          %v910 = vunpack.c.h.b16 %v856
          %v911 = vunpack.c.l.b16 %v857
          %v912 = vunpack.c.h.b16 %v857
          %v913 = vunpack.c.l.b16 %v858
          %v914 = vunpack.c.h.b16 %v858
          %v915 = vunpack.c.l.b16 %v859
          %v916 = vunpack.c.h.b16 %v859
          %v917 = vunpack.c.l.b16 %v860
          %v918 = vunpack.c.h.b16 %v860
          %v919 = vunpack.c.l.b16 %v861
          %v920 = vunpack.c.h.b16 %v861
          %v921 = vunpack.c.l.b16 %v862
          %v922 = vunpack.c.h.b16 %v862
          %v923 = vunpack.c.l.b16 %v863
          %v924 = vunpack.c.h.b16 %v863
          %v925 = vpack.c.b16 %v895, %v893
          %v926 = vpack.c.b16 %v896, %v894
          %v927 = vpack.c.b16 %v899, %v897
          %v928 = vpack.c.b16 %v900, %v898
          %v929 = vpack.c.b16 %v903, %v901
          %v930 = vpack.c.b16 %v904, %v902
          %v931 = vpack.c.b16 %v907, %v905
          %v932 = vpack.c.b16 %v908, %v906
          %v933 = vpack.c.b16 %v911, %v909
          %v934 = vpack.c.b16 %v912, %v910
          %v935 = vpack.c.b16 %v915, %v913
          %v936 = vpack.c.b16 %v916, %v914
          %v937 = vpack.c.b16 %v919, %v917
          %v938 = vpack.c.b16 %v920, %v918
          %v939 = vpack.c.b16 %v923, %v921
          %v940 = vpack.c.b16 %v924, %v922
          %957 = vmatprep.subr.bf16.mxu0 %v926
          %958 = vmatpush1.bf16.msra.mxu0 %v925
          %959 = vmatprep.subr.bf16.mxu0 %v928
          %960 = vmatpush1.bf16.msra.mxu0 %v927
          %961 = vmatprep.subr.bf16.mxu0 %v930
          %962 = vmatpush1.bf16.msra.mxu0 %v929
          %963 = vmatprep.subr.bf16.mxu0 %v932
          %964 = vmatpush1.bf16.msra.mxu0 %v931
          %965 = vmatprep.subr.bf16.mxu0 %v934
          %966 = vmatpush1.bf16.msra.mxu0 %v933
          %967 = vmatprep.subr.bf16.mxu0 %v936
          %968 = vmatpush1.bf16.msra.mxu0 %v935
          %969 = vmatprep.subr.bf16.mxu0 %v938
          %970 = vmatpush1.bf16.msra.mxu0 %v937
          %971 = vmatprep.subr.bf16.mxu0 %v940
          %972 = vmatpush1.bf16.msra.mxu0 %v939
          %973 = vmatprep.subr.bf16.mxu0 0
          %974 = vmatpush1.bf16.msra.mxu0 0
          %975 = vmatprep.subr.bf16.mxu0 0
          %976 = vmatpush1.bf16.msra.mxu0 0
          %977 = vmatprep.subr.bf16.mxu0 0
          %978 = vmatpush1.bf16.msra.mxu0 0
          %979 = vmatprep.subr.bf16.mxu0 0
          %980 = vmatpush1.bf16.msra.mxu0 0
          %981 = vmatprep.subr.bf16.mxu0 0
          %982 = vmatpush1.bf16.msra.mxu0 0
          %983 = vmatprep.subr.bf16.mxu0 0
          %984 = vmatpush1.bf16.msra.mxu0 0
          %985 = vmatprep.subr.bf16.mxu0 0
          %986 = vmatpush1.bf16.msra.mxu0 0
          %987 = vmatprep.subr.bf16.mxu0 0
          %988 = vmatpush1.bf16.msra.mxu0 0
          %989 = vmatprep.mubr.bf16.mxu0 0
          %990 = vmatmul.mubr.bf16.gmra.mrb[0].mxu0 %v864
          %v991 = vpop.f32.mrb[0].mxu0
          %v992 = vadd.f32 %v870, %v991
          %v993 = vpop.f32.mrb[0].mxu0
          %v994 = vadd.f32 %v874, %v993
          %v995 = vpop.f32.mrb[0].mxu0
          %v996 = vadd.f32 %v870, %v995
          %v997 = vpop.f32.mrb[0].mxu0
          %v998 = vadd.f32 %v874, %v997
          %999 = vdwg.mxu0
          %1000 = vst [vmem:[#allocation3] sm:$0xff] %v992
          %1001 = vst [vmem:[#allocation3 + $0x8] sm:$0xff] %v994
          %1002 = vst [vmem:[#allocation3 + $0x10] sm:$0xff] %v996
          %1003 = vst [vmem:[#allocation3 + $0x18] sm:$0xff] %v998
        $region124: #{transformer_forward.3} parent=119 // pred_fallthru
          _
        %v1004 = vld [vmem:[#allocation2] sm:$0xff]
        %v1005 = vld [vmem:[#allocation2 + $0x8] sm:$0xff]
        %v1006 = vld [vmem:[%s4] sm:$0xff]
        %v1007 = vld [vmem:[%s4 + $0x8] sm:$0xf]
        %v1008 = vld [vmem:[%s4 + $0xc] sm:$0xff]
        %v1009 = vld [vmem:[%s4 + $0x14] sm:$0xf]
        %v1010 = vld [vmem:[%s4 + $0x18] sm:$0xff]
        %v1011 = vld [vmem:[%s4 + $0x20] sm:$0xf]
        %v1012 = vld [vmem:[%s4 + $0x24] sm:$0xff]
        %v1013 = vld [vmem:[%s4 + $0x2c] sm:$0xf]
        %v1014 = vld [vmem:[%s4 + $0x30] sm:$0xff]
        %v1015 = vld [vmem:[%s4 + $0x38] sm:$0xf]
        %v1016 = vld [vmem:[%s4 + $0x3c] sm:$0xff]
        %v1017 = vld [vmem:[%s4 + $0x44] sm:$0xf]
        %v1018 = vld [vmem:[%s4 + $0x48] sm:$0xff]
        %v1019 = vld [vmem:[%s4 + $0x50] sm:$0xf]
        %v1020 = vld [vmem:[%s4 + $0x54] sm:$0xff]
        %v1021 = vld [vmem:[%s4 + $0x5c] sm:$0xf]
        %v1022 = vld [vmem:[%s4 + $0x60] sm:$0xff]
        %v1023 = vld [vmem:[%s4 + $0x68] sm:$0xf]
        %v1024 = vld [vmem:[%s4 + $0x6c] sm:$0xff]
        %v1025 = vld [vmem:[%s4 + $0x74] sm:$0xf]
        %v1026 = vld [vmem:[%s4 + $0x78] sm:$0xff]
        %v1027 = vld [vmem:[%s4 + $0x80] sm:$0xf]
        %v1028 = vld [vmem:[%s4 + $0x84] sm:$0xff]
        %v1029 = vld [vmem:[%s4 + $0x8c] sm:$0xf]
        %v1030 = vld [vmem:[%s4 + $0x90] sm:$0xff]
        %v1031 = vld [vmem:[%s4 + $0x98] sm:$0xf]
        %v1032 = vld [vmem:[%s4 + $0x9c] sm:$0xff]
        %v1033 = vld [vmem:[%s4 + $0xa4] sm:$0xf]
        %v1034 = vld [vmem:[%s4 + $0xa8] sm:$0xff]
        %v1035 = vld [vmem:[%s4 + $0xb0] sm:$0xf]
        %v1036 = vld [vmem:[%s4 + $0xb4] sm:$0xff]
        %v1037 = vld [vmem:[%s4 + $0xbc] sm:$0xf]
        %v1038 = vpack.c.bf16 %v1005, %v1004
        %v1039 = vld [vmem:[%s5] sm:$0x7]
        %v1041 = vlaneseq
        %v1042 = vshrl.u32 %v1041, 7
        %v1043 = vsub.s32 0, %v1042
        %v1044 = vrot.slane %v1039, %v1043
        %v1045 = vlaneseq
        %v1046 = vshrl.u32 %v1045, 7
        %v1047 = vsub.s32 1, %v1046
        %v1048 = vrot.slane %v1039, %v1047
        %v1049 = vlaneseq
        %v1050 = vshrl.u32 %v1049, 7
        %v1051 = vsub.s32 2, %v1050
        %v1052 = vrot.slane %v1039, %v1051
        %v1088 = vunpack.c.l.b16 %v1006
        %v1089 = vunpack.c.h.b16 %v1006
        %v1090 = vunpack.c.l.b16 %v1007
        %v1091 = vunpack.c.l.b16 %v1008
        %v1092 = vunpack.c.h.b16 %v1008
        %v1093 = vunpack.c.l.b16 %v1009
        %v1094 = vunpack.c.l.b16 %v1010
        %v1095 = vunpack.c.h.b16 %v1010
        %v1096 = vunpack.c.l.b16 %v1011
        %v1097 = vunpack.c.l.b16 %v1012
        %v1098 = vunpack.c.h.b16 %v1012
        %v1099 = vunpack.c.l.b16 %v1013
        %v1100 = vunpack.c.l.b16 %v1014
        %v1101 = vunpack.c.h.b16 %v1014
        %v1102 = vunpack.c.l.b16 %v1015
        %v1103 = vunpack.c.l.b16 %v1016
        %v1104 = vunpack.c.h.b16 %v1016
        %v1105 = vunpack.c.l.b16 %v1017
        %v1106 = vunpack.c.l.b16 %v1018
        %v1107 = vunpack.c.h.b16 %v1018
        %v1108 = vunpack.c.l.b16 %v1019
        %v1109 = vunpack.c.l.b16 %v1020
        %v1110 = vunpack.c.h.b16 %v1020
        %v1111 = vunpack.c.l.b16 %v1021
        %v1112 = vunpack.c.l.b16 %v1022
        %v1113 = vunpack.c.h.b16 %v1022
        %v1114 = vunpack.c.l.b16 %v1023
        %v1115 = vunpack.c.l.b16 %v1024
        %v1116 = vunpack.c.h.b16 %v1024
        %v1117 = vunpack.c.l.b16 %v1025
        %v1118 = vunpack.c.l.b16 %v1026
        %v1119 = vunpack.c.h.b16 %v1026
        %v1120 = vunpack.c.l.b16 %v1027
        %v1121 = vunpack.c.l.b16 %v1028
        %v1122 = vunpack.c.h.b16 %v1028
        %v1123 = vunpack.c.l.b16 %v1029
        %v1124 = vunpack.c.l.b16 %v1030
        %v1125 = vunpack.c.h.b16 %v1030
        %v1126 = vunpack.c.l.b16 %v1031
        %v1127 = vunpack.c.l.b16 %v1032
        %v1128 = vunpack.c.h.b16 %v1032
        %v1129 = vunpack.c.l.b16 %v1033
        %v1130 = vunpack.c.l.b16 %v1034
        %v1131 = vunpack.c.h.b16 %v1034
        %v1132 = vunpack.c.l.b16 %v1035
        %v1133 = vunpack.c.l.b16 %v1036
        %v1134 = vunpack.c.h.b16 %v1036
        %v1135 = vunpack.c.l.b16 %v1037
        %v1136 = vpack.c.b16 %v1091, %v1088
        %v1137 = vpack.c.b16 %v1092, %v1089
        %v1138 = vpack.c.b16 %v1093, %v1090
        %v1139 = vpack.c.b16 %v1097, %v1094
        %v1140 = vpack.c.b16 %v1098, %v1095
        %v1141 = vpack.c.b16 %v1099, %v1096
        %v1142 = vpack.c.b16 %v1103, %v1100
        %v1143 = vpack.c.b16 %v1104, %v1101
        %v1144 = vpack.c.b16 %v1105, %v1102
        %v1145 = vpack.c.b16 %v1109, %v1106
        %v1146 = vpack.c.b16 %v1110, %v1107
        %v1147 = vpack.c.b16 %v1111, %v1108
        %v1148 = vpack.c.b16 %v1115, %v1112
        %v1149 = vpack.c.b16 %v1116, %v1113
        %v1150 = vpack.c.b16 %v1117, %v1114
        %v1151 = vpack.c.b16 %v1121, %v1118
        %v1152 = vpack.c.b16 %v1122, %v1119
        %v1153 = vpack.c.b16 %v1123, %v1120
        %v1154 = vpack.c.b16 %v1127, %v1124
        %v1155 = vpack.c.b16 %v1128, %v1125
        %v1156 = vpack.c.b16 %v1129, %v1126
        %v1157 = vpack.c.b16 %v1133, %v1130
        %v1158 = vpack.c.b16 %v1134, %v1131
        %v1159 = vpack.c.b16 %v1135, %v1132
        %1184 = vmatprep.subr.bf16.mxu0 %v1137
        %1185 = vmatpush1.bf16.msra.mxu0 %v1136
        %1186 = vmatprep.subr.bf16.mxu0 %v1140
        %1187 = vmatpush1.bf16.msra.mxu0 %v1139
        %1188 = vmatprep.subr.bf16.mxu0 %v1143
        %1189 = vmatpush1.bf16.msra.mxu0 %v1142
        %1190 = vmatprep.subr.bf16.mxu0 %v1146
        %1191 = vmatpush1.bf16.msra.mxu0 %v1145
        %1192 = vmatprep.subr.bf16.mxu0 %v1149
        %1193 = vmatpush1.bf16.msra.mxu0 %v1148
        %1194 = vmatprep.subr.bf16.mxu0 %v1152
        %1195 = vmatpush1.bf16.msra.mxu0 %v1151
        %1196 = vmatprep.subr.bf16.mxu0 %v1155
        %1197 = vmatpush1.bf16.msra.mxu0 %v1154
        %1198 = vmatprep.subr.bf16.mxu0 %v1158
        %1199 = vmatpush1.bf16.msra.mxu0 %v1157
        %1200 = vmatprep.subr.bf16.mxu0 0
        %1201 = vmatpush1.bf16.msra.mxu0 0
        %1202 = vmatprep.subr.bf16.mxu0 0
        %1203 = vmatpush1.bf16.msra.mxu0 0
        %1204 = vmatprep.subr.bf16.mxu0 0
        %1205 = vmatpush1.bf16.msra.mxu0 0
        %1206 = vmatprep.subr.bf16.mxu0 0
        %1207 = vmatpush1.bf16.msra.mxu0 0
        %1208 = vmatprep.subr.bf16.mxu0 0
        %1209 = vmatpush1.bf16.msra.mxu0 0
        %1210 = vmatprep.subr.bf16.mxu0 0
        %1211 = vmatpush1.bf16.msra.mxu0 0
        %1212 = vmatprep.subr.bf16.mxu0 0
        %1213 = vmatpush1.bf16.msra.mxu0 0
        %1214 = vmatprep.subr.bf16.mxu0 0
        %1215 = vmatpush1.bf16.msra.mxu0 0
        %1216 = vmatprep.mubr.bf16.mxu0 0
        %1217 = vmatmul.mubr.bf16.gmra.mrb[0].mxu0 %v1038
        %v1218 = vpop.f32.mrb[0].mxu0
        %v1219 = vadd.f32 %v1044, %v1218
        %v1220 = vpop.f32.mrb[0].mxu0
        %v1221 = vadd.f32 %v1048, %v1220
        %v1222 = vpop.f32.mrb[0].mxu0
        %v1223 = vadd.f32 %v1044, %v1222
        %v1224 = vpop.f32.mrb[0].mxu0
        %v1225 = vadd.f32 %v1048, %v1224
        %1226 = vdwg.mxu0
        %1227 = vmatprep.subr.bf16.mxu0 0
        %1228 = vmatpush1.bf16.msra.mxu0 %v1138
        %1229 = vmatprep.subr.bf16.mxu0 0
        %1230 = vmatpush1.bf16.msra.mxu0 %v1141
        %1231 = vmatprep.subr.bf16.mxu0 0
        %1232 = vmatpush1.bf16.msra.mxu0 %v1144
        %1233 = vmatprep.subr.bf16.mxu0 0
        %1234 = vmatpush1.bf16.msra.mxu0 %v1147
        %1235 = vmatprep.subr.bf16.mxu0 0
        %1236 = vmatpush1.bf16.msra.mxu0 %v1150
        %1237 = vmatprep.subr.bf16.mxu0 0
        %1238 = vmatpush1.bf16.msra.mxu0 %v1153
        %1239 = vmatprep.subr.bf16.mxu0 0
        %1240 = vmatpush1.bf16.msra.mxu0 %v1156
        %1241 = vmatprep.subr.bf16.mxu0 0
        %1242 = vmatpush1.bf16.msra.mxu0 %v1159
        %1243 = vmatprep.subr.bf16.mxu0 0
        %1244 = vmatpush1.bf16.msra.mxu0 0
        %1245 = vmatprep.subr.bf16.mxu0 0
        %1246 = vmatpush1.bf16.msra.mxu0 0
        %1247 = vmatprep.subr.bf16.mxu0 0
        %1248 = vmatpush1.bf16.msra.mxu0 0
        %1249 = vmatprep.subr.bf16.mxu0 0
        %1250 = vmatpush1.bf16.msra.mxu0 0
        %1251 = vmatprep.subr.bf16.mxu0 0
        %1252 = vmatpush1.bf16.msra.mxu0 0
        %1253 = vmatprep.subr.bf16.mxu0 0
        %1254 = vmatpush1.bf16.msra.mxu0 0
        %1255 = vmatprep.subr.bf16.mxu0 0
        %1256 = vmatpush1.bf16.msra.mxu0 0
        %1257 = vmatprep.subr.bf16.mxu0 0
        %1258 = vmatpush1.bf16.msra.mxu0 0
        %1259 = vmatprep.mubr.bf16.mxu0 0
        %1260 = vmatmul.mubr.bf16.gmra.mrb[0].mxu0 %v1038
        %v1261 = vpop.f32.mrb[0].mxu0
        %v1262 = vadd.f32 %v1052, %v1261
        %v1263 = vpop.f32.mrb[0].mxu0
        %v1264 = vpop.f32.mrb[0].mxu0
        %v1265 = vadd.f32 %v1052, %v1264
        %v1266 = vpop.f32.mrb[0].mxu0
        %1267 = vdwg.mxu0
        %v1268 = vld [vmem:[%s828] sm:$0xff]
        %v1269 = vld [vmem:[%s828 + $0x8] sm:$0xff]
        %v1270 = vpack.c.bf16 %v1221, %v1221
        %v1271 = vpack.c.bf16 %v1225, %v1225
        %v1272 = vpack.c.bf16 %v1262, %v1262
        %v1273 = vpack.c.bf16 %v1265, %v1265
        %v1274 = vlaneseq
        %v1275 = vand.u32 %v1274, 127
        %vm1276 = vcmp.ge.s32.totalorder %v1275, 0
        %vm1277 = vcmp.lt.s32.totalorder %v1275, 8
        %vm1278 = vmand %vm1276, %vm1277
        %v1279 = vsel %vm1278, 1, 0
        %v1280 = vcvt.s32.f32 %v1279
        %v1281 = vmul.f32 %v1219, %v1280
        %v1282 = vmul.f32 %v1223, %v1280
        %v1283 = vpack.c.bf16 %v1281, %v1281
        %v1284 = vpack.c.bf16 %v1282, %v1282
        %1285 = vmatprep.subr.bf16.mxu0 0
        %1286 = vmatpush1.bf16.xpose.msra.mxu0 %v1270
        %1287 = vmatprep.subr.bf16.mxu0 0
        %1288 = vmatpush1.bf16.xpose.msra.mxu0 0
        %1289 = vmatprep.subr.bf16.mxu0 0
        %1290 = vmatpush1.bf16.xpose.msra.mxu0 0
        %1291 = vmatprep.subr.bf16.mxu0 0
        %1292 = vmatpush1.bf16.xpose.msra.mxu0 0
        %1293 = vmatprep.subr.bf16.mxu0 0
        %1294 = vmatpush1.bf16.xpose.msra.mxu0 0
        %1295 = vmatprep.subr.bf16.mxu0 0
        %1296 = vmatpush1.bf16.xpose.msra.mxu0 0
        %1297 = vmatprep.subr.bf16.mxu0 0
        %1298 = vmatpush1.bf16.xpose.msra.mxu0 0
        %1299 = vmatprep.subr.bf16.mxu0 0
        %1300 = vmatpush1.bf16.xpose.msra.mxu0 0
        %1301 = vmatprep.subr.bf16.mxu0 0
        %1302 = vmatpush1.bf16.xpose.msra.mxu0 0
        %1303 = vmatprep.subr.bf16.mxu0 0
        %1304 = vmatpush1.bf16.xpose.msra.mxu0 0
        %1305 = vmatprep.subr.bf16.mxu0 0
        %1306 = vmatpush1.bf16.xpose.msra.mxu0 0
        %1307 = vmatprep.subr.bf16.mxu0 0
        %1308 = vmatpush1.bf16.xpose.msra.mxu0 0
        %1309 = vmatprep.subr.bf16.mxu0 0
        %1310 = vmatpush1.bf16.xpose.msra.mxu0 0
        %1311 = vmatprep.subr.bf16.mxu0 0
        %1312 = vmatpush1.bf16.xpose.msra.mxu0 0
        %1313 = vmatprep.subr.bf16.mxu0 0
        %1314 = vmatpush1.bf16.xpose.msra.mxu0 0
        %1315 = vmatprep.subr.bf16.mxu0 0
        %1316 = vmatpush1.bf16.xpose.msra.mxu0 0
        %1317 = vmatprep.mubr.bf16.mxu0 0
        %1318 = vmatmul.mubr.bf16.gmra.mrb[0].mxu0 %v1283
        %v1319 = vpop.f32.mrb[0].mxu0
        %v1320 = vadd.f32 0.0, %v1319
        %v1321 = vpop.f32.mrb[0].mxu0
        %v1322 = vpop.f32.mrb[0].mxu0
        %v1323 = vpop.f32.mrb[0].mxu0
        %1324 = vdwg.mxu0
        %1325 = vmatprep.subr.bf16.mxu0 0
        %1326 = vmatpush1.bf16.xpose.msra.mxu0 %v1271
        %1327 = vmatprep.subr.bf16.mxu0 0
        %1328 = vmatpush1.bf16.xpose.msra.mxu0 0
        %1329 = vmatprep.subr.bf16.mxu0 0
        %1330 = vmatpush1.bf16.xpose.msra.mxu0 0
        %1331 = vmatprep.subr.bf16.mxu0 0
        %1332 = vmatpush1.bf16.xpose.msra.mxu0 0
        %1333 = vmatprep.subr.bf16.mxu0 0
        %1334 = vmatpush1.bf16.xpose.msra.mxu0 0
        %1335 = vmatprep.subr.bf16.mxu0 0
        %1336 = vmatpush1.bf16.xpose.msra.mxu0 0
        %1337 = vmatprep.subr.bf16.mxu0 0
        %1338 = vmatpush1.bf16.xpose.msra.mxu0 0
        %1339 = vmatprep.subr.bf16.mxu0 0
        %1340 = vmatpush1.bf16.xpose.msra.mxu0 0
        %1341 = vmatprep.subr.bf16.mxu0 0
        %1342 = vmatpush1.bf16.xpose.msra.mxu0 0
        %1343 = vmatprep.subr.bf16.mxu0 0
        %1344 = vmatpush1.bf16.xpose.msra.mxu0 0
        %1345 = vmatprep.subr.bf16.mxu0 0
        %1346 = vmatpush1.bf16.xpose.msra.mxu0 0
        %1347 = vmatprep.subr.bf16.mxu0 0
        %1348 = vmatpush1.bf16.xpose.msra.mxu0 0
        %1349 = vmatprep.subr.bf16.mxu0 0
        %1350 = vmatpush1.bf16.xpose.msra.mxu0 0
        %1351 = vmatprep.subr.bf16.mxu0 0
        %1352 = vmatpush1.bf16.xpose.msra.mxu0 0
        %1353 = vmatprep.subr.bf16.mxu0 0
        %1354 = vmatpush1.bf16.xpose.msra.mxu0 0
        %1355 = vmatprep.subr.bf16.mxu0 0
        %1356 = vmatpush1.bf16.xpose.msra.mxu0 0
        %1357 = vmatprep.mubr.bf16.mxu0 0
        %1358 = vmatmul.mubr.bf16.gmra.mrb[0].mxu0 %v1284
        %v1359 = vpop.f32.mrb[0].mxu0
        %v1360 = vadd.f32 0.0, %v1359
        %v1361 = vpop.f32.mrb[0].mxu0
        %v1362 = vpop.f32.mrb[0].mxu0
        %v1363 = vpop.f32.mrb[0].mxu0
        %1364 = vdwg.mxu0
        %v1365 = vmul.f32 %v1320, 0.35355338
        %v1366 = vmul.f32 %v1360, 0.35355338
        %v1367 = vadd.f32 %v1365, %v1268
        %v1368 = vadd.f32 %v1366, %v1269
        %vm1369 = vcmask 64512
        %v1370 = vsel %vm1369, %v1367, -inf
        %1371 = vmax.xlane.f32.xlu0 %v1370
        %v1372 = vpop.xlane.xlu0 %1371
        %v1373 = vsel %vm1369, %v1368, -inf
        %1374 = vmax.xlane.f32.xlu0 %v1373
        %v1375 = vpop.xlane.xlu0 %1374
        %v1376 = vsub.f32 %v1367, %v1372
        %v1377 = vsub.f32 %v1368, %v1375
        %v1378 = vmul.f32 %v1376, 1.442695
        %v1379 = vpow.pop %v1378
        %v1380 = vmul.f32 %v1377, 1.442695
        %v1381 = vpow.pop %v1380
        %v1382 = vsel %vm1369, %v1379, 0.0
        %1383 = vadd.xlane.f32.xlu0 %v1382
        %v1384 = vpop.xlane.xlu0 %1383
        %v1385 = vsel %vm1369, %v1381, 0.0
        %1386 = vadd.xlane.f32.xlu0 %v1385
        %v1387 = vpop.xlane.xlu0 %1386
        %v1388 = vrcp.pop %v1384
        %v1389 = vrcp.pop %v1387
        %v1390 = vmul.f32 %v1379, %v1388
        %v1391 = vmul.f32 %v1381, %v1389
        %v1392 = vpack.c.bf16 %v1390, %v1390
        %v1393 = vpack.c.bf16 %v1391, %v1391
        %v1395 = vsel %vm1369, %v1392, 0
        %vm1397 = vcmask 1043456
        %v1399 = vsel %vm1397, %v1272, 0
        %1401 = vmatprep.subr.bf16.mxu0 0
        %1402 = vmatpush1.bf16.msra.mxu0 %v1399
        %1403 = vmatprep.subr.bf16.mxu0 0
        %1404 = vmatpush1.bf16.msra.mxu0 0
        %1405 = vmatprep.subr.bf16.mxu0 0
        %1406 = vmatpush1.bf16.msra.mxu0 0
        %1407 = vmatprep.subr.bf16.mxu0 0
        %1408 = vmatpush1.bf16.msra.mxu0 0
        %1409 = vmatprep.subr.bf16.mxu0 0
        %1410 = vmatpush1.bf16.msra.mxu0 0
        %1411 = vmatprep.subr.bf16.mxu0 0
        %1412 = vmatpush1.bf16.msra.mxu0 0
        %1413 = vmatprep.subr.bf16.mxu0 0
        %1414 = vmatpush1.bf16.msra.mxu0 0
        %1415 = vmatprep.subr.bf16.mxu0 0
        %1416 = vmatpush1.bf16.msra.mxu0 0
        %1417 = vmatprep.subr.bf16.mxu0 0
        %1418 = vmatpush1.bf16.msra.mxu0 0
        %1419 = vmatprep.subr.bf16.mxu0 0
        %1420 = vmatpush1.bf16.msra.mxu0 0
        %1421 = vmatprep.subr.bf16.mxu0 0
        %1422 = vmatpush1.bf16.msra.mxu0 0
        %1423 = vmatprep.subr.bf16.mxu0 0
        %1424 = vmatpush1.bf16.msra.mxu0 0
        %1425 = vmatprep.subr.bf16.mxu0 0
        %1426 = vmatpush1.bf16.msra.mxu0 0
        %1427 = vmatprep.subr.bf16.mxu0 0
        %1428 = vmatpush1.bf16.msra.mxu0 0
        %1429 = vmatprep.subr.bf16.mxu0 0
        %1430 = vmatpush1.bf16.msra.mxu0 0
        %1431 = vmatprep.subr.bf16.mxu0 0
        %1432 = vmatpush1.bf16.msra.mxu0 0
        %1433 = vmatprep.mubr.bf16.mxu0 0
        %1434 = vmatmul.mubr.bf16.gmra.mrb[0].mxu0 %v1395
        %v1435 = vpop.f32.mrb[0].mxu0
        %v1436 = vadd.f32 0.0, %v1435
        %v1437 = vpop.f32.mrb[0].mxu0
        %v1438 = vpop.f32.mrb[0].mxu0
        %v1439 = vpop.f32.mrb[0].mxu0
        %1440 = vdwg.mxu0
        %v1442 = vsel %vm1369, %v1393, 0
        %v1445 = vsel %vm1397, %v1273, 0
        %1447 = vmatprep.subr.bf16.mxu0 0
        %1448 = vmatpush1.bf16.msra.mxu0 %v1445
        %1449 = vmatprep.subr.bf16.mxu0 0
        %1450 = vmatpush1.bf16.msra.mxu0 0
        %1451 = vmatprep.subr.bf16.mxu0 0
        %1452 = vmatpush1.bf16.msra.mxu0 0
        %1453 = vmatprep.subr.bf16.mxu0 0
        %1454 = vmatpush1.bf16.msra.mxu0 0
        %1455 = vmatprep.subr.bf16.mxu0 0
        %1456 = vmatpush1.bf16.msra.mxu0 0
        %1457 = vmatprep.subr.bf16.mxu0 0
        %1458 = vmatpush1.bf16.msra.mxu0 0
        %1459 = vmatprep.subr.bf16.mxu0 0
        %1460 = vmatpush1.bf16.msra.mxu0 0
        %1461 = vmatprep.subr.bf16.mxu0 0
        %1462 = vmatpush1.bf16.msra.mxu0 0
        %1463 = vmatprep.subr.bf16.mxu0 0
        %1464 = vmatpush1.bf16.msra.mxu0 0
        %1465 = vmatprep.subr.bf16.mxu0 0
        %1466 = vmatpush1.bf16.msra.mxu0 0
        %1467 = vmatprep.subr.bf16.mxu0 0
        %1468 = vmatpush1.bf16.msra.mxu0 0
        %1469 = vmatprep.subr.bf16.mxu0 0
        %1470 = vmatpush1.bf16.msra.mxu0 0
        %1471 = vmatprep.subr.bf16.mxu0 0
        %1472 = vmatpush1.bf16.msra.mxu0 0
        %1473 = vmatprep.subr.bf16.mxu0 0
        %1474 = vmatpush1.bf16.msra.mxu0 0
        %1475 = vmatprep.subr.bf16.mxu0 0
        %1476 = vmatpush1.bf16.msra.mxu0 0
        %1477 = vmatprep.subr.bf16.mxu0 0
        %1478 = vmatpush1.bf16.msra.mxu0 0
        %1479 = vmatprep.mubr.bf16.mxu0 0
        %1480 = vmatmul.mubr.bf16.gmra.mrb[0].mxu0 %v1442
        %v1481 = vpop.f32.mrb[0].mxu0
        %v1482 = vadd.f32 0.0, %v1481
        %v1483 = vpop.f32.mrb[0].mxu0
        %v1484 = vpop.f32.mrb[0].mxu0
        %v1485 = vpop.f32.mrb[0].mxu0
        %1486 = vdwg.mxu0
        %v1487 = vmul.f32 %v1280, %v1436
        %v1488 = vmul.f32 %v1280, %v1482
        %v1489 = vadd.f32 %v1487, 0.0
        %v1490 = vadd.f32 %v1488, 0.0
        %vm1491 = vcmp.ge.s32.totalorder %v1275, 8
        %vm1492 = vcmp.lt.s32.totalorder %v1275, 16
        %vm1493 = vmand %vm1491, %vm1492
        %v1494 = vsel %vm1493, 1, 0
        %v1495 = vcvt.s32.f32 %v1494
        %v1496 = vmul.f32 %v1219, %v1495
        %v1497 = vmul.f32 %v1223, %v1495
        %v1498 = vpack.c.bf16 %v1496, %v1496
        %v1499 = vpack.c.bf16 %v1497, %v1497
        %1500 = vmatprep.subr.bf16.mxu0 0
        %1501 = vmatpush1.bf16.xpose.msra.mxu0 %v1270
        %1502 = vmatprep.subr.bf16.mxu0 0
        %1503 = vmatpush1.bf16.xpose.msra.mxu0 0
        %1504 = vmatprep.subr.bf16.mxu0 0
        %1505 = vmatpush1.bf16.xpose.msra.mxu0 0
        %1506 = vmatprep.subr.bf16.mxu0 0
        %1507 = vmatpush1.bf16.xpose.msra.mxu0 0
        %1508 = vmatprep.subr.bf16.mxu0 0
        %1509 = vmatpush1.bf16.xpose.msra.mxu0 0
        %1510 = vmatprep.subr.bf16.mxu0 0
        %1511 = vmatpush1.bf16.xpose.msra.mxu0 0
        %1512 = vmatprep.subr.bf16.mxu0 0
        %1513 = vmatpush1.bf16.xpose.msra.mxu0 0
        %1514 = vmatprep.subr.bf16.mxu0 0
        %1515 = vmatpush1.bf16.xpose.msra.mxu0 0
        %1516 = vmatprep.subr.bf16.mxu0 0
        %1517 = vmatpush1.bf16.xpose.msra.mxu0 0
        %1518 = vmatprep.subr.bf16.mxu0 0
        %1519 = vmatpush1.bf16.xpose.msra.mxu0 0
        %1520 = vmatprep.subr.bf16.mxu0 0
        %1521 = vmatpush1.bf16.xpose.msra.mxu0 0
        %1522 = vmatprep.subr.bf16.mxu0 0
        %1523 = vmatpush1.bf16.xpose.msra.mxu0 0
        %1524 = vmatprep.subr.bf16.mxu0 0
        %1525 = vmatpush1.bf16.xpose.msra.mxu0 0
        %1526 = vmatprep.subr.bf16.mxu0 0
        %1527 = vmatpush1.bf16.xpose.msra.mxu0 0
        %1528 = vmatprep.subr.bf16.mxu0 0
        %1529 = vmatpush1.bf16.xpose.msra.mxu0 0
        %1530 = vmatprep.subr.bf16.mxu0 0
        %1531 = vmatpush1.bf16.xpose.msra.mxu0 0
        %1532 = vmatprep.mubr.bf16.mxu0 0
        %1533 = vmatmul.mubr.bf16.gmra.mrb[0].mxu0 %v1498
        %v1534 = vpop.f32.mrb[0].mxu0
        %v1535 = vadd.f32 0.0, %v1534
        %v1536 = vpop.f32.mrb[0].mxu0
        %v1537 = vpop.f32.mrb[0].mxu0
        %v1538 = vpop.f32.mrb[0].mxu0
        %1539 = vdwg.mxu0
        %1540 = vmatprep.subr.bf16.mxu0 0
        %1541 = vmatpush1.bf16.xpose.msra.mxu0 %v1271
        %1542 = vmatprep.subr.bf16.mxu0 0
        %1543 = vmatpush1.bf16.xpose.msra.mxu0 0
        %1544 = vmatprep.subr.bf16.mxu0 0
        %1545 = vmatpush1.bf16.xpose.msra.mxu0 0
        %1546 = vmatprep.subr.bf16.mxu0 0
        %1547 = vmatpush1.bf16.xpose.msra.mxu0 0
        %1548 = vmatprep.subr.bf16.mxu0 0
        %1549 = vmatpush1.bf16.xpose.msra.mxu0 0
        %1550 = vmatprep.subr.bf16.mxu0 0
        %1551 = vmatpush1.bf16.xpose.msra.mxu0 0
        %1552 = vmatprep.subr.bf16.mxu0 0
        %1553 = vmatpush1.bf16.xpose.msra.mxu0 0
        %1554 = vmatprep.subr.bf16.mxu0 0
        %1555 = vmatpush1.bf16.xpose.msra.mxu0 0
        %1556 = vmatprep.subr.bf16.mxu0 0
        %1557 = vmatpush1.bf16.xpose.msra.mxu0 0
        %1558 = vmatprep.subr.bf16.mxu0 0
        %1559 = vmatpush1.bf16.xpose.msra.mxu0 0
        %1560 = vmatprep.subr.bf16.mxu0 0
        %1561 = vmatpush1.bf16.xpose.msra.mxu0 0
        %1562 = vmatprep.subr.bf16.mxu0 0
        %1563 = vmatpush1.bf16.xpose.msra.mxu0 0
        %1564 = vmatprep.subr.bf16.mxu0 0
        %1565 = vmatpush1.bf16.xpose.msra.mxu0 0
        %1566 = vmatprep.subr.bf16.mxu0 0
        %1567 = vmatpush1.bf16.xpose.msra.mxu0 0
        %1568 = vmatprep.subr.bf16.mxu0 0
        %1569 = vmatpush1.bf16.xpose.msra.mxu0 0
        %1570 = vmatprep.subr.bf16.mxu0 0
        %1571 = vmatpush1.bf16.xpose.msra.mxu0 0
        %1572 = vmatprep.mubr.bf16.mxu0 0
        %1573 = vmatmul.mubr.bf16.gmra.mrb[0].mxu0 %v1499
        %v1574 = vpop.f32.mrb[0].mxu0
        %v1575 = vadd.f32 0.0, %v1574
        %v1576 = vpop.f32.mrb[0].mxu0
        %v1577 = vpop.f32.mrb[0].mxu0
        %v1578 = vpop.f32.mrb[0].mxu0
        %1579 = vdwg.mxu0
        %v1580 = vmul.f32 %v1535, 0.35355338
        %v1581 = vmul.f32 %v1575, 0.35355338
        %v1582 = vadd.f32 %v1580, %v1268
        %v1583 = vadd.f32 %v1581, %v1269
        %v1584 = vsel %vm1369, %v1582, -inf
        %1585 = vmax.xlane.f32.xlu0 %v1584
        %v1586 = vpop.xlane.xlu0 %1585
        %v1587 = vsel %vm1369, %v1583, -inf
        %1588 = vmax.xlane.f32.xlu0 %v1587
        %v1589 = vpop.xlane.xlu0 %1588
        %v1590 = vsub.f32 %v1582, %v1586
        %v1591 = vsub.f32 %v1583, %v1589
        %v1592 = vmul.f32 %v1590, 1.442695
        %v1593 = vpow.pop %v1592
        %v1594 = vmul.f32 %v1591, 1.442695
        %v1595 = vpow.pop %v1594
        %v1596 = vsel %vm1369, %v1593, 0.0
        %1597 = vadd.xlane.f32.xlu0 %v1596
        %v1598 = vpop.xlane.xlu0 %1597
        %v1599 = vsel %vm1369, %v1595, 0.0
        %1600 = vadd.xlane.f32.xlu0 %v1599
        %v1601 = vpop.xlane.xlu0 %1600
        %v1602 = vrcp.pop %v1598
        %v1603 = vrcp.pop %v1601
        %v1604 = vmul.f32 %v1593, %v1602
        %v1605 = vmul.f32 %v1595, %v1603
        %v1606 = vpack.c.bf16 %v1604, %v1604
        %v1607 = vpack.c.bf16 %v1605, %v1605
        %v1609 = vsel %vm1369, %v1606, 0
        %1611 = vmatprep.subr.bf16.mxu0 0
        %1612 = vmatpush1.bf16.msra.mxu0 %v1399
        %1613 = vmatprep.subr.bf16.mxu0 0
        %1614 = vmatpush1.bf16.msra.mxu0 0
        %1615 = vmatprep.subr.bf16.mxu0 0
        %1616 = vmatpush1.bf16.msra.mxu0 0
        %1617 = vmatprep.subr.bf16.mxu0 0
        %1618 = vmatpush1.bf16.msra.mxu0 0
        %1619 = vmatprep.subr.bf16.mxu0 0
        %1620 = vmatpush1.bf16.msra.mxu0 0
        %1621 = vmatprep.subr.bf16.mxu0 0
        %1622 = vmatpush1.bf16.msra.mxu0 0
        %1623 = vmatprep.subr.bf16.mxu0 0
        %1624 = vmatpush1.bf16.msra.mxu0 0
        %1625 = vmatprep.subr.bf16.mxu0 0
        %1626 = vmatpush1.bf16.msra.mxu0 0
        %1627 = vmatprep.subr.bf16.mxu0 0
        %1628 = vmatpush1.bf16.msra.mxu0 0
        %1629 = vmatprep.subr.bf16.mxu0 0
        %1630 = vmatpush1.bf16.msra.mxu0 0
        %1631 = vmatprep.subr.bf16.mxu0 0
        %1632 = vmatpush1.bf16.msra.mxu0 0
        %1633 = vmatprep.subr.bf16.mxu0 0
        %1634 = vmatpush1.bf16.msra.mxu0 0
        %1635 = vmatprep.subr.bf16.mxu0 0
        %1636 = vmatpush1.bf16.msra.mxu0 0
        %1637 = vmatprep.subr.bf16.mxu0 0
        %1638 = vmatpush1.bf16.msra.mxu0 0
        %1639 = vmatprep.subr.bf16.mxu0 0
        %1640 = vmatpush1.bf16.msra.mxu0 0
        %1641 = vmatprep.subr.bf16.mxu0 0
        %1642 = vmatpush1.bf16.msra.mxu0 0
        %1643 = vmatprep.mubr.bf16.mxu0 0
        %1644 = vmatmul.mubr.bf16.gmra.mrb[0].mxu0 %v1609
        %v1645 = vpop.f32.mrb[0].mxu0
        %v1646 = vadd.f32 0.0, %v1645
        %v1647 = vpop.f32.mrb[0].mxu0
        %v1648 = vpop.f32.mrb[0].mxu0
        %v1649 = vpop.f32.mrb[0].mxu0
        %1650 = vdwg.mxu0
        %v1652 = vsel %vm1369, %v1607, 0
        %1654 = vmatprep.subr.bf16.mxu0 0
        %1655 = vmatpush1.bf16.msra.mxu0 %v1445
        %1656 = vmatprep.subr.bf16.mxu0 0
        %1657 = vmatpush1.bf16.msra.mxu0 0
        %1658 = vmatprep.subr.bf16.mxu0 0
        %1659 = vmatpush1.bf16.msra.mxu0 0
        %1660 = vmatprep.subr.bf16.mxu0 0
        %1661 = vmatpush1.bf16.msra.mxu0 0
        %1662 = vmatprep.subr.bf16.mxu0 0
        %1663 = vmatpush1.bf16.msra.mxu0 0
        %1664 = vmatprep.subr.bf16.mxu0 0
        %1665 = vmatpush1.bf16.msra.mxu0 0
        %1666 = vmatprep.subr.bf16.mxu0 0
        %1667 = vmatpush1.bf16.msra.mxu0 0
        %1668 = vmatprep.subr.bf16.mxu0 0
        %1669 = vmatpush1.bf16.msra.mxu0 0
        %1670 = vmatprep.subr.bf16.mxu0 0
        %1671 = vmatpush1.bf16.msra.mxu0 0
        %1672 = vmatprep.subr.bf16.mxu0 0
        %1673 = vmatpush1.bf16.msra.mxu0 0
        %1674 = vmatprep.subr.bf16.mxu0 0
        %1675 = vmatpush1.bf16.msra.mxu0 0
        %1676 = vmatprep.subr.bf16.mxu0 0
        %1677 = vmatpush1.bf16.msra.mxu0 0
        %1678 = vmatprep.subr.bf16.mxu0 0
        %1679 = vmatpush1.bf16.msra.mxu0 0
        %1680 = vmatprep.subr.bf16.mxu0 0
        %1681 = vmatpush1.bf16.msra.mxu0 0
        %1682 = vmatprep.subr.bf16.mxu0 0
        %1683 = vmatpush1.bf16.msra.mxu0 0
        %1684 = vmatprep.subr.bf16.mxu0 0
        %1685 = vmatpush1.bf16.msra.mxu0 0
        %1686 = vmatprep.mubr.bf16.mxu0 0
        %1687 = vmatmul.mubr.bf16.gmra.mrb[0].mxu0 %v1652
        %v1688 = vpop.f32.mrb[0].mxu0
        %v1689 = vadd.f32 0.0, %v1688
        %v1690 = vpop.f32.mrb[0].mxu0
        %v1691 = vpop.f32.mrb[0].mxu0
        %v1692 = vpop.f32.mrb[0].mxu0
        %1693 = vdwg.mxu0
        %v1694 = vmul.f32 %v1495, %v1646
        %v1695 = vmul.f32 %v1495, %v1689
        %v1696 = vadd.f32 %v1489, %v1694
        %v1697 = vadd.f32 %v1490, %v1695
        %vm1698 = vcmp.ge.s32.totalorder %v1275, 16
        %vm1699 = vcmp.lt.s32.totalorder %v1275, 24
        %vm1700 = vmand %vm1698, %vm1699
        %v1701 = vsel %vm1700, 1, 0
        %v1702 = vcvt.s32.f32 %v1701
        %v1703 = vmul.f32 %v1219, %v1702
        %v1704 = vmul.f32 %v1223, %v1702
        %v1705 = vpack.c.bf16 %v1703, %v1703
        %v1706 = vpack.c.bf16 %v1704, %v1704
        %1707 = vmatprep.subr.bf16.mxu0 0
        %1708 = vmatpush1.bf16.xpose.msra.mxu0 %v1270
        %1709 = vmatprep.subr.bf16.mxu0 0
        %1710 = vmatpush1.bf16.xpose.msra.mxu0 0
        %1711 = vmatprep.subr.bf16.mxu0 0
        %1712 = vmatpush1.bf16.xpose.msra.mxu0 0
        %1713 = vmatprep.subr.bf16.mxu0 0
        %1714 = vmatpush1.bf16.xpose.msra.mxu0 0
        %1715 = vmatprep.subr.bf16.mxu0 0
        %1716 = vmatpush1.bf16.xpose.msra.mxu0 0
        %1717 = vmatprep.subr.bf16.mxu0 0
        %1718 = vmatpush1.bf16.xpose.msra.mxu0 0
        %1719 = vmatprep.subr.bf16.mxu0 0
        %1720 = vmatpush1.bf16.xpose.msra.mxu0 0
        %1721 = vmatprep.subr.bf16.mxu0 0
        %1722 = vmatpush1.bf16.xpose.msra.mxu0 0
        %1723 = vmatprep.subr.bf16.mxu0 0
        %1724 = vmatpush1.bf16.xpose.msra.mxu0 0
        %1725 = vmatprep.subr.bf16.mxu0 0
        %1726 = vmatpush1.bf16.xpose.msra.mxu0 0
        %1727 = vmatprep.subr.bf16.mxu0 0
        %1728 = vmatpush1.bf16.xpose.msra.mxu0 0
        %1729 = vmatprep.subr.bf16.mxu0 0
        %1730 = vmatpush1.bf16.xpose.msra.mxu0 0
        %1731 = vmatprep.subr.bf16.mxu0 0
        %1732 = vmatpush1.bf16.xpose.msra.mxu0 0
        %1733 = vmatprep.subr.bf16.mxu0 0
        %1734 = vmatpush1.bf16.xpose.msra.mxu0 0
        %1735 = vmatprep.subr.bf16.mxu0 0
        %1736 = vmatpush1.bf16.xpose.msra.mxu0 0
        %1737 = vmatprep.subr.bf16.mxu0 0
        %1738 = vmatpush1.bf16.xpose.msra.mxu0 0
        %1739 = vmatprep.mubr.bf16.mxu0 0
        %1740 = vmatmul.mubr.bf16.gmra.mrb[0].mxu0 %v1705
        %v1741 = vpop.f32.mrb[0].mxu0
        %v1742 = vadd.f32 0.0, %v1741
        %v1743 = vpop.f32.mrb[0].mxu0
        %v1744 = vpop.f32.mrb[0].mxu0
        %v1745 = vpop.f32.mrb[0].mxu0
        %1746 = vdwg.mxu0
        %1747 = vmatprep.subr.bf16.mxu0 0
        %1748 = vmatpush1.bf16.xpose.msra.mxu0 %v1271
        %1749 = vmatprep.subr.bf16.mxu0 0
        %1750 = vmatpush1.bf16.xpose.msra.mxu0 0
        %1751 = vmatprep.subr.bf16.mxu0 0
        %1752 = vmatpush1.bf16.xpose.msra.mxu0 0
        %1753 = vmatprep.subr.bf16.mxu0 0
        %1754 = vmatpush1.bf16.xpose.msra.mxu0 0
        %1755 = vmatprep.subr.bf16.mxu0 0
        %1756 = vmatpush1.bf16.xpose.msra.mxu0 0
        %1757 = vmatprep.subr.bf16.mxu0 0
        %1758 = vmatpush1.bf16.xpose.msra.mxu0 0
        %1759 = vmatprep.subr.bf16.mxu0 0
        %1760 = vmatpush1.bf16.xpose.msra.mxu0 0
        %1761 = vmatprep.subr.bf16.mxu0 0
        %1762 = vmatpush1.bf16.xpose.msra.mxu0 0
        %1763 = vmatprep.subr.bf16.mxu0 0
        %1764 = vmatpush1.bf16.xpose.msra.mxu0 0
        %1765 = vmatprep.subr.bf16.mxu0 0
        %1766 = vmatpush1.bf16.xpose.msra.mxu0 0
        %1767 = vmatprep.subr.bf16.mxu0 0
        %1768 = vmatpush1.bf16.xpose.msra.mxu0 0
        %1769 = vmatprep.subr.bf16.mxu0 0
        %1770 = vmatpush1.bf16.xpose.msra.mxu0 0
        %1771 = vmatprep.subr.bf16.mxu0 0
        %1772 = vmatpush1.bf16.xpose.msra.mxu0 0
        %1773 = vmatprep.subr.bf16.mxu0 0
        %1774 = vmatpush1.bf16.xpose.msra.mxu0 0
        %1775 = vmatprep.subr.bf16.mxu0 0
        %1776 = vmatpush1.bf16.xpose.msra.mxu0 0
        %1777 = vmatprep.subr.bf16.mxu0 0
        %1778 = vmatpush1.bf16.xpose.msra.mxu0 0
        %1779 = vmatprep.mubr.bf16.mxu0 0
        %1780 = vmatmul.mubr.bf16.gmra.mrb[0].mxu0 %v1706
        %v1781 = vpop.f32.mrb[0].mxu0
        %v1782 = vadd.f32 0.0, %v1781
        %v1783 = vpop.f32.mrb[0].mxu0
        %v1784 = vpop.f32.mrb[0].mxu0
        %v1785 = vpop.f32.mrb[0].mxu0
        %1786 = vdwg.mxu0
        %v1787 = vmul.f32 %v1742, 0.35355338
        %v1788 = vmul.f32 %v1782, 0.35355338
        %v1789 = vadd.f32 %v1787, %v1268
        %v1790 = vadd.f32 %v1788, %v1269
        %v1791 = vsel %vm1369, %v1789, -inf
        %1792 = vmax.xlane.f32.xlu0 %v1791
        %v1793 = vpop.xlane.xlu0 %1792
        %v1794 = vsel %vm1369, %v1790, -inf
        %1795 = vmax.xlane.f32.xlu0 %v1794
        %v1796 = vpop.xlane.xlu0 %1795
        %v1797 = vsub.f32 %v1789, %v1793
        %v1798 = vsub.f32 %v1790, %v1796
        %v1799 = vmul.f32 %v1797, 1.442695
        %v1800 = vpow.pop %v1799
        %v1801 = vmul.f32 %v1798, 1.442695
        %v1802 = vpow.pop %v1801
        %v1803 = vsel %vm1369, %v1800, 0.0
        %1804 = vadd.xlane.f32.xlu0 %v1803
        %v1805 = vpop.xlane.xlu0 %1804
        %v1806 = vsel %vm1369, %v1802, 0.0
        %1807 = vadd.xlane.f32.xlu0 %v1806
        %v1808 = vpop.xlane.xlu0 %1807
        %v1809 = vrcp.pop %v1805
        %v1810 = vrcp.pop %v1808
        %v1811 = vmul.f32 %v1800, %v1809
        %v1812 = vmul.f32 %v1802, %v1810
        %v1813 = vpack.c.bf16 %v1811, %v1811
        %v1814 = vpack.c.bf16 %v1812, %v1812
        %v1816 = vsel %vm1369, %v1813, 0
        %1818 = vmatprep.subr.bf16.mxu0 0
        %1819 = vmatpush1.bf16.msra.mxu0 %v1399
        %1820 = vmatprep.subr.bf16.mxu0 0
        %1821 = vmatpush1.bf16.msra.mxu0 0
        %1822 = vmatprep.subr.bf16.mxu0 0
        %1823 = vmatpush1.bf16.msra.mxu0 0
        %1824 = vmatprep.subr.bf16.mxu0 0
        %1825 = vmatpush1.bf16.msra.mxu0 0
        %1826 = vmatprep.subr.bf16.mxu0 0
        %1827 = vmatpush1.bf16.msra.mxu0 0
        %1828 = vmatprep.subr.bf16.mxu0 0
        %1829 = vmatpush1.bf16.msra.mxu0 0
        %1830 = vmatprep.subr.bf16.mxu0 0
        %1831 = vmatpush1.bf16.msra.mxu0 0
        %1832 = vmatprep.subr.bf16.mxu0 0
        %1833 = vmatpush1.bf16.msra.mxu0 0
        %1834 = vmatprep.subr.bf16.mxu0 0
        %1835 = vmatpush1.bf16.msra.mxu0 0
        %1836 = vmatprep.subr.bf16.mxu0 0
        %1837 = vmatpush1.bf16.msra.mxu0 0
        %1838 = vmatprep.subr.bf16.mxu0 0
        %1839 = vmatpush1.bf16.msra.mxu0 0
        %1840 = vmatprep.subr.bf16.mxu0 0
        %1841 = vmatpush1.bf16.msra.mxu0 0
        %1842 = vmatprep.subr.bf16.mxu0 0
        %1843 = vmatpush1.bf16.msra.mxu0 0
        %1844 = vmatprep.subr.bf16.mxu0 0
        %1845 = vmatpush1.bf16.msra.mxu0 0
        %1846 = vmatprep.subr.bf16.mxu0 0
        %1847 = vmatpush1.bf16.msra.mxu0 0
        %1848 = vmatprep.subr.bf16.mxu0 0
        %1849 = vmatpush1.bf16.msra.mxu0 0
        %1850 = vmatprep.mubr.bf16.mxu0 0
        %1851 = vmatmul.mubr.bf16.gmra.mrb[0].mxu0 %v1816
        %v1852 = vpop.f32.mrb[0].mxu0
        %v1853 = vadd.f32 0.0, %v1852
        %v1854 = vpop.f32.mrb[0].mxu0
        %v1855 = vpop.f32.mrb[0].mxu0
        %v1856 = vpop.f32.mrb[0].mxu0
        %1857 = vdwg.mxu0
        %v1859 = vsel %vm1369, %v1814, 0
        %1861 = vmatprep.subr.bf16.mxu0 0
        %1862 = vmatpush1.bf16.msra.mxu0 %v1445
        %1863 = vmatprep.subr.bf16.mxu0 0
        %1864 = vmatpush1.bf16.msra.mxu0 0
        %1865 = vmatprep.subr.bf16.mxu0 0
        %1866 = vmatpush1.bf16.msra.mxu0 0
        %1867 = vmatprep.subr.bf16.mxu0 0
        %1868 = vmatpush1.bf16.msra.mxu0 0
        %1869 = vmatprep.subr.bf16.mxu0 0
        %1870 = vmatpush1.bf16.msra.mxu0 0
        %1871 = vmatprep.subr.bf16.mxu0 0
        %1872 = vmatpush1.bf16.msra.mxu0 0
        %1873 = vmatprep.subr.bf16.mxu0 0
        %1874 = vmatpush1.bf16.msra.mxu0 0
        %1875 = vmatprep.subr.bf16.mxu0 0
        %1876 = vmatpush1.bf16.msra.mxu0 0
        %1877 = vmatprep.subr.bf16.mxu0 0
        %1878 = vmatpush1.bf16.msra.mxu0 0
        %1879 = vmatprep.subr.bf16.mxu0 0
        %1880 = vmatpush1.bf16.msra.mxu0 0
        %1881 = vmatprep.subr.bf16.mxu0 0
        %1882 = vmatpush1.bf16.msra.mxu0 0
        %1883 = vmatprep.subr.bf16.mxu0 0
        %1884 = vmatpush1.bf16.msra.mxu0 0
        %1885 = vmatprep.subr.bf16.mxu0 0
        %1886 = vmatpush1.bf16.msra.mxu0 0
        %1887 = vmatprep.subr.bf16.mxu0 0
        %1888 = vmatpush1.bf16.msra.mxu0 0
        %1889 = vmatprep.subr.bf16.mxu0 0
        %1890 = vmatpush1.bf16.msra.mxu0 0
        %1891 = vmatprep.subr.bf16.mxu0 0
        %1892 = vmatpush1.bf16.msra.mxu0 0
        %1893 = vmatprep.mubr.bf16.mxu0 0
        %1894 = vmatmul.mubr.bf16.gmra.mrb[0].mxu0 %v1859
        %v1895 = vpop.f32.mrb[0].mxu0
        %v1896 = vadd.f32 0.0, %v1895
        %v1897 = vpop.f32.mrb[0].mxu0
        %v1898 = vpop.f32.mrb[0].mxu0
        %v1899 = vpop.f32.mrb[0].mxu0
        %1900 = vdwg.mxu0
        %v1901 = vmul.f32 %v1702, %v1853
        %v1902 = vmul.f32 %v1702, %v1896
        %v1903 = vadd.f32 %v1696, %v1901
        %v1904 = vadd.f32 %v1697, %v1902
        %vm1905 = vcmp.ge.s32.totalorder %v1275, 24
        %vm1906 = vcmp.lt.s32.totalorder %v1275, 32
        %vm1907 = vmand %vm1905, %vm1906
        %v1908 = vsel %vm1907, 1, 0
        %v1909 = vcvt.s32.f32 %v1908
        %v1910 = vmul.f32 %v1219, %v1909
        %v1911 = vmul.f32 %v1223, %v1909
        %v1912 = vpack.c.bf16 %v1910, %v1910
        %v1913 = vpack.c.bf16 %v1911, %v1911
        %1914 = vmatprep.subr.bf16.mxu0 0
        %1915 = vmatpush1.bf16.xpose.msra.mxu0 %v1270
        %1916 = vmatprep.subr.bf16.mxu0 0
        %1917 = vmatpush1.bf16.xpose.msra.mxu0 0
        %1918 = vmatprep.subr.bf16.mxu0 0
        %1919 = vmatpush1.bf16.xpose.msra.mxu0 0
        %1920 = vmatprep.subr.bf16.mxu0 0
        %1921 = vmatpush1.bf16.xpose.msra.mxu0 0
        %1922 = vmatprep.subr.bf16.mxu0 0
        %1923 = vmatpush1.bf16.xpose.msra.mxu0 0
        %1924 = vmatprep.subr.bf16.mxu0 0
        %1925 = vmatpush1.bf16.xpose.msra.mxu0 0
        %1926 = vmatprep.subr.bf16.mxu0 0
        %1927 = vmatpush1.bf16.xpose.msra.mxu0 0
        %1928 = vmatprep.subr.bf16.mxu0 0
        %1929 = vmatpush1.bf16.xpose.msra.mxu0 0
        %1930 = vmatprep.subr.bf16.mxu0 0
        %1931 = vmatpush1.bf16.xpose.msra.mxu0 0
        %1932 = vmatprep.subr.bf16.mxu0 0
        %1933 = vmatpush1.bf16.xpose.msra.mxu0 0
        %1934 = vmatprep.subr.bf16.mxu0 0
        %1935 = vmatpush1.bf16.xpose.msra.mxu0 0
        %1936 = vmatprep.subr.bf16.mxu0 0
        %1937 = vmatpush1.bf16.xpose.msra.mxu0 0
        %1938 = vmatprep.subr.bf16.mxu0 0
        %1939 = vmatpush1.bf16.xpose.msra.mxu0 0
        %1940 = vmatprep.subr.bf16.mxu0 0
        %1941 = vmatpush1.bf16.xpose.msra.mxu0 0
        %1942 = vmatprep.subr.bf16.mxu0 0
        %1943 = vmatpush1.bf16.xpose.msra.mxu0 0
        %1944 = vmatprep.subr.bf16.mxu0 0
        %1945 = vmatpush1.bf16.xpose.msra.mxu0 0
        %1946 = vmatprep.mubr.bf16.mxu0 0
        %1947 = vmatmul.mubr.bf16.gmra.mrb[0].mxu0 %v1912
        %v1948 = vpop.f32.mrb[0].mxu0
        %v1949 = vadd.f32 0.0, %v1948
        %v1950 = vpop.f32.mrb[0].mxu0
        %v1951 = vpop.f32.mrb[0].mxu0
        %v1952 = vpop.f32.mrb[0].mxu0
        %1953 = vdwg.mxu0
        %1954 = vmatprep.subr.bf16.mxu0 0
        %1955 = vmatpush1.bf16.xpose.msra.mxu0 %v1271
        %1956 = vmatprep.subr.bf16.mxu0 0
        %1957 = vmatpush1.bf16.xpose.msra.mxu0 0
        %1958 = vmatprep.subr.bf16.mxu0 0
        %1959 = vmatpush1.bf16.xpose.msra.mxu0 0
        %1960 = vmatprep.subr.bf16.mxu0 0
        %1961 = vmatpush1.bf16.xpose.msra.mxu0 0
        %1962 = vmatprep.subr.bf16.mxu0 0
        %1963 = vmatpush1.bf16.xpose.msra.mxu0 0
        %1964 = vmatprep.subr.bf16.mxu0 0
        %1965 = vmatpush1.bf16.xpose.msra.mxu0 0
        %1966 = vmatprep.subr.bf16.mxu0 0
        %1967 = vmatpush1.bf16.xpose.msra.mxu0 0
        %1968 = vmatprep.subr.bf16.mxu0 0
        %1969 = vmatpush1.bf16.xpose.msra.mxu0 0
        %1970 = vmatprep.subr.bf16.mxu0 0
        %1971 = vmatpush1.bf16.xpose.msra.mxu0 0
        %1972 = vmatprep.subr.bf16.mxu0 0
        %1973 = vmatpush1.bf16.xpose.msra.mxu0 0
        %1974 = vmatprep.subr.bf16.mxu0 0
        %1975 = vmatpush1.bf16.xpose.msra.mxu0 0
        %1976 = vmatprep.subr.bf16.mxu0 0
        %1977 = vmatpush1.bf16.xpose.msra.mxu0 0
        %1978 = vmatprep.subr.bf16.mxu0 0
        %1979 = vmatpush1.bf16.xpose.msra.mxu0 0
        %1980 = vmatprep.subr.bf16.mxu0 0
        %1981 = vmatpush1.bf16.xpose.msra.mxu0 0
        %1982 = vmatprep.subr.bf16.mxu0 0
        %1983 = vmatpush1.bf16.xpose.msra.mxu0 0
        %1984 = vmatprep.subr.bf16.mxu0 0
        %1985 = vmatpush1.bf16.xpose.msra.mxu0 0
        %1986 = vmatprep.mubr.bf16.mxu0 0
        %1987 = vmatmul.mubr.bf16.gmra.mrb[0].mxu0 %v1913
        %v1988 = vpop.f32.mrb[0].mxu0
        %v1989 = vadd.f32 0.0, %v1988
        %v1990 = vpop.f32.mrb[0].mxu0
        %v1991 = vpop.f32.mrb[0].mxu0
        %v1992 = vpop.f32.mrb[0].mxu0
        %1993 = vdwg.mxu0
        %v1994 = vmul.f32 %v1949, 0.35355338
        %v1995 = vmul.f32 %v1989, 0.35355338
        %v1996 = vadd.f32 %v1994, %v1268
        %v1997 = vadd.f32 %v1995, %v1269
        %v1998 = vsel %vm1369, %v1996, -inf
        %1999 = vmax.xlane.f32.xlu0 %v1998
        %v2000 = vpop.xlane.xlu0 %1999
        %v2001 = vsel %vm1369, %v1997, -inf
        %2002 = vmax.xlane.f32.xlu0 %v2001
        %v2003 = vpop.xlane.xlu0 %2002
        %v2004 = vsub.f32 %v1996, %v2000
        %v2005 = vsub.f32 %v1997, %v2003
        %v2006 = vmul.f32 %v2004, 1.442695
        %v2007 = vpow.pop %v2006
        %v2008 = vmul.f32 %v2005, 1.442695
        %v2009 = vpow.pop %v2008
        %v2010 = vsel %vm1369, %v2007, 0.0
        %2011 = vadd.xlane.f32.xlu0 %v2010
        %v2012 = vpop.xlane.xlu0 %2011
        %v2013 = vsel %vm1369, %v2009, 0.0
        %2014 = vadd.xlane.f32.xlu0 %v2013
        %v2015 = vpop.xlane.xlu0 %2014
        %v2016 = vrcp.pop %v2012
        %v2017 = vrcp.pop %v2015
        %v2018 = vmul.f32 %v2007, %v2016
        %v2019 = vmul.f32 %v2009, %v2017
        %v2020 = vpack.c.bf16 %v2018, %v2018
        %v2021 = vpack.c.bf16 %v2019, %v2019
        %v2023 = vsel %vm1369, %v2020, 0
        %2025 = vmatprep.subr.bf16.mxu0 0
        %2026 = vmatpush1.bf16.msra.mxu0 %v1399
        %2027 = vmatprep.subr.bf16.mxu0 0
        %2028 = vmatpush1.bf16.msra.mxu0 0
        %2029 = vmatprep.subr.bf16.mxu0 0
        %2030 = vmatpush1.bf16.msra.mxu0 0
        %2031 = vmatprep.subr.bf16.mxu0 0
        %2032 = vmatpush1.bf16.msra.mxu0 0
        %2033 = vmatprep.subr.bf16.mxu0 0
        %2034 = vmatpush1.bf16.msra.mxu0 0
        %2035 = vmatprep.subr.bf16.mxu0 0
        %2036 = vmatpush1.bf16.msra.mxu0 0
        %2037 = vmatprep.subr.bf16.mxu0 0
        %2038 = vmatpush1.bf16.msra.mxu0 0
        %2039 = vmatprep.subr.bf16.mxu0 0
        %2040 = vmatpush1.bf16.msra.mxu0 0
        %2041 = vmatprep.subr.bf16.mxu0 0
        %2042 = vmatpush1.bf16.msra.mxu0 0
        %2043 = vmatprep.subr.bf16.mxu0 0
        %2044 = vmatpush1.bf16.msra.mxu0 0
        %2045 = vmatprep.subr.bf16.mxu0 0
        %2046 = vmatpush1.bf16.msra.mxu0 0
        %2047 = vmatprep.subr.bf16.mxu0 0
        %2048 = vmatpush1.bf16.msra.mxu0 0
        %2049 = vmatprep.subr.bf16.mxu0 0
        %2050 = vmatpush1.bf16.msra.mxu0 0
        %2051 = vmatprep.subr.bf16.mxu0 0
        %2052 = vmatpush1.bf16.msra.mxu0 0
        %2053 = vmatprep.subr.bf16.mxu0 0
        %2054 = vmatpush1.bf16.msra.mxu0 0
        %2055 = vmatprep.subr.bf16.mxu0 0
        %2056 = vmatpush1.bf16.msra.mxu0 0
        %2057 = vmatprep.mubr.bf16.mxu0 0
        %2058 = vmatmul.mubr.bf16.gmra.mrb[0].mxu0 %v2023
        %v2059 = vpop.f32.mrb[0].mxu0
        %v2060 = vadd.f32 0.0, %v2059
        %v2061 = vpop.f32.mrb[0].mxu0
        %v2062 = vpop.f32.mrb[0].mxu0
        %v2063 = vpop.f32.mrb[0].mxu0
        %2064 = vdwg.mxu0
        %v2066 = vsel %vm1369, %v2021, 0
        %2068 = vmatprep.subr.bf16.mxu0 0
        %2069 = vmatpush1.bf16.msra.mxu0 %v1445
        %2070 = vmatprep.subr.bf16.mxu0 0
        %2071 = vmatpush1.bf16.msra.mxu0 0
        %2072 = vmatprep.subr.bf16.mxu0 0
        %2073 = vmatpush1.bf16.msra.mxu0 0
        %2074 = vmatprep.subr.bf16.mxu0 0
        %2075 = vmatpush1.bf16.msra.mxu0 0
        %2076 = vmatprep.subr.bf16.mxu0 0
        %2077 = vmatpush1.bf16.msra.mxu0 0
        %2078 = vmatprep.subr.bf16.mxu0 0
        %2079 = vmatpush1.bf16.msra.mxu0 0
        %2080 = vmatprep.subr.bf16.mxu0 0
        %2081 = vmatpush1.bf16.msra.mxu0 0
        %2082 = vmatprep.subr.bf16.mxu0 0
        %2083 = vmatpush1.bf16.msra.mxu0 0
        %2084 = vmatprep.subr.bf16.mxu0 0
        %2085 = vmatpush1.bf16.msra.mxu0 0
        %2086 = vmatprep.subr.bf16.mxu0 0
        %2087 = vmatpush1.bf16.msra.mxu0 0
        %2088 = vmatprep.subr.bf16.mxu0 0
        %2089 = vmatpush1.bf16.msra.mxu0 0
        %2090 = vmatprep.subr.bf16.mxu0 0
        %2091 = vmatpush1.bf16.msra.mxu0 0
        %2092 = vmatprep.subr.bf16.mxu0 0
        %2093 = vmatpush1.bf16.msra.mxu0 0
        %2094 = vmatprep.subr.bf16.mxu0 0
        %2095 = vmatpush1.bf16.msra.mxu0 0
        %2096 = vmatprep.subr.bf16.mxu0 0
        %2097 = vmatpush1.bf16.msra.mxu0 0
        %2098 = vmatprep.subr.bf16.mxu0 0
        %2099 = vmatpush1.bf16.msra.mxu0 0
        %2100 = vmatprep.mubr.bf16.mxu0 0
        %2101 = vmatmul.mubr.bf16.gmra.mrb[0].mxu0 %v2066
        %v2102 = vpop.f32.mrb[0].mxu0
        %v2103 = vadd.f32 0.0, %v2102
        %v2104 = vpop.f32.mrb[0].mxu0
        %v2105 = vpop.f32.mrb[0].mxu0
        %v2106 = vpop.f32.mrb[0].mxu0
        %2107 = vdwg.mxu0
        %v2108 = vmul.f32 %v1909, %v2060
        %v2109 = vmul.f32 %v1909, %v2103
        %v2110 = vadd.f32 %v1903, %v2108
        %v2111 = vadd.f32 %v1904, %v2109
        %v2112 = vld [vmem:[%s6] sm:$0xf]
        %v2113 = vld [vmem:[%s6 + $0x4] sm:$0xf]
        %v2114 = vld [vmem:[%s6 + $0x8] sm:$0xf]
        %v2115 = vld [vmem:[%s6 + $0xc] sm:$0xf]
        %v2116 = vld [vmem:[%s6 + $0x10] sm:$0xf]
        %v2117 = vld [vmem:[%s6 + $0x14] sm:$0xf]
        %v2118 = vld [vmem:[%s6 + $0x18] sm:$0xf]
        %v2119 = vld [vmem:[%s6 + $0x1c] sm:$0xf]
        %v2120 = vld [vmem:[%s6 + $0x20] sm:$0xf]
        %v2121 = vld [vmem:[%s6 + $0x24] sm:$0xf]
        %v2122 = vld [vmem:[%s6 + $0x28] sm:$0xf]
        %v2123 = vld [vmem:[%s6 + $0x2c] sm:$0xf]
        %v2124 = vld [vmem:[%s6 + $0x30] sm:$0xf]
        %v2125 = vld [vmem:[%s6 + $0x34] sm:$0xf]
        %v2126 = vld [vmem:[%s6 + $0x38] sm:$0xf]
        %v2127 = vld [vmem:[%s6 + $0x3c] sm:$0xf]
        %v2128 = vpack.c.bf16 %v2111, %v2110
        %v2129 = vld [vmem:[%s7] sm:$0x1]
        %v2131 = vlaneseq
        %v2132 = vshrl.u32 %v2131, 7
        %v2133 = vsub.s32 0, %v2132
        %v2134 = vrot.slane %v2129, %v2133
        %v2152 = vunpack.c.l.b16 %v2112
        %v2153 = vunpack.c.l.b16 %v2113
        %v2154 = vunpack.c.l.b16 %v2114
        %v2155 = vunpack.c.l.b16 %v2115
        %v2156 = vunpack.c.l.b16 %v2116
        %v2157 = vunpack.c.l.b16 %v2117
        %v2158 = vunpack.c.l.b16 %v2118
        %v2159 = vunpack.c.l.b16 %v2119
        %v2160 = vunpack.c.l.b16 %v2120
        %v2161 = vunpack.c.l.b16 %v2121
        %v2162 = vunpack.c.l.b16 %v2122
        %v2163 = vunpack.c.l.b16 %v2123
        %v2164 = vunpack.c.l.b16 %v2124
        %v2165 = vunpack.c.l.b16 %v2125
        %v2166 = vunpack.c.l.b16 %v2126
        %v2167 = vunpack.c.l.b16 %v2127
        %v2168 = vpack.c.b16 %v2153, %v2152
        %v2169 = vpack.c.b16 %v2155, %v2154
        %v2170 = vpack.c.b16 %v2157, %v2156
        %v2171 = vpack.c.b16 %v2159, %v2158
        %v2172 = vpack.c.b16 %v2161, %v2160
        %v2173 = vpack.c.b16 %v2163, %v2162
        %v2174 = vpack.c.b16 %v2165, %v2164
        %v2175 = vpack.c.b16 %v2167, %v2166
        %2184 = vmatprep.subr.bf16.mxu0 0
        %2185 = vmatpush1.bf16.msra.mxu0 %v2168
        %2186 = vmatprep.subr.bf16.mxu0 0
        %2187 = vmatpush1.bf16.msra.mxu0 %v2169
        %2188 = vmatprep.subr.bf16.mxu0 0
        %2189 = vmatpush1.bf16.msra.mxu0 %v2170
        %2190 = vmatprep.subr.bf16.mxu0 0
        %2191 = vmatpush1.bf16.msra.mxu0 %v2171
        %2192 = vmatprep.subr.bf16.mxu0 0
        %2193 = vmatpush1.bf16.msra.mxu0 %v2172
        %2194 = vmatprep.subr.bf16.mxu0 0
        %2195 = vmatpush1.bf16.msra.mxu0 %v2173
        %2196 = vmatprep.subr.bf16.mxu0 0
        %2197 = vmatpush1.bf16.msra.mxu0 %v2174
        %2198 = vmatprep.subr.bf16.mxu0 0
        %2199 = vmatpush1.bf16.msra.mxu0 %v2175
        %2200 = vmatprep.subr.bf16.mxu0 0
        %2201 = vmatpush1.bf16.msra.mxu0 0
        %2202 = vmatprep.subr.bf16.mxu0 0
        %2203 = vmatpush1.bf16.msra.mxu0 0
        %2204 = vmatprep.subr.bf16.mxu0 0
        %2205 = vmatpush1.bf16.msra.mxu0 0
        %2206 = vmatprep.subr.bf16.mxu0 0
        %2207 = vmatpush1.bf16.msra.mxu0 0
        %2208 = vmatprep.subr.bf16.mxu0 0
        %2209 = vmatpush1.bf16.msra.mxu0 0
        %2210 = vmatprep.subr.bf16.mxu0 0
        %2211 = vmatpush1.bf16.msra.mxu0 0
        %2212 = vmatprep.subr.bf16.mxu0 0
        %2213 = vmatpush1.bf16.msra.mxu0 0
        %2214 = vmatprep.subr.bf16.mxu0 0
        %2215 = vmatpush1.bf16.msra.mxu0 0
        %2216 = vmatprep.mubr.bf16.mxu0 0
        %2217 = vmatmul.mubr.bf16.gmra.mrb[0].mxu0 %v2128
        %v2218 = vpop.f32.mrb[0].mxu0
        %v2219 = vadd.f32 %v2134, %v2218
        %v2220 = vpop.f32.mrb[0].mxu0
        %v2221 = vpop.f32.mrb[0].mxu0
        %v2222 = vadd.f32 %v2134, %v2221
        %v2223 = vpop.f32.mrb[0].mxu0
        %2224 = vdwg.mxu0
        %v2225 = vld [vmem:[%s8] sm:$0x1]
        %v2226 = vld [vmem:[%s9] sm:$0x1]
        %v2227 = vadd.f32 %v2219, %v1004
        %v2228 = vadd.f32 %v2222, %v1005
        %2229 = vadd.xlane.f32.xlu0 %v2227
        %v2230 = vpop.xlane.xlu0 %2229
        %2231 = vadd.xlane.f32.xlu0 %v2228
        %v2232 = vpop.xlane.xlu0 %2231
        %v2233 = vmul.f32 %v2230, 0.03125
        %v2234 = vmul.f32 %v2232, 0.03125
        %v2235 = vmul.f32 %v2227, %v2227
        %v2236 = vmul.f32 %v2228, %v2228
        %2237 = vadd.xlane.f32.xlu0 %v2235
        %v2238 = vpop.xlane.xlu0 %2237
        %2239 = vadd.xlane.f32.xlu0 %v2236
        %v2240 = vpop.xlane.xlu0 %2239
        %v2241 = vmul.f32 %v2238, 0.03125
        %v2242 = vmul.f32 %v2240, 0.03125
        %v2243 = vmul.f32 %v2233, %v2233
        %v2244 = vmul.f32 %v2234, %v2234
        %v2245 = vsub.f32 %v2241, %v2243
        %v2246 = vsub.f32 %v2242, %v2244
        %v2247 = vsub.f32 %v2227, %v2233
        %v2248 = vsub.f32 %v2228, %v2234
        %v2249 = vmax.f32 %v2245, 0.0
        %v2250 = vmax.f32 %v2246, 0.0
        %v2251 = vadd.f32 %v2249, 1e-05
        %v2252 = vadd.f32 %v2250, 1e-05
        %v2253 = vrsqrt.pop %v2251
        %v2254 = vrsqrt.pop %v2252
        %v2255 = vmul.f32 %v2247, %v2253
        %v2256 = vmul.f32 %v2248, %v2254
        %v2258 = vlaneseq
        %v2259 = vshrl.u32 %v2258, 7
        %v2260 = vsub.s32 0, %v2259
        %v2261 = vrot.slane %v2225, %v2260
        %v2263 = vmul.f32 %v2255, %v2261
        %v2264 = vmul.f32 %v2256, %v2261
        %v2266 = vlaneseq
        %v2267 = vshrl.u32 %v2266, 7
        %v2268 = vsub.s32 0, %v2267
        %v2269 = vrot.slane %v2226, %v2268
        %v2271 = vadd.f32 %v2263, %v2269
        %v2272 = vadd.f32 %v2264, %v2269
        %v2273 = vld [vmem:[%s10] sm:$0xf]
        %v2274 = vld [vmem:[%s10 + $0x4] sm:$0xf]
        %v2275 = vld [vmem:[%s10 + $0x8] sm:$0xf]
        %v2276 = vld [vmem:[%s10 + $0xc] sm:$0xf]
        %v2277 = vld [vmem:[%s10 + $0x10] sm:$0xf]
        %v2278 = vld [vmem:[%s10 + $0x14] sm:$0xf]
        %v2279 = vld [vmem:[%s10 + $0x18] sm:$0xf]
        %v2280 = vld [vmem:[%s10 + $0x1c] sm:$0xf]
        %v2281 = vld [vmem:[%s10 + $0x20] sm:$0xf]
        %v2282 = vld [vmem:[%s10 + $0x24] sm:$0xf]
        %v2283 = vld [vmem:[%s10 + $0x28] sm:$0xf]
        %v2284 = vld [vmem:[%s10 + $0x2c] sm:$0xf]
        %v2285 = vld [vmem:[%s10 + $0x30] sm:$0xf]
        %v2286 = vld [vmem:[%s10 + $0x34] sm:$0xf]
        %v2287 = vld [vmem:[%s10 + $0x38] sm:$0xf]
        %v2288 = vld [vmem:[%s10 + $0x3c] sm:$0xf]
        %v2289 = vpack.c.bf16 %v2272, %v2271
        %v2290 = vld [vmem:[%s11] sm:$0x1]
        %v2292 = vlaneseq
        %v2293 = vshrl.u32 %v2292, 7
        %v2294 = vsub.s32 0, %v2293
        %v2295 = vrot.slane %v2290, %v2294
        %v2313 = vunpack.c.l.b16 %v2273
        %v2314 = vunpack.c.l.b16 %v2274
        %v2315 = vunpack.c.l.b16 %v2275
        %v2316 = vunpack.c.l.b16 %v2276
        %v2317 = vunpack.c.l.b16 %v2277
        %v2318 = vunpack.c.l.b16 %v2278
        %v2319 = vunpack.c.l.b16 %v2279
        %v2320 = vunpack.c.l.b16 %v2280
        %v2321 = vunpack.c.l.b16 %v2281
        %v2322 = vunpack.c.l.b16 %v2282
        %v2323 = vunpack.c.l.b16 %v2283
        %v2324 = vunpack.c.l.b16 %v2284
        %v2325 = vunpack.c.l.b16 %v2285
        %v2326 = vunpack.c.l.b16 %v2286
        %v2327 = vunpack.c.l.b16 %v2287
        %v2328 = vunpack.c.l.b16 %v2288
        %v2329 = vpack.c.b16 %v2314, %v2313
        %v2330 = vpack.c.b16 %v2316, %v2315
        %v2331 = vpack.c.b16 %v2318, %v2317
        %v2332 = vpack.c.b16 %v2320, %v2319
        %v2333 = vpack.c.b16 %v2322, %v2321
        %v2334 = vpack.c.b16 %v2324, %v2323
        %v2335 = vpack.c.b16 %v2326, %v2325
        %v2336 = vpack.c.b16 %v2328, %v2327
        %2345 = vmatprep.subr.bf16.mxu0 0
        %2346 = vmatpush1.bf16.msra.mxu0 %v2329
        %2347 = vmatprep.subr.bf16.mxu0 0
        %2348 = vmatpush1.bf16.msra.mxu0 %v2330
        %2349 = vmatprep.subr.bf16.mxu0 0
        %2350 = vmatpush1.bf16.msra.mxu0 %v2331
        %2351 = vmatprep.subr.bf16.mxu0 0
        %2352 = vmatpush1.bf16.msra.mxu0 %v2332
        %2353 = vmatprep.subr.bf16.mxu0 0
        %2354 = vmatpush1.bf16.msra.mxu0 %v2333
        %2355 = vmatprep.subr.bf16.mxu0 0
        %2356 = vmatpush1.bf16.msra.mxu0 %v2334
        %2357 = vmatprep.subr.bf16.mxu0 0
        %2358 = vmatpush1.bf16.msra.mxu0 %v2335
        %2359 = vmatprep.subr.bf16.mxu0 0
        %2360 = vmatpush1.bf16.msra.mxu0 %v2336
        %2361 = vmatprep.subr.bf16.mxu0 0
        %2362 = vmatpush1.bf16.msra.mxu0 0
        %2363 = vmatprep.subr.bf16.mxu0 0
        %2364 = vmatpush1.bf16.msra.mxu0 0
        %2365 = vmatprep.subr.bf16.mxu0 0
        %2366 = vmatpush1.bf16.msra.mxu0 0
        %2367 = vmatprep.subr.bf16.mxu0 0
        %2368 = vmatpush1.bf16.msra.mxu0 0
        %2369 = vmatprep.subr.bf16.mxu0 0
        %2370 = vmatpush1.bf16.msra.mxu0 0
        %2371 = vmatprep.subr.bf16.mxu0 0
        %2372 = vmatpush1.bf16.msra.mxu0 0
        %2373 = vmatprep.subr.bf16.mxu0 0
        %2374 = vmatpush1.bf16.msra.mxu0 0
        %2375 = vmatprep.subr.bf16.mxu0 0
        %2376 = vmatpush1.bf16.msra.mxu0 0
        %2377 = vmatprep.mubr.bf16.mxu0 0
        %2378 = vmatmul.mubr.bf16.gmra.mrb[0].mxu0 %v2289
        %v2379 = vpop.f32.mrb[0].mxu0
        %v2380 = vadd.f32 %v2295, %v2379
        %v2381 = vpop.f32.mrb[0].mxu0
        %v2382 = vpop.f32.mrb[0].mxu0
        %v2383 = vadd.f32 %v2295, %v2382
        %v2384 = vpop.f32.mrb[0].mxu0
        %2385 = vdwg.mxu0
        %v2386 = vld [vmem:[#allocation3] sm:$0xff]
        %v2387 = vld [vmem:[#allocation3 + $0x8] sm:$0xff]
        %v2388 = vld [vmem:[#allocation3 + $0x10] sm:$0xff]
        %v2389 = vld [vmem:[#allocation3 + $0x18] sm:$0xff]
        %v2390 = vld [vmem:[%s834] sm:$0xff]
        %v2391 = vld [vmem:[%s834 + $0x8] sm:$0xff]
        %v2392 = vpack.c.bf16 %v2386, %v2386
        %v2393 = vpack.c.bf16 %v2388, %v2388
        %v2394 = vpack.c.bf16 %v2387, %v2387
        %v2395 = vpack.c.bf16 %v2389, %v2389
        %v2396 = vmul.f32 %v2380, %v1280
        %v2397 = vmul.f32 %v2383, %v1280
        %v2398 = vpack.c.bf16 %v2396, %v2396
        %v2399 = vpack.c.bf16 %v2397, %v2397
        %2400 = vmatprep.subr.bf16.mxu0 0
        %2401 = vmatpush1.bf16.xpose.msra.mxu0 %v2392
        %2402 = vmatprep.subr.bf16.mxu0 0
        %2403 = vmatpush1.bf16.xpose.msra.mxu0 0
        %2404 = vmatprep.subr.bf16.mxu0 0
        %2405 = vmatpush1.bf16.xpose.msra.mxu0 0
        %2406 = vmatprep.subr.bf16.mxu0 0
        %2407 = vmatpush1.bf16.xpose.msra.mxu0 0
        %2408 = vmatprep.subr.bf16.mxu0 0
        %2409 = vmatpush1.bf16.xpose.msra.mxu0 0
        %2410 = vmatprep.subr.bf16.mxu0 0
        %2411 = vmatpush1.bf16.xpose.msra.mxu0 0
        %2412 = vmatprep.subr.bf16.mxu0 0
        %2413 = vmatpush1.bf16.xpose.msra.mxu0 0
        %2414 = vmatprep.subr.bf16.mxu0 0
        %2415 = vmatpush1.bf16.xpose.msra.mxu0 0
        %2416 = vmatprep.subr.bf16.mxu0 0
        %2417 = vmatpush1.bf16.xpose.msra.mxu0 0
        %2418 = vmatprep.subr.bf16.mxu0 0
        %2419 = vmatpush1.bf16.xpose.msra.mxu0 0
        %2420 = vmatprep.subr.bf16.mxu0 0
        %2421 = vmatpush1.bf16.xpose.msra.mxu0 0
        %2422 = vmatprep.subr.bf16.mxu0 0
        %2423 = vmatpush1.bf16.xpose.msra.mxu0 0
        %2424 = vmatprep.subr.bf16.mxu0 0
        %2425 = vmatpush1.bf16.xpose.msra.mxu0 0
        %2426 = vmatprep.subr.bf16.mxu0 0
        %2427 = vmatpush1.bf16.xpose.msra.mxu0 0
        %2428 = vmatprep.subr.bf16.mxu0 0
        %2429 = vmatpush1.bf16.xpose.msra.mxu0 0
        %2430 = vmatprep.subr.bf16.mxu0 0
        %2431 = vmatpush1.bf16.xpose.msra.mxu0 0
        %2432 = vmatprep.mubr.bf16.mxu0 0
        %2433 = vmatmul.mubr.bf16.gmra.mrb[0].mxu0 %v2398
        %v2434 = vpop.f32.mrb[0].mxu0
        %v2435 = vadd.f32 0.0, %v2434
        %v2436 = vpop.f32.mrb[0].mxu0
        %v2437 = vpop.f32.mrb[0].mxu0
        %v2438 = vpop.f32.mrb[0].mxu0
        %2439 = vdwg.mxu0
        %2440 = vmatprep.subr.bf16.mxu0 0
        %2441 = vmatpush1.bf16.xpose.msra.mxu0 %v2393
        %2442 = vmatprep.subr.bf16.mxu0 0
        %2443 = vmatpush1.bf16.xpose.msra.mxu0 0
        %2444 = vmatprep.subr.bf16.mxu0 0
        %2445 = vmatpush1.bf16.xpose.msra.mxu0 0
        %2446 = vmatprep.subr.bf16.mxu0 0
        %2447 = vmatpush1.bf16.xpose.msra.mxu0 0
        %2448 = vmatprep.subr.bf16.mxu0 0
        %2449 = vmatpush1.bf16.xpose.msra.mxu0 0
        %2450 = vmatprep.subr.bf16.mxu0 0
        %2451 = vmatpush1.bf16.xpose.msra.mxu0 0
        %2452 = vmatprep.subr.bf16.mxu0 0
        %2453 = vmatpush1.bf16.xpose.msra.mxu0 0
        %2454 = vmatprep.subr.bf16.mxu0 0
        %2455 = vmatpush1.bf16.xpose.msra.mxu0 0
        %2456 = vmatprep.subr.bf16.mxu0 0
        %2457 = vmatpush1.bf16.xpose.msra.mxu0 0
        %2458 = vmatprep.subr.bf16.mxu0 0
        %2459 = vmatpush1.bf16.xpose.msra.mxu0 0
        %2460 = vmatprep.subr.bf16.mxu0 0
        %2461 = vmatpush1.bf16.xpose.msra.mxu0 0
        %2462 = vmatprep.subr.bf16.mxu0 0
        %2463 = vmatpush1.bf16.xpose.msra.mxu0 0
        %2464 = vmatprep.subr.bf16.mxu0 0
        %2465 = vmatpush1.bf16.xpose.msra.mxu0 0
        %2466 = vmatprep.subr.bf16.mxu0 0
        %2467 = vmatpush1.bf16.xpose.msra.mxu0 0
        %2468 = vmatprep.subr.bf16.mxu0 0
        %2469 = vmatpush1.bf16.xpose.msra.mxu0 0
        %2470 = vmatprep.subr.bf16.mxu0 0
        %2471 = vmatpush1.bf16.xpose.msra.mxu0 0
        %2472 = vmatprep.mubr.bf16.mxu0 0
        %2473 = vmatmul.mubr.bf16.gmra.mrb[0].mxu0 %v2399
        %v2474 = vpop.f32.mrb[0].mxu0
        %v2475 = vadd.f32 0.0, %v2474
        %v2476 = vpop.f32.mrb[0].mxu0
        %v2477 = vpop.f32.mrb[0].mxu0
        %v2478 = vpop.f32.mrb[0].mxu0
        %2479 = vdwg.mxu0
        %v2480 = vmul.f32 %v2435, 0.35355338
        %v2481 = vmul.f32 %v2475, 0.35355338
        %v2482 = vadd.f32 %v2480, %v2390
        %v2483 = vadd.f32 %v2481, %v2391
        %v2484 = vsel %vm1369, %v2482, -inf
        %2485 = vmax.xlane.f32.xlu0 %v2484
        %v2486 = vpop.xlane.xlu0 %2485
        %v2487 = vsel %vm1369, %v2483, -inf
        %2488 = vmax.xlane.f32.xlu0 %v2487
        %v2489 = vpop.xlane.xlu0 %2488
        %v2490 = vsub.f32 %v2482, %v2486
        %v2491 = vsub.f32 %v2483, %v2489
        %v2492 = vmul.f32 %v2490, 1.442695
        %v2493 = vpow.pop %v2492
        %v2494 = vmul.f32 %v2491, 1.442695
        %v2495 = vpow.pop %v2494
        %v2496 = vsel %vm1369, %v2493, 0.0
        %2497 = vadd.xlane.f32.xlu0 %v2496
        %v2498 = vpop.xlane.xlu0 %2497
        %v2499 = vsel %vm1369, %v2495, 0.0
        %2500 = vadd.xlane.f32.xlu0 %v2499
        %v2501 = vpop.xlane.xlu0 %2500
        %v2502 = vrcp.pop %v2498
        %v2503 = vrcp.pop %v2501
        %v2504 = vmul.f32 %v2493, %v2502
        %v2505 = vmul.f32 %v2495, %v2503
        %v2506 = vpack.c.bf16 %v2504, %v2504
        %v2507 = vpack.c.bf16 %v2505, %v2505
        %v2509 = vsel %vm1369, %v2506, 0
        %v2512 = vsel %vm1397, %v2394, 0
        %2514 = vmatprep.subr.bf16.mxu0 0
        %2515 = vmatpush1.bf16.msra.mxu0 %v2512
        %2516 = vmatprep.subr.bf16.mxu0 0
        %2517 = vmatpush1.bf16.msra.mxu0 0
        %2518 = vmatprep.subr.bf16.mxu0 0
        %2519 = vmatpush1.bf16.msra.mxu0 0
        %2520 = vmatprep.subr.bf16.mxu0 0
        %2521 = vmatpush1.bf16.msra.mxu0 0
        %2522 = vmatprep.subr.bf16.mxu0 0
        %2523 = vmatpush1.bf16.msra.mxu0 0
        %2524 = vmatprep.subr.bf16.mxu0 0
        %2525 = vmatpush1.bf16.msra.mxu0 0
        %2526 = vmatprep.subr.bf16.mxu0 0
        %2527 = vmatpush1.bf16.msra.mxu0 0
        %2528 = vmatprep.subr.bf16.mxu0 0
        %2529 = vmatpush1.bf16.msra.mxu0 0
        %2530 = vmatprep.subr.bf16.mxu0 0
        %2531 = vmatpush1.bf16.msra.mxu0 0
        %2532 = vmatprep.subr.bf16.mxu0 0
        %2533 = vmatpush1.bf16.msra.mxu0 0
        %2534 = vmatprep.subr.bf16.mxu0 0
        %2535 = vmatpush1.bf16.msra.mxu0 0
        %2536 = vmatprep.subr.bf16.mxu0 0
        %2537 = vmatpush1.bf16.msra.mxu0 0
        %2538 = vmatprep.subr.bf16.mxu0 0
        %2539 = vmatpush1.bf16.msra.mxu0 0
        %2540 = vmatprep.subr.bf16.mxu0 0
        %2541 = vmatpush1.bf16.msra.mxu0 0
        %2542 = vmatprep.subr.bf16.mxu0 0
        %2543 = vmatpush1.bf16.msra.mxu0 0
        %2544 = vmatprep.subr.bf16.mxu0 0
        %2545 = vmatpush1.bf16.msra.mxu0 0
        %2546 = vmatprep.mubr.bf16.mxu0 0
        %2547 = vmatmul.mubr.bf16.gmra.mrb[0].mxu0 %v2509
        %v2548 = vpop.f32.mrb[0].mxu0
        %v2549 = vadd.f32 0.0, %v2548
        %v2550 = vpop.f32.mrb[0].mxu0
        %v2551 = vpop.f32.mrb[0].mxu0
        %v2552 = vpop.f32.mrb[0].mxu0
        %2553 = vdwg.mxu0
        %v2555 = vsel %vm1369, %v2507, 0
        %v2558 = vsel %vm1397, %v2395, 0
        %2560 = vmatprep.subr.bf16.mxu0 0
        %2561 = vmatpush1.bf16.msra.mxu0 %v2558
        %2562 = vmatprep.subr.bf16.mxu0 0
        %2563 = vmatpush1.bf16.msra.mxu0 0
        %2564 = vmatprep.subr.bf16.mxu0 0
        %2565 = vmatpush1.bf16.msra.mxu0 0
        %2566 = vmatprep.subr.bf16.mxu0 0
        %2567 = vmatpush1.bf16.msra.mxu0 0
        %2568 = vmatprep.subr.bf16.mxu0 0
        %2569 = vmatpush1.bf16.msra.mxu0 0
        %2570 = vmatprep.subr.bf16.mxu0 0
        %2571 = vmatpush1.bf16.msra.mxu0 0
        %2572 = vmatprep.subr.bf16.mxu0 0
        %2573 = vmatpush1.bf16.msra.mxu0 0
        %2574 = vmatprep.subr.bf16.mxu0 0
        %2575 = vmatpush1.bf16.msra.mxu0 0
        %2576 = vmatprep.subr.bf16.mxu0 0
        %2577 = vmatpush1.bf16.msra.mxu0 0
        %2578 = vmatprep.subr.bf16.mxu0 0
        %2579 = vmatpush1.bf16.msra.mxu0 0
        %2580 = vmatprep.subr.bf16.mxu0 0
        %2581 = vmatpush1.bf16.msra.mxu0 0
        %2582 = vmatprep.subr.bf16.mxu0 0
        %2583 = vmatpush1.bf16.msra.mxu0 0
        %2584 = vmatprep.subr.bf16.mxu0 0
        %2585 = vmatpush1.bf16.msra.mxu0 0
        %2586 = vmatprep.subr.bf16.mxu0 0
        %2587 = vmatpush1.bf16.msra.mxu0 0
        %2588 = vmatprep.subr.bf16.mxu0 0
        %2589 = vmatpush1.bf16.msra.mxu0 0
        %2590 = vmatprep.subr.bf16.mxu0 0
        %2591 = vmatpush1.bf16.msra.mxu0 0
        %2592 = vmatprep.mubr.bf16.mxu0 0
        %2593 = vmatmul.mubr.bf16.gmra.mrb[0].mxu0 %v2555
        %v2594 = vpop.f32.mrb[0].mxu0
        %v2595 = vadd.f32 0.0, %v2594
        %v2596 = vpop.f32.mrb[0].mxu0
        %v2597 = vpop.f32.mrb[0].mxu0
        %v2598 = vpop.f32.mrb[0].mxu0
        %2599 = vdwg.mxu0
        %v2600 = vmul.f32 %v1280, %v2549
        %v2601 = vmul.f32 %v1280, %v2595
        %v2602 = vadd.f32 %v2600, 0.0
        %v2603 = vadd.f32 %v2601, 0.0
        %v2604 = vmul.f32 %v2380, %v1495
        %v2605 = vmul.f32 %v2383, %v1495
        %v2606 = vpack.c.bf16 %v2604, %v2604
        %v2607 = vpack.c.bf16 %v2605, %v2605
        %2608 = vmatprep.subr.bf16.mxu0 0
        %2609 = vmatpush1.bf16.xpose.msra.mxu0 %v2392
        %2610 = vmatprep.subr.bf16.mxu0 0
        %2611 = vmatpush1.bf16.xpose.msra.mxu0 0
        %2612 = vmatprep.subr.bf16.mxu0 0
        %2613 = vmatpush1.bf16.xpose.msra.mxu0 0
        %2614 = vmatprep.subr.bf16.mxu0 0
        %2615 = vmatpush1.bf16.xpose.msra.mxu0 0
        %2616 = vmatprep.subr.bf16.mxu0 0
        %2617 = vmatpush1.bf16.xpose.msra.mxu0 0
        %2618 = vmatprep.subr.bf16.mxu0 0
        %2619 = vmatpush1.bf16.xpose.msra.mxu0 0
        %2620 = vmatprep.subr.bf16.mxu0 0
        %2621 = vmatpush1.bf16.xpose.msra.mxu0 0
        %2622 = vmatprep.subr.bf16.mxu0 0
        %2623 = vmatpush1.bf16.xpose.msra.mxu0 0
        %2624 = vmatprep.subr.bf16.mxu0 0
        %2625 = vmatpush1.bf16.xpose.msra.mxu0 0
        %2626 = vmatprep.subr.bf16.mxu0 0
        %2627 = vmatpush1.bf16.xpose.msra.mxu0 0
        %2628 = vmatprep.subr.bf16.mxu0 0
        %2629 = vmatpush1.bf16.xpose.msra.mxu0 0
        %2630 = vmatprep.subr.bf16.mxu0 0
        %2631 = vmatpush1.bf16.xpose.msra.mxu0 0
        %2632 = vmatprep.subr.bf16.mxu0 0
        %2633 = vmatpush1.bf16.xpose.msra.mxu0 0
        %2634 = vmatprep.subr.bf16.mxu0 0
        %2635 = vmatpush1.bf16.xpose.msra.mxu0 0
        %2636 = vmatprep.subr.bf16.mxu0 0
        %2637 = vmatpush1.bf16.xpose.msra.mxu0 0
        %2638 = vmatprep.subr.bf16.mxu0 0
        %2639 = vmatpush1.bf16.xpose.msra.mxu0 0
        %2640 = vmatprep.mubr.bf16.mxu0 0
        %2641 = vmatmul.mubr.bf16.gmra.mrb[0].mxu0 %v2606
        %v2642 = vpop.f32.mrb[0].mxu0
        %v2643 = vadd.f32 0.0, %v2642
        %v2644 = vpop.f32.mrb[0].mxu0
        %v2645 = vpop.f32.mrb[0].mxu0
        %v2646 = vpop.f32.mrb[0].mxu0
        %2647 = vdwg.mxu0
        %2648 = vmatprep.subr.bf16.mxu0 0
        %2649 = vmatpush1.bf16.xpose.msra.mxu0 %v2393
        %2650 = vmatprep.subr.bf16.mxu0 0
        %2651 = vmatpush1.bf16.xpose.msra.mxu0 0
        %2652 = vmatprep.subr.bf16.mxu0 0
        %2653 = vmatpush1.bf16.xpose.msra.mxu0 0
        %2654 = vmatprep.subr.bf16.mxu0 0
        %2655 = vmatpush1.bf16.xpose.msra.mxu0 0
        %2656 = vmatprep.subr.bf16.mxu0 0
        %2657 = vmatpush1.bf16.xpose.msra.mxu0 0
        %2658 = vmatprep.subr.bf16.mxu0 0
        %2659 = vmatpush1.bf16.xpose.msra.mxu0 0
        %2660 = vmatprep.subr.bf16.mxu0 0
        %2661 = vmatpush1.bf16.xpose.msra.mxu0 0
        %2662 = vmatprep.subr.bf16.mxu0 0
        %2663 = vmatpush1.bf16.xpose.msra.mxu0 0
        %2664 = vmatprep.subr.bf16.mxu0 0
        %2665 = vmatpush1.bf16.xpose.msra.mxu0 0
        %2666 = vmatprep.subr.bf16.mxu0 0
        %2667 = vmatpush1.bf16.xpose.msra.mxu0 0
        %2668 = vmatprep.subr.bf16.mxu0 0
        %2669 = vmatpush1.bf16.xpose.msra.mxu0 0
        %2670 = vmatprep.subr.bf16.mxu0 0
        %2671 = vmatpush1.bf16.xpose.msra.mxu0 0
        %2672 = vmatprep.subr.bf16.mxu0 0
        %2673 = vmatpush1.bf16.xpose.msra.mxu0 0
        %2674 = vmatprep.subr.bf16.mxu0 0
        %2675 = vmatpush1.bf16.xpose.msra.mxu0 0
        %2676 = vmatprep.subr.bf16.mxu0 0
        %2677 = vmatpush1.bf16.xpose.msra.mxu0 0
        %2678 = vmatprep.subr.bf16.mxu0 0
        %2679 = vmatpush1.bf16.xpose.msra.mxu0 0
        %2680 = vmatprep.mubr.bf16.mxu0 0
        %2681 = vmatmul.mubr.bf16.gmra.mrb[0].mxu0 %v2607
        %v2682 = vpop.f32.mrb[0].mxu0
        %v2683 = vadd.f32 0.0, %v2682
        %v2684 = vpop.f32.mrb[0].mxu0
        %v2685 = vpop.f32.mrb[0].mxu0
        %v2686 = vpop.f32.mrb[0].mxu0
        %2687 = vdwg.mxu0
        %v2688 = vmul.f32 %v2643, 0.35355338
        %v2689 = vmul.f32 %v2683, 0.35355338
        %v2690 = vadd.f32 %v2688, %v2390
        %v2691 = vadd.f32 %v2689, %v2391
        %v2692 = vsel %vm1369, %v2690, -inf
        %2693 = vmax.xlane.f32.xlu0 %v2692
        %v2694 = vpop.xlane.xlu0 %2693
        %v2695 = vsel %vm1369, %v2691, -inf
        %2696 = vmax.xlane.f32.xlu0 %v2695
        %v2697 = vpop.xlane.xlu0 %2696
        %v2698 = vsub.f32 %v2690, %v2694
        %v2699 = vsub.f32 %v2691, %v2697
        %v2700 = vmul.f32 %v2698, 1.442695
        %v2701 = vpow.pop %v2700
        %v2702 = vmul.f32 %v2699, 1.442695
        %v2703 = vpow.pop %v2702
        %v2704 = vsel %vm1369, %v2701, 0.0
        %2705 = vadd.xlane.f32.xlu0 %v2704
        %v2706 = vpop.xlane.xlu0 %2705
        %v2707 = vsel %vm1369, %v2703, 0.0
        %2708 = vadd.xlane.f32.xlu0 %v2707
        %v2709 = vpop.xlane.xlu0 %2708
        %v2710 = vrcp.pop %v2706
        %v2711 = vrcp.pop %v2709
        %v2712 = vmul.f32 %v2701, %v2710
        %v2713 = vmul.f32 %v2703, %v2711
        %v2714 = vpack.c.bf16 %v2712, %v2712
        %v2715 = vpack.c.bf16 %v2713, %v2713
        %v2717 = vsel %vm1369, %v2714, 0
        %2719 = vmatprep.subr.bf16.mxu0 0
        %2720 = vmatpush1.bf16.msra.mxu0 %v2512
        %2721 = vmatprep.subr.bf16.mxu0 0
        %2722 = vmatpush1.bf16.msra.mxu0 0
        %2723 = vmatprep.subr.bf16.mxu0 0
        %2724 = vmatpush1.bf16.msra.mxu0 0
        %2725 = vmatprep.subr.bf16.mxu0 0
        %2726 = vmatpush1.bf16.msra.mxu0 0
        %2727 = vmatprep.subr.bf16.mxu0 0
        %2728 = vmatpush1.bf16.msra.mxu0 0
        %2729 = vmatprep.subr.bf16.mxu0 0
        %2730 = vmatpush1.bf16.msra.mxu0 0
        %2731 = vmatprep.subr.bf16.mxu0 0
        %2732 = vmatpush1.bf16.msra.mxu0 0
        %2733 = vmatprep.subr.bf16.mxu0 0
        %2734 = vmatpush1.bf16.msra.mxu0 0
        %2735 = vmatprep.subr.bf16.mxu0 0
        %2736 = vmatpush1.bf16.msra.mxu0 0
        %2737 = vmatprep.subr.bf16.mxu0 0
        %2738 = vmatpush1.bf16.msra.mxu0 0
        %2739 = vmatprep.subr.bf16.mxu0 0
        %2740 = vmatpush1.bf16.msra.mxu0 0
        %2741 = vmatprep.subr.bf16.mxu0 0
        %2742 = vmatpush1.bf16.msra.mxu0 0
        %2743 = vmatprep.subr.bf16.mxu0 0
        %2744 = vmatpush1.bf16.msra.mxu0 0
        %2745 = vmatprep.subr.bf16.mxu0 0
        %2746 = vmatpush1.bf16.msra.mxu0 0
        %2747 = vmatprep.subr.bf16.mxu0 0
        %2748 = vmatpush1.bf16.msra.mxu0 0
        %2749 = vmatprep.subr.bf16.mxu0 0
        %2750 = vmatpush1.bf16.msra.mxu0 0
        %2751 = vmatprep.mubr.bf16.mxu0 0
        %2752 = vmatmul.mubr.bf16.gmra.mrb[0].mxu0 %v2717
        %v2753 = vpop.f32.mrb[0].mxu0
        %v2754 = vadd.f32 0.0, %v2753
        %v2755 = vpop.f32.mrb[0].mxu0
        %v2756 = vpop.f32.mrb[0].mxu0
        %v2757 = vpop.f32.mrb[0].mxu0
        %2758 = vdwg.mxu0
        %v2760 = vsel %vm1369, %v2715, 0
        %2762 = vmatprep.subr.bf16.mxu0 0
        %2763 = vmatpush1.bf16.msra.mxu0 %v2558
        %2764 = vmatprep.subr.bf16.mxu0 0
        %2765 = vmatpush1.bf16.msra.mxu0 0
        %2766 = vmatprep.subr.bf16.mxu0 0
        %2767 = vmatpush1.bf16.msra.mxu0 0
        %2768 = vmatprep.subr.bf16.mxu0 0
        %2769 = vmatpush1.bf16.msra.mxu0 0
        %2770 = vmatprep.subr.bf16.mxu0 0
        %2771 = vmatpush1.bf16.msra.mxu0 0
        %2772 = vmatprep.subr.bf16.mxu0 0
        %2773 = vmatpush1.bf16.msra.mxu0 0
        %2774 = vmatprep.subr.bf16.mxu0 0
        %2775 = vmatpush1.bf16.msra.mxu0 0
        %2776 = vmatprep.subr.bf16.mxu0 0
        %2777 = vmatpush1.bf16.msra.mxu0 0
        %2778 = vmatprep.subr.bf16.mxu0 0
        %2779 = vmatpush1.bf16.msra.mxu0 0
        %2780 = vmatprep.subr.bf16.mxu0 0
        %2781 = vmatpush1.bf16.msra.mxu0 0
        %2782 = vmatprep.subr.bf16.mxu0 0
        %2783 = vmatpush1.bf16.msra.mxu0 0
        %2784 = vmatprep.subr.bf16.mxu0 0
        %2785 = vmatpush1.bf16.msra.mxu0 0
        %2786 = vmatprep.subr.bf16.mxu0 0
        %2787 = vmatpush1.bf16.msra.mxu0 0
        %2788 = vmatprep.subr.bf16.mxu0 0
        %2789 = vmatpush1.bf16.msra.mxu0 0
        %2790 = vmatprep.subr.bf16.mxu0 0
        %2791 = vmatpush1.bf16.msra.mxu0 0
        %2792 = vmatprep.subr.bf16.mxu0 0
        %2793 = vmatpush1.bf16.msra.mxu0 0
        %2794 = vmatprep.mubr.bf16.mxu0 0
        %2795 = vmatmul.mubr.bf16.gmra.mrb[0].mxu0 %v2760
        %v2796 = vpop.f32.mrb[0].mxu0
        %v2797 = vadd.f32 0.0, %v2796
        %v2798 = vpop.f32.mrb[0].mxu0
        %v2799 = vpop.f32.mrb[0].mxu0
        %v2800 = vpop.f32.mrb[0].mxu0
        %2801 = vdwg.mxu0
        %v2802 = vmul.f32 %v1495, %v2754
        %v2803 = vmul.f32 %v1495, %v2797
        %v2804 = vadd.f32 %v2602, %v2802
        %v2805 = vadd.f32 %v2603, %v2803
        %v2806 = vmul.f32 %v2380, %v1702
        %v2807 = vmul.f32 %v2383, %v1702
        %v2808 = vpack.c.bf16 %v2806, %v2806
        %v2809 = vpack.c.bf16 %v2807, %v2807
        %2810 = vmatprep.subr.bf16.mxu0 0
        %2811 = vmatpush1.bf16.xpose.msra.mxu0 %v2392
        %2812 = vmatprep.subr.bf16.mxu0 0
        %2813 = vmatpush1.bf16.xpose.msra.mxu0 0
        %2814 = vmatprep.subr.bf16.mxu0 0
        %2815 = vmatpush1.bf16.xpose.msra.mxu0 0
        %2816 = vmatprep.subr.bf16.mxu0 0
        %2817 = vmatpush1.bf16.xpose.msra.mxu0 0
        %2818 = vmatprep.subr.bf16.mxu0 0
        %2819 = vmatpush1.bf16.xpose.msra.mxu0 0
        %2820 = vmatprep.subr.bf16.mxu0 0
        %2821 = vmatpush1.bf16.xpose.msra.mxu0 0
        %2822 = vmatprep.subr.bf16.mxu0 0
        %2823 = vmatpush1.bf16.xpose.msra.mxu0 0
        %2824 = vmatprep.subr.bf16.mxu0 0
        %2825 = vmatpush1.bf16.xpose.msra.mxu0 0
        %2826 = vmatprep.subr.bf16.mxu0 0
        %2827 = vmatpush1.bf16.xpose.msra.mxu0 0
        %2828 = vmatprep.subr.bf16.mxu0 0
        %2829 = vmatpush1.bf16.xpose.msra.mxu0 0
        %2830 = vmatprep.subr.bf16.mxu0 0
        %2831 = vmatpush1.bf16.xpose.msra.mxu0 0
        %2832 = vmatprep.subr.bf16.mxu0 0
        %2833 = vmatpush1.bf16.xpose.msra.mxu0 0
        %2834 = vmatprep.subr.bf16.mxu0 0
        %2835 = vmatpush1.bf16.xpose.msra.mxu0 0
        %2836 = vmatprep.subr.bf16.mxu0 0
        %2837 = vmatpush1.bf16.xpose.msra.mxu0 0
        %2838 = vmatprep.subr.bf16.mxu0 0
        %2839 = vmatpush1.bf16.xpose.msra.mxu0 0
        %2840 = vmatprep.subr.bf16.mxu0 0
        %2841 = vmatpush1.bf16.xpose.msra.mxu0 0
        %2842 = vmatprep.mubr.bf16.mxu0 0
        %2843 = vmatmul.mubr.bf16.gmra.mrb[0].mxu0 %v2808
        %v2844 = vpop.f32.mrb[0].mxu0
        %v2845 = vadd.f32 0.0, %v2844
        %v2846 = vpop.f32.mrb[0].mxu0
        %v2847 = vpop.f32.mrb[0].mxu0
        %v2848 = vpop.f32.mrb[0].mxu0
        %2849 = vdwg.mxu0
        %2850 = vmatprep.subr.bf16.mxu0 0
        %2851 = vmatpush1.bf16.xpose.msra.mxu0 %v2393
        %2852 = vmatprep.subr.bf16.mxu0 0
        %2853 = vmatpush1.bf16.xpose.msra.mxu0 0
        %2854 = vmatprep.subr.bf16.mxu0 0
        %2855 = vmatpush1.bf16.xpose.msra.mxu0 0
        %2856 = vmatprep.subr.bf16.mxu0 0
        %2857 = vmatpush1.bf16.xpose.msra.mxu0 0
        %2858 = vmatprep.subr.bf16.mxu0 0
        %2859 = vmatpush1.bf16.xpose.msra.mxu0 0
        %2860 = vmatprep.subr.bf16.mxu0 0
        %2861 = vmatpush1.bf16.xpose.msra.mxu0 0
        %2862 = vmatprep.subr.bf16.mxu0 0
        %2863 = vmatpush1.bf16.xpose.msra.mxu0 0
        %2864 = vmatprep.subr.bf16.mxu0 0
        %2865 = vmatpush1.bf16.xpose.msra.mxu0 0
        %2866 = vmatprep.subr.bf16.mxu0 0
        %2867 = vmatpush1.bf16.xpose.msra.mxu0 0
        %2868 = vmatprep.subr.bf16.mxu0 0
        %2869 = vmatpush1.bf16.xpose.msra.mxu0 0
        %2870 = vmatprep.subr.bf16.mxu0 0
        %2871 = vmatpush1.bf16.xpose.msra.mxu0 0
        %2872 = vmatprep.subr.bf16.mxu0 0
        %2873 = vmatpush1.bf16.xpose.msra.mxu0 0
        %2874 = vmatprep.subr.bf16.mxu0 0
        %2875 = vmatpush1.bf16.xpose.msra.mxu0 0
        %2876 = vmatprep.subr.bf16.mxu0 0
        %2877 = vmatpush1.bf16.xpose.msra.mxu0 0
        %2878 = vmatprep.subr.bf16.mxu0 0
        %2879 = vmatpush1.bf16.xpose.msra.mxu0 0
        %2880 = vmatprep.subr.bf16.mxu0 0
        %2881 = vmatpush1.bf16.xpose.msra.mxu0 0
        %2882 = vmatprep.mubr.bf16.mxu0 0
        %2883 = vmatmul.mubr.bf16.gmra.mrb[0].mxu0 %v2809
        %v2884 = vpop.f32.mrb[0].mxu0
        %v2885 = vadd.f32 0.0, %v2884
        %v2886 = vpop.f32.mrb[0].mxu0
        %v2887 = vpop.f32.mrb[0].mxu0
        %v2888 = vpop.f32.mrb[0].mxu0
        %2889 = vdwg.mxu0
        %v2890 = vmul.f32 %v2845, 0.35355338
        %v2891 = vmul.f32 %v2885, 0.35355338
        %v2892 = vadd.f32 %v2890, %v2390
        %v2893 = vadd.f32 %v2891, %v2391
        %v2894 = vsel %vm1369, %v2892, -inf
        %2895 = vmax.xlane.f32.xlu0 %v2894
        %v2896 = vpop.xlane.xlu0 %2895
        %v2897 = vsel %vm1369, %v2893, -inf
        %2898 = vmax.xlane.f32.xlu0 %v2897
        %v2899 = vpop.xlane.xlu0 %2898
        %v2900 = vsub.f32 %v2892, %v2896
        %v2901 = vsub.f32 %v2893, %v2899
        %v2902 = vmul.f32 %v2900, 1.442695
        %v2903 = vpow.pop %v2902
        %v2904 = vmul.f32 %v2901, 1.442695
        %v2905 = vpow.pop %v2904
        %v2906 = vsel %vm1369, %v2903, 0.0
        %2907 = vadd.xlane.f32.xlu0 %v2906
        %v2908 = vpop.xlane.xlu0 %2907
        %v2909 = vsel %vm1369, %v2905, 0.0
        %2910 = vadd.xlane.f32.xlu0 %v2909
        %v2911 = vpop.xlane.xlu0 %2910
        %v2912 = vrcp.pop %v2908
        %v2913 = vrcp.pop %v2911
        %v2914 = vmul.f32 %v2903, %v2912
        %v2915 = vmul.f32 %v2905, %v2913
        %v2916 = vpack.c.bf16 %v2914, %v2914
        %v2917 = vpack.c.bf16 %v2915, %v2915
        %v2919 = vsel %vm1369, %v2916, 0
        %2921 = vmatprep.subr.bf16.mxu0 0
        %2922 = vmatpush1.bf16.msra.mxu0 %v2512
        %2923 = vmatprep.subr.bf16.mxu0 0
        %2924 = vmatpush1.bf16.msra.mxu0 0
        %2925 = vmatprep.subr.bf16.mxu0 0
        %2926 = vmatpush1.bf16.msra.mxu0 0
        %2927 = vmatprep.subr.bf16.mxu0 0
        %2928 = vmatpush1.bf16.msra.mxu0 0
        %2929 = vmatprep.subr.bf16.mxu0 0
        %2930 = vmatpush1.bf16.msra.mxu0 0
        %2931 = vmatprep.subr.bf16.mxu0 0
        %2932 = vmatpush1.bf16.msra.mxu0 0
        %2933 = vmatprep.subr.bf16.mxu0 0
        %2934 = vmatpush1.bf16.msra.mxu0 0
        %2935 = vmatprep.subr.bf16.mxu0 0
        %2936 = vmatpush1.bf16.msra.mxu0 0
        %2937 = vmatprep.subr.bf16.mxu0 0
        %2938 = vmatpush1.bf16.msra.mxu0 0
        %2939 = vmatprep.subr.bf16.mxu0 0
        %2940 = vmatpush1.bf16.msra.mxu0 0
        %2941 = vmatprep.subr.bf16.mxu0 0
        %2942 = vmatpush1.bf16.msra.mxu0 0
        %2943 = vmatprep.subr.bf16.mxu0 0
        %2944 = vmatpush1.bf16.msra.mxu0 0
        %2945 = vmatprep.subr.bf16.mxu0 0
        %2946 = vmatpush1.bf16.msra.mxu0 0
        %2947 = vmatprep.subr.bf16.mxu0 0
        %2948 = vmatpush1.bf16.msra.mxu0 0
        %2949 = vmatprep.subr.bf16.mxu0 0
        %2950 = vmatpush1.bf16.msra.mxu0 0
        %2951 = vmatprep.subr.bf16.mxu0 0
        %2952 = vmatpush1.bf16.msra.mxu0 0
        %2953 = vmatprep.mubr.bf16.mxu0 0
        %2954 = vmatmul.mubr.bf16.gmra.mrb[0].mxu0 %v2919
        %v2955 = vpop.f32.mrb[0].mxu0
        %v2956 = vadd.f32 0.0, %v2955
        %v2957 = vpop.f32.mrb[0].mxu0
        %v2958 = vpop.f32.mrb[0].mxu0
        %v2959 = vpop.f32.mrb[0].mxu0
        %2960 = vdwg.mxu0
        %v2962 = vsel %vm1369, %v2917, 0
        %2964 = vmatprep.subr.bf16.mxu0 0
        %2965 = vmatpush1.bf16.msra.mxu0 %v2558
        %2966 = vmatprep.subr.bf16.mxu0 0
        %2967 = vmatpush1.bf16.msra.mxu0 0
        %2968 = vmatprep.subr.bf16.mxu0 0
        %2969 = vmatpush1.bf16.msra.mxu0 0
        %2970 = vmatprep.subr.bf16.mxu0 0
        %2971 = vmatpush1.bf16.msra.mxu0 0
        %2972 = vmatprep.subr.bf16.mxu0 0
        %2973 = vmatpush1.bf16.msra.mxu0 0
        %2974 = vmatprep.subr.bf16.mxu0 0
        %2975 = vmatpush1.bf16.msra.mxu0 0
        %2976 = vmatprep.subr.bf16.mxu0 0
        %2977 = vmatpush1.bf16.msra.mxu0 0
        %2978 = vmatprep.subr.bf16.mxu0 0
        %2979 = vmatpush1.bf16.msra.mxu0 0
        %2980 = vmatprep.subr.bf16.mxu0 0
        %2981 = vmatpush1.bf16.msra.mxu0 0
        %2982 = vmatprep.subr.bf16.mxu0 0
        %2983 = vmatpush1.bf16.msra.mxu0 0
        %2984 = vmatprep.subr.bf16.mxu0 0
        %2985 = vmatpush1.bf16.msra.mxu0 0
        %2986 = vmatprep.subr.bf16.mxu0 0
        %2987 = vmatpush1.bf16.msra.mxu0 0
        %2988 = vmatprep.subr.bf16.mxu0 0
        %2989 = vmatpush1.bf16.msra.mxu0 0
        %2990 = vmatprep.subr.bf16.mxu0 0
        %2991 = vmatpush1.bf16.msra.mxu0 0
        %2992 = vmatprep.subr.bf16.mxu0 0
        %2993 = vmatpush1.bf16.msra.mxu0 0
        %2994 = vmatprep.subr.bf16.mxu0 0
        %2995 = vmatpush1.bf16.msra.mxu0 0
        %2996 = vmatprep.mubr.bf16.mxu0 0
        %2997 = vmatmul.mubr.bf16.gmra.mrb[0].mxu0 %v2962
        %v2998 = vpop.f32.mrb[0].mxu0
        %v2999 = vadd.f32 0.0, %v2998
        %v3000 = vpop.f32.mrb[0].mxu0
        %v3001 = vpop.f32.mrb[0].mxu0
        %v3002 = vpop.f32.mrb[0].mxu0
        %3003 = vdwg.mxu0
        %v3004 = vmul.f32 %v1702, %v2956
        %v3005 = vmul.f32 %v1702, %v2999
        %v3006 = vadd.f32 %v2804, %v3004
        %v3007 = vadd.f32 %v2805, %v3005
        %v3008 = vmul.f32 %v2380, %v1909
        %v3009 = vmul.f32 %v2383, %v1909
        %v3010 = vpack.c.bf16 %v3008, %v3008
        %v3011 = vpack.c.bf16 %v3009, %v3009
        %3012 = vmatprep.subr.bf16.mxu0 0
        %3013 = vmatpush1.bf16.xpose.msra.mxu0 %v2392
        %3014 = vmatprep.subr.bf16.mxu0 0
        %3015 = vmatpush1.bf16.xpose.msra.mxu0 0
        %3016 = vmatprep.subr.bf16.mxu0 0
        %3017 = vmatpush1.bf16.xpose.msra.mxu0 0
        %3018 = vmatprep.subr.bf16.mxu0 0
        %3019 = vmatpush1.bf16.xpose.msra.mxu0 0
        %3020 = vmatprep.subr.bf16.mxu0 0
        %3021 = vmatpush1.bf16.xpose.msra.mxu0 0
        %3022 = vmatprep.subr.bf16.mxu0 0
        %3023 = vmatpush1.bf16.xpose.msra.mxu0 0
        %3024 = vmatprep.subr.bf16.mxu0 0
        %3025 = vmatpush1.bf16.xpose.msra.mxu0 0
        %3026 = vmatprep.subr.bf16.mxu0 0
        %3027 = vmatpush1.bf16.xpose.msra.mxu0 0
        %3028 = vmatprep.subr.bf16.mxu0 0
        %3029 = vmatpush1.bf16.xpose.msra.mxu0 0
        %3030 = vmatprep.subr.bf16.mxu0 0
        %3031 = vmatpush1.bf16.xpose.msra.mxu0 0
        %3032 = vmatprep.subr.bf16.mxu0 0
        %3033 = vmatpush1.bf16.xpose.msra.mxu0 0
        %3034 = vmatprep.subr.bf16.mxu0 0
        %3035 = vmatpush1.bf16.xpose.msra.mxu0 0
        %3036 = vmatprep.subr.bf16.mxu0 0
        %3037 = vmatpush1.bf16.xpose.msra.mxu0 0
        %3038 = vmatprep.subr.bf16.mxu0 0
        %3039 = vmatpush1.bf16.xpose.msra.mxu0 0
        %3040 = vmatprep.subr.bf16.mxu0 0
        %3041 = vmatpush1.bf16.xpose.msra.mxu0 0
        %3042 = vmatprep.subr.bf16.mxu0 0
        %3043 = vmatpush1.bf16.xpose.msra.mxu0 0
        %3044 = vmatprep.mubr.bf16.mxu0 0
        %3045 = vmatmul.mubr.bf16.gmra.mrb[0].mxu0 %v3010
        %v3046 = vpop.f32.mrb[0].mxu0
        %v3047 = vadd.f32 0.0, %v3046
        %v3048 = vpop.f32.mrb[0].mxu0
        %v3049 = vpop.f32.mrb[0].mxu0
        %v3050 = vpop.f32.mrb[0].mxu0
        %3051 = vdwg.mxu0
        %3052 = vmatprep.subr.bf16.mxu0 0
        %3053 = vmatpush1.bf16.xpose.msra.mxu0 %v2393
        %3054 = vmatprep.subr.bf16.mxu0 0
        %3055 = vmatpush1.bf16.xpose.msra.mxu0 0
        %3056 = vmatprep.subr.bf16.mxu0 0
        %3057 = vmatpush1.bf16.xpose.msra.mxu0 0
        %3058 = vmatprep.subr.bf16.mxu0 0
        %3059 = vmatpush1.bf16.xpose.msra.mxu0 0
        %3060 = vmatprep.subr.bf16.mxu0 0
        %3061 = vmatpush1.bf16.xpose.msra.mxu0 0
        %3062 = vmatprep.subr.bf16.mxu0 0
        %3063 = vmatpush1.bf16.xpose.msra.mxu0 0
        %3064 = vmatprep.subr.bf16.mxu0 0
        %3065 = vmatpush1.bf16.xpose.msra.mxu0 0
        %3066 = vmatprep.subr.bf16.mxu0 0
        %3067 = vmatpush1.bf16.xpose.msra.mxu0 0
        %3068 = vmatprep.subr.bf16.mxu0 0
        %3069 = vmatpush1.bf16.xpose.msra.mxu0 0
        %3070 = vmatprep.subr.bf16.mxu0 0
        %3071 = vmatpush1.bf16.xpose.msra.mxu0 0
        %3072 = vmatprep.subr.bf16.mxu0 0
        %3073 = vmatpush1.bf16.xpose.msra.mxu0 0
        %3074 = vmatprep.subr.bf16.mxu0 0
        %3075 = vmatpush1.bf16.xpose.msra.mxu0 0
        %3076 = vmatprep.subr.bf16.mxu0 0
        %3077 = vmatpush1.bf16.xpose.msra.mxu0 0
        %3078 = vmatprep.subr.bf16.mxu0 0
        %3079 = vmatpush1.bf16.xpose.msra.mxu0 0
        %3080 = vmatprep.subr.bf16.mxu0 0
        %3081 = vmatpush1.bf16.xpose.msra.mxu0 0
        %3082 = vmatprep.subr.bf16.mxu0 0
        %3083 = vmatpush1.bf16.xpose.msra.mxu0 0
        %3084 = vmatprep.mubr.bf16.mxu0 0
        %3085 = vmatmul.mubr.bf16.gmra.mrb[0].mxu0 %v3011
        %v3086 = vpop.f32.mrb[0].mxu0
        %v3087 = vadd.f32 0.0, %v3086
        %v3088 = vpop.f32.mrb[0].mxu0
        %v3089 = vpop.f32.mrb[0].mxu0
        %v3090 = vpop.f32.mrb[0].mxu0
        %3091 = vdwg.mxu0
        %v3092 = vmul.f32 %v3047, 0.35355338
        %v3093 = vmul.f32 %v3087, 0.35355338
        %v3094 = vadd.f32 %v3092, %v2390
        %v3095 = vadd.f32 %v3093, %v2391
        %v3096 = vsel %vm1369, %v3094, -inf
        %3097 = vmax.xlane.f32.xlu0 %v3096
        %v3098 = vpop.xlane.xlu0 %3097
        %v3099 = vsel %vm1369, %v3095, -inf
        %3100 = vmax.xlane.f32.xlu0 %v3099
        %v3101 = vpop.xlane.xlu0 %3100
        %v3102 = vsub.f32 %v3094, %v3098
        %v3103 = vsub.f32 %v3095, %v3101
        %v3104 = vmul.f32 %v3102, 1.442695
        %v3105 = vpow.pop %v3104
        %v3106 = vmul.f32 %v3103, 1.442695
        %v3107 = vpow.pop %v3106
        %v3108 = vsel %vm1369, %v3105, 0.0
        %3109 = vadd.xlane.f32.xlu0 %v3108
        %v3110 = vpop.xlane.xlu0 %3109
        %v3111 = vsel %vm1369, %v3107, 0.0
        %3112 = vadd.xlane.f32.xlu0 %v3111
        %v3113 = vpop.xlane.xlu0 %3112
        %v3114 = vrcp.pop %v3110
        %v3115 = vrcp.pop %v3113
        %v3116 = vmul.f32 %v3105, %v3114
        %v3117 = vmul.f32 %v3107, %v3115
        %v3118 = vpack.c.bf16 %v3116, %v3116
        %v3119 = vpack.c.bf16 %v3117, %v3117
        %v3121 = vsel %vm1369, %v3118, 0
        %3123 = vmatprep.subr.bf16.mxu0 0
        %3124 = vmatpush1.bf16.msra.mxu0 %v2512
        %3125 = vmatprep.subr.bf16.mxu0 0
        %3126 = vmatpush1.bf16.msra.mxu0 0
        %3127 = vmatprep.subr.bf16.mxu0 0
        %3128 = vmatpush1.bf16.msra.mxu0 0
        %3129 = vmatprep.subr.bf16.mxu0 0
        %3130 = vmatpush1.bf16.msra.mxu0 0
        %3131 = vmatprep.subr.bf16.mxu0 0
        %3132 = vmatpush1.bf16.msra.mxu0 0
        %3133 = vmatprep.subr.bf16.mxu0 0
        %3134 = vmatpush1.bf16.msra.mxu0 0
        %3135 = vmatprep.subr.bf16.mxu0 0
        %3136 = vmatpush1.bf16.msra.mxu0 0
        %3137 = vmatprep.subr.bf16.mxu0 0
        %3138 = vmatpush1.bf16.msra.mxu0 0
        %3139 = vmatprep.subr.bf16.mxu0 0
        %3140 = vmatpush1.bf16.msra.mxu0 0
        %3141 = vmatprep.subr.bf16.mxu0 0
        %3142 = vmatpush1.bf16.msra.mxu0 0
        %3143 = vmatprep.subr.bf16.mxu0 0
        %3144 = vmatpush1.bf16.msra.mxu0 0
        %3145 = vmatprep.subr.bf16.mxu0 0
        %3146 = vmatpush1.bf16.msra.mxu0 0
        %3147 = vmatprep.subr.bf16.mxu0 0
        %3148 = vmatpush1.bf16.msra.mxu0 0
        %3149 = vmatprep.subr.bf16.mxu0 0
        %3150 = vmatpush1.bf16.msra.mxu0 0
        %3151 = vmatprep.subr.bf16.mxu0 0
        %3152 = vmatpush1.bf16.msra.mxu0 0
        %3153 = vmatprep.subr.bf16.mxu0 0
        %3154 = vmatpush1.bf16.msra.mxu0 0
        %3155 = vmatprep.mubr.bf16.mxu0 0
        %3156 = vmatmul.mubr.bf16.gmra.mrb[0].mxu0 %v3121
        %v3157 = vpop.f32.mrb[0].mxu0
        %v3158 = vadd.f32 0.0, %v3157
        %v3159 = vpop.f32.mrb[0].mxu0
        %v3160 = vpop.f32.mrb[0].mxu0
        %v3161 = vpop.f32.mrb[0].mxu0
        %3162 = vdwg.mxu0
        %v3164 = vsel %vm1369, %v3119, 0
        %3166 = vmatprep.subr.bf16.mxu0 0
        %3167 = vmatpush1.bf16.msra.mxu0 %v2558
        %3168 = vmatprep.subr.bf16.mxu0 0
        %3169 = vmatpush1.bf16.msra.mxu0 0
        %3170 = vmatprep.subr.bf16.mxu0 0
        %3171 = vmatpush1.bf16.msra.mxu0 0
        %3172 = vmatprep.subr.bf16.mxu0 0
        %3173 = vmatpush1.bf16.msra.mxu0 0
        %3174 = vmatprep.subr.bf16.mxu0 0
        %3175 = vmatpush1.bf16.msra.mxu0 0
        %3176 = vmatprep.subr.bf16.mxu0 0
        %3177 = vmatpush1.bf16.msra.mxu0 0
        %3178 = vmatprep.subr.bf16.mxu0 0
        %3179 = vmatpush1.bf16.msra.mxu0 0
        %3180 = vmatprep.subr.bf16.mxu0 0
        %3181 = vmatpush1.bf16.msra.mxu0 0
        %3182 = vmatprep.subr.bf16.mxu0 0
        %3183 = vmatpush1.bf16.msra.mxu0 0
        %3184 = vmatprep.subr.bf16.mxu0 0
        %3185 = vmatpush1.bf16.msra.mxu0 0
        %3186 = vmatprep.subr.bf16.mxu0 0
        %3187 = vmatpush1.bf16.msra.mxu0 0
        %3188 = vmatprep.subr.bf16.mxu0 0
        %3189 = vmatpush1.bf16.msra.mxu0 0
        %3190 = vmatprep.subr.bf16.mxu0 0
        %3191 = vmatpush1.bf16.msra.mxu0 0
        %3192 = vmatprep.subr.bf16.mxu0 0
        %3193 = vmatpush1.bf16.msra.mxu0 0
        %3194 = vmatprep.subr.bf16.mxu0 0
        %3195 = vmatpush1.bf16.msra.mxu0 0
        %3196 = vmatprep.subr.bf16.mxu0 0
        %3197 = vmatpush1.bf16.msra.mxu0 0
        %3198 = vmatprep.mubr.bf16.mxu0 0
        %3199 = vmatmul.mubr.bf16.gmra.mrb[0].mxu0 %v3164
        %v3200 = vpop.f32.mrb[0].mxu0
        %v3201 = vadd.f32 0.0, %v3200
        %v3202 = vpop.f32.mrb[0].mxu0
        %v3203 = vpop.f32.mrb[0].mxu0
        %v3204 = vpop.f32.mrb[0].mxu0
        %3205 = vdwg.mxu0
        %v3206 = vmul.f32 %v1909, %v3158
        %v3207 = vmul.f32 %v1909, %v3201
        %v3208 = vadd.f32 %v3006, %v3206
        %v3209 = vadd.f32 %v3007, %v3207
        %v3210 = vld [vmem:[%s14] sm:$0xf]
        %v3211 = vld [vmem:[%s14 + $0x4] sm:$0xf]
        %v3212 = vld [vmem:[%s14 + $0x8] sm:$0xf]
        %v3213 = vld [vmem:[%s14 + $0xc] sm:$0xf]
        %v3214 = vld [vmem:[%s14 + $0x10] sm:$0xf]
        %v3215 = vld [vmem:[%s14 + $0x14] sm:$0xf]
        %v3216 = vld [vmem:[%s14 + $0x18] sm:$0xf]
        %v3217 = vld [vmem:[%s14 + $0x1c] sm:$0xf]
        %v3218 = vld [vmem:[%s14 + $0x20] sm:$0xf]
        %v3219 = vld [vmem:[%s14 + $0x24] sm:$0xf]
        %v3220 = vld [vmem:[%s14 + $0x28] sm:$0xf]
        %v3221 = vld [vmem:[%s14 + $0x2c] sm:$0xf]
        %v3222 = vld [vmem:[%s14 + $0x30] sm:$0xf]
        %v3223 = vld [vmem:[%s14 + $0x34] sm:$0xf]
        %v3224 = vld [vmem:[%s14 + $0x38] sm:$0xf]
        %v3225 = vld [vmem:[%s14 + $0x3c] sm:$0xf]
        %v3226 = vpack.c.bf16 %v3209, %v3208
        %v3227 = vld [vmem:[%s15] sm:$0x1]
        %v3229 = vlaneseq
        %v3230 = vshrl.u32 %v3229, 7
        %v3231 = vsub.s32 0, %v3230
        %v3232 = vrot.slane %v3227, %v3231
        %v3250 = vunpack.c.l.b16 %v3210
        %v3251 = vunpack.c.l.b16 %v3211
        %v3252 = vunpack.c.l.b16 %v3212
        %v3253 = vunpack.c.l.b16 %v3213
        %v3254 = vunpack.c.l.b16 %v3214
        %v3255 = vunpack.c.l.b16 %v3215
        %v3256 = vunpack.c.l.b16 %v3216
        %v3257 = vunpack.c.l.b16 %v3217
        %v3258 = vunpack.c.l.b16 %v3218
        %v3259 = vunpack.c.l.b16 %v3219
        %v3260 = vunpack.c.l.b16 %v3220
        %v3261 = vunpack.c.l.b16 %v3221
        %v3262 = vunpack.c.l.b16 %v3222
        %v3263 = vunpack.c.l.b16 %v3223
        %v3264 = vunpack.c.l.b16 %v3224
        %v3265 = vunpack.c.l.b16 %v3225
        %v3266 = vpack.c.b16 %v3251, %v3250
        %v3267 = vpack.c.b16 %v3253, %v3252
        %v3268 = vpack.c.b16 %v3255, %v3254
        %v3269 = vpack.c.b16 %v3257, %v3256
        %v3270 = vpack.c.b16 %v3259, %v3258
        %v3271 = vpack.c.b16 %v3261, %v3260
        %v3272 = vpack.c.b16 %v3263, %v3262
        %v3273 = vpack.c.b16 %v3265, %v3264
        %3282 = vmatprep.subr.bf16.mxu0 0
        %3283 = vmatpush1.bf16.msra.mxu0 %v3266
        %3284 = vmatprep.subr.bf16.mxu0 0
        %3285 = vmatpush1.bf16.msra.mxu0 %v3267
        %3286 = vmatprep.subr.bf16.mxu0 0
        %3287 = vmatpush1.bf16.msra.mxu0 %v3268
        %3288 = vmatprep.subr.bf16.mxu0 0
        %3289 = vmatpush1.bf16.msra.mxu0 %v3269
        %3290 = vmatprep.subr.bf16.mxu0 0
        %3291 = vmatpush1.bf16.msra.mxu0 %v3270
        %3292 = vmatprep.subr.bf16.mxu0 0
        %3293 = vmatpush1.bf16.msra.mxu0 %v3271
        %3294 = vmatprep.subr.bf16.mxu0 0
        %3295 = vmatpush1.bf16.msra.mxu0 %v3272
        %3296 = vmatprep.subr.bf16.mxu0 0
        %3297 = vmatpush1.bf16.msra.mxu0 %v3273
        %3298 = vmatprep.subr.bf16.mxu0 0
        %3299 = vmatpush1.bf16.msra.mxu0 0
        %3300 = vmatprep.subr.bf16.mxu0 0
        %3301 = vmatpush1.bf16.msra.mxu0 0
        %3302 = vmatprep.subr.bf16.mxu0 0
        %3303 = vmatpush1.bf16.msra.mxu0 0
        %3304 = vmatprep.subr.bf16.mxu0 0
        %3305 = vmatpush1.bf16.msra.mxu0 0
        %3306 = vmatprep.subr.bf16.mxu0 0
        %3307 = vmatpush1.bf16.msra.mxu0 0
        %3308 = vmatprep.subr.bf16.mxu0 0
        %3309 = vmatpush1.bf16.msra.mxu0 0
        %3310 = vmatprep.subr.bf16.mxu0 0
        %3311 = vmatpush1.bf16.msra.mxu0 0
        %3312 = vmatprep.subr.bf16.mxu0 0
        %3313 = vmatpush1.bf16.msra.mxu0 0
        %3314 = vmatprep.mubr.bf16.mxu0 0
        %3315 = vmatmul.mubr.bf16.gmra.mrb[0].mxu0 %v3226
        %v3316 = vpop.f32.mrb[0].mxu0
        %v3317 = vadd.f32 %v3232, %v3316
        %v3318 = vpop.f32.mrb[0].mxu0
        %v3319 = vpop.f32.mrb[0].mxu0
        %v3320 = vadd.f32 %v3232, %v3319
        %v3321 = vpop.f32.mrb[0].mxu0
        %3322 = vdwg.mxu0
        %v3323 = vld [vmem:[%s16] sm:$0x1]
        %v3324 = vld [vmem:[%s17] sm:$0x1]
        %v3325 = vadd.f32 %v3317, %v2271
        %v3326 = vadd.f32 %v3320, %v2272
        %3327 = vadd.xlane.f32.xlu0 %v3325
        %v3328 = vpop.xlane.xlu0 %3327
        %3329 = vadd.xlane.f32.xlu0 %v3326
        %v3330 = vpop.xlane.xlu0 %3329
        %v3331 = vmul.f32 %v3328, 0.03125
        %v3332 = vmul.f32 %v3330, 0.03125
        %v3333 = vmul.f32 %v3325, %v3325
        %v3334 = vmul.f32 %v3326, %v3326
        %3335 = vadd.xlane.f32.xlu0 %v3333
        %v3336 = vpop.xlane.xlu0 %3335
        %3337 = vadd.xlane.f32.xlu0 %v3334
        %v3338 = vpop.xlane.xlu0 %3337
        %v3339 = vmul.f32 %v3336, 0.03125
        %v3340 = vmul.f32 %v3338, 0.03125
        %v3341 = vmul.f32 %v3331, %v3331
        %v3342 = vmul.f32 %v3332, %v3332
        %v3343 = vsub.f32 %v3339, %v3341
        %v3344 = vsub.f32 %v3340, %v3342
        %v3345 = vsub.f32 %v3325, %v3331
        %v3346 = vsub.f32 %v3326, %v3332
        %v3347 = vmax.f32 %v3343, 0.0
        %v3348 = vmax.f32 %v3344, 0.0
        %v3349 = vadd.f32 %v3347, 1e-05
        %v3350 = vadd.f32 %v3348, 1e-05
        %v3351 = vrsqrt.pop %v3349
        %v3352 = vrsqrt.pop %v3350
        %v3353 = vmul.f32 %v3345, %v3351
        %v3354 = vmul.f32 %v3346, %v3352
        %v3356 = vlaneseq
        %v3357 = vshrl.u32 %v3356, 7
        %v3358 = vsub.s32 0, %v3357
        %v3359 = vrot.slane %v3323, %v3358
        %v3361 = vmul.f32 %v3353, %v3359
        %v3362 = vmul.f32 %v3354, %v3359
        %v3364 = vlaneseq
        %v3365 = vshrl.u32 %v3364, 7
        %v3366 = vsub.s32 0, %v3365
        %v3367 = vrot.slane %v3324, %v3366
        %v3369 = vadd.f32 %v3361, %v3367
        %v3370 = vadd.f32 %v3362, %v3367
        %v3371 = vld [vmem:[%s18] sm:$0xf]
        %v3372 = vld [vmem:[%s18 + $0x4] sm:$0xf]
        %v3373 = vld [vmem:[%s18 + $0x8] sm:$0xf]
        %v3374 = vld [vmem:[%s18 + $0xc] sm:$0xf]
        %v3375 = vld [vmem:[%s18 + $0x10] sm:$0xf]
        %v3376 = vld [vmem:[%s18 + $0x14] sm:$0xf]
        %v3377 = vld [vmem:[%s18 + $0x18] sm:$0xf]
        %v3378 = vld [vmem:[%s18 + $0x1c] sm:$0xf]
        %v3379 = vld [vmem:[%s18 + $0x20] sm:$0xf]
        %v3380 = vld [vmem:[%s18 + $0x24] sm:$0xf]
        %v3381 = vld [vmem:[%s18 + $0x28] sm:$0xf]
        %v3382 = vld [vmem:[%s18 + $0x2c] sm:$0xf]
        %v3383 = vld [vmem:[%s18 + $0x30] sm:$0xf]
        %v3384 = vld [vmem:[%s18 + $0x34] sm:$0xf]
        %v3385 = vld [vmem:[%s18 + $0x38] sm:$0xf]
        %v3386 = vld [vmem:[%s18 + $0x3c] sm:$0xf]
        %v3387 = vpack.c.bf16 %v3370, %v3369
        %v3388 = vld [vmem:[%s19] sm:$0x1]
        %v3390 = vlaneseq
        %v3391 = vshrl.u32 %v3390, 7
        %v3392 = vsub.s32 0, %v3391
        %v3393 = vrot.slane %v3388, %v3392
        %v3411 = vunpack.c.l.b16 %v3371
        %v3412 = vunpack.c.l.b16 %v3372
        %v3413 = vunpack.c.l.b16 %v3373
        %v3414 = vunpack.c.l.b16 %v3374
        %v3415 = vunpack.c.l.b16 %v3375
        %v3416 = vunpack.c.l.b16 %v3376
        %v3417 = vunpack.c.l.b16 %v3377
        %v3418 = vunpack.c.l.b16 %v3378
        %v3419 = vunpack.c.l.b16 %v3379
        %v3420 = vunpack.c.l.b16 %v3380
        %v3421 = vunpack.c.l.b16 %v3381
        %v3422 = vunpack.c.l.b16 %v3382
        %v3423 = vunpack.c.l.b16 %v3383
        %v3424 = vunpack.c.l.b16 %v3384
        %v3425 = vunpack.c.l.b16 %v3385
        %v3426 = vunpack.c.l.b16 %v3386
        %v3427 = vpack.c.b16 %v3412, %v3411
        %v3428 = vpack.c.b16 %v3414, %v3413
        %v3429 = vpack.c.b16 %v3416, %v3415
        %v3430 = vpack.c.b16 %v3418, %v3417
        %v3431 = vpack.c.b16 %v3420, %v3419
        %v3432 = vpack.c.b16 %v3422, %v3421
        %v3433 = vpack.c.b16 %v3424, %v3423
        %v3434 = vpack.c.b16 %v3426, %v3425
        %3443 = vmatprep.subr.bf16.mxu0 0
        %3444 = vmatpush1.bf16.msra.mxu0 %v3427
        %3445 = vmatprep.subr.bf16.mxu0 0
        %3446 = vmatpush1.bf16.msra.mxu0 %v3428
        %3447 = vmatprep.subr.bf16.mxu0 0
        %3448 = vmatpush1.bf16.msra.mxu0 %v3429
        %3449 = vmatprep.subr.bf16.mxu0 0
        %3450 = vmatpush1.bf16.msra.mxu0 %v3430
        %3451 = vmatprep.subr.bf16.mxu0 0
        %3452 = vmatpush1.bf16.msra.mxu0 %v3431
        %3453 = vmatprep.subr.bf16.mxu0 0
        %3454 = vmatpush1.bf16.msra.mxu0 %v3432
        %3455 = vmatprep.subr.bf16.mxu0 0
        %3456 = vmatpush1.bf16.msra.mxu0 %v3433
        %3457 = vmatprep.subr.bf16.mxu0 0
        %3458 = vmatpush1.bf16.msra.mxu0 %v3434
        %3459 = vmatprep.subr.bf16.mxu0 0
        %3460 = vmatpush1.bf16.msra.mxu0 0
        %3461 = vmatprep.subr.bf16.mxu0 0
        %3462 = vmatpush1.bf16.msra.mxu0 0
        %3463 = vmatprep.subr.bf16.mxu0 0
        %3464 = vmatpush1.bf16.msra.mxu0 0
        %3465 = vmatprep.subr.bf16.mxu0 0
        %3466 = vmatpush1.bf16.msra.mxu0 0
        %3467 = vmatprep.subr.bf16.mxu0 0
        %3468 = vmatpush1.bf16.msra.mxu0 0
        %3469 = vmatprep.subr.bf16.mxu0 0
        %3470 = vmatpush1.bf16.msra.mxu0 0
        %3471 = vmatprep.subr.bf16.mxu0 0
        %3472 = vmatpush1.bf16.msra.mxu0 0
        %3473 = vmatprep.subr.bf16.mxu0 0
        %3474 = vmatpush1.bf16.msra.mxu0 0
        %3475 = vmatprep.mubr.bf16.mxu0 0
        %3476 = vmatmul.mubr.bf16.gmra.mrb[0].mxu0 %v3387
        %v3477 = vpop.f32.mrb[0].mxu0
        %v3478 = vadd.f32 %v3393, %v3477
        %v3479 = vpop.f32.mrb[0].mxu0
        %v3480 = vpop.f32.mrb[0].mxu0
        %v3481 = vadd.f32 %v3393, %v3480
        %v3482 = vpop.f32.mrb[0].mxu0
        %3483 = vdwg.mxu0
        %v3484 = vmax.f32 %v3478, 0.0
        %v3485 = vmax.f32 %v3481, 0.0
        %v3486 = vld [vmem:[%s20] sm:$0xf]
        %v3487 = vld [vmem:[%s20 + $0x4] sm:$0xf]
        %v3488 = vld [vmem:[%s20 + $0x8] sm:$0xf]
        %v3489 = vld [vmem:[%s20 + $0xc] sm:$0xf]
        %v3490 = vld [vmem:[%s20 + $0x10] sm:$0xf]
        %v3491 = vld [vmem:[%s20 + $0x14] sm:$0xf]
        %v3492 = vld [vmem:[%s20 + $0x18] sm:$0xf]
        %v3493 = vld [vmem:[%s20 + $0x1c] sm:$0xf]
        %v3494 = vld [vmem:[%s20 + $0x20] sm:$0xf]
        %v3495 = vld [vmem:[%s20 + $0x24] sm:$0xf]
        %v3496 = vld [vmem:[%s20 + $0x28] sm:$0xf]
        %v3497 = vld [vmem:[%s20 + $0x2c] sm:$0xf]
        %v3498 = vld [vmem:[%s20 + $0x30] sm:$0xf]
        %v3499 = vld [vmem:[%s20 + $0x34] sm:$0xf]
        %v3500 = vld [vmem:[%s20 + $0x38] sm:$0xf]
        %v3501 = vld [vmem:[%s20 + $0x3c] sm:$0xf]
        %v3502 = vpack.c.bf16 %v3485, %v3484
        %v3503 = vld [vmem:[%s21] sm:$0x1]
        %v3505 = vlaneseq
        %v3506 = vshrl.u32 %v3505, 7
        %v3507 = vsub.s32 0, %v3506
        %v3508 = vrot.slane %v3503, %v3507
        %v3526 = vunpack.c.l.b16 %v3486
        %v3527 = vunpack.c.l.b16 %v3487
        %v3528 = vunpack.c.l.b16 %v3488
        %v3529 = vunpack.c.l.b16 %v3489
        %v3530 = vunpack.c.l.b16 %v3490
        %v3531 = vunpack.c.l.b16 %v3491
        %v3532 = vunpack.c.l.b16 %v3492
        %v3533 = vunpack.c.l.b16 %v3493
        %v3534 = vunpack.c.l.b16 %v3494
        %v3535 = vunpack.c.l.b16 %v3495
        %v3536 = vunpack.c.l.b16 %v3496
        %v3537 = vunpack.c.l.b16 %v3497
        %v3538 = vunpack.c.l.b16 %v3498
        %v3539 = vunpack.c.l.b16 %v3499
        %v3540 = vunpack.c.l.b16 %v3500
        %v3541 = vunpack.c.l.b16 %v3501
        %v3542 = vpack.c.b16 %v3527, %v3526
        %v3543 = vpack.c.b16 %v3529, %v3528
        %v3544 = vpack.c.b16 %v3531, %v3530
        %v3545 = vpack.c.b16 %v3533, %v3532
        %v3546 = vpack.c.b16 %v3535, %v3534
        %v3547 = vpack.c.b16 %v3537, %v3536
        %v3548 = vpack.c.b16 %v3539, %v3538
        %v3549 = vpack.c.b16 %v3541, %v3540
        %3558 = vmatprep.subr.bf16.mxu0 0
        %3559 = vmatpush1.bf16.msra.mxu0 %v3542
        %3560 = vmatprep.subr.bf16.mxu0 0
        %3561 = vmatpush1.bf16.msra.mxu0 %v3543
        %3562 = vmatprep.subr.bf16.mxu0 0
        %3563 = vmatpush1.bf16.msra.mxu0 %v3544
        %3564 = vmatprep.subr.bf16.mxu0 0
        %3565 = vmatpush1.bf16.msra.mxu0 %v3545
        %3566 = vmatprep.subr.bf16.mxu0 0
        %3567 = vmatpush1.bf16.msra.mxu0 %v3546
        %3568 = vmatprep.subr.bf16.mxu0 0
        %3569 = vmatpush1.bf16.msra.mxu0 %v3547
        %3570 = vmatprep.subr.bf16.mxu0 0
        %3571 = vmatpush1.bf16.msra.mxu0 %v3548
        %3572 = vmatprep.subr.bf16.mxu0 0
        %3573 = vmatpush1.bf16.msra.mxu0 %v3549
        %3574 = vmatprep.subr.bf16.mxu0 0
        %3575 = vmatpush1.bf16.msra.mxu0 0
        %3576 = vmatprep.subr.bf16.mxu0 0
        %3577 = vmatpush1.bf16.msra.mxu0 0
        %3578 = vmatprep.subr.bf16.mxu0 0
        %3579 = vmatpush1.bf16.msra.mxu0 0
        %3580 = vmatprep.subr.bf16.mxu0 0
        %3581 = vmatpush1.bf16.msra.mxu0 0
        %3582 = vmatprep.subr.bf16.mxu0 0
        %3583 = vmatpush1.bf16.msra.mxu0 0
        %3584 = vmatprep.subr.bf16.mxu0 0
        %3585 = vmatpush1.bf16.msra.mxu0 0
        %3586 = vmatprep.subr.bf16.mxu0 0
        %3587 = vmatpush1.bf16.msra.mxu0 0
        %3588 = vmatprep.subr.bf16.mxu0 0
        %3589 = vmatpush1.bf16.msra.mxu0 0
        %3590 = vmatprep.mubr.bf16.mxu0 0
        %3591 = vmatmul.mubr.bf16.gmra.mrb[0].mxu0 %v3502
        %v3592 = vpop.f32.mrb[0].mxu0
        %v3593 = vadd.f32 %v3508, %v3592
        %v3594 = vpop.f32.mrb[0].mxu0
        %v3595 = vpop.f32.mrb[0].mxu0
        %v3596 = vadd.f32 %v3508, %v3595
        %v3597 = vpop.f32.mrb[0].mxu0
        %3598 = vdwg.mxu0
        %v3599 = vld [vmem:[%s22] sm:$0x1]
        %v3600 = vld [vmem:[%s23] sm:$0x1]
        %v3601 = vadd.f32 %v3593, %v3369
        %v3602 = vadd.f32 %v3596, %v3370
        %3603 = vadd.xlane.f32.xlu0 %v3601
        %v3604 = vpop.xlane.xlu0 %3603
        %3605 = vadd.xlane.f32.xlu0 %v3602
        %v3606 = vpop.xlane.xlu0 %3605
        %v3607 = vmul.f32 %v3604, 0.03125
        %v3608 = vmul.f32 %v3606, 0.03125
        %v3609 = vmul.f32 %v3601, %v3601
        %v3610 = vmul.f32 %v3602, %v3602
        %3611 = vadd.xlane.f32.xlu0 %v3609
        %v3612 = vpop.xlane.xlu0 %3611
        %3613 = vadd.xlane.f32.xlu0 %v3610
        %v3614 = vpop.xlane.xlu0 %3613
        %v3615 = vmul.f32 %v3612, 0.03125
        %v3616 = vmul.f32 %v3614, 0.03125
        %v3617 = vmul.f32 %v3607, %v3607
        %v3618 = vmul.f32 %v3608, %v3608
        %v3619 = vsub.f32 %v3615, %v3617
        %v3620 = vsub.f32 %v3616, %v3618
        %v3621 = vsub.f32 %v3601, %v3607
        %v3622 = vsub.f32 %v3602, %v3608
        %v3623 = vmax.f32 %v3619, 0.0
        %v3624 = vmax.f32 %v3620, 0.0
        %v3625 = vadd.f32 %v3623, 1e-05
        %v3626 = vadd.f32 %v3624, 1e-05
        %v3627 = vrsqrt.pop %v3625
        %v3628 = vrsqrt.pop %v3626
        %v3629 = vmul.f32 %v3621, %v3627
        %v3630 = vmul.f32 %v3622, %v3628
        %v3632 = vlaneseq
        %v3633 = vshrl.u32 %v3632, 7
        %v3634 = vsub.s32 0, %v3633
        %v3635 = vrot.slane %v3599, %v3634
        %v3637 = vmul.f32 %v3629, %v3635
        %v3638 = vmul.f32 %v3630, %v3635
        %v3640 = vlaneseq
        %v3641 = vshrl.u32 %v3640, 7
        %v3642 = vsub.s32 0, %v3641
        %v3643 = vrot.slane %v3600, %v3642
        %v3645 = vadd.f32 %v3637, %v3643
        %v3646 = vadd.f32 %v3638, %v3643
        %3647 = vst [vmem:[#allocation2] sm:$0xff] %v3645
        %3648 = vst [vmem:[#allocation2 + $0x8] sm:$0xff] %v3646
        %p3649 = scmp.eq.s32.totalorder %s42, 1
        // Predicated region
        $region125: #{transformer_forward.3} parent=119 // pred_check
          %p3650 = pneg %p3649
        $region126: #{transformer_forward.3} parent=119 // pred_check_branch
          %3652 = sbr.rel (%p3650) target = $region128
        $region127: #{transformer_forward.3} parent=119 // pred_region
          %v3653 = vld [vmem:[%s24] sm:$0xf]
          %v3654 = vld [vmem:[%s24 + $0x4] sm:$0xf]
          %v3655 = vld [vmem:[%s24 + $0x8] sm:$0xf]
          %v3656 = vld [vmem:[%s24 + $0xc] sm:$0xf]
          %v3657 = vld [vmem:[%s24 + $0x10] sm:$0xf]
          %v3658 = vld [vmem:[%s24 + $0x14] sm:$0xf]
          %v3659 = vld [vmem:[%s24 + $0x18] sm:$0xf]
          %v3660 = vld [vmem:[%s24 + $0x1c] sm:$0xf]
          %v3661 = vld [vmem:[%s24 + $0x20] sm:$0xf]
          %v3662 = vld [vmem:[%s24 + $0x24] sm:$0xf]
          %v3663 = vld [vmem:[%s24 + $0x28] sm:$0xf]
          %v3664 = vld [vmem:[%s24 + $0x2c] sm:$0xf]
          %v3665 = vld [vmem:[%s24 + $0x30] sm:$0xf]
          %v3666 = vld [vmem:[%s24 + $0x34] sm:$0xf]
          %v3667 = vld [vmem:[%s24 + $0x38] sm:$0xf]
          %v3668 = vld [vmem:[%s24 + $0x3c] sm:$0xf]
          %v3669 = vpack.c.bf16 %v3646, %v3645
          %v3686 = vunpack.c.l.b16 %v3653
          %v3687 = vunpack.c.l.b16 %v3654
          %v3688 = vunpack.c.l.b16 %v3655
          %v3689 = vunpack.c.l.b16 %v3656
          %v3690 = vunpack.c.l.b16 %v3657
          %v3691 = vunpack.c.l.b16 %v3658
          %v3692 = vunpack.c.l.b16 %v3659
          %v3693 = vunpack.c.l.b16 %v3660
          %v3694 = vunpack.c.l.b16 %v3661
          %v3695 = vunpack.c.l.b16 %v3662
          %v3696 = vunpack.c.l.b16 %v3663
          %v3697 = vunpack.c.l.b16 %v3664
          %v3698 = vunpack.c.l.b16 %v3665
          %v3699 = vunpack.c.l.b16 %v3666
          %v3700 = vunpack.c.l.b16 %v3667
          %v3701 = vunpack.c.l.b16 %v3668
          %v3702 = vpack.c.b16 %v3687, %v3686
          %v3703 = vpack.c.b16 %v3689, %v3688
          %v3704 = vpack.c.b16 %v3691, %v3690
          %v3705 = vpack.c.b16 %v3693, %v3692
          %v3706 = vpack.c.b16 %v3695, %v3694
          %v3707 = vpack.c.b16 %v3697, %v3696
          %v3708 = vpack.c.b16 %v3699, %v3698
          %v3709 = vpack.c.b16 %v3701, %v3700
          %3718 = vmatprep.subr.bf16.mxu0 0
          %3719 = vmatpush1.bf16.msra.mxu0 %v3702
          %3720 = vmatprep.subr.bf16.mxu0 0
          %3721 = vmatpush1.bf16.msra.mxu0 %v3703
          %3722 = vmatprep.subr.bf16.mxu0 0
          %3723 = vmatpush1.bf16.msra.mxu0 %v3704
          %3724 = vmatprep.subr.bf16.mxu0 0
          %3725 = vmatpush1.bf16.msra.mxu0 %v3705
          %3726 = vmatprep.subr.bf16.mxu0 0
          %3727 = vmatpush1.bf16.msra.mxu0 %v3706
          %3728 = vmatprep.subr.bf16.mxu0 0
          %3729 = vmatpush1.bf16.msra.mxu0 %v3707
          %3730 = vmatprep.subr.bf16.mxu0 0
          %3731 = vmatpush1.bf16.msra.mxu0 %v3708
          %3732 = vmatprep.subr.bf16.mxu0 0
          %3733 = vmatpush1.bf16.msra.mxu0 %v3709
          %3734 = vmatprep.subr.bf16.mxu0 0
          %3735 = vmatpush1.bf16.msra.mxu0 0
          %3736 = vmatprep.subr.bf16.mxu0 0
          %3737 = vmatpush1.bf16.msra.mxu0 0
          %3738 = vmatprep.subr.bf16.mxu0 0
          %3739 = vmatpush1.bf16.msra.mxu0 0
          %3740 = vmatprep.subr.bf16.mxu0 0
          %3741 = vmatpush1.bf16.msra.mxu0 0
          %3742 = vmatprep.subr.bf16.mxu0 0
          %3743 = vmatpush1.bf16.msra.mxu0 0
          %3744 = vmatprep.subr.bf16.mxu0 0
          %3745 = vmatpush1.bf16.msra.mxu0 0
          %3746 = vmatprep.subr.bf16.mxu0 0
          %3747 = vmatpush1.bf16.msra.mxu0 0
          %3748 = vmatprep.subr.bf16.mxu0 0
          %3749 = vmatpush1.bf16.msra.mxu0 0
          %3750 = vmatprep.mubr.bf16.mxu0 0
          %3751 = vmatmul.mubr.bf16.gmra.mrb[0].mxu0 %v3669
          %v3752 = vpop.f32.mrb[0].mxu0
          %v3753 = vadd.f32 0.0, %v3752
          %v3754 = vpop.f32.mrb[0].mxu0
          %v3755 = vpop.f32.mrb[0].mxu0
          %v3756 = vadd.f32 0.0, %v3755
          %v3757 = vpop.f32.mrb[0].mxu0
          %3758 = vdwg.mxu0
          %3759 = vst [vmem:[#allocation4] sm:$0xff] %v3753
          %3760 = vst [vmem:[#allocation4 + $0x8] sm:$0xff] %v3756
        $region128: #{transformer_forward.3} parent=119 // pred_fallthru
          _
        // Predicated region
        $region129: #{transformer_forward.3} parent=119 // pred_check
          %p3761 = pneg %p612
        $region130: #{transformer_forward.3} parent=119 // pred_check_branch
          %3763 = sbr.rel (%p3761) target = $region132
        $region131: #{transformer_forward.3} parent=119 // pred_region
          %s3764 = smul.u32 2, %s41
          %s3766 = ssub.s32 256, 256
          %3767 = vsyncadd [#allocation5], %s3766
          %s3768 = smul.addr %s3764, 128
          %s3769 = scalar_lea.hbm %s25, %s3768
          %s3770 = sshll.u32 [#allocation4], 4
          %s3771 = int_to_ptr.vmem [resolvable:$true] %s3770
          %3776 = dma.vmem_to_hbm [thread:$0]  %s3771, 256, %s3769, [#allocation5], 128, 128, 8
        $region132: #{transformer_forward.3} parent=119 // pred_fallthru
          _
        // Predicated region
        $region133: #{transformer_forward.3} parent=119 // pred_check
          %p3777 = pneg %p612
        $region134: #{transformer_forward.3} parent=119 // pred_check_branch
          %3779 = sbr.rel (%p3777) target = $region136
        $region135: #{transformer_forward.3} parent=119 // pred_region
          %3780 = dma.done [#allocation5], 256
        $region136: #{transformer_forward.3} parent=119 // pred_fallthru
          _
      $region120: #{transformer_forward.3} parent=5 // pred_fallthru
        _
      %p3781 = scmp.le.s32.totalorder 2, %s32
      // Predicated region
      $region137: #{transformer_forward.3} parent=5 // pred_check
        %p3782 = pneg %p3781
      $region138: #{transformer_forward.3} parent=5 // pred_check_branch
        %3784 = sbr.rel (%p3782) target = $region140
      $region139: #{transformer_forward.3} parent=5 // pred_region
        %s3785 = ssub.s32 %s32, 2
      $region140: #{transformer_forward.3} parent=5 // pred_fallthru
        _
    $region6: #{transformer_forward.3} parent=1 // loop_footer
      %s36 = sadd.s32 1, %s32
    $region7: #{transformer_forward.3} parent=1 // loop_footer_branch
      %31 = sbr.rel target = $region3
    $region8: #{transformer_forward.3} parent=1 // loop_exit
      _
    %3786 = vsyncpa [#allocation5], 1
    %s3787 = scalar_lea.sflag [#allocation5], 1
    %3788 = vsyncpa %s3787, 1

</llo_original>
